<compile_context>
chip_gen: v5e
topology: v5e:2x2
jax: 0.10.0
libtpu: 0.0.40
codegen_flags: <defaults>
</compile_context>

<pallas_src>
import functools

import jax
import jax.numpy as jnp
from jax.experimental import pallas as pl
from jax.experimental.pallas import tpu as pltpu

_MiB = 1024 * 1024


def _vmem_ceiling_bytes():
    """Usable scoped-VMEM ceiling: physical capacity minus headroom, capped at 100 MiB."""
    cap = 64 * _MiB  # conservative default: assume v7x (smallest per-TC VMEM)
    try:
        cap = int(pltpu.get_tpu_info().vmem_capacity_bytes)
    except Exception:
        pass
    return max(32 * _MiB, min(100 * _MiB, cap - 12 * _MiB))


def _ffn_kernel_resident(x_ref, w1_ref, b1_ref, w2_ref, b2_ref, o_ref, *, compute_dtype):
    # Weights fully resident in VMEM (single-buffered); no accumulator scratch needed.
    x = x_ref[...].astype(compute_dtype)
    h = jnp.dot(x, w1_ref[...], preferred_element_type=jnp.float32)
    h = jnp.maximum(h + b1_ref[...], 0.0)
    y = jnp.dot(h.astype(compute_dtype), w2_ref[...], preferred_element_type=jnp.float32)
    # Dropout(p=0.2) is identity in eval mode.
    o_ref[...] = (y + b2_ref[...]).astype(o_ref.dtype)


def _ffn_kernel_streamed(x_ref, w1_ref, b1_ref, w2_ref, b2_ref, o_ref, acc_ref, *,
                         th, num_h, compute_dtype):
    # x_ref: (tm, C)      w1_ref: (C, th) slab     b1_ref: (1, H) full, resident
    # w2_ref: (th, C)     b2_ref: (1, C) resident  acc_ref: (tm, C) f32 scratch
    i = pl.program_id(0)
    k = pl.program_id(1)
    # Effective hidden-slab index; must mirror the serpentine index_map of W1/W2.
    k_eff = k + (i % 2) * (num_h - 1 - 2 * k)

    x = x_ref[...].astype(compute_dtype)
    h = jnp.dot(x, w1_ref[...], preferred_element_type=jnp.float32)
    off = pl.multiple_of(k_eff * th, 128)
    h = jnp.maximum(h + b1_ref[:, pl.ds(off, th)], 0.0)
    partial = jnp.dot(h.astype(compute_dtype), w2_ref[...],
                      preferred_element_type=jnp.float32)

    @pl.when(k == 0)
    def _init():
        acc_ref[...] = partial          # direct write -- no zero-fill pass

    @pl.when(k > 0)
    def _accum():
        acc_ref[...] += partial

    @pl.when(k == num_h - 1)
    def _finalize():
        # Dropout(p=0.2) is identity in eval mode.
        o_ref[...] = (acc_ref[...] + b2_ref[...]).astype(o_ref.dtype)


@functools.partial(jax.jit, static_argnames=("tm", "th", "compute_dtype"))
def feed_forward(x, w1, b1, w2, b2, *, tm=None, th=None, compute_dtype=jnp.bfloat16):
    """x: (B, T, C). w1: (C, 4C), b1: (4C,), w2: (4C, C), b2: (C,). Returns (B, T, C)."""
    B, T, C = x.shape
    H = w1.shape[1]
    assert w1.shape == (C, H) and w2.shape == (H, C)
    assert C % 128 == 0, "n_embd must be a multiple of 128 for lane-dense output stores"
    assert H % 128 == 0

    cbytes = jnp.dtype(compute_dtype).itemsize
    xbytes = x.dtype.itemsize
    vmem_ceiling = _vmem_ceiling_bytes()

    # Keep both weight matrices fully resident (single-buffered) whenever they fit in
    # ~half the usable VMEM; otherwise stream 512-wide hidden slabs.
    if th is None:
        resident_weight_bytes = 2 * C * H * cbytes
        th = H if resident_weight_bytes <= vmem_ceiling // 2 else 512
    assert H % th == 0 and th % 128 == 0
    num_h = H // th

    M = B * T
    # Row tile: large enough to sit on the MXU roofline when streaming weight slabs,
    # shrunk so there are >= 2 row tiles (megacore / 2-TC sharding) for small batches.
    if tm is None:
        tm = 256 if num_h == 1 else 512
        while tm > 128 and pl.cdiv(M, tm) < 2:
            tm //= 2
    assert tm % 8 == 0, "row tile must be a multiple of 8 (sublane)"
    Mp = pl.cdiv(M, tm) * tm
    num_m = Mp // tm

    # No wrapper-side dtype cast of x (saves a full HBM read+write pass over activations);
    # the kernel casts each tile to compute_dtype in-register. Padded rows are discarded.
    x2 = x.reshape(M, C)
    if Mp != M:
        x2 = jnp.pad(x2, ((0, Mp - M), (0, 0)))

    # Weights should be pre-cast to compute_dtype once, outside the jitted call; fall back
    # to an in-jit cast only if they weren't.
    w1c = w1 if w1.dtype == compute_dtype else w1.astype(compute_dtype)
    w2c = w2 if w2.dtype == compute_dtype else w2.astype(compute_dtype)
    b1_2 = b1.reshape(1, H).astype(jnp.float32)
    b2_2 = b2.reshape(1, C).astype(jnp.float32)

    if num_h == 1:
        kernel = functools.partial(_ffn_kernel_resident, compute_dtype=compute_dtype)
        grid = (num_m,)
        resident = lambda shape: pl.BlockSpec(shape, lambda i: (0, 0),
                                              pipeline_mode=pl.Buffered(1))
        in_specs = [
            pl.BlockSpec((tm, C), lambda i: (i, 0)),   # x row tile
            resident((C, H)),                          # W1 (resident, single-buffered)
            resident((1, H)),                          # b1
            resident((H, C)),                          # W2
            resident((1, C)),                          # b2
        ]
        out_specs = pl.BlockSpec((tm, C), lambda i: (i, 0))
        scratch_shapes = []
        dim_sem = ("parallel",)
        weight_slab_reads = 1
    else:
        kernel = functools.partial(_ffn_kernel_streamed, th=th, num_h=num_h,
                                   compute_dtype=compute_dtype)
        grid = (num_m, num_h)

        def slab(i, k):
            # Serpentine order: slab at a row-tile boundary is reused, saving one
            # W1+W2 reload per row tile.
            return k + (i % 2) * (num_h - 1 - 2 * k)

        resident = lambda shape: pl.BlockSpec(shape, lambda i, k: (0, 0),
                                              pipeline_mode=pl.Buffered(1))
        in_specs = [
            pl.BlockSpec((tm, C), lambda i, k: (i, 0)),        # x row tile
            pl.BlockSpec((C, th), lambda i, k: (0, slab(i, k))),  # W1 slab (serpentine)
            resident((1, H)),                                   # full b1, sliced in-kernel
            pl.BlockSpec((th, C), lambda i, k: (slab(i, k), 0)),  # W2 slab (serpentine)
            resident((1, C)),                                   # b2
        ]
        out_specs = pl.BlockSpec((tm, C), lambda i, k: (i, 0))
        scratch_shapes = [pltpu.VMEM((tm, C), jnp.float32)]
        dim_sem = ("parallel", "arbitrary")
        weight_slab_reads = num_h + (num_m - 1) * (num_h - 1)   # serpentine reuse

    # VMEM estimate (x/out tiles double-buffered, slabs double-buffered when streamed,
    # biases single-buffered, f32 accumulator + hidden activation), clamped to the
    # generation-aware ceiling so we never request more than physical VMEM allows.
    est = (2 * tm * C * xbytes                                   # x tiles
           + 2 * tm * C * xbytes                                 # out tiles
           + (1 if num_h == 1 else 2) * 2 * C * th * cbytes      # W1 + W2 (slabs)
           + (H + C) * 4                                         # biases (f32)
           + (0 if num_h == 1 else tm * C * 4)                   # f32 accumulator scratch
           + tm * th * 4)                                        # hidden activation
    vmem_limit = int(min(vmem_ceiling, max(32 * _MiB, 2 * est)))

    flops = 4 * Mp * C * H                                       # two matmuls (fwd)
    bytes_accessed = (2 * Mp * C * xbytes                        # x read + out write
                      + 2 * C * th * cbytes * weight_slab_reads  # actual streamed traffic
                      + (H + C) * 4)

    out2 = pl.pallas_call(
        kernel,
        out_shape=jax.ShapeDtypeStruct((Mp, C), x.dtype),
        grid_spec=pltpu.PrefetchScalarGridSpec(
            num_scalar_prefetch=0,
            grid=grid,
            in_specs=in_specs,
            out_specs=out_specs,
            scratch_shapes=scratch_shapes),
        compiler_params=pltpu.CompilerParams(
            dimension_semantics=dim_sem,
            vmem_limit_bytes=vmem_limit),
        cost_estimate=pl.CostEstimate(
            flops=flops, transcendentals=0, bytes_accessed=bytes_accessed),
    )(x2, w1c, b1_2, w2c, b2_2)

    return out2[:M].reshape(B, T, C)


def init_params(key, n_embd):
    """Deterministic init mirroring nn.Linear default (uniform +/- 1/sqrt(fan_in))."""
    hidden = 4 * n_embd
    k1, k2, k3, k4 = jax.random.split(key, 4)
    lim1 = 1.0 / jnp.sqrt(n_embd)
    lim2 = 1.0 / jnp.sqrt(hidden)
    w1 = jax.random.uniform(k1, (n_embd, hidden), jnp.float32, -lim1, lim1)
    b1 = jax.random.uniform(k2, (hidden,), jnp.float32, -lim1, lim1)
    w2 = jax.random.uniform(k3, (hidden, n_embd), jnp.float32, -lim2, lim2)
    b2 = jax.random.uniform(k4, (n_embd,), jnp.float32, -lim2, lim2)
    return w1, b1, w2, b2


def reference(x, w1, b1, w2, b2, compute_dtype=jnp.bfloat16):
    """Plain-JAX reference with the same bf16-compute / f32-accumulate precision."""
    B, T, C = x.shape
    x2 = x.reshape(-1, C).astype(compute_dtype)
    h = jnp.dot(x2, w1.astype(compute_dtype),
                preferred_element_type=jnp.float32) + b1.astype(jnp.float32)
    h = jnp.maximum(h, 0.0)
    y = jnp.dot(h.astype(compute_dtype), w2.astype(compute_dtype),
                preferred_element_type=jnp.float32) + b2.astype(jnp.float32)
    return y.astype(x.dtype).reshape(B, T, C)


if __name__ == "__main__":
    # n_embd = 384 as in the reference module; small batch/seq.
    B, T, C = 2, 72, 384
    key = jax.random.PRNGKey(0)
    kx, kp = jax.random.split(key)
    x = jax.random.normal(kx, (B, T, C), jnp.float32)
    w1, b1, w2, b2 = init_params(kp, C)

    # Pre-cast weights to bf16 ONCE outside the jitted call (no per-call HBM cast pass).
    w1c = jax.device_put(w1.astype(jnp.bfloat16))
    w2c = jax.device_put(w2.astype(jnp.bfloat16))

    ref = reference(x, w1, b1, w2, b2)

    # Default config: weights resident & single-buffered, auto row tile (>= 2 row tiles).
    out = jax.block_until_ready(feed_forward(x, w1c, b1, w2c, b2))
    assert out.shape == (B, T, C)
    assert jnp.allclose(out, ref, atol=1e-2, rtol=1e-2)

    # Hidden-dim-streamed config (the very-large-C / v7x path): serpentine (C,512)/(512,C)
    # weight slabs, full-resident b1 sliced in-kernel, f32 VMEM accumulator over 3 slabs.
    out_tiled = jax.block_until_ready(
        feed_forward(x, w1c, b1, w2c, b2, tm=128, th=512))
    assert jnp.allclose(out_tiled, ref, atol=1e-2, rtol=1e-2)

    print("KERNEL_OK")
</pallas_src>

<mosaic_0001>
module attributes {stable_mosaic.version = 11 : i64} {
  func.func @_ffn_kernel_resident(%arg0: i32, %arg1: memref<128x384xf32, #tpu.memory_space<vmem>>, %arg2: memref<384x1536xbf16, #tpu.memory_space<vmem>>, %arg3: memref<1x1536xf32, #tpu.memory_space<vmem>>, %arg4: memref<1536x384xbf16, #tpu.memory_space<vmem>>, %arg5: memref<1x384xf32, #tpu.memory_space<vmem>>, %arg6: memref<128x384xf32, #tpu.memory_space<vmem>>) attributes {dimension_semantics = [#tpu.dimension_semantics<parallel>], iteration_bounds = array<i64: 2>, scalar_prefetch = 0 : i64, scratch_operands = 0 : i64, tpu.core_type = #tpu.core_type<tc>, window_params = [{transform_indices = @transform_0, window_bounds = array<i64: 128, 384>}, {pipeline_mode = #tpu.pipeline_mode<synchronous>, transform_indices = @transform_1, window_bounds = array<i64: 384, 1536>}, {pipeline_mode = #tpu.pipeline_mode<synchronous>, transform_indices = @transform_2, window_bounds = array<i64: 1, 1536>}, {pipeline_mode = #tpu.pipeline_mode<synchronous>, transform_indices = @transform_3, window_bounds = array<i64: 1536, 384>}, {pipeline_mode = #tpu.pipeline_mode<synchronous>, transform_indices = @transform_4, window_bounds = array<i64: 1, 384>}, {transform_indices = @transform_5, window_bounds = array<i64: 128, 384>}]} {
    %c0 = arith.constant 0 : index
    %c0_0 = arith.constant 0 : index
    %0 = vector.load %arg1[%c0, %c0_0] : memref<128x384xf32, #tpu.memory_space<vmem>>, vector<128x384xf32>
    %1 = arith.truncf %0 : vector<128x384xf32> to vector<128x384xbf16>
    %c0_1 = arith.constant 0 : index
    %c0_2 = arith.constant 0 : index
    %2 = vector.load %arg2[%c0_1, %c0_2] : memref<384x1536xbf16, #tpu.memory_space<vmem>>, vector<384x1536xbf16>
    %cst = arith.constant dense<0.000000e+00> : vector<128x1536xf32>
    %3 = tpu.matmul %1, %2, %cst {dimension_numbers = #tpu.dot_dimension_numbers<[1], [0], [0], [1], [0, 0, 1, 1], [], []>} : vector<128x384xbf16>, vector<384x1536xbf16>, vector<128x1536xf32> -> vector<128x1536xf32>
    %c0_3 = arith.constant 0 : index
    %c0_4 = arith.constant 0 : index
    %4 = vector.load %arg3[%c0_3, %c0_4] : memref<1x1536xf32, #tpu.memory_space<vmem>>, vector<1x1536xf32>
    %5 = vector.broadcast %4 : vector<1x1536xf32> to vector<128x1536xf32>
    %6 = arith.addf %3, %5 : vector<128x1536xf32>
    %cst_5 = arith.constant 0.000000e+00 : f32
    %7 = vector.broadcast %cst_5 : f32 to vector<128x1536xf32>
    %8 = arith.maximumf %6, %7 : vector<128x1536xf32>
    %9 = arith.truncf %8 : vector<128x1536xf32> to vector<128x1536xbf16>
    %c0_6 = arith.constant 0 : index
    %c0_7 = arith.constant 0 : index
    %10 = vector.load %arg4[%c0_6, %c0_7] : memref<1536x384xbf16, #tpu.memory_space<vmem>>, vector<1536x384xbf16>
    %cst_8 = arith.constant dense<0.000000e+00> : vector<128x384xf32>
    %11 = tpu.matmul %9, %10, %cst_8 {dimension_numbers = #tpu.dot_dimension_numbers<[1], [0], [0], [1], [0, 0, 1, 1], [], []>} : vector<128x1536xbf16>, vector<1536x384xbf16>, vector<128x384xf32> -> vector<128x384xf32>
    %c0_9 = arith.constant 0 : index
    %c0_10 = arith.constant 0 : index
    %12 = vector.load %arg5[%c0_9, %c0_10] : memref<1x384xf32, #tpu.memory_space<vmem>>, vector<1x384xf32>
    %13 = vector.broadcast %12 : vector<1x384xf32> to vector<128x384xf32>
    %14 = arith.addf %11, %13 : vector<128x384xf32>
    %c0_11 = arith.constant 0 : index
    %c0_12 = arith.constant 0 : index
    %15 = vector.load %arg6[%c0_11, %c0_12] : memref<128x384xf32, #tpu.memory_space<vmem>>, vector<128x384xf32>
    tpu.vector_store %arg6[%c0_11, %c0_12], %14 {strides = array<i32>} : memref<128x384xf32, #tpu.memory_space<vmem>>, vector<128x384xf32>,
    return
  }
  func.func @transform_0(%arg0: i32) -> (i32, i32) {
    %c0_i32 = arith.constant 0 : i32
    %c0_i32_0 = arith.constant 0 : i32
    return %arg0, %c0_i32 : i32, i32
  }
  func.func @transform_1(%arg0: i32) -> (i32, i32) {
    %c0_i32 = arith.constant 0 : i32
    %c0_i32_0 = arith.constant 0 : i32
    %c0_i32_1 = arith.constant 0 : i32
    return %c0_i32, %c0_i32_0 : i32, i32
  }
  func.func @transform_2(%arg0: i32) -> (i32, i32) {
    %c0_i32 = arith.constant 0 : i32
    %c0_i32_0 = arith.constant 0 : i32
    %c0_i32_1 = arith.constant 0 : i32
    return %c0_i32, %c0_i32_0 : i32, i32
  }
  func.func @transform_3(%arg0: i32) -> (i32, i32) {
    %c0_i32 = arith.constant 0 : i32
    %c0_i32_0 = arith.constant 0 : i32
    %c0_i32_1 = arith.constant 0 : i32
    return %c0_i32, %c0_i32_0 : i32, i32
  }
  func.func @transform_4(%arg0: i32) -> (i32, i32) {
    %c0_i32 = arith.constant 0 : i32
    %c0_i32_0 = arith.constant 0 : i32
    %c0_i32_1 = arith.constant 0 : i32
    return %c0_i32, %c0_i32_0 : i32, i32
  }
  func.func @transform_5(%arg0: i32) -> (i32, i32) {
    %c0_i32 = arith.constant 0 : i32
    %c0_i32_0 = arith.constant 0 : i32
    return %arg0, %c0_i32 : i32, i32
  }
}

</mosaic_0001>

<llo_original>
// kernel: feed_forward.1
$region0: #{feed_forward.1}
  #allocation0 [shape = 'u32[]', space=smem, size = 0x4, offset = 0x4, fixed_abs, tag = 'smem constant byte address 0x4 - core index']
  #allocation1 [shape = 'u32[72,128]{1,0:T(1,128)}', space=vmem, size = 0x9000, scoped, tag = 'internal scratch']
  %s0 = inlined_call_operand.vmem [shape: f32[256,384], index: 0, kind: input, shape index: {}]
  %s1 = inlined_call_operand.hbm [shape: bf16[384,1536], index: 1, kind: input, shape index: {}]
  %s2 = inlined_call_operand.vmem [shape: f32[1,1536], index: 2, kind: input, shape index: {}]
  %s3 = inlined_call_operand.hbm [shape: bf16[1536,384], index: 3, kind: input, shape index: {}]
  %s4 = inlined_call_operand.vmem [shape: f32[1,384], index: 4, kind: input, shape index: {}]
  %s5 = inlined_call_operand.vmem [shape: f32[256,384], index: 5, kind: output, shape index: {}]
  %s6 = sld [smem:[#allocation0]]
  $region61: #{feed_forward.1} parent=0
    _
  %s8 = ssub.s32 1, %s6
  %s9 = scalar_select 0, %s8, %s6
  $region1: #{feed_forward.1} parent=0
    #allocation2 [shape = 'u8[1179648]{0}', space=vmem, size = 0x120000, scoped, tag = 'input window, operand 1, single buffered']
    #allocation3 [shape = 's32[2]{0}', space=sflag, size = 0x8, scoped, tag = 'scoped memory for feed_forward.1']
    #allocation4 [shape = 'u8[1179648]{0}', space=vmem, size = 0x120000, scoped, tag = 'input window, operand 3, single buffered']
    #allocation5 [shape = 's32[1]{0}', space=sflag, size = 0x4, scoped, tag = 'scoped memory for feed_forward.1']
    %10 = vsyncpa [#allocation3], 0
    %11 = vsyncpa [#allocation5], 0
    loop: start=0, step=1, limit=4
    $region2: #{feed_forward.1} parent=1 // loop_pre_header
      _
    $region3: #{feed_forward.1} parent=1 // loop_header
      %s13 = sphi 0, %s17
      %p14 = scmp.ge.s32.totalorder %s13, 4
      %s23 = sphi 0, %s25
      %s26 = sphi 0, %s23
      %s27 = sphi 0, %s26
      %s43 = sphi 0, %s27
      %s47 = sphi 0, %s47
      %s49 = sphi 0, %s47
      %s50 = sphi 0, %s49
      %s64 = sphi 0, %s50
      %s68 = sphi 0, %s68
      %s70 = sphi 0, %s68
      %s71 = sphi 0, %s70
      %s85 = sphi 0, %s71
      %s89 = sphi 0, %s89
      %s91 = sphi 0, %s89
      %s92 = sphi 0, %s91
      %s106 = sphi 0, %s92
      %s110 = sphi 0, %s110
      %s112 = sphi 0, %s110
      %s113 = sphi 0, %s112
      %s127 = sphi 0, %s113
      %s133 = sphi 0, %s135
      %s136 = sphi 0, %s133
      %s137 = sphi 0, %s136
      %s153 = sphi 0, %s137
    $region4: #{feed_forward.1} parent=1 // loop_header_branch
      %16 = sbr.rel (%p14) target = $region8
    $region5: #{feed_forward.1} parent=1 // loop_body
      %s18 = ssub.s32 %s13, 1
      %s19 = ssub.s32 %s13, 2
      %s20 = sadd.s32 %s13, 1
      %s21 = ssub.s32 %s13, %s20
      %p22 = scmp.eq.s32.totalorder %s21, 0
      %s24 = sadd.s32 %s23, 1
      %s25 = scalar_select %p22, %s23, %s24
      %p28 = pneg %p22
      %p29 = scmp.eq.s32.totalorder %s13, 1
      %p30 = por %p28, %p29
      %p31 = scmp.ne.s32.totalorder %s23, %s26
      %p32 = scmp.eq.s32.totalorder %s13, 0
      %p33 = por %p31, %p32
      %p34 = scmp.ne.s32.totalorder %s23, %s26
      %p35 = scmp.eq.s32.totalorder %s18, 1
      %p36 = por %p34, %p35
      %p37 = scmp.ne.s32.totalorder %s26, %s27
      %p38 = scmp.eq.s32.totalorder %s18, 0
      %p39 = por %p37, %p38
      %p40 = scmp.ne.s32.totalorder %s26, %s27
      %p41 = scmp.eq.s32.totalorder %s19, 1
      %p42 = por %p40, %p41
      %p44 = scmp.ne.s32.totalorder %s27, %s43
      %p45 = scmp.eq.s32.totalorder %s19, 0
      %p46 = por %p44, %p45
      %s48 = sadd.s32 %s47, 1
      %p51 = scmp.eq.s32.totalorder %s13, 1
      %p52 = scmp.ne.s32.totalorder %s47, %s49
      %p53 = scmp.eq.s32.totalorder %s13, 0
      %p54 = por %p52, %p53
      %p55 = scmp.ne.s32.totalorder %s47, %s49
      %p56 = scmp.eq.s32.totalorder %s18, 1
      %p57 = por %p55, %p56
      %p58 = scmp.ne.s32.totalorder %s49, %s50
      %p59 = scmp.eq.s32.totalorder %s18, 0
      %p60 = por %p58, %p59
      %p61 = scmp.ne.s32.totalorder %s49, %s50
      %p62 = scmp.eq.s32.totalorder %s19, 1
      %p63 = por %p61, %p62
      %p65 = scmp.ne.s32.totalorder %s50, %s64
      %p66 = scmp.eq.s32.totalorder %s19, 0
      %p67 = por %p65, %p66
      %s69 = sadd.s32 %s68, 1
      %p72 = scmp.eq.s32.totalorder %s13, 1
      %p73 = scmp.ne.s32.totalorder %s68, %s70
      %p74 = scmp.eq.s32.totalorder %s13, 0
      %p75 = por %p73, %p74
      %p76 = scmp.ne.s32.totalorder %s68, %s70
      %p77 = scmp.eq.s32.totalorder %s18, 1
      %p78 = por %p76, %p77
      %p79 = scmp.ne.s32.totalorder %s70, %s71
      %p80 = scmp.eq.s32.totalorder %s18, 0
      %p81 = por %p79, %p80
      %p82 = scmp.ne.s32.totalorder %s70, %s71
      %p83 = scmp.eq.s32.totalorder %s19, 1
      %p84 = por %p82, %p83
      %p86 = scmp.ne.s32.totalorder %s71, %s85
      %p87 = scmp.eq.s32.totalorder %s19, 0
      %p88 = por %p86, %p87
      %s90 = sadd.s32 %s89, 1
      %p93 = scmp.eq.s32.totalorder %s13, 1
      %p94 = scmp.ne.s32.totalorder %s89, %s91
      %p95 = scmp.eq.s32.totalorder %s13, 0
      %p96 = por %p94, %p95
      %p97 = scmp.ne.s32.totalorder %s89, %s91
      %p98 = scmp.eq.s32.totalorder %s18, 1
      %p99 = por %p97, %p98
      %p100 = scmp.ne.s32.totalorder %s91, %s92
      %p101 = scmp.eq.s32.totalorder %s18, 0
      %p102 = por %p100, %p101
      %p103 = scmp.ne.s32.totalorder %s91, %s92
      %p104 = scmp.eq.s32.totalorder %s19, 1
      %p105 = por %p103, %p104
      %p107 = scmp.ne.s32.totalorder %s92, %s106
      %p108 = scmp.eq.s32.totalorder %s19, 0
      %p109 = por %p107, %p108
      %s111 = sadd.s32 %s110, 1
      %p114 = scmp.eq.s32.totalorder %s13, 1
      %p115 = scmp.ne.s32.totalorder %s110, %s112
      %p116 = scmp.eq.s32.totalorder %s13, 0
      %p117 = por %p115, %p116
      %p118 = scmp.ne.s32.totalorder %s110, %s112
      %p119 = scmp.eq.s32.totalorder %s18, 1
      %p120 = por %p118, %p119
      %p121 = scmp.ne.s32.totalorder %s112, %s113
      %p122 = scmp.eq.s32.totalorder %s18, 0
      %p123 = por %p121, %p122
      %p124 = scmp.ne.s32.totalorder %s112, %s113
      %p125 = scmp.eq.s32.totalorder %s19, 1
      %p126 = por %p124, %p125
      %p128 = scmp.ne.s32.totalorder %s113, %s127
      %p129 = scmp.eq.s32.totalorder %s19, 0
      %p130 = por %p128, %p129
      %s131 = ssub.s32 %s13, %s20
      %p132 = scmp.eq.s32.totalorder %s131, 0
      %s134 = sadd.s32 %s133, 1
      %s135 = scalar_select %p132, %s133, %s134
      %p138 = pneg %p132
      %p139 = scmp.eq.s32.totalorder %s13, 1
      %p140 = por %p138, %p139
      %p141 = scmp.ne.s32.totalorder %s133, %s136
      %p142 = scmp.eq.s32.totalorder %s13, 0
      %p143 = por %p141, %p142
      %p144 = scmp.ne.s32.totalorder %s133, %s136
      %p145 = scmp.eq.s32.totalorder %s18, 1
      %p146 = por %p144, %p145
      %p147 = scmp.ne.s32.totalorder %s136, %s137
      %p148 = scmp.eq.s32.totalorder %s18, 0
      %p149 = por %p147, %p148
      %p150 = scmp.ne.s32.totalorder %s136, %s137
      %p151 = scmp.eq.s32.totalorder %s19, 1
      %p152 = por %p150, %p151
      %p154 = scmp.ne.s32.totalorder %s137, %s153
      %p155 = scmp.eq.s32.totalorder %s19, 0
      %p156 = por %p154, %p155
      %p157 = scmp.le.s32.totalorder 1, %s13
      %p158 = scmp.lt.s32.totalorder %s13, 3
      %p159 = pnand %p157, %p158
      %p160 = pneg %p159
      // Predicated region
      $region9: #{feed_forward.1} parent=5 // pred_check
        _
      $region10: #{feed_forward.1} parent=5 // pred_check_branch
        %162 = sbr.rel (%p159) target = $region12
      $region11: #{feed_forward.1} parent=5 // pred_region
        %s163 = ssub.s32 %s13, 1
        // Predicated region
        $region13: #{feed_forward.1} parent=11 // pred_check
          %p164 = pneg %p60
        $region14: #{feed_forward.1} parent=11 // pred_check_branch
          %166 = sbr.rel (%p164) target = $region16
        $region15: #{feed_forward.1} parent=11 // pred_region
          %168 = vsyncadd [#allocation3], 0
          %s169 = sshll.u32 %s1, 4
          %s170 = int_to_ptr.hbm [resolvable:$true] %s169
          %s171 = sshll.u32 [#allocation2], 4
          %s172 = int_to_ptr.vmem [resolvable:$true] %s171
          %177 = dma.hbm_to_vmem [thread:$0]  %s170, 36864, %s172, [#allocation3], 768, 768, 48
        $region16: #{feed_forward.1} parent=11 // pred_fallthru
          _
        // Predicated region
        $region17: #{feed_forward.1} parent=11 // pred_check
          %p178 = pneg %p81
        $region18: #{feed_forward.1} parent=11 // pred_check_branch
          %180 = sbr.rel (%p178) target = $region20
        $region19: #{feed_forward.1} parent=11 // pred_region
          _
        $region20: #{feed_forward.1} parent=11 // pred_fallthru
          _
        // Predicated region
        $region21: #{feed_forward.1} parent=11 // pred_check
          %p181 = pneg %p102
        $region22: #{feed_forward.1} parent=11 // pred_check_branch
          %183 = sbr.rel (%p181) target = $region24
        $region23: #{feed_forward.1} parent=11 // pred_region
          %185 = vsyncadd [#allocation5], 0
          %s186 = sshll.u32 %s3, 4
          %s187 = int_to_ptr.hbm [resolvable:$true] %s186
          %s188 = sshll.u32 [#allocation4], 4
          %s189 = int_to_ptr.vmem [resolvable:$true] %s188
          %194 = dma.hbm_to_vmem [thread:$0]  %s187, 36864, %s189, [#allocation5], 192, 192, 12
        $region24: #{feed_forward.1} parent=11 // pred_fallthru
          _
        // Predicated region
        $region25: #{feed_forward.1} parent=11 // pred_check
          %p195 = pneg %p123
        $region26: #{feed_forward.1} parent=11 // pred_check_branch
          %197 = sbr.rel (%p195) target = $region28
        $region27: #{feed_forward.1} parent=11 // pred_region
          _
        $region28: #{feed_forward.1} parent=11 // pred_fallthru
          _
      $region12: #{feed_forward.1} parent=5 // pred_fallthru
        _
      %p198 = scmp.lt.s32.totalorder %s13, 2
      // Predicated region
      $region29: #{feed_forward.1} parent=5 // pred_check
        %p199 = pneg %p198
      $region30: #{feed_forward.1} parent=5 // pred_check_branch
        %201 = sbr.rel (%p199) target = $region32
      $region31: #{feed_forward.1} parent=5 // pred_region
        // Predicated region
        $region33: #{feed_forward.1} parent=31 // pred_check
          %p202 = pneg %p33
        $region34: #{feed_forward.1} parent=31 // pred_check_branch
          %204 = sbr.rel (%p202) target = $region36
        $region35: #{feed_forward.1} parent=31 // pred_region
          %s205 = smul.u32 16, %s13
          %p206 = scmp.lt.s32.totalorder %s205, 31
          %s207 = scalar_select %p206, %s205, 31
          %s208 = smul.addr %s207, 3
          %s209 = smul.addr %s208, 8
          %s210 = scalar_lea.vmem %s0, %s209
          %s211 = smul.u32 16, %s13
        $region36: #{feed_forward.1} parent=31 // pred_fallthru
          _
      $region32: #{feed_forward.1} parent=5 // pred_fallthru
        _
      %p212 = scmp.le.s32.totalorder 1, %s13
      %p213 = scmp.lt.s32.totalorder %s13, 3
      %p214 = pnand %p212, %p213
      %p215 = pneg %p214
      // Predicated region
      $region37: #{feed_forward.1} parent=5 // pred_check
        _
      $region38: #{feed_forward.1} parent=5 // pred_check_branch
        %217 = sbr.rel (%p214) target = $region40
      $region39: #{feed_forward.1} parent=5 // pred_region
        %s218 = ssub.s32 %s13, 1
        // Predicated region
        $region41: #{feed_forward.1} parent=39 // pred_check
          %p219 = pneg %p60
        $region42: #{feed_forward.1} parent=39 // pred_check_branch
          %221 = sbr.rel (%p219) target = $region44
        $region43: #{feed_forward.1} parent=39 // pred_region
          %223 = dma.done [#allocation3], 36864
        $region44: #{feed_forward.1} parent=39 // pred_fallthru
          _
        // Predicated region
        $region45: #{feed_forward.1} parent=39 // pred_check
          %p224 = pneg %p102
        $region46: #{feed_forward.1} parent=39 // pred_check_branch
          %226 = sbr.rel (%p224) target = $region48
        $region47: #{feed_forward.1} parent=39 // pred_region
          %228 = dma.done [#allocation5], 36864
        $region48: #{feed_forward.1} parent=39 // pred_fallthru
          _
        %s229 = smul.u32 16, %s18
        %p230 = scmp.lt.s32.totalorder %s229, 31
        %s231 = scalar_select %p230, %s229, 31
        %s232 = smul.addr %s231, 3
        %s233 = smul.addr %s232, 8
        %s234 = scalar_lea.vmem %s0, %s233
        %p235 = pneg %p39
        %p236 = pneg %p36
        %p237 = pneg %p60
        %p238 = pneg %p57
        %p239 = pneg %p81
        %p240 = pneg %p78
        %p241 = pneg %p102
        %p242 = pneg %p99
        %p243 = pneg %p123
        %p244 = pneg %p120
        %p245 = pneg %p149
        %p246 = pneg %p146
        %s247 = smul.u32 16, %s18
        %p248 = scmp.lt.s32.totalorder %s247, 31
        %s249 = scalar_select %p248, %s247, 31
        %s250 = smul.addr %s249, 3
        %s251 = smul.addr %s250, 8
        %s252 = scalar_lea.vmem %s5, %s251
        %s253 = smul.u32 16, %s18
        %p254 = scmp.lt.s32.totalorder %s253, 31
        %s255 = scalar_select %p254, %s253, 31
        %s256 = smul.addr %s255, 3
        %s257 = smul.addr %s256, 8
        %s258 = scalar_lea.vmem %s0, %s257
        %s259 = smul.u32 16, %s18
        %s260 = smul.u32 16, %s18
        %p261 = scmp.lt.s32.totalorder %s260, 31
        %s262 = scalar_select %p261, %s260, 31
        %s263 = smul.addr %s262, 3
        %s264 = smul.addr %s263, 8
        %s265 = scalar_lea.vmem %s5, %s264
        %s266 = smul.u32 16, %s18
        %v267 = vld [vmem:[%s258] sm:$0xff]
        %v268 = vld [vmem:[%s258 + $0x8] sm:$0xff]
        %v269 = vld [vmem:[%s258 + $0x10] sm:$0xff]
        %v270 = vld [vmem:[%s258 + $0x18] sm:$0xff]
        %v271 = vld [vmem:[%s258 + $0x20] sm:$0xff]
        %v272 = vld [vmem:[%s258 + $0x28] sm:$0xff]
        %v273 = vld [vmem:[%s258 + $0x30] sm:$0xff]
        %v274 = vld [vmem:[%s258 + $0x38] sm:$0xff]
        %v275 = vld [vmem:[%s258 + $0x40] sm:$0xff]
        %v276 = vld [vmem:[%s258 + $0x48] sm:$0xff]
        %v277 = vld [vmem:[%s258 + $0x50] sm:$0xff]
        %v278 = vld [vmem:[%s258 + $0x58] sm:$0xff]
        %v279 = vld [vmem:[%s258 + $0x60] sm:$0xff]
        %v280 = vld [vmem:[%s258 + $0x68] sm:$0xff]
        %v281 = vld [vmem:[%s258 + $0x70] sm:$0xff]
        %v282 = vld [vmem:[%s258 + $0x78] sm:$0xff]
        %v283 = vld [vmem:[%s258 + $0x80] sm:$0xff]
        %v284 = vld [vmem:[%s258 + $0x88] sm:$0xff]
        %v285 = vld [vmem:[%s258 + $0x90] sm:$0xff]
        %v286 = vld [vmem:[%s258 + $0x98] sm:$0xff]
        %v287 = vld [vmem:[%s258 + $0xa0] sm:$0xff]
        %v288 = vld [vmem:[%s258 + $0xa8] sm:$0xff]
        %v289 = vld [vmem:[%s258 + $0xb0] sm:$0xff]
        %v290 = vld [vmem:[%s258 + $0xb8] sm:$0xff]
        %v291 = vld [vmem:[%s258 + $0xc0] sm:$0xff]
        %v292 = vld [vmem:[%s258 + $0xc8] sm:$0xff]
        %v293 = vld [vmem:[%s258 + $0xd0] sm:$0xff]
        %v294 = vld [vmem:[%s258 + $0xd8] sm:$0xff]
        %v295 = vld [vmem:[%s258 + $0xe0] sm:$0xff]
        %v296 = vld [vmem:[%s258 + $0xe8] sm:$0xff]
        %v297 = vld [vmem:[%s258 + $0xf0] sm:$0xff]
        %v298 = vld [vmem:[%s258 + $0xf8] sm:$0xff]
        %v299 = vld [vmem:[%s258 + $0x100] sm:$0xff]
        %v300 = vld [vmem:[%s258 + $0x108] sm:$0xff]
        %v301 = vld [vmem:[%s258 + $0x110] sm:$0xff]
        %v302 = vld [vmem:[%s258 + $0x118] sm:$0xff]
        %v303 = vld [vmem:[%s258 + $0x120] sm:$0xff]
        %v304 = vld [vmem:[%s258 + $0x128] sm:$0xff]
        %v305 = vld [vmem:[%s258 + $0x130] sm:$0xff]
        %v306 = vld [vmem:[%s258 + $0x138] sm:$0xff]
        %v307 = vld [vmem:[%s258 + $0x140] sm:$0xff]
        %v308 = vld [vmem:[%s258 + $0x148] sm:$0xff]
        %v309 = vld [vmem:[%s258 + $0x150] sm:$0xff]
        %v310 = vld [vmem:[%s258 + $0x158] sm:$0xff]
        %v311 = vld [vmem:[%s258 + $0x160] sm:$0xff]
        %v312 = vld [vmem:[%s258 + $0x168] sm:$0xff]
        %v313 = vld [vmem:[%s258 + $0x170] sm:$0xff]
        %v314 = vld [vmem:[%s258 + $0x178] sm:$0xff]
        %v315 = vpack.c.bf16 %v270, %v267
        %v316 = vpack.c.bf16 %v271, %v268
        %v317 = vpack.c.bf16 %v272, %v269
        %v318 = vpack.c.bf16 %v276, %v273
        %v319 = vpack.c.bf16 %v277, %v274
        %v320 = vpack.c.bf16 %v278, %v275
        %v321 = vpack.c.bf16 %v282, %v279
        %v322 = vpack.c.bf16 %v283, %v280
        %v323 = vpack.c.bf16 %v284, %v281
        %v324 = vpack.c.bf16 %v288, %v285
        %v325 = vpack.c.bf16 %v289, %v286
        %v326 = vpack.c.bf16 %v290, %v287
        %v327 = vpack.c.bf16 %v294, %v291
        %v328 = vpack.c.bf16 %v295, %v292
        %v329 = vpack.c.bf16 %v296, %v293
        %v330 = vpack.c.bf16 %v300, %v297
        %v331 = vpack.c.bf16 %v301, %v298
        %v332 = vpack.c.bf16 %v302, %v299
        %v333 = vpack.c.bf16 %v306, %v303
        %v334 = vpack.c.bf16 %v307, %v304
        %v335 = vpack.c.bf16 %v308, %v305
        %v336 = vpack.c.bf16 %v312, %v309
        %v337 = vpack.c.bf16 %v313, %v310
        %v338 = vpack.c.bf16 %v314, %v311
        %v339 = vld [vmem:[#allocation2] sm:$0xff]
        %v340 = vld [vmem:[#allocation2 + $0x8] sm:$0xff]
        %v341 = vld [vmem:[#allocation2 + $0x10] sm:$0xff]
        %v342 = vld [vmem:[#allocation2 + $0x18] sm:$0xff]
        %v343 = vld [vmem:[#allocation2 + $0x20] sm:$0xff]
        %v344 = vld [vmem:[#allocation2 + $0x28] sm:$0xff]
        %v345 = vld [vmem:[#allocation2 + $0x30] sm:$0xff]
        %v346 = vld [vmem:[#allocation2 + $0x38] sm:$0xff]
        %v347 = vld [vmem:[#allocation2 + $0x40] sm:$0xff]
        %v348 = vld [vmem:[#allocation2 + $0x48] sm:$0xff]
        %v349 = vld [vmem:[#allocation2 + $0x50] sm:$0xff]
        %v350 = vld [vmem:[#allocation2 + $0x58] sm:$0xff]
        %v351 = vld [vmem:[#allocation2 + $0x60] sm:$0xff]
        %v352 = vld [vmem:[#allocation2 + $0x68] sm:$0xff]
        %v353 = vld [vmem:[#allocation2 + $0x70] sm:$0xff]
        %v354 = vld [vmem:[#allocation2 + $0x78] sm:$0xff]
        %v355 = vld [vmem:[#allocation2 + $0x80] sm:$0xff]
        %v356 = vld [vmem:[#allocation2 + $0x88] sm:$0xff]
        %v357 = vld [vmem:[#allocation2 + $0x90] sm:$0xff]
        %v358 = vld [vmem:[#allocation2 + $0x98] sm:$0xff]
        %v359 = vld [vmem:[#allocation2 + $0xa0] sm:$0xff]
        %v360 = vld [vmem:[#allocation2 + $0xa8] sm:$0xff]
        %v361 = vld [vmem:[#allocation2 + $0xb0] sm:$0xff]
        %v362 = vld [vmem:[#allocation2 + $0xb8] sm:$0xff]
        %v363 = vld [vmem:[#allocation2 + $0xc0] sm:$0xff]
        %v364 = vld [vmem:[#allocation2 + $0xc8] sm:$0xff]
        %v365 = vld [vmem:[#allocation2 + $0xd0] sm:$0xff]
        %v366 = vld [vmem:[#allocation2 + $0xd8] sm:$0xff]
        %v367 = vld [vmem:[#allocation2 + $0xe0] sm:$0xff]
        %v368 = vld [vmem:[#allocation2 + $0xe8] sm:$0xff]
        %v369 = vld [vmem:[#allocation2 + $0xf0] sm:$0xff]
        %v370 = vld [vmem:[#allocation2 + $0xf8] sm:$0xff]
        %v371 = vld [vmem:[#allocation2 + $0x100] sm:$0xff]
        %v372 = vld [vmem:[#allocation2 + $0x108] sm:$0xff]
        %v373 = vld [vmem:[#allocation2 + $0x110] sm:$0xff]
        %v374 = vld [vmem:[#allocation2 + $0x118] sm:$0xff]
        %v375 = vld [vmem:[#allocation2 + $0x120] sm:$0xff]
        %v376 = vld [vmem:[#allocation2 + $0x128] sm:$0xff]
        %v377 = vld [vmem:[#allocation2 + $0x130] sm:$0xff]
        %v378 = vld [vmem:[#allocation2 + $0x138] sm:$0xff]
        %v379 = vld [vmem:[#allocation2 + $0x140] sm:$0xff]
        %v380 = vld [vmem:[#allocation2 + $0x148] sm:$0xff]
        %v381 = vld [vmem:[#allocation2 + $0x150] sm:$0xff]
        %v382 = vld [vmem:[#allocation2 + $0x158] sm:$0xff]
        %v383 = vld [vmem:[#allocation2 + $0x160] sm:$0xff]
        %v384 = vld [vmem:[#allocation2 + $0x168] sm:$0xff]
        %v385 = vld [vmem:[#allocation2 + $0x170] sm:$0xff]
        %v386 = vld [vmem:[#allocation2 + $0x178] sm:$0xff]
        %v387 = vld [vmem:[#allocation2 + $0x180] sm:$0xff]
        %v388 = vld [vmem:[#allocation2 + $0x188] sm:$0xff]
        %v389 = vld [vmem:[#allocation2 + $0x190] sm:$0xff]
        %v390 = vld [vmem:[#allocation2 + $0x198] sm:$0xff]
        %v391 = vld [vmem:[#allocation2 + $0x1a0] sm:$0xff]
        %v392 = vld [vmem:[#allocation2 + $0x1a8] sm:$0xff]
        %v393 = vld [vmem:[#allocation2 + $0x1b0] sm:$0xff]
        %v394 = vld [vmem:[#allocation2 + $0x1b8] sm:$0xff]
        %v395 = vld [vmem:[#allocation2 + $0x1c0] sm:$0xff]
        %v396 = vld [vmem:[#allocation2 + $0x1c8] sm:$0xff]
        %v397 = vld [vmem:[#allocation2 + $0x1d0] sm:$0xff]
        %v398 = vld [vmem:[#allocation2 + $0x1d8] sm:$0xff]
        %v399 = vld [vmem:[#allocation2 + $0x1e0] sm:$0xff]
        %v400 = vld [vmem:[#allocation2 + $0x1e8] sm:$0xff]
        %v401 = vld [vmem:[#allocation2 + $0x1f0] sm:$0xff]
        %v402 = vld [vmem:[#allocation2 + $0x1f8] sm:$0xff]
        %v403 = vld [vmem:[#allocation2 + $0x200] sm:$0xff]
        %v404 = vld [vmem:[#allocation2 + $0x208] sm:$0xff]
        %v405 = vld [vmem:[#allocation2 + $0x210] sm:$0xff]
        %v406 = vld [vmem:[#allocation2 + $0x218] sm:$0xff]
        %v407 = vld [vmem:[#allocation2 + $0x220] sm:$0xff]
        %v408 = vld [vmem:[#allocation2 + $0x228] sm:$0xff]
        %v409 = vld [vmem:[#allocation2 + $0x230] sm:$0xff]
        %v410 = vld [vmem:[#allocation2 + $0x238] sm:$0xff]
        %v411 = vld [vmem:[#allocation2 + $0x240] sm:$0xff]
        %v412 = vld [vmem:[#allocation2 + $0x248] sm:$0xff]
        %v413 = vld [vmem:[#allocation2 + $0x250] sm:$0xff]
        %v414 = vld [vmem:[#allocation2 + $0x258] sm:$0xff]
        %v415 = vld [vmem:[#allocation2 + $0x260] sm:$0xff]
        %v416 = vld [vmem:[#allocation2 + $0x268] sm:$0xff]
        %v417 = vld [vmem:[#allocation2 + $0x270] sm:$0xff]
        %v418 = vld [vmem:[#allocation2 + $0x278] sm:$0xff]
        %v419 = vld [vmem:[#allocation2 + $0x280] sm:$0xff]
        %v420 = vld [vmem:[#allocation2 + $0x288] sm:$0xff]
        %v421 = vld [vmem:[#allocation2 + $0x290] sm:$0xff]
        %v422 = vld [vmem:[#allocation2 + $0x298] sm:$0xff]
        %v423 = vld [vmem:[#allocation2 + $0x2a0] sm:$0xff]
        %v424 = vld [vmem:[#allocation2 + $0x2a8] sm:$0xff]
        %v425 = vld [vmem:[#allocation2 + $0x2b0] sm:$0xff]
        %v426 = vld [vmem:[#allocation2 + $0x2b8] sm:$0xff]
        %v427 = vld [vmem:[#allocation2 + $0x2c0] sm:$0xff]
        %v428 = vld [vmem:[#allocation2 + $0x2c8] sm:$0xff]
        %v429 = vld [vmem:[#allocation2 + $0x2d0] sm:$0xff]
        %v430 = vld [vmem:[#allocation2 + $0x2d8] sm:$0xff]
        %v431 = vld [vmem:[#allocation2 + $0x2e0] sm:$0xff]
        %v432 = vld [vmem:[#allocation2 + $0x2e8] sm:$0xff]
        %v433 = vld [vmem:[#allocation2 + $0x2f0] sm:$0xff]
        %v434 = vld [vmem:[#allocation2 + $0x2f8] sm:$0xff]
        %v435 = vld [vmem:[#allocation2 + $0x300] sm:$0xff]
        %v436 = vld [vmem:[#allocation2 + $0x308] sm:$0xff]
        %v437 = vld [vmem:[#allocation2 + $0x310] sm:$0xff]
        %v438 = vld [vmem:[#allocation2 + $0x318] sm:$0xff]
        %v439 = vld [vmem:[#allocation2 + $0x320] sm:$0xff]
        %v440 = vld [vmem:[#allocation2 + $0x328] sm:$0xff]
        %v441 = vld [vmem:[#allocation2 + $0x330] sm:$0xff]
        %v442 = vld [vmem:[#allocation2 + $0x338] sm:$0xff]
        %v443 = vld [vmem:[#allocation2 + $0x340] sm:$0xff]
        %v444 = vld [vmem:[#allocation2 + $0x348] sm:$0xff]
        %v445 = vld [vmem:[#allocation2 + $0x350] sm:$0xff]
        %v446 = vld [vmem:[#allocation2 + $0x358] sm:$0xff]
        %v447 = vld [vmem:[#allocation2 + $0x360] sm:$0xff]
        %v448 = vld [vmem:[#allocation2 + $0x368] sm:$0xff]
        %v449 = vld [vmem:[#allocation2 + $0x370] sm:$0xff]
        %v450 = vld [vmem:[#allocation2 + $0x378] sm:$0xff]
        %v451 = vld [vmem:[#allocation2 + $0x380] sm:$0xff]
        %v452 = vld [vmem:[#allocation2 + $0x388] sm:$0xff]
        %v453 = vld [vmem:[#allocation2 + $0x390] sm:$0xff]
        %v454 = vld [vmem:[#allocation2 + $0x398] sm:$0xff]
        %v455 = vld [vmem:[#allocation2 + $0x3a0] sm:$0xff]
        %v456 = vld [vmem:[#allocation2 + $0x3a8] sm:$0xff]
        %v457 = vld [vmem:[#allocation2 + $0x3b0] sm:$0xff]
        %v458 = vld [vmem:[#allocation2 + $0x3b8] sm:$0xff]
        %v459 = vld [vmem:[#allocation2 + $0x3c0] sm:$0xff]
        %v460 = vld [vmem:[#allocation2 + $0x3c8] sm:$0xff]
        %v461 = vld [vmem:[#allocation2 + $0x3d0] sm:$0xff]
        %v462 = vld [vmem:[#allocation2 + $0x3d8] sm:$0xff]
        %v463 = vld [vmem:[#allocation2 + $0x3e0] sm:$0xff]
        %v464 = vld [vmem:[#allocation2 + $0x3e8] sm:$0xff]
        %v465 = vld [vmem:[#allocation2 + $0x3f0] sm:$0xff]
        %v466 = vld [vmem:[#allocation2 + $0x3f8] sm:$0xff]
        %v467 = vld [vmem:[#allocation2 + $0x400] sm:$0xff]
        %v468 = vld [vmem:[#allocation2 + $0x408] sm:$0xff]
        %v469 = vld [vmem:[#allocation2 + $0x410] sm:$0xff]
        %v470 = vld [vmem:[#allocation2 + $0x418] sm:$0xff]
        %v471 = vld [vmem:[#allocation2 + $0x420] sm:$0xff]
        %v472 = vld [vmem:[#allocation2 + $0x428] sm:$0xff]
        %v473 = vld [vmem:[#allocation2 + $0x430] sm:$0xff]
        %v474 = vld [vmem:[#allocation2 + $0x438] sm:$0xff]
        %v475 = vld [vmem:[#allocation2 + $0x440] sm:$0xff]
        %v476 = vld [vmem:[#allocation2 + $0x448] sm:$0xff]
        %v477 = vld [vmem:[#allocation2 + $0x450] sm:$0xff]
        %v478 = vld [vmem:[#allocation2 + $0x458] sm:$0xff]
        %v479 = vld [vmem:[#allocation2 + $0x460] sm:$0xff]
        %v480 = vld [vmem:[#allocation2 + $0x468] sm:$0xff]
        %v481 = vld [vmem:[#allocation2 + $0x470] sm:$0xff]
        %v482 = vld [vmem:[#allocation2 + $0x478] sm:$0xff]
        %v483 = vld [vmem:[#allocation2 + $0x480] sm:$0xff]
        %v484 = vld [vmem:[#allocation2 + $0x488] sm:$0xff]
        %v485 = vld [vmem:[#allocation2 + $0x490] sm:$0xff]
        %v486 = vld [vmem:[#allocation2 + $0x498] sm:$0xff]
        %v487 = vld [vmem:[#allocation2 + $0x4a0] sm:$0xff]
        %v488 = vld [vmem:[#allocation2 + $0x4a8] sm:$0xff]
        %v489 = vld [vmem:[#allocation2 + $0x4b0] sm:$0xff]
        %v490 = vld [vmem:[#allocation2 + $0x4b8] sm:$0xff]
        %v491 = vld [vmem:[#allocation2 + $0x4c0] sm:$0xff]
        %v492 = vld [vmem:[#allocation2 + $0x4c8] sm:$0xff]
        %v493 = vld [vmem:[#allocation2 + $0x4d0] sm:$0xff]
        %v494 = vld [vmem:[#allocation2 + $0x4d8] sm:$0xff]
        %v495 = vld [vmem:[#allocation2 + $0x4e0] sm:$0xff]
        %v496 = vld [vmem:[#allocation2 + $0x4e8] sm:$0xff]
        %v497 = vld [vmem:[#allocation2 + $0x4f0] sm:$0xff]
        %v498 = vld [vmem:[#allocation2 + $0x4f8] sm:$0xff]
        %v499 = vld [vmem:[#allocation2 + $0x500] sm:$0xff]
        %v500 = vld [vmem:[#allocation2 + $0x508] sm:$0xff]
        %v501 = vld [vmem:[#allocation2 + $0x510] sm:$0xff]
        %v502 = vld [vmem:[#allocation2 + $0x518] sm:$0xff]
        %v503 = vld [vmem:[#allocation2 + $0x520] sm:$0xff]
        %v504 = vld [vmem:[#allocation2 + $0x528] sm:$0xff]
        %v505 = vld [vmem:[#allocation2 + $0x530] sm:$0xff]
        %v506 = vld [vmem:[#allocation2 + $0x538] sm:$0xff]
        %v507 = vld [vmem:[#allocation2 + $0x540] sm:$0xff]
        %v508 = vld [vmem:[#allocation2 + $0x548] sm:$0xff]
        %v509 = vld [vmem:[#allocation2 + $0x550] sm:$0xff]
        %v510 = vld [vmem:[#allocation2 + $0x558] sm:$0xff]
        %v511 = vld [vmem:[#allocation2 + $0x560] sm:$0xff]
        %v512 = vld [vmem:[#allocation2 + $0x568] sm:$0xff]
        %v513 = vld [vmem:[#allocation2 + $0x570] sm:$0xff]
        %v514 = vld [vmem:[#allocation2 + $0x578] sm:$0xff]
        %v515 = vld [vmem:[#allocation2 + $0x580] sm:$0xff]
        %v516 = vld [vmem:[#allocation2 + $0x588] sm:$0xff]
        %v517 = vld [vmem:[#allocation2 + $0x590] sm:$0xff]
        %v518 = vld [vmem:[#allocation2 + $0x598] sm:$0xff]
        %v519 = vld [vmem:[#allocation2 + $0x5a0] sm:$0xff]
        %v520 = vld [vmem:[#allocation2 + $0x5a8] sm:$0xff]
        %v521 = vld [vmem:[#allocation2 + $0x5b0] sm:$0xff]
        %v522 = vld [vmem:[#allocation2 + $0x5b8] sm:$0xff]
        %v523 = vld [vmem:[#allocation2 + $0x5c0] sm:$0xff]
        %v524 = vld [vmem:[#allocation2 + $0x5c8] sm:$0xff]
        %v525 = vld [vmem:[#allocation2 + $0x5d0] sm:$0xff]
        %v526 = vld [vmem:[#allocation2 + $0x5d8] sm:$0xff]
        %v527 = vld [vmem:[#allocation2 + $0x5e0] sm:$0xff]
        %v528 = vld [vmem:[#allocation2 + $0x5e8] sm:$0xff]
        %v529 = vld [vmem:[#allocation2 + $0x5f0] sm:$0xff]
        %v530 = vld [vmem:[#allocation2 + $0x5f8] sm:$0xff]
        %v531 = vld [vmem:[#allocation2 + $0x600] sm:$0xff]
        %v532 = vld [vmem:[#allocation2 + $0x608] sm:$0xff]
        %v533 = vld [vmem:[#allocation2 + $0x610] sm:$0xff]
        %v534 = vld [vmem:[#allocation2 + $0x618] sm:$0xff]
        %v535 = vld [vmem:[#allocation2 + $0x620] sm:$0xff]
        %v536 = vld [vmem:[#allocation2 + $0x628] sm:$0xff]
        %v537 = vld [vmem:[#allocation2 + $0x630] sm:$0xff]
        %v538 = vld [vmem:[#allocation2 + $0x638] sm:$0xff]
        %v539 = vld [vmem:[#allocation2 + $0x640] sm:$0xff]
        %v540 = vld [vmem:[#allocation2 + $0x648] sm:$0xff]
        %v541 = vld [vmem:[#allocation2 + $0x650] sm:$0xff]
        %v542 = vld [vmem:[#allocation2 + $0x658] sm:$0xff]
        %v543 = vld [vmem:[#allocation2 + $0x660] sm:$0xff]
        %v544 = vld [vmem:[#allocation2 + $0x668] sm:$0xff]
        %v545 = vld [vmem:[#allocation2 + $0x670] sm:$0xff]
        %v546 = vld [vmem:[#allocation2 + $0x678] sm:$0xff]
        %v547 = vld [vmem:[#allocation2 + $0x680] sm:$0xff]
        %v548 = vld [vmem:[#allocation2 + $0x688] sm:$0xff]
        %v549 = vld [vmem:[#allocation2 + $0x690] sm:$0xff]
        %v550 = vld [vmem:[#allocation2 + $0x698] sm:$0xff]
        %v551 = vld [vmem:[#allocation2 + $0x6a0] sm:$0xff]
        %v552 = vld [vmem:[#allocation2 + $0x6a8] sm:$0xff]
        %v553 = vld [vmem:[#allocation2 + $0x6b0] sm:$0xff]
        %v554 = vld [vmem:[#allocation2 + $0x6b8] sm:$0xff]
        %v555 = vld [vmem:[#allocation2 + $0x6c0] sm:$0xff]
        %v556 = vld [vmem:[#allocation2 + $0x6c8] sm:$0xff]
        %v557 = vld [vmem:[#allocation2 + $0x6d0] sm:$0xff]
        %v558 = vld [vmem:[#allocation2 + $0x6d8] sm:$0xff]
        %v559 = vld [vmem:[#allocation2 + $0x6e0] sm:$0xff]
        %v560 = vld [vmem:[#allocation2 + $0x6e8] sm:$0xff]
        %v561 = vld [vmem:[#allocation2 + $0x6f0] sm:$0xff]
        %v562 = vld [vmem:[#allocation2 + $0x6f8] sm:$0xff]
        %v563 = vld [vmem:[#allocation2 + $0x700] sm:$0xff]
        %v564 = vld [vmem:[#allocation2 + $0x708] sm:$0xff]
        %v565 = vld [vmem:[#allocation2 + $0x710] sm:$0xff]
        %v566 = vld [vmem:[#allocation2 + $0x718] sm:$0xff]
        %v567 = vld [vmem:[#allocation2 + $0x720] sm:$0xff]
        %v568 = vld [vmem:[#allocation2 + $0x728] sm:$0xff]
        %v569 = vld [vmem:[#allocation2 + $0x730] sm:$0xff]
        %v570 = vld [vmem:[#allocation2 + $0x738] sm:$0xff]
        %v571 = vld [vmem:[#allocation2 + $0x740] sm:$0xff]
        %v572 = vld [vmem:[#allocation2 + $0x748] sm:$0xff]
        %v573 = vld [vmem:[#allocation2 + $0x750] sm:$0xff]
        %v574 = vld [vmem:[#allocation2 + $0x758] sm:$0xff]
        %v575 = vld [vmem:[#allocation2 + $0x760] sm:$0xff]
        %v576 = vld [vmem:[#allocation2 + $0x768] sm:$0xff]
        %v577 = vld [vmem:[#allocation2 + $0x770] sm:$0xff]
        %v578 = vld [vmem:[#allocation2 + $0x778] sm:$0xff]
        %v579 = vld [vmem:[#allocation2 + $0x780] sm:$0xff]
        %v580 = vld [vmem:[#allocation2 + $0x788] sm:$0xff]
        %v581 = vld [vmem:[#allocation2 + $0x790] sm:$0xff]
        %v582 = vld [vmem:[#allocation2 + $0x798] sm:$0xff]
        %v583 = vld [vmem:[#allocation2 + $0x7a0] sm:$0xff]
        %v584 = vld [vmem:[#allocation2 + $0x7a8] sm:$0xff]
        %v585 = vld [vmem:[#allocation2 + $0x7b0] sm:$0xff]
        %v586 = vld [vmem:[#allocation2 + $0x7b8] sm:$0xff]
        %v587 = vld [vmem:[#allocation2 + $0x7c0] sm:$0xff]
        %v588 = vld [vmem:[#allocation2 + $0x7c8] sm:$0xff]
        %v589 = vld [vmem:[#allocation2 + $0x7d0] sm:$0xff]
        %v590 = vld [vmem:[#allocation2 + $0x7d8] sm:$0xff]
        %v591 = vld [vmem:[#allocation2 + $0x7e0] sm:$0xff]
        %v592 = vld [vmem:[#allocation2 + $0x7e8] sm:$0xff]
        %v593 = vld [vmem:[#allocation2 + $0x7f0] sm:$0xff]
        %v594 = vld [vmem:[#allocation2 + $0x7f8] sm:$0xff]
        %v595 = vld [vmem:[#allocation2 + $0x800] sm:$0xff]
        %v596 = vld [vmem:[#allocation2 + $0x808] sm:$0xff]
        %v597 = vld [vmem:[#allocation2 + $0x810] sm:$0xff]
        %v598 = vld [vmem:[#allocation2 + $0x818] sm:$0xff]
        %v599 = vld [vmem:[#allocation2 + $0x820] sm:$0xff]
        %v600 = vld [vmem:[#allocation2 + $0x828] sm:$0xff]
        %v601 = vld [vmem:[#allocation2 + $0x830] sm:$0xff]
        %v602 = vld [vmem:[#allocation2 + $0x838] sm:$0xff]
        %v603 = vld [vmem:[#allocation2 + $0x840] sm:$0xff]
        %v604 = vld [vmem:[#allocation2 + $0x848] sm:$0xff]
        %v605 = vld [vmem:[#allocation2 + $0x850] sm:$0xff]
        %v606 = vld [vmem:[#allocation2 + $0x858] sm:$0xff]
        %v607 = vld [vmem:[#allocation2 + $0x860] sm:$0xff]
        %v608 = vld [vmem:[#allocation2 + $0x868] sm:$0xff]
        %v609 = vld [vmem:[#allocation2 + $0x870] sm:$0xff]
        %v610 = vld [vmem:[#allocation2 + $0x878] sm:$0xff]
        %v611 = vld [vmem:[#allocation2 + $0x880] sm:$0xff]
        %v612 = vld [vmem:[#allocation2 + $0x888] sm:$0xff]
        %v613 = vld [vmem:[#allocation2 + $0x890] sm:$0xff]
        %v614 = vld [vmem:[#allocation2 + $0x898] sm:$0xff]
        %v615 = vld [vmem:[#allocation2 + $0x8a0] sm:$0xff]
        %v616 = vld [vmem:[#allocation2 + $0x8a8] sm:$0xff]
        %v617 = vld [vmem:[#allocation2 + $0x8b0] sm:$0xff]
        %v618 = vld [vmem:[#allocation2 + $0x8b8] sm:$0xff]
        %v619 = vld [vmem:[#allocation2 + $0x8c0] sm:$0xff]
        %v620 = vld [vmem:[#allocation2 + $0x8c8] sm:$0xff]
        %v621 = vld [vmem:[#allocation2 + $0x8d0] sm:$0xff]
        %v622 = vld [vmem:[#allocation2 + $0x8d8] sm:$0xff]
        %v623 = vld [vmem:[#allocation2 + $0x8e0] sm:$0xff]
        %v624 = vld [vmem:[#allocation2 + $0x8e8] sm:$0xff]
        %v625 = vld [vmem:[#allocation2 + $0x8f0] sm:$0xff]
        %v626 = vld [vmem:[#allocation2 + $0x8f8] sm:$0xff]
        %v627 = vld [vmem:[%s2] sm:$0xff]
        %v628 = vld [vmem:[%s2 + $0x8] sm:$0xf]
        %v631 = vperm.slane %v627, 0
        %v632 = vperm.slane %v627, 1
        %v633 = vperm.slane %v627, 2
        %v634 = vperm.slane %v627, 3
        %v635 = vperm.slane %v627, 4
        %v636 = vperm.slane %v627, 5
        %v637 = vperm.slane %v627, 6
        %v638 = vperm.slane %v627, 7
        %v639 = vperm.slane %v628, 0
        %v640 = vperm.slane %v628, 1
        %v641 = vperm.slane %v628, 2
        %v642 = vperm.slane %v628, 3
        %v943 = vunpack.c.l.b16 %v339
        %v944 = vunpack.c.h.b16 %v339
        %v945 = vunpack.c.l.b16 %v340
        %v946 = vunpack.c.h.b16 %v340
        %v947 = vunpack.c.l.b16 %v341
        %v948 = vunpack.c.h.b16 %v341
        %v949 = vunpack.c.l.b16 %v342
        %v950 = vunpack.c.h.b16 %v342
        %v951 = vunpack.c.l.b16 %v343
        %v952 = vunpack.c.h.b16 %v343
        %v953 = vunpack.c.l.b16 %v344
        %v954 = vunpack.c.h.b16 %v344
        %v955 = vunpack.c.l.b16 %v345
        %v956 = vunpack.c.h.b16 %v345
        %v957 = vunpack.c.l.b16 %v346
        %v958 = vunpack.c.h.b16 %v346
        %v959 = vunpack.c.l.b16 %v347
        %v960 = vunpack.c.h.b16 %v347
        %v961 = vunpack.c.l.b16 %v348
        %v962 = vunpack.c.h.b16 %v348
        %v963 = vunpack.c.l.b16 %v349
        %v964 = vunpack.c.h.b16 %v349
        %v965 = vunpack.c.l.b16 %v350
        %v966 = vunpack.c.h.b16 %v350
        %v967 = vunpack.c.l.b16 %v351
        %v968 = vunpack.c.h.b16 %v351
        %v969 = vunpack.c.l.b16 %v352
        %v970 = vunpack.c.h.b16 %v352
        %v971 = vunpack.c.l.b16 %v353
        %v972 = vunpack.c.h.b16 %v353
        %v973 = vunpack.c.l.b16 %v354
        %v974 = vunpack.c.h.b16 %v354
        %v975 = vunpack.c.l.b16 %v355
        %v976 = vunpack.c.h.b16 %v355
        %v977 = vunpack.c.l.b16 %v356
        %v978 = vunpack.c.h.b16 %v356
        %v979 = vunpack.c.l.b16 %v357
        %v980 = vunpack.c.h.b16 %v357
        %v981 = vunpack.c.l.b16 %v358
        %v982 = vunpack.c.h.b16 %v358
        %v983 = vunpack.c.l.b16 %v359
        %v984 = vunpack.c.h.b16 %v359
        %v985 = vunpack.c.l.b16 %v360
        %v986 = vunpack.c.h.b16 %v360
        %v987 = vunpack.c.l.b16 %v361
        %v988 = vunpack.c.h.b16 %v361
        %v989 = vunpack.c.l.b16 %v362
        %v990 = vunpack.c.h.b16 %v362
        %v991 = vunpack.c.l.b16 %v363
        %v992 = vunpack.c.h.b16 %v363
        %v993 = vunpack.c.l.b16 %v364
        %v994 = vunpack.c.h.b16 %v364
        %v995 = vunpack.c.l.b16 %v365
        %v996 = vunpack.c.h.b16 %v365
        %v997 = vunpack.c.l.b16 %v366
        %v998 = vunpack.c.h.b16 %v366
        %v999 = vunpack.c.l.b16 %v367
        %v1000 = vunpack.c.h.b16 %v367
        %v1001 = vunpack.c.l.b16 %v368
        %v1002 = vunpack.c.h.b16 %v368
        %v1003 = vunpack.c.l.b16 %v369
        %v1004 = vunpack.c.h.b16 %v369
        %v1005 = vunpack.c.l.b16 %v370
        %v1006 = vunpack.c.h.b16 %v370
        %v1007 = vunpack.c.l.b16 %v371
        %v1008 = vunpack.c.h.b16 %v371
        %v1009 = vunpack.c.l.b16 %v372
        %v1010 = vunpack.c.h.b16 %v372
        %v1011 = vunpack.c.l.b16 %v373
        %v1012 = vunpack.c.h.b16 %v373
        %v1013 = vunpack.c.l.b16 %v374
        %v1014 = vunpack.c.h.b16 %v374
        %v1015 = vunpack.c.l.b16 %v375
        %v1016 = vunpack.c.h.b16 %v375
        %v1017 = vunpack.c.l.b16 %v376
        %v1018 = vunpack.c.h.b16 %v376
        %v1019 = vunpack.c.l.b16 %v377
        %v1020 = vunpack.c.h.b16 %v377
        %v1021 = vunpack.c.l.b16 %v378
        %v1022 = vunpack.c.h.b16 %v378
        %v1023 = vunpack.c.l.b16 %v379
        %v1024 = vunpack.c.h.b16 %v379
        %v1025 = vunpack.c.l.b16 %v380
        %v1026 = vunpack.c.h.b16 %v380
        %v1027 = vunpack.c.l.b16 %v381
        %v1028 = vunpack.c.h.b16 %v381
        %v1029 = vunpack.c.l.b16 %v382
        %v1030 = vunpack.c.h.b16 %v382
        %v1031 = vunpack.c.l.b16 %v383
        %v1032 = vunpack.c.h.b16 %v383
        %v1033 = vunpack.c.l.b16 %v384
        %v1034 = vunpack.c.h.b16 %v384
        %v1035 = vunpack.c.l.b16 %v385
        %v1036 = vunpack.c.h.b16 %v385
        %v1037 = vunpack.c.l.b16 %v386
        %v1038 = vunpack.c.h.b16 %v386
        %v1039 = vunpack.c.l.b16 %v387
        %v1040 = vunpack.c.h.b16 %v387
        %v1041 = vunpack.c.l.b16 %v388
        %v1042 = vunpack.c.h.b16 %v388
        %v1043 = vunpack.c.l.b16 %v389
        %v1044 = vunpack.c.h.b16 %v389
        %v1045 = vunpack.c.l.b16 %v390
        %v1046 = vunpack.c.h.b16 %v390
        %v1047 = vunpack.c.l.b16 %v391
        %v1048 = vunpack.c.h.b16 %v391
        %v1049 = vunpack.c.l.b16 %v392
        %v1050 = vunpack.c.h.b16 %v392
        %v1051 = vunpack.c.l.b16 %v393
        %v1052 = vunpack.c.h.b16 %v393
        %v1053 = vunpack.c.l.b16 %v394
        %v1054 = vunpack.c.h.b16 %v394
        %v1055 = vunpack.c.l.b16 %v395
        %v1056 = vunpack.c.h.b16 %v395
        %v1057 = vunpack.c.l.b16 %v396
        %v1058 = vunpack.c.h.b16 %v396
        %v1059 = vunpack.c.l.b16 %v397
        %v1060 = vunpack.c.h.b16 %v397
        %v1061 = vunpack.c.l.b16 %v398
        %v1062 = vunpack.c.h.b16 %v398
        %v1063 = vunpack.c.l.b16 %v399
        %v1064 = vunpack.c.h.b16 %v399
        %v1065 = vunpack.c.l.b16 %v400
        %v1066 = vunpack.c.h.b16 %v400
        %v1067 = vunpack.c.l.b16 %v401
        %v1068 = vunpack.c.h.b16 %v401
        %v1069 = vunpack.c.l.b16 %v402
        %v1070 = vunpack.c.h.b16 %v402
        %v1071 = vunpack.c.l.b16 %v403
        %v1072 = vunpack.c.h.b16 %v403
        %v1073 = vunpack.c.l.b16 %v404
        %v1074 = vunpack.c.h.b16 %v404
        %v1075 = vunpack.c.l.b16 %v405
        %v1076 = vunpack.c.h.b16 %v405
        %v1077 = vunpack.c.l.b16 %v406
        %v1078 = vunpack.c.h.b16 %v406
        %v1079 = vunpack.c.l.b16 %v407
        %v1080 = vunpack.c.h.b16 %v407
        %v1081 = vunpack.c.l.b16 %v408
        %v1082 = vunpack.c.h.b16 %v408
        %v1083 = vunpack.c.l.b16 %v409
        %v1084 = vunpack.c.h.b16 %v409
        %v1085 = vunpack.c.l.b16 %v410
        %v1086 = vunpack.c.h.b16 %v410
        %v1087 = vunpack.c.l.b16 %v411
        %v1088 = vunpack.c.h.b16 %v411
        %v1089 = vunpack.c.l.b16 %v412
        %v1090 = vunpack.c.h.b16 %v412
        %v1091 = vunpack.c.l.b16 %v413
        %v1092 = vunpack.c.h.b16 %v413
        %v1093 = vunpack.c.l.b16 %v414
        %v1094 = vunpack.c.h.b16 %v414
        %v1095 = vunpack.c.l.b16 %v415
        %v1096 = vunpack.c.h.b16 %v415
        %v1097 = vunpack.c.l.b16 %v416
        %v1098 = vunpack.c.h.b16 %v416
        %v1099 = vunpack.c.l.b16 %v417
        %v1100 = vunpack.c.h.b16 %v417
        %v1101 = vunpack.c.l.b16 %v418
        %v1102 = vunpack.c.h.b16 %v418
        %v1103 = vunpack.c.l.b16 %v419
        %v1104 = vunpack.c.h.b16 %v419
        %v1105 = vunpack.c.l.b16 %v420
        %v1106 = vunpack.c.h.b16 %v420
        %v1107 = vunpack.c.l.b16 %v421
        %v1108 = vunpack.c.h.b16 %v421
        %v1109 = vunpack.c.l.b16 %v422
        %v1110 = vunpack.c.h.b16 %v422
        %v1111 = vunpack.c.l.b16 %v423
        %v1112 = vunpack.c.h.b16 %v423
        %v1113 = vunpack.c.l.b16 %v424
        %v1114 = vunpack.c.h.b16 %v424
        %v1115 = vunpack.c.l.b16 %v425
        %v1116 = vunpack.c.h.b16 %v425
        %v1117 = vunpack.c.l.b16 %v426
        %v1118 = vunpack.c.h.b16 %v426
        %v1119 = vunpack.c.l.b16 %v427
        %v1120 = vunpack.c.h.b16 %v427
        %v1121 = vunpack.c.l.b16 %v428
        %v1122 = vunpack.c.h.b16 %v428
        %v1123 = vunpack.c.l.b16 %v429
        %v1124 = vunpack.c.h.b16 %v429
        %v1125 = vunpack.c.l.b16 %v430
        %v1126 = vunpack.c.h.b16 %v430
        %v1127 = vunpack.c.l.b16 %v431
        %v1128 = vunpack.c.h.b16 %v431
        %v1129 = vunpack.c.l.b16 %v432
        %v1130 = vunpack.c.h.b16 %v432
        %v1131 = vunpack.c.l.b16 %v433
        %v1132 = vunpack.c.h.b16 %v433
        %v1133 = vunpack.c.l.b16 %v434
        %v1134 = vunpack.c.h.b16 %v434
        %v1135 = vunpack.c.l.b16 %v435
        %v1136 = vunpack.c.h.b16 %v435
        %v1137 = vunpack.c.l.b16 %v436
        %v1138 = vunpack.c.h.b16 %v436
        %v1139 = vunpack.c.l.b16 %v437
        %v1140 = vunpack.c.h.b16 %v437
        %v1141 = vunpack.c.l.b16 %v438
        %v1142 = vunpack.c.h.b16 %v438
        %v1143 = vunpack.c.l.b16 %v439
        %v1144 = vunpack.c.h.b16 %v439
        %v1145 = vunpack.c.l.b16 %v440
        %v1146 = vunpack.c.h.b16 %v440
        %v1147 = vunpack.c.l.b16 %v441
        %v1148 = vunpack.c.h.b16 %v441
        %v1149 = vunpack.c.l.b16 %v442
        %v1150 = vunpack.c.h.b16 %v442
        %v1151 = vunpack.c.l.b16 %v443
        %v1152 = vunpack.c.h.b16 %v443
        %v1153 = vunpack.c.l.b16 %v444
        %v1154 = vunpack.c.h.b16 %v444
        %v1155 = vunpack.c.l.b16 %v445
        %v1156 = vunpack.c.h.b16 %v445
        %v1157 = vunpack.c.l.b16 %v446
        %v1158 = vunpack.c.h.b16 %v446
        %v1159 = vunpack.c.l.b16 %v447
        %v1160 = vunpack.c.h.b16 %v447
        %v1161 = vunpack.c.l.b16 %v448
        %v1162 = vunpack.c.h.b16 %v448
        %v1163 = vunpack.c.l.b16 %v449
        %v1164 = vunpack.c.h.b16 %v449
        %v1165 = vunpack.c.l.b16 %v450
        %v1166 = vunpack.c.h.b16 %v450
        %v1167 = vunpack.c.l.b16 %v451
        %v1168 = vunpack.c.h.b16 %v451
        %v1169 = vunpack.c.l.b16 %v452
        %v1170 = vunpack.c.h.b16 %v452
        %v1171 = vunpack.c.l.b16 %v453
        %v1172 = vunpack.c.h.b16 %v453
        %v1173 = vunpack.c.l.b16 %v454
        %v1174 = vunpack.c.h.b16 %v454
        %v1175 = vunpack.c.l.b16 %v455
        %v1176 = vunpack.c.h.b16 %v455
        %v1177 = vunpack.c.l.b16 %v456
        %v1178 = vunpack.c.h.b16 %v456
        %v1179 = vunpack.c.l.b16 %v457
        %v1180 = vunpack.c.h.b16 %v457
        %v1181 = vunpack.c.l.b16 %v458
        %v1182 = vunpack.c.h.b16 %v458
        %v1183 = vunpack.c.l.b16 %v459
        %v1184 = vunpack.c.h.b16 %v459
        %v1185 = vunpack.c.l.b16 %v460
        %v1186 = vunpack.c.h.b16 %v460
        %v1187 = vunpack.c.l.b16 %v461
        %v1188 = vunpack.c.h.b16 %v461
        %v1189 = vunpack.c.l.b16 %v462
        %v1190 = vunpack.c.h.b16 %v462
        %v1191 = vunpack.c.l.b16 %v463
        %v1192 = vunpack.c.h.b16 %v463
        %v1193 = vunpack.c.l.b16 %v464
        %v1194 = vunpack.c.h.b16 %v464
        %v1195 = vunpack.c.l.b16 %v465
        %v1196 = vunpack.c.h.b16 %v465
        %v1197 = vunpack.c.l.b16 %v466
        %v1198 = vunpack.c.h.b16 %v466
        %v1199 = vunpack.c.l.b16 %v467
        %v1200 = vunpack.c.h.b16 %v467
        %v1201 = vunpack.c.l.b16 %v468
        %v1202 = vunpack.c.h.b16 %v468
        %v1203 = vunpack.c.l.b16 %v469
        %v1204 = vunpack.c.h.b16 %v469
        %v1205 = vunpack.c.l.b16 %v470
        %v1206 = vunpack.c.h.b16 %v470
        %v1207 = vunpack.c.l.b16 %v471
        %v1208 = vunpack.c.h.b16 %v471
        %v1209 = vunpack.c.l.b16 %v472
        %v1210 = vunpack.c.h.b16 %v472
        %v1211 = vunpack.c.l.b16 %v473
        %v1212 = vunpack.c.h.b16 %v473
        %v1213 = vunpack.c.l.b16 %v474
        %v1214 = vunpack.c.h.b16 %v474
        %v1215 = vunpack.c.l.b16 %v475
        %v1216 = vunpack.c.h.b16 %v475
        %v1217 = vunpack.c.l.b16 %v476
        %v1218 = vunpack.c.h.b16 %v476
        %v1219 = vunpack.c.l.b16 %v477
        %v1220 = vunpack.c.h.b16 %v477
        %v1221 = vunpack.c.l.b16 %v478
        %v1222 = vunpack.c.h.b16 %v478
        %v1223 = vunpack.c.l.b16 %v479
        %v1224 = vunpack.c.h.b16 %v479
        %v1225 = vunpack.c.l.b16 %v480
        %v1226 = vunpack.c.h.b16 %v480
        %v1227 = vunpack.c.l.b16 %v481
        %v1228 = vunpack.c.h.b16 %v481
        %v1229 = vunpack.c.l.b16 %v482
        %v1230 = vunpack.c.h.b16 %v482
        %v1231 = vunpack.c.l.b16 %v483
        %v1232 = vunpack.c.h.b16 %v483
        %v1233 = vunpack.c.l.b16 %v484
        %v1234 = vunpack.c.h.b16 %v484
        %v1235 = vunpack.c.l.b16 %v485
        %v1236 = vunpack.c.h.b16 %v485
        %v1237 = vunpack.c.l.b16 %v486
        %v1238 = vunpack.c.h.b16 %v486
        %v1239 = vunpack.c.l.b16 %v487
        %v1240 = vunpack.c.h.b16 %v487
        %v1241 = vunpack.c.l.b16 %v488
        %v1242 = vunpack.c.h.b16 %v488
        %v1243 = vunpack.c.l.b16 %v489
        %v1244 = vunpack.c.h.b16 %v489
        %v1245 = vunpack.c.l.b16 %v490
        %v1246 = vunpack.c.h.b16 %v490
        %v1247 = vunpack.c.l.b16 %v491
        %v1248 = vunpack.c.h.b16 %v491
        %v1249 = vunpack.c.l.b16 %v492
        %v1250 = vunpack.c.h.b16 %v492
        %v1251 = vunpack.c.l.b16 %v493
        %v1252 = vunpack.c.h.b16 %v493
        %v1253 = vunpack.c.l.b16 %v494
        %v1254 = vunpack.c.h.b16 %v494
        %v1255 = vunpack.c.l.b16 %v495
        %v1256 = vunpack.c.h.b16 %v495
        %v1257 = vunpack.c.l.b16 %v496
        %v1258 = vunpack.c.h.b16 %v496
        %v1259 = vunpack.c.l.b16 %v497
        %v1260 = vunpack.c.h.b16 %v497
        %v1261 = vunpack.c.l.b16 %v498
        %v1262 = vunpack.c.h.b16 %v498
        %v1263 = vunpack.c.l.b16 %v499
        %v1264 = vunpack.c.h.b16 %v499
        %v1265 = vunpack.c.l.b16 %v500
        %v1266 = vunpack.c.h.b16 %v500
        %v1267 = vunpack.c.l.b16 %v501
        %v1268 = vunpack.c.h.b16 %v501
        %v1269 = vunpack.c.l.b16 %v502
        %v1270 = vunpack.c.h.b16 %v502
        %v1271 = vunpack.c.l.b16 %v503
        %v1272 = vunpack.c.h.b16 %v503
        %v1273 = vunpack.c.l.b16 %v504
        %v1274 = vunpack.c.h.b16 %v504
        %v1275 = vunpack.c.l.b16 %v505
        %v1276 = vunpack.c.h.b16 %v505
        %v1277 = vunpack.c.l.b16 %v506
        %v1278 = vunpack.c.h.b16 %v506
        %v1279 = vunpack.c.l.b16 %v507
        %v1280 = vunpack.c.h.b16 %v507
        %v1281 = vunpack.c.l.b16 %v508
        %v1282 = vunpack.c.h.b16 %v508
        %v1283 = vunpack.c.l.b16 %v509
        %v1284 = vunpack.c.h.b16 %v509
        %v1285 = vunpack.c.l.b16 %v510
        %v1286 = vunpack.c.h.b16 %v510
        %v1287 = vunpack.c.l.b16 %v511
        %v1288 = vunpack.c.h.b16 %v511
        %v1289 = vunpack.c.l.b16 %v512
        %v1290 = vunpack.c.h.b16 %v512
        %v1291 = vunpack.c.l.b16 %v513
        %v1292 = vunpack.c.h.b16 %v513
        %v1293 = vunpack.c.l.b16 %v514
        %v1294 = vunpack.c.h.b16 %v514
        %v1295 = vunpack.c.l.b16 %v515
        %v1296 = vunpack.c.h.b16 %v515
        %v1297 = vunpack.c.l.b16 %v516
        %v1298 = vunpack.c.h.b16 %v516
        %v1299 = vunpack.c.l.b16 %v517
        %v1300 = vunpack.c.h.b16 %v517
        %v1301 = vunpack.c.l.b16 %v518
        %v1302 = vunpack.c.h.b16 %v518
        %v1303 = vunpack.c.l.b16 %v519
        %v1304 = vunpack.c.h.b16 %v519
        %v1305 = vunpack.c.l.b16 %v520
        %v1306 = vunpack.c.h.b16 %v520
        %v1307 = vunpack.c.l.b16 %v521
        %v1308 = vunpack.c.h.b16 %v521
        %v1309 = vunpack.c.l.b16 %v522
        %v1310 = vunpack.c.h.b16 %v522
        %v1311 = vunpack.c.l.b16 %v523
        %v1312 = vunpack.c.h.b16 %v523
        %v1313 = vunpack.c.l.b16 %v524
        %v1314 = vunpack.c.h.b16 %v524
        %v1315 = vunpack.c.l.b16 %v525
        %v1316 = vunpack.c.h.b16 %v525
        %v1317 = vunpack.c.l.b16 %v526
        %v1318 = vunpack.c.h.b16 %v526
        %v1319 = vunpack.c.l.b16 %v527
        %v1320 = vunpack.c.h.b16 %v527
        %v1321 = vunpack.c.l.b16 %v528
        %v1322 = vunpack.c.h.b16 %v528
        %v1323 = vunpack.c.l.b16 %v529
        %v1324 = vunpack.c.h.b16 %v529
        %v1325 = vunpack.c.l.b16 %v530
        %v1326 = vunpack.c.h.b16 %v530
        %v1327 = vunpack.c.l.b16 %v531
        %v1328 = vunpack.c.h.b16 %v531
        %v1329 = vunpack.c.l.b16 %v532
        %v1330 = vunpack.c.h.b16 %v532
        %v1331 = vunpack.c.l.b16 %v533
        %v1332 = vunpack.c.h.b16 %v533
        %v1333 = vunpack.c.l.b16 %v534
        %v1334 = vunpack.c.h.b16 %v534
        %v1335 = vunpack.c.l.b16 %v535
        %v1336 = vunpack.c.h.b16 %v535
        %v1337 = vunpack.c.l.b16 %v536
        %v1338 = vunpack.c.h.b16 %v536
        %v1339 = vunpack.c.l.b16 %v537
        %v1340 = vunpack.c.h.b16 %v537
        %v1341 = vunpack.c.l.b16 %v538
        %v1342 = vunpack.c.h.b16 %v538
        %v1343 = vunpack.c.l.b16 %v539
        %v1344 = vunpack.c.h.b16 %v539
        %v1345 = vunpack.c.l.b16 %v540
        %v1346 = vunpack.c.h.b16 %v540
        %v1347 = vunpack.c.l.b16 %v541
        %v1348 = vunpack.c.h.b16 %v541
        %v1349 = vunpack.c.l.b16 %v542
        %v1350 = vunpack.c.h.b16 %v542
        %v1351 = vunpack.c.l.b16 %v543
        %v1352 = vunpack.c.h.b16 %v543
        %v1353 = vunpack.c.l.b16 %v544
        %v1354 = vunpack.c.h.b16 %v544
        %v1355 = vunpack.c.l.b16 %v545
        %v1356 = vunpack.c.h.b16 %v545
        %v1357 = vunpack.c.l.b16 %v546
        %v1358 = vunpack.c.h.b16 %v546
        %v1359 = vunpack.c.l.b16 %v547
        %v1360 = vunpack.c.h.b16 %v547
        %v1361 = vunpack.c.l.b16 %v548
        %v1362 = vunpack.c.h.b16 %v548
        %v1363 = vunpack.c.l.b16 %v549
        %v1364 = vunpack.c.h.b16 %v549
        %v1365 = vunpack.c.l.b16 %v550
        %v1366 = vunpack.c.h.b16 %v550
        %v1367 = vunpack.c.l.b16 %v551
        %v1368 = vunpack.c.h.b16 %v551
        %v1369 = vunpack.c.l.b16 %v552
        %v1370 = vunpack.c.h.b16 %v552
        %v1371 = vunpack.c.l.b16 %v553
        %v1372 = vunpack.c.h.b16 %v553
        %v1373 = vunpack.c.l.b16 %v554
        %v1374 = vunpack.c.h.b16 %v554
        %v1375 = vunpack.c.l.b16 %v555
        %v1376 = vunpack.c.h.b16 %v555
        %v1377 = vunpack.c.l.b16 %v556
        %v1378 = vunpack.c.h.b16 %v556
        %v1379 = vunpack.c.l.b16 %v557
        %v1380 = vunpack.c.h.b16 %v557
        %v1381 = vunpack.c.l.b16 %v558
        %v1382 = vunpack.c.h.b16 %v558
        %v1383 = vunpack.c.l.b16 %v559
        %v1384 = vunpack.c.h.b16 %v559
        %v1385 = vunpack.c.l.b16 %v560
        %v1386 = vunpack.c.h.b16 %v560
        %v1387 = vunpack.c.l.b16 %v561
        %v1388 = vunpack.c.h.b16 %v561
        %v1389 = vunpack.c.l.b16 %v562
        %v1390 = vunpack.c.h.b16 %v562
        %v1391 = vunpack.c.l.b16 %v563
        %v1392 = vunpack.c.h.b16 %v563
        %v1393 = vunpack.c.l.b16 %v564
        %v1394 = vunpack.c.h.b16 %v564
        %v1395 = vunpack.c.l.b16 %v565
        %v1396 = vunpack.c.h.b16 %v565
        %v1397 = vunpack.c.l.b16 %v566
        %v1398 = vunpack.c.h.b16 %v566
        %v1399 = vunpack.c.l.b16 %v567
        %v1400 = vunpack.c.h.b16 %v567
        %v1401 = vunpack.c.l.b16 %v568
        %v1402 = vunpack.c.h.b16 %v568
        %v1403 = vunpack.c.l.b16 %v569
        %v1404 = vunpack.c.h.b16 %v569
        %v1405 = vunpack.c.l.b16 %v570
        %v1406 = vunpack.c.h.b16 %v570
        %v1407 = vunpack.c.l.b16 %v571
        %v1408 = vunpack.c.h.b16 %v571
        %v1409 = vunpack.c.l.b16 %v572
        %v1410 = vunpack.c.h.b16 %v572
        %v1411 = vunpack.c.l.b16 %v573
        %v1412 = vunpack.c.h.b16 %v573
        %v1413 = vunpack.c.l.b16 %v574
        %v1414 = vunpack.c.h.b16 %v574
        %v1415 = vunpack.c.l.b16 %v575
        %v1416 = vunpack.c.h.b16 %v575
        %v1417 = vunpack.c.l.b16 %v576
        %v1418 = vunpack.c.h.b16 %v576
        %v1419 = vunpack.c.l.b16 %v577
        %v1420 = vunpack.c.h.b16 %v577
        %v1421 = vunpack.c.l.b16 %v578
        %v1422 = vunpack.c.h.b16 %v578
        %v1423 = vunpack.c.l.b16 %v579
        %v1424 = vunpack.c.h.b16 %v579
        %v1425 = vunpack.c.l.b16 %v580
        %v1426 = vunpack.c.h.b16 %v580
        %v1427 = vunpack.c.l.b16 %v581
        %v1428 = vunpack.c.h.b16 %v581
        %v1429 = vunpack.c.l.b16 %v582
        %v1430 = vunpack.c.h.b16 %v582
        %v1431 = vunpack.c.l.b16 %v583
        %v1432 = vunpack.c.h.b16 %v583
        %v1433 = vunpack.c.l.b16 %v584
        %v1434 = vunpack.c.h.b16 %v584
        %v1435 = vunpack.c.l.b16 %v585
        %v1436 = vunpack.c.h.b16 %v585
        %v1437 = vunpack.c.l.b16 %v586
        %v1438 = vunpack.c.h.b16 %v586
        %v1439 = vunpack.c.l.b16 %v587
        %v1440 = vunpack.c.h.b16 %v587
        %v1441 = vunpack.c.l.b16 %v588
        %v1442 = vunpack.c.h.b16 %v588
        %v1443 = vunpack.c.l.b16 %v589
        %v1444 = vunpack.c.h.b16 %v589
        %v1445 = vunpack.c.l.b16 %v590
        %v1446 = vunpack.c.h.b16 %v590
        %v1447 = vunpack.c.l.b16 %v591
        %v1448 = vunpack.c.h.b16 %v591
        %v1449 = vunpack.c.l.b16 %v592
        %v1450 = vunpack.c.h.b16 %v592
        %v1451 = vunpack.c.l.b16 %v593
        %v1452 = vunpack.c.h.b16 %v593
        %v1453 = vunpack.c.l.b16 %v594
        %v1454 = vunpack.c.h.b16 %v594
        %v1455 = vunpack.c.l.b16 %v595
        %v1456 = vunpack.c.h.b16 %v595
        %v1457 = vunpack.c.l.b16 %v596
        %v1458 = vunpack.c.h.b16 %v596
        %v1459 = vunpack.c.l.b16 %v597
        %v1460 = vunpack.c.h.b16 %v597
        %v1461 = vunpack.c.l.b16 %v598
        %v1462 = vunpack.c.h.b16 %v598
        %v1463 = vunpack.c.l.b16 %v599
        %v1464 = vunpack.c.h.b16 %v599
        %v1465 = vunpack.c.l.b16 %v600
        %v1466 = vunpack.c.h.b16 %v600
        %v1467 = vunpack.c.l.b16 %v601
        %v1468 = vunpack.c.h.b16 %v601
        %v1469 = vunpack.c.l.b16 %v602
        %v1470 = vunpack.c.h.b16 %v602
        %v1471 = vunpack.c.l.b16 %v603
        %v1472 = vunpack.c.h.b16 %v603
        %v1473 = vunpack.c.l.b16 %v604
        %v1474 = vunpack.c.h.b16 %v604
        %v1475 = vunpack.c.l.b16 %v605
        %v1476 = vunpack.c.h.b16 %v605
        %v1477 = vunpack.c.l.b16 %v606
        %v1478 = vunpack.c.h.b16 %v606
        %v1479 = vunpack.c.l.b16 %v607
        %v1480 = vunpack.c.h.b16 %v607
        %v1481 = vunpack.c.l.b16 %v608
        %v1482 = vunpack.c.h.b16 %v608
        %v1483 = vunpack.c.l.b16 %v609
        %v1484 = vunpack.c.h.b16 %v609
        %v1485 = vunpack.c.l.b16 %v610
        %v1486 = vunpack.c.h.b16 %v610
        %v1487 = vunpack.c.l.b16 %v611
        %v1488 = vunpack.c.h.b16 %v611
        %v1489 = vunpack.c.l.b16 %v612
        %v1490 = vunpack.c.h.b16 %v612
        %v1491 = vunpack.c.l.b16 %v613
        %v1492 = vunpack.c.h.b16 %v613
        %v1493 = vunpack.c.l.b16 %v614
        %v1494 = vunpack.c.h.b16 %v614
        %v1495 = vunpack.c.l.b16 %v615
        %v1496 = vunpack.c.h.b16 %v615
        %v1497 = vunpack.c.l.b16 %v616
        %v1498 = vunpack.c.h.b16 %v616
        %v1499 = vunpack.c.l.b16 %v617
        %v1500 = vunpack.c.h.b16 %v617
        %v1501 = vunpack.c.l.b16 %v618
        %v1502 = vunpack.c.h.b16 %v618
        %v1503 = vunpack.c.l.b16 %v619
        %v1504 = vunpack.c.h.b16 %v619
        %v1505 = vunpack.c.l.b16 %v620
        %v1506 = vunpack.c.h.b16 %v620
        %v1507 = vunpack.c.l.b16 %v621
        %v1508 = vunpack.c.h.b16 %v621
        %v1509 = vunpack.c.l.b16 %v622
        %v1510 = vunpack.c.h.b16 %v622
        %v1511 = vunpack.c.l.b16 %v623
        %v1512 = vunpack.c.h.b16 %v623
        %v1513 = vunpack.c.l.b16 %v624
        %v1514 = vunpack.c.h.b16 %v624
        %v1515 = vunpack.c.l.b16 %v625
        %v1516 = vunpack.c.h.b16 %v625
        %v1517 = vunpack.c.l.b16 %v626
        %v1518 = vunpack.c.h.b16 %v626
        %v1519 = vpack.c.b16 %v955, %v943
        %v1520 = vpack.c.b16 %v956, %v944
        %v1521 = vpack.c.b16 %v957, %v945
        %v1522 = vpack.c.b16 %v958, %v946
        %v1523 = vpack.c.b16 %v959, %v947
        %v1524 = vpack.c.b16 %v960, %v948
        %v1525 = vpack.c.b16 %v961, %v949
        %v1526 = vpack.c.b16 %v962, %v950
        %v1527 = vpack.c.b16 %v963, %v951
        %v1528 = vpack.c.b16 %v964, %v952
        %v1529 = vpack.c.b16 %v965, %v953
        %v1530 = vpack.c.b16 %v966, %v954
        %v1531 = vpack.c.b16 %v979, %v967
        %v1532 = vpack.c.b16 %v980, %v968
        %v1533 = vpack.c.b16 %v981, %v969
        %v1534 = vpack.c.b16 %v982, %v970
        %v1535 = vpack.c.b16 %v983, %v971
        %v1536 = vpack.c.b16 %v984, %v972
        %v1537 = vpack.c.b16 %v985, %v973
        %v1538 = vpack.c.b16 %v986, %v974
        %v1539 = vpack.c.b16 %v987, %v975
        %v1540 = vpack.c.b16 %v988, %v976
        %v1541 = vpack.c.b16 %v989, %v977
        %v1542 = vpack.c.b16 %v990, %v978
        %v1543 = vpack.c.b16 %v1003, %v991
        %v1544 = vpack.c.b16 %v1004, %v992
        %v1545 = vpack.c.b16 %v1005, %v993
        %v1546 = vpack.c.b16 %v1006, %v994
        %v1547 = vpack.c.b16 %v1007, %v995
        %v1548 = vpack.c.b16 %v1008, %v996
        %v1549 = vpack.c.b16 %v1009, %v997
        %v1550 = vpack.c.b16 %v1010, %v998
        %v1551 = vpack.c.b16 %v1011, %v999
        %v1552 = vpack.c.b16 %v1012, %v1000
        %v1553 = vpack.c.b16 %v1013, %v1001
        %v1554 = vpack.c.b16 %v1014, %v1002
        %v1555 = vpack.c.b16 %v1027, %v1015
        %v1556 = vpack.c.b16 %v1028, %v1016
        %v1557 = vpack.c.b16 %v1029, %v1017
        %v1558 = vpack.c.b16 %v1030, %v1018
        %v1559 = vpack.c.b16 %v1031, %v1019
        %v1560 = vpack.c.b16 %v1032, %v1020
        %v1561 = vpack.c.b16 %v1033, %v1021
        %v1562 = vpack.c.b16 %v1034, %v1022
        %v1563 = vpack.c.b16 %v1035, %v1023
        %v1564 = vpack.c.b16 %v1036, %v1024
        %v1565 = vpack.c.b16 %v1037, %v1025
        %v1566 = vpack.c.b16 %v1038, %v1026
        %v1567 = vpack.c.b16 %v1051, %v1039
        %v1568 = vpack.c.b16 %v1052, %v1040
        %v1569 = vpack.c.b16 %v1053, %v1041
        %v1570 = vpack.c.b16 %v1054, %v1042
        %v1571 = vpack.c.b16 %v1055, %v1043
        %v1572 = vpack.c.b16 %v1056, %v1044
        %v1573 = vpack.c.b16 %v1057, %v1045
        %v1574 = vpack.c.b16 %v1058, %v1046
        %v1575 = vpack.c.b16 %v1059, %v1047
        %v1576 = vpack.c.b16 %v1060, %v1048
        %v1577 = vpack.c.b16 %v1061, %v1049
        %v1578 = vpack.c.b16 %v1062, %v1050
        %v1579 = vpack.c.b16 %v1075, %v1063
        %v1580 = vpack.c.b16 %v1076, %v1064
        %v1581 = vpack.c.b16 %v1077, %v1065
        %v1582 = vpack.c.b16 %v1078, %v1066
        %v1583 = vpack.c.b16 %v1079, %v1067
        %v1584 = vpack.c.b16 %v1080, %v1068
        %v1585 = vpack.c.b16 %v1081, %v1069
        %v1586 = vpack.c.b16 %v1082, %v1070
        %v1587 = vpack.c.b16 %v1083, %v1071
        %v1588 = vpack.c.b16 %v1084, %v1072
        %v1589 = vpack.c.b16 %v1085, %v1073
        %v1590 = vpack.c.b16 %v1086, %v1074
        %v1591 = vpack.c.b16 %v1099, %v1087
        %v1592 = vpack.c.b16 %v1100, %v1088
        %v1593 = vpack.c.b16 %v1101, %v1089
        %v1594 = vpack.c.b16 %v1102, %v1090
        %v1595 = vpack.c.b16 %v1103, %v1091
        %v1596 = vpack.c.b16 %v1104, %v1092
        %v1597 = vpack.c.b16 %v1105, %v1093
        %v1598 = vpack.c.b16 %v1106, %v1094
        %v1599 = vpack.c.b16 %v1107, %v1095
        %v1600 = vpack.c.b16 %v1108, %v1096
        %v1601 = vpack.c.b16 %v1109, %v1097
        %v1602 = vpack.c.b16 %v1110, %v1098
        %v1603 = vpack.c.b16 %v1123, %v1111
        %v1604 = vpack.c.b16 %v1124, %v1112
        %v1605 = vpack.c.b16 %v1125, %v1113
        %v1606 = vpack.c.b16 %v1126, %v1114
        %v1607 = vpack.c.b16 %v1127, %v1115
        %v1608 = vpack.c.b16 %v1128, %v1116
        %v1609 = vpack.c.b16 %v1129, %v1117
        %v1610 = vpack.c.b16 %v1130, %v1118
        %v1611 = vpack.c.b16 %v1131, %v1119
        %v1612 = vpack.c.b16 %v1132, %v1120
        %v1613 = vpack.c.b16 %v1133, %v1121
        %v1614 = vpack.c.b16 %v1134, %v1122
        %v1615 = vpack.c.b16 %v1147, %v1135
        %v1616 = vpack.c.b16 %v1148, %v1136
        %v1617 = vpack.c.b16 %v1149, %v1137
        %v1618 = vpack.c.b16 %v1150, %v1138
        %v1619 = vpack.c.b16 %v1151, %v1139
        %v1620 = vpack.c.b16 %v1152, %v1140
        %v1621 = vpack.c.b16 %v1153, %v1141
        %v1622 = vpack.c.b16 %v1154, %v1142
        %v1623 = vpack.c.b16 %v1155, %v1143
        %v1624 = vpack.c.b16 %v1156, %v1144
        %v1625 = vpack.c.b16 %v1157, %v1145
        %v1626 = vpack.c.b16 %v1158, %v1146
        %v1627 = vpack.c.b16 %v1171, %v1159
        %v1628 = vpack.c.b16 %v1172, %v1160
        %v1629 = vpack.c.b16 %v1173, %v1161
        %v1630 = vpack.c.b16 %v1174, %v1162
        %v1631 = vpack.c.b16 %v1175, %v1163
        %v1632 = vpack.c.b16 %v1176, %v1164
        %v1633 = vpack.c.b16 %v1177, %v1165
        %v1634 = vpack.c.b16 %v1178, %v1166
        %v1635 = vpack.c.b16 %v1179, %v1167
        %v1636 = vpack.c.b16 %v1180, %v1168
        %v1637 = vpack.c.b16 %v1181, %v1169
        %v1638 = vpack.c.b16 %v1182, %v1170
        %v1639 = vpack.c.b16 %v1195, %v1183
        %v1640 = vpack.c.b16 %v1196, %v1184
        %v1641 = vpack.c.b16 %v1197, %v1185
        %v1642 = vpack.c.b16 %v1198, %v1186
        %v1643 = vpack.c.b16 %v1199, %v1187
        %v1644 = vpack.c.b16 %v1200, %v1188
        %v1645 = vpack.c.b16 %v1201, %v1189
        %v1646 = vpack.c.b16 %v1202, %v1190
        %v1647 = vpack.c.b16 %v1203, %v1191
        %v1648 = vpack.c.b16 %v1204, %v1192
        %v1649 = vpack.c.b16 %v1205, %v1193
        %v1650 = vpack.c.b16 %v1206, %v1194
        %v1651 = vpack.c.b16 %v1219, %v1207
        %v1652 = vpack.c.b16 %v1220, %v1208
        %v1653 = vpack.c.b16 %v1221, %v1209
        %v1654 = vpack.c.b16 %v1222, %v1210
        %v1655 = vpack.c.b16 %v1223, %v1211
        %v1656 = vpack.c.b16 %v1224, %v1212
        %v1657 = vpack.c.b16 %v1225, %v1213
        %v1658 = vpack.c.b16 %v1226, %v1214
        %v1659 = vpack.c.b16 %v1227, %v1215
        %v1660 = vpack.c.b16 %v1228, %v1216
        %v1661 = vpack.c.b16 %v1229, %v1217
        %v1662 = vpack.c.b16 %v1230, %v1218
        %v1663 = vpack.c.b16 %v1243, %v1231
        %v1664 = vpack.c.b16 %v1244, %v1232
        %v1665 = vpack.c.b16 %v1245, %v1233
        %v1666 = vpack.c.b16 %v1246, %v1234
        %v1667 = vpack.c.b16 %v1247, %v1235
        %v1668 = vpack.c.b16 %v1248, %v1236
        %v1669 = vpack.c.b16 %v1249, %v1237
        %v1670 = vpack.c.b16 %v1250, %v1238
        %v1671 = vpack.c.b16 %v1251, %v1239
        %v1672 = vpack.c.b16 %v1252, %v1240
        %v1673 = vpack.c.b16 %v1253, %v1241
        %v1674 = vpack.c.b16 %v1254, %v1242
        %v1675 = vpack.c.b16 %v1267, %v1255
        %v1676 = vpack.c.b16 %v1268, %v1256
        %v1677 = vpack.c.b16 %v1269, %v1257
        %v1678 = vpack.c.b16 %v1270, %v1258
        %v1679 = vpack.c.b16 %v1271, %v1259
        %v1680 = vpack.c.b16 %v1272, %v1260
        %v1681 = vpack.c.b16 %v1273, %v1261
        %v1682 = vpack.c.b16 %v1274, %v1262
        %v1683 = vpack.c.b16 %v1275, %v1263
        %v1684 = vpack.c.b16 %v1276, %v1264
        %v1685 = vpack.c.b16 %v1277, %v1265
        %v1686 = vpack.c.b16 %v1278, %v1266
        %v1687 = vpack.c.b16 %v1291, %v1279
        %v1688 = vpack.c.b16 %v1292, %v1280
        %v1689 = vpack.c.b16 %v1293, %v1281
        %v1690 = vpack.c.b16 %v1294, %v1282
        %v1691 = vpack.c.b16 %v1295, %v1283
        %v1692 = vpack.c.b16 %v1296, %v1284
        %v1693 = vpack.c.b16 %v1297, %v1285
        %v1694 = vpack.c.b16 %v1298, %v1286
        %v1695 = vpack.c.b16 %v1299, %v1287
        %v1696 = vpack.c.b16 %v1300, %v1288
        %v1697 = vpack.c.b16 %v1301, %v1289
        %v1698 = vpack.c.b16 %v1302, %v1290
        %v1699 = vpack.c.b16 %v1315, %v1303
        %v1700 = vpack.c.b16 %v1316, %v1304
        %v1701 = vpack.c.b16 %v1317, %v1305
        %v1702 = vpack.c.b16 %v1318, %v1306
        %v1703 = vpack.c.b16 %v1319, %v1307
        %v1704 = vpack.c.b16 %v1320, %v1308
        %v1705 = vpack.c.b16 %v1321, %v1309
        %v1706 = vpack.c.b16 %v1322, %v1310
        %v1707 = vpack.c.b16 %v1323, %v1311
        %v1708 = vpack.c.b16 %v1324, %v1312
        %v1709 = vpack.c.b16 %v1325, %v1313
        %v1710 = vpack.c.b16 %v1326, %v1314
        %v1711 = vpack.c.b16 %v1339, %v1327
        %v1712 = vpack.c.b16 %v1340, %v1328
        %v1713 = vpack.c.b16 %v1341, %v1329
        %v1714 = vpack.c.b16 %v1342, %v1330
        %v1715 = vpack.c.b16 %v1343, %v1331
        %v1716 = vpack.c.b16 %v1344, %v1332
        %v1717 = vpack.c.b16 %v1345, %v1333
        %v1718 = vpack.c.b16 %v1346, %v1334
        %v1719 = vpack.c.b16 %v1347, %v1335
        %v1720 = vpack.c.b16 %v1348, %v1336
        %v1721 = vpack.c.b16 %v1349, %v1337
        %v1722 = vpack.c.b16 %v1350, %v1338
        %v1723 = vpack.c.b16 %v1363, %v1351
        %v1724 = vpack.c.b16 %v1364, %v1352
        %v1725 = vpack.c.b16 %v1365, %v1353
        %v1726 = vpack.c.b16 %v1366, %v1354
        %v1727 = vpack.c.b16 %v1367, %v1355
        %v1728 = vpack.c.b16 %v1368, %v1356
        %v1729 = vpack.c.b16 %v1369, %v1357
        %v1730 = vpack.c.b16 %v1370, %v1358
        %v1731 = vpack.c.b16 %v1371, %v1359
        %v1732 = vpack.c.b16 %v1372, %v1360
        %v1733 = vpack.c.b16 %v1373, %v1361
        %v1734 = vpack.c.b16 %v1374, %v1362
        %v1735 = vpack.c.b16 %v1387, %v1375
        %v1736 = vpack.c.b16 %v1388, %v1376
        %v1737 = vpack.c.b16 %v1389, %v1377
        %v1738 = vpack.c.b16 %v1390, %v1378
        %v1739 = vpack.c.b16 %v1391, %v1379
        %v1740 = vpack.c.b16 %v1392, %v1380
        %v1741 = vpack.c.b16 %v1393, %v1381
        %v1742 = vpack.c.b16 %v1394, %v1382
        %v1743 = vpack.c.b16 %v1395, %v1383
        %v1744 = vpack.c.b16 %v1396, %v1384
        %v1745 = vpack.c.b16 %v1397, %v1385
        %v1746 = vpack.c.b16 %v1398, %v1386
        %v1747 = vpack.c.b16 %v1411, %v1399
        %v1748 = vpack.c.b16 %v1412, %v1400
        %v1749 = vpack.c.b16 %v1413, %v1401
        %v1750 = vpack.c.b16 %v1414, %v1402
        %v1751 = vpack.c.b16 %v1415, %v1403
        %v1752 = vpack.c.b16 %v1416, %v1404
        %v1753 = vpack.c.b16 %v1417, %v1405
        %v1754 = vpack.c.b16 %v1418, %v1406
        %v1755 = vpack.c.b16 %v1419, %v1407
        %v1756 = vpack.c.b16 %v1420, %v1408
        %v1757 = vpack.c.b16 %v1421, %v1409
        %v1758 = vpack.c.b16 %v1422, %v1410
        %v1759 = vpack.c.b16 %v1435, %v1423
        %v1760 = vpack.c.b16 %v1436, %v1424
        %v1761 = vpack.c.b16 %v1437, %v1425
        %v1762 = vpack.c.b16 %v1438, %v1426
        %v1763 = vpack.c.b16 %v1439, %v1427
        %v1764 = vpack.c.b16 %v1440, %v1428
        %v1765 = vpack.c.b16 %v1441, %v1429
        %v1766 = vpack.c.b16 %v1442, %v1430
        %v1767 = vpack.c.b16 %v1443, %v1431
        %v1768 = vpack.c.b16 %v1444, %v1432
        %v1769 = vpack.c.b16 %v1445, %v1433
        %v1770 = vpack.c.b16 %v1446, %v1434
        %v1771 = vpack.c.b16 %v1459, %v1447
        %v1772 = vpack.c.b16 %v1460, %v1448
        %v1773 = vpack.c.b16 %v1461, %v1449
        %v1774 = vpack.c.b16 %v1462, %v1450
        %v1775 = vpack.c.b16 %v1463, %v1451
        %v1776 = vpack.c.b16 %v1464, %v1452
        %v1777 = vpack.c.b16 %v1465, %v1453
        %v1778 = vpack.c.b16 %v1466, %v1454
        %v1779 = vpack.c.b16 %v1467, %v1455
        %v1780 = vpack.c.b16 %v1468, %v1456
        %v1781 = vpack.c.b16 %v1469, %v1457
        %v1782 = vpack.c.b16 %v1470, %v1458
        %v1783 = vpack.c.b16 %v1483, %v1471
        %v1784 = vpack.c.b16 %v1484, %v1472
        %v1785 = vpack.c.b16 %v1485, %v1473
        %v1786 = vpack.c.b16 %v1486, %v1474
        %v1787 = vpack.c.b16 %v1487, %v1475
        %v1788 = vpack.c.b16 %v1488, %v1476
        %v1789 = vpack.c.b16 %v1489, %v1477
        %v1790 = vpack.c.b16 %v1490, %v1478
        %v1791 = vpack.c.b16 %v1491, %v1479
        %v1792 = vpack.c.b16 %v1492, %v1480
        %v1793 = vpack.c.b16 %v1493, %v1481
        %v1794 = vpack.c.b16 %v1494, %v1482
        %v1795 = vpack.c.b16 %v1507, %v1495
        %v1796 = vpack.c.b16 %v1508, %v1496
        %v1797 = vpack.c.b16 %v1509, %v1497
        %v1798 = vpack.c.b16 %v1510, %v1498
        %v1799 = vpack.c.b16 %v1511, %v1499
        %v1800 = vpack.c.b16 %v1512, %v1500
        %v1801 = vpack.c.b16 %v1513, %v1501
        %v1802 = vpack.c.b16 %v1514, %v1502
        %v1803 = vpack.c.b16 %v1515, %v1503
        %v1804 = vpack.c.b16 %v1516, %v1504
        %v1805 = vpack.c.b16 %v1517, %v1505
        %v1806 = vpack.c.b16 %v1518, %v1506
        %2095 = vmatpush.bf16.msra.mxu0 %v1603
        %2096 = vmatpush.bf16.msra.mxu0 %v1591
        %2097 = vmatpush.bf16.msra.mxu0 %v1579
        %2098 = vmatpush.bf16.msra.mxu0 %v1567
        %2099 = vmatpush.bf16.msra.mxu0 %v1555
        %2100 = vmatpush.bf16.msra.mxu0 %v1543
        %2101 = vmatpush.bf16.msra.mxu0 %v1531
        %2102 = vmatpush.bf16.msra.mxu0 %v1519
        %2103 = vmatmul.bf16.gmra.mxu0 %v315
        %v2104 = vpop.f32.mrf.mxu0
        %v2105 = vadd.f32 %v631, %v2104
        %v2106 = vpop.f32.mrf.mxu0
        %v2107 = vadd.f32 %v631, %v2106
        %2108 = vmatmul.bf16.gmra.mxu0 %v318
        %v2109 = vpop.f32.mrf.mxu0
        %v2110 = vadd.f32 %v631, %v2109
        %v2111 = vpop.f32.mrf.mxu0
        %v2112 = vadd.f32 %v631, %v2111
        %2113 = vmatmul.bf16.gmra.mxu0 %v321
        %v2114 = vpop.f32.mrf.mxu0
        %v2115 = vadd.f32 %v631, %v2114
        %v2116 = vpop.f32.mrf.mxu0
        %v2117 = vadd.f32 %v631, %v2116
        %2118 = vmatmul.bf16.gmra.mxu0 %v324
        %v2119 = vpop.f32.mrf.mxu0
        %v2120 = vadd.f32 %v631, %v2119
        %v2121 = vpop.f32.mrf.mxu0
        %v2122 = vadd.f32 %v631, %v2121
        %2123 = vmatmul.bf16.gmra.mxu0 %v327
        %v2124 = vpop.f32.mrf.mxu0
        %v2125 = vadd.f32 %v631, %v2124
        %v2126 = vpop.f32.mrf.mxu0
        %v2127 = vadd.f32 %v631, %v2126
        %2128 = vmatmul.bf16.gmra.mxu0 %v330
        %v2129 = vpop.f32.mrf.mxu0
        %v2130 = vadd.f32 %v631, %v2129
        %v2131 = vpop.f32.mrf.mxu0
        %v2132 = vadd.f32 %v631, %v2131
        %2133 = vmatmul.bf16.gmra.mxu0 %v333
        %v2134 = vpop.f32.mrf.mxu0
        %v2135 = vadd.f32 %v631, %v2134
        %v2136 = vpop.f32.mrf.mxu0
        %v2137 = vadd.f32 %v631, %v2136
        %2138 = vmatmul.bf16.gmra.mxu0 %v336
        %v2139 = vpop.f32.mrf.mxu0
        %v2140 = vadd.f32 %v631, %v2139
        %v2141 = vpop.f32.mrf.mxu0
        %v2142 = vadd.f32 %v631, %v2141
        %2143 = vdwg.mxu0
        %2144 = vmatpush.bf16.msra.mxu0 %v1699
        %2145 = vmatpush.bf16.msra.mxu0 %v1687
        %2146 = vmatpush.bf16.msra.mxu0 %v1675
        %2147 = vmatpush.bf16.msra.mxu0 %v1663
        %2148 = vmatpush.bf16.msra.mxu0 %v1651
        %2149 = vmatpush.bf16.msra.mxu0 %v1639
        %2150 = vmatpush.bf16.msra.mxu0 %v1627
        %2151 = vmatpush.bf16.msra.mxu0 %v1615
        %2152 = vmatmul.bf16.gmra.mxu0 %v316
        %v2153 = vpop.f32.mrf.mxu0
        %v2154 = vadd.f32 %v2105, %v2153
        %v2155 = vpop.f32.mrf.mxu0
        %v2156 = vadd.f32 %v2107, %v2155
        %2157 = vmatmul.bf16.gmra.mxu0 %v319
        %v2158 = vpop.f32.mrf.mxu0
        %v2159 = vadd.f32 %v2110, %v2158
        %v2160 = vpop.f32.mrf.mxu0
        %v2161 = vadd.f32 %v2112, %v2160
        %2162 = vmatmul.bf16.gmra.mxu0 %v322
        %v2163 = vpop.f32.mrf.mxu0
        %v2164 = vadd.f32 %v2115, %v2163
        %v2165 = vpop.f32.mrf.mxu0
        %v2166 = vadd.f32 %v2117, %v2165
        %2167 = vmatmul.bf16.gmra.mxu0 %v325
        %v2168 = vpop.f32.mrf.mxu0
        %v2169 = vadd.f32 %v2120, %v2168
        %v2170 = vpop.f32.mrf.mxu0
        %v2171 = vadd.f32 %v2122, %v2170
        %2172 = vmatmul.bf16.gmra.mxu0 %v328
        %v2173 = vpop.f32.mrf.mxu0
        %v2174 = vadd.f32 %v2125, %v2173
        %v2175 = vpop.f32.mrf.mxu0
        %v2176 = vadd.f32 %v2127, %v2175
        %2177 = vmatmul.bf16.gmra.mxu0 %v331
        %v2178 = vpop.f32.mrf.mxu0
        %v2179 = vadd.f32 %v2130, %v2178
        %v2180 = vpop.f32.mrf.mxu0
        %v2181 = vadd.f32 %v2132, %v2180
        %2182 = vmatmul.bf16.gmra.mxu0 %v334
        %v2183 = vpop.f32.mrf.mxu0
        %v2184 = vadd.f32 %v2135, %v2183
        %v2185 = vpop.f32.mrf.mxu0
        %v2186 = vadd.f32 %v2137, %v2185
        %2187 = vmatmul.bf16.gmra.mxu0 %v337
        %v2188 = vpop.f32.mrf.mxu0
        %v2189 = vadd.f32 %v2140, %v2188
        %v2190 = vpop.f32.mrf.mxu0
        %v2191 = vadd.f32 %v2142, %v2190
        %2192 = vdwg.mxu0
        %2193 = vmatpush.bf16.msra.mxu0 %v1795
        %2194 = vmatpush.bf16.msra.mxu0 %v1783
        %2195 = vmatpush.bf16.msra.mxu0 %v1771
        %2196 = vmatpush.bf16.msra.mxu0 %v1759
        %2197 = vmatpush.bf16.msra.mxu0 %v1747
        %2198 = vmatpush.bf16.msra.mxu0 %v1735
        %2199 = vmatpush.bf16.msra.mxu0 %v1723
        %2200 = vmatpush.bf16.msra.mxu0 %v1711
        %2201 = vmatmul.bf16.gmra.mxu0 %v317
        %v2202 = vpop.f32.mrf.mxu0
        %v2203 = vadd.f32 %v2154, %v2202
        %v2204 = vpop.f32.mrf.mxu0
        %v2205 = vadd.f32 %v2156, %v2204
        %2206 = vmatmul.bf16.gmra.mxu0 %v320
        %v2207 = vpop.f32.mrf.mxu0
        %v2208 = vadd.f32 %v2159, %v2207
        %v2209 = vpop.f32.mrf.mxu0
        %v2210 = vadd.f32 %v2161, %v2209
        %2211 = vmatmul.bf16.gmra.mxu0 %v323
        %v2212 = vpop.f32.mrf.mxu0
        %v2213 = vadd.f32 %v2164, %v2212
        %v2214 = vpop.f32.mrf.mxu0
        %v2215 = vadd.f32 %v2166, %v2214
        %2216 = vmatmul.bf16.gmra.mxu0 %v326
        %v2217 = vpop.f32.mrf.mxu0
        %v2218 = vadd.f32 %v2169, %v2217
        %v2219 = vpop.f32.mrf.mxu0
        %v2220 = vadd.f32 %v2171, %v2219
        %2221 = vmatmul.bf16.gmra.mxu0 %v329
        %v2222 = vpop.f32.mrf.mxu0
        %v2223 = vadd.f32 %v2174, %v2222
        %v2224 = vpop.f32.mrf.mxu0
        %v2225 = vadd.f32 %v2176, %v2224
        %2226 = vmatmul.bf16.gmra.mxu0 %v332
        %v2227 = vpop.f32.mrf.mxu0
        %v2228 = vadd.f32 %v2179, %v2227
        %v2229 = vpop.f32.mrf.mxu0
        %v2230 = vadd.f32 %v2181, %v2229
        %2231 = vmatmul.bf16.gmra.mxu0 %v335
        %v2232 = vpop.f32.mrf.mxu0
        %v2233 = vadd.f32 %v2184, %v2232
        %v2234 = vpop.f32.mrf.mxu0
        %v2235 = vadd.f32 %v2186, %v2234
        %2236 = vmatmul.bf16.gmra.mxu0 %v338
        %v2237 = vpop.f32.mrf.mxu0
        %v2238 = vadd.f32 %v2189, %v2237
        %v2239 = vpop.f32.mrf.mxu0
        %v2240 = vadd.f32 %v2191, %v2239
        %2241 = vdwg.mxu0
        %2242 = vmatpush.bf16.msra.mxu0 %v1604
        %2243 = vmatpush.bf16.msra.mxu0 %v1592
        %2244 = vmatpush.bf16.msra.mxu0 %v1580
        %2245 = vmatpush.bf16.msra.mxu0 %v1568
        %2246 = vmatpush.bf16.msra.mxu0 %v1556
        %2247 = vmatpush.bf16.msra.mxu0 %v1544
        %2248 = vmatpush.bf16.msra.mxu0 %v1532
        %2249 = vmatpush.bf16.msra.mxu0 %v1520
        %2250 = vmatmul.bf16.gmra.mxu0 %v315
        %v2251 = vpop.f32.mrf.mxu0
        %v2252 = vadd.f32 %v632, %v2251
        %v2253 = vpop.f32.mrf.mxu0
        %v2254 = vadd.f32 %v632, %v2253
        %2255 = vmatmul.bf16.gmra.mxu0 %v318
        %v2256 = vpop.f32.mrf.mxu0
        %v2257 = vadd.f32 %v632, %v2256
        %v2258 = vpop.f32.mrf.mxu0
        %v2259 = vadd.f32 %v632, %v2258
        %2260 = vmatmul.bf16.gmra.mxu0 %v321
        %v2261 = vpop.f32.mrf.mxu0
        %v2262 = vadd.f32 %v632, %v2261
        %v2263 = vpop.f32.mrf.mxu0
        %v2264 = vadd.f32 %v632, %v2263
        %2265 = vmatmul.bf16.gmra.mxu0 %v324
        %v2266 = vpop.f32.mrf.mxu0
        %v2267 = vadd.f32 %v632, %v2266
        %v2268 = vpop.f32.mrf.mxu0
        %v2269 = vadd.f32 %v632, %v2268
        %2270 = vmatmul.bf16.gmra.mxu0 %v327
        %v2271 = vpop.f32.mrf.mxu0
        %v2272 = vadd.f32 %v632, %v2271
        %v2273 = vpop.f32.mrf.mxu0
        %v2274 = vadd.f32 %v632, %v2273
        %2275 = vmatmul.bf16.gmra.mxu0 %v330
        %v2276 = vpop.f32.mrf.mxu0
        %v2277 = vadd.f32 %v632, %v2276
        %v2278 = vpop.f32.mrf.mxu0
        %v2279 = vadd.f32 %v632, %v2278
        %2280 = vmatmul.bf16.gmra.mxu0 %v333
        %v2281 = vpop.f32.mrf.mxu0
        %v2282 = vadd.f32 %v632, %v2281
        %v2283 = vpop.f32.mrf.mxu0
        %v2284 = vadd.f32 %v632, %v2283
        %2285 = vmatmul.bf16.gmra.mxu0 %v336
        %v2286 = vpop.f32.mrf.mxu0
        %v2287 = vadd.f32 %v632, %v2286
        %v2288 = vpop.f32.mrf.mxu0
        %v2289 = vadd.f32 %v632, %v2288
        %2290 = vdwg.mxu0
        %2291 = vmatpush.bf16.msra.mxu0 %v1700
        %2292 = vmatpush.bf16.msra.mxu0 %v1688
        %2293 = vmatpush.bf16.msra.mxu0 %v1676
        %2294 = vmatpush.bf16.msra.mxu0 %v1664
        %2295 = vmatpush.bf16.msra.mxu0 %v1652
        %2296 = vmatpush.bf16.msra.mxu0 %v1640
        %2297 = vmatpush.bf16.msra.mxu0 %v1628
        %2298 = vmatpush.bf16.msra.mxu0 %v1616
        %2299 = vmatmul.bf16.gmra.mxu0 %v316
        %v2300 = vpop.f32.mrf.mxu0
        %v2301 = vadd.f32 %v2252, %v2300
        %v2302 = vpop.f32.mrf.mxu0
        %v2303 = vadd.f32 %v2254, %v2302
        %2304 = vmatmul.bf16.gmra.mxu0 %v319
        %v2305 = vpop.f32.mrf.mxu0
        %v2306 = vadd.f32 %v2257, %v2305
        %v2307 = vpop.f32.mrf.mxu0
        %v2308 = vadd.f32 %v2259, %v2307
        %2309 = vmatmul.bf16.gmra.mxu0 %v322
        %v2310 = vpop.f32.mrf.mxu0
        %v2311 = vadd.f32 %v2262, %v2310
        %v2312 = vpop.f32.mrf.mxu0
        %v2313 = vadd.f32 %v2264, %v2312
        %2314 = vmatmul.bf16.gmra.mxu0 %v325
        %v2315 = vpop.f32.mrf.mxu0
        %v2316 = vadd.f32 %v2267, %v2315
        %v2317 = vpop.f32.mrf.mxu0
        %v2318 = vadd.f32 %v2269, %v2317
        %2319 = vmatmul.bf16.gmra.mxu0 %v328
        %v2320 = vpop.f32.mrf.mxu0
        %v2321 = vadd.f32 %v2272, %v2320
        %v2322 = vpop.f32.mrf.mxu0
        %v2323 = vadd.f32 %v2274, %v2322
        %2324 = vmatmul.bf16.gmra.mxu0 %v331
        %v2325 = vpop.f32.mrf.mxu0
        %v2326 = vadd.f32 %v2277, %v2325
        %v2327 = vpop.f32.mrf.mxu0
        %v2328 = vadd.f32 %v2279, %v2327
        %2329 = vmatmul.bf16.gmra.mxu0 %v334
        %v2330 = vpop.f32.mrf.mxu0
        %v2331 = vadd.f32 %v2282, %v2330
        %v2332 = vpop.f32.mrf.mxu0
        %v2333 = vadd.f32 %v2284, %v2332
        %2334 = vmatmul.bf16.gmra.mxu0 %v337
        %v2335 = vpop.f32.mrf.mxu0
        %v2336 = vadd.f32 %v2287, %v2335
        %v2337 = vpop.f32.mrf.mxu0
        %v2338 = vadd.f32 %v2289, %v2337
        %2339 = vdwg.mxu0
        %2340 = vmatpush.bf16.msra.mxu0 %v1796
        %2341 = vmatpush.bf16.msra.mxu0 %v1784
        %2342 = vmatpush.bf16.msra.mxu0 %v1772
        %2343 = vmatpush.bf16.msra.mxu0 %v1760
        %2344 = vmatpush.bf16.msra.mxu0 %v1748
        %2345 = vmatpush.bf16.msra.mxu0 %v1736
        %2346 = vmatpush.bf16.msra.mxu0 %v1724
        %2347 = vmatpush.bf16.msra.mxu0 %v1712
        %2348 = vmatmul.bf16.gmra.mxu0 %v317
        %v2349 = vpop.f32.mrf.mxu0
        %v2350 = vadd.f32 %v2301, %v2349
        %v2351 = vpop.f32.mrf.mxu0
        %v2352 = vadd.f32 %v2303, %v2351
        %2353 = vmatmul.bf16.gmra.mxu0 %v320
        %v2354 = vpop.f32.mrf.mxu0
        %v2355 = vadd.f32 %v2306, %v2354
        %v2356 = vpop.f32.mrf.mxu0
        %v2357 = vadd.f32 %v2308, %v2356
        %2358 = vmatmul.bf16.gmra.mxu0 %v323
        %v2359 = vpop.f32.mrf.mxu0
        %v2360 = vadd.f32 %v2311, %v2359
        %v2361 = vpop.f32.mrf.mxu0
        %v2362 = vadd.f32 %v2313, %v2361
        %2363 = vmatmul.bf16.gmra.mxu0 %v326
        %v2364 = vpop.f32.mrf.mxu0
        %v2365 = vadd.f32 %v2316, %v2364
        %v2366 = vpop.f32.mrf.mxu0
        %v2367 = vadd.f32 %v2318, %v2366
        %2368 = vmatmul.bf16.gmra.mxu0 %v329
        %v2369 = vpop.f32.mrf.mxu0
        %v2370 = vadd.f32 %v2321, %v2369
        %v2371 = vpop.f32.mrf.mxu0
        %v2372 = vadd.f32 %v2323, %v2371
        %2373 = vmatmul.bf16.gmra.mxu0 %v332
        %v2374 = vpop.f32.mrf.mxu0
        %v2375 = vadd.f32 %v2326, %v2374
        %v2376 = vpop.f32.mrf.mxu0
        %v2377 = vadd.f32 %v2328, %v2376
        %2378 = vmatmul.bf16.gmra.mxu0 %v335
        %v2379 = vpop.f32.mrf.mxu0
        %v2380 = vadd.f32 %v2331, %v2379
        %v2381 = vpop.f32.mrf.mxu0
        %v2382 = vadd.f32 %v2333, %v2381
        %2383 = vmatmul.bf16.gmra.mxu0 %v338
        %v2384 = vpop.f32.mrf.mxu0
        %v2385 = vadd.f32 %v2336, %v2384
        %v2386 = vpop.f32.mrf.mxu0
        %v2387 = vadd.f32 %v2338, %v2386
        %2388 = vdwg.mxu0
        %2389 = vmatpush.bf16.msra.mxu0 %v1605
        %2390 = vmatpush.bf16.msra.mxu0 %v1593
        %2391 = vmatpush.bf16.msra.mxu0 %v1581
        %2392 = vmatpush.bf16.msra.mxu0 %v1569
        %2393 = vmatpush.bf16.msra.mxu0 %v1557
        %2394 = vmatpush.bf16.msra.mxu0 %v1545
        %2395 = vmatpush.bf16.msra.mxu0 %v1533
        %2396 = vmatpush.bf16.msra.mxu0 %v1521
        %2397 = vmatmul.bf16.gmra.mxu0 %v315
        %v2398 = vpop.f32.mrf.mxu0
        %v2399 = vadd.f32 %v633, %v2398
        %v2400 = vpop.f32.mrf.mxu0
        %v2401 = vadd.f32 %v633, %v2400
        %2402 = vmatmul.bf16.gmra.mxu0 %v318
        %v2403 = vpop.f32.mrf.mxu0
        %v2404 = vadd.f32 %v633, %v2403
        %v2405 = vpop.f32.mrf.mxu0
        %v2406 = vadd.f32 %v633, %v2405
        %2407 = vmatmul.bf16.gmra.mxu0 %v321
        %v2408 = vpop.f32.mrf.mxu0
        %v2409 = vadd.f32 %v633, %v2408
        %v2410 = vpop.f32.mrf.mxu0
        %v2411 = vadd.f32 %v633, %v2410
        %2412 = vmatmul.bf16.gmra.mxu0 %v324
        %v2413 = vpop.f32.mrf.mxu0
        %v2414 = vadd.f32 %v633, %v2413
        %v2415 = vpop.f32.mrf.mxu0
        %v2416 = vadd.f32 %v633, %v2415
        %2417 = vmatmul.bf16.gmra.mxu0 %v327
        %v2418 = vpop.f32.mrf.mxu0
        %v2419 = vadd.f32 %v633, %v2418
        %v2420 = vpop.f32.mrf.mxu0
        %v2421 = vadd.f32 %v633, %v2420
        %2422 = vmatmul.bf16.gmra.mxu0 %v330
        %v2423 = vpop.f32.mrf.mxu0
        %v2424 = vadd.f32 %v633, %v2423
        %v2425 = vpop.f32.mrf.mxu0
        %v2426 = vadd.f32 %v633, %v2425
        %2427 = vmatmul.bf16.gmra.mxu0 %v333
        %v2428 = vpop.f32.mrf.mxu0
        %v2429 = vadd.f32 %v633, %v2428
        %v2430 = vpop.f32.mrf.mxu0
        %v2431 = vadd.f32 %v633, %v2430
        %2432 = vmatmul.bf16.gmra.mxu0 %v336
        %v2433 = vpop.f32.mrf.mxu0
        %v2434 = vadd.f32 %v633, %v2433
        %v2435 = vpop.f32.mrf.mxu0
        %v2436 = vadd.f32 %v633, %v2435
        %2437 = vdwg.mxu0
        %2438 = vmatpush.bf16.msra.mxu0 %v1701
        %2439 = vmatpush.bf16.msra.mxu0 %v1689
        %2440 = vmatpush.bf16.msra.mxu0 %v1677
        %2441 = vmatpush.bf16.msra.mxu0 %v1665
        %2442 = vmatpush.bf16.msra.mxu0 %v1653
        %2443 = vmatpush.bf16.msra.mxu0 %v1641
        %2444 = vmatpush.bf16.msra.mxu0 %v1629
        %2445 = vmatpush.bf16.msra.mxu0 %v1617
        %2446 = vmatmul.bf16.gmra.mxu0 %v316
        %v2447 = vpop.f32.mrf.mxu0
        %v2448 = vadd.f32 %v2399, %v2447
        %v2449 = vpop.f32.mrf.mxu0
        %v2450 = vadd.f32 %v2401, %v2449
        %2451 = vmatmul.bf16.gmra.mxu0 %v319
        %v2452 = vpop.f32.mrf.mxu0
        %v2453 = vadd.f32 %v2404, %v2452
        %v2454 = vpop.f32.mrf.mxu0
        %v2455 = vadd.f32 %v2406, %v2454
        %2456 = vmatmul.bf16.gmra.mxu0 %v322
        %v2457 = vpop.f32.mrf.mxu0
        %v2458 = vadd.f32 %v2409, %v2457
        %v2459 = vpop.f32.mrf.mxu0
        %v2460 = vadd.f32 %v2411, %v2459
        %2461 = vmatmul.bf16.gmra.mxu0 %v325
        %v2462 = vpop.f32.mrf.mxu0
        %v2463 = vadd.f32 %v2414, %v2462
        %v2464 = vpop.f32.mrf.mxu0
        %v2465 = vadd.f32 %v2416, %v2464
        %2466 = vmatmul.bf16.gmra.mxu0 %v328
        %v2467 = vpop.f32.mrf.mxu0
        %v2468 = vadd.f32 %v2419, %v2467
        %v2469 = vpop.f32.mrf.mxu0
        %v2470 = vadd.f32 %v2421, %v2469
        %2471 = vmatmul.bf16.gmra.mxu0 %v331
        %v2472 = vpop.f32.mrf.mxu0
        %v2473 = vadd.f32 %v2424, %v2472
        %v2474 = vpop.f32.mrf.mxu0
        %v2475 = vadd.f32 %v2426, %v2474
        %2476 = vmatmul.bf16.gmra.mxu0 %v334
        %v2477 = vpop.f32.mrf.mxu0
        %v2478 = vadd.f32 %v2429, %v2477
        %v2479 = vpop.f32.mrf.mxu0
        %v2480 = vadd.f32 %v2431, %v2479
        %2481 = vmatmul.bf16.gmra.mxu0 %v337
        %v2482 = vpop.f32.mrf.mxu0
        %v2483 = vadd.f32 %v2434, %v2482
        %v2484 = vpop.f32.mrf.mxu0
        %v2485 = vadd.f32 %v2436, %v2484
        %2486 = vdwg.mxu0
        %2487 = vmatpush.bf16.msra.mxu0 %v1797
        %2488 = vmatpush.bf16.msra.mxu0 %v1785
        %2489 = vmatpush.bf16.msra.mxu0 %v1773
        %2490 = vmatpush.bf16.msra.mxu0 %v1761
        %2491 = vmatpush.bf16.msra.mxu0 %v1749
        %2492 = vmatpush.bf16.msra.mxu0 %v1737
        %2493 = vmatpush.bf16.msra.mxu0 %v1725
        %2494 = vmatpush.bf16.msra.mxu0 %v1713
        %2495 = vmatmul.bf16.gmra.mxu0 %v317
        %v2496 = vpop.f32.mrf.mxu0
        %v2497 = vadd.f32 %v2448, %v2496
        %v2498 = vpop.f32.mrf.mxu0
        %v2499 = vadd.f32 %v2450, %v2498
        %2500 = vmatmul.bf16.gmra.mxu0 %v320
        %v2501 = vpop.f32.mrf.mxu0
        %v2502 = vadd.f32 %v2453, %v2501
        %v2503 = vpop.f32.mrf.mxu0
        %v2504 = vadd.f32 %v2455, %v2503
        %2505 = vmatmul.bf16.gmra.mxu0 %v323
        %v2506 = vpop.f32.mrf.mxu0
        %v2507 = vadd.f32 %v2458, %v2506
        %v2508 = vpop.f32.mrf.mxu0
        %v2509 = vadd.f32 %v2460, %v2508
        %2510 = vmatmul.bf16.gmra.mxu0 %v326
        %v2511 = vpop.f32.mrf.mxu0
        %v2512 = vadd.f32 %v2463, %v2511
        %v2513 = vpop.f32.mrf.mxu0
        %v2514 = vadd.f32 %v2465, %v2513
        %2515 = vmatmul.bf16.gmra.mxu0 %v329
        %v2516 = vpop.f32.mrf.mxu0
        %v2517 = vadd.f32 %v2468, %v2516
        %v2518 = vpop.f32.mrf.mxu0
        %v2519 = vadd.f32 %v2470, %v2518
        %2520 = vmatmul.bf16.gmra.mxu0 %v332
        %v2521 = vpop.f32.mrf.mxu0
        %v2522 = vadd.f32 %v2473, %v2521
        %v2523 = vpop.f32.mrf.mxu0
        %v2524 = vadd.f32 %v2475, %v2523
        %2525 = vmatmul.bf16.gmra.mxu0 %v335
        %v2526 = vpop.f32.mrf.mxu0
        %v2527 = vadd.f32 %v2478, %v2526
        %v2528 = vpop.f32.mrf.mxu0
        %v2529 = vadd.f32 %v2480, %v2528
        %2530 = vmatmul.bf16.gmra.mxu0 %v338
        %v2531 = vpop.f32.mrf.mxu0
        %v2532 = vadd.f32 %v2483, %v2531
        %v2533 = vpop.f32.mrf.mxu0
        %v2534 = vadd.f32 %v2485, %v2533
        %2535 = vdwg.mxu0
        %2536 = vmatpush.bf16.msra.mxu0 %v1606
        %2537 = vmatpush.bf16.msra.mxu0 %v1594
        %2538 = vmatpush.bf16.msra.mxu0 %v1582
        %2539 = vmatpush.bf16.msra.mxu0 %v1570
        %2540 = vmatpush.bf16.msra.mxu0 %v1558
        %2541 = vmatpush.bf16.msra.mxu0 %v1546
        %2542 = vmatpush.bf16.msra.mxu0 %v1534
        %2543 = vmatpush.bf16.msra.mxu0 %v1522
        %2544 = vmatmul.bf16.gmra.mxu0 %v315
        %v2545 = vpop.f32.mrf.mxu0
        %v2546 = vadd.f32 %v634, %v2545
        %v2547 = vpop.f32.mrf.mxu0
        %v2548 = vadd.f32 %v634, %v2547
        %2549 = vmatmul.bf16.gmra.mxu0 %v318
        %v2550 = vpop.f32.mrf.mxu0
        %v2551 = vadd.f32 %v634, %v2550
        %v2552 = vpop.f32.mrf.mxu0
        %v2553 = vadd.f32 %v634, %v2552
        %2554 = vmatmul.bf16.gmra.mxu0 %v321
        %v2555 = vpop.f32.mrf.mxu0
        %v2556 = vadd.f32 %v634, %v2555
        %v2557 = vpop.f32.mrf.mxu0
        %v2558 = vadd.f32 %v634, %v2557
        %2559 = vmatmul.bf16.gmra.mxu0 %v324
        %v2560 = vpop.f32.mrf.mxu0
        %v2561 = vadd.f32 %v634, %v2560
        %v2562 = vpop.f32.mrf.mxu0
        %v2563 = vadd.f32 %v634, %v2562
        %2564 = vmatmul.bf16.gmra.mxu0 %v327
        %v2565 = vpop.f32.mrf.mxu0
        %v2566 = vadd.f32 %v634, %v2565
        %v2567 = vpop.f32.mrf.mxu0
        %v2568 = vadd.f32 %v634, %v2567
        %2569 = vmatmul.bf16.gmra.mxu0 %v330
        %v2570 = vpop.f32.mrf.mxu0
        %v2571 = vadd.f32 %v634, %v2570
        %v2572 = vpop.f32.mrf.mxu0
        %v2573 = vadd.f32 %v634, %v2572
        %2574 = vmatmul.bf16.gmra.mxu0 %v333
        %v2575 = vpop.f32.mrf.mxu0
        %v2576 = vadd.f32 %v634, %v2575
        %v2577 = vpop.f32.mrf.mxu0
        %v2578 = vadd.f32 %v634, %v2577
        %2579 = vmatmul.bf16.gmra.mxu0 %v336
        %v2580 = vpop.f32.mrf.mxu0
        %v2581 = vadd.f32 %v634, %v2580
        %v2582 = vpop.f32.mrf.mxu0
        %v2583 = vadd.f32 %v634, %v2582
        %2584 = vdwg.mxu0
        %2585 = vmatpush.bf16.msra.mxu0 %v1702
        %2586 = vmatpush.bf16.msra.mxu0 %v1690
        %2587 = vmatpush.bf16.msra.mxu0 %v1678
        %2588 = vmatpush.bf16.msra.mxu0 %v1666
        %2589 = vmatpush.bf16.msra.mxu0 %v1654
        %2590 = vmatpush.bf16.msra.mxu0 %v1642
        %2591 = vmatpush.bf16.msra.mxu0 %v1630
        %2592 = vmatpush.bf16.msra.mxu0 %v1618
        %2593 = vmatmul.bf16.gmra.mxu0 %v316
        %v2594 = vpop.f32.mrf.mxu0
        %v2595 = vadd.f32 %v2546, %v2594
        %v2596 = vpop.f32.mrf.mxu0
        %v2597 = vadd.f32 %v2548, %v2596
        %2598 = vmatmul.bf16.gmra.mxu0 %v319
        %v2599 = vpop.f32.mrf.mxu0
        %v2600 = vadd.f32 %v2551, %v2599
        %v2601 = vpop.f32.mrf.mxu0
        %v2602 = vadd.f32 %v2553, %v2601
        %2603 = vmatmul.bf16.gmra.mxu0 %v322
        %v2604 = vpop.f32.mrf.mxu0
        %v2605 = vadd.f32 %v2556, %v2604
        %v2606 = vpop.f32.mrf.mxu0
        %v2607 = vadd.f32 %v2558, %v2606
        %2608 = vmatmul.bf16.gmra.mxu0 %v325
        %v2609 = vpop.f32.mrf.mxu0
        %v2610 = vadd.f32 %v2561, %v2609
        %v2611 = vpop.f32.mrf.mxu0
        %v2612 = vadd.f32 %v2563, %v2611
        %2613 = vmatmul.bf16.gmra.mxu0 %v328
        %v2614 = vpop.f32.mrf.mxu0
        %v2615 = vadd.f32 %v2566, %v2614
        %v2616 = vpop.f32.mrf.mxu0
        %v2617 = vadd.f32 %v2568, %v2616
        %2618 = vmatmul.bf16.gmra.mxu0 %v331
        %v2619 = vpop.f32.mrf.mxu0
        %v2620 = vadd.f32 %v2571, %v2619
        %v2621 = vpop.f32.mrf.mxu0
        %v2622 = vadd.f32 %v2573, %v2621
        %2623 = vmatmul.bf16.gmra.mxu0 %v334
        %v2624 = vpop.f32.mrf.mxu0
        %v2625 = vadd.f32 %v2576, %v2624
        %v2626 = vpop.f32.mrf.mxu0
        %v2627 = vadd.f32 %v2578, %v2626
        %2628 = vmatmul.bf16.gmra.mxu0 %v337
        %v2629 = vpop.f32.mrf.mxu0
        %v2630 = vadd.f32 %v2581, %v2629
        %v2631 = vpop.f32.mrf.mxu0
        %v2632 = vadd.f32 %v2583, %v2631
        %2633 = vdwg.mxu0
        %2634 = vmatpush.bf16.msra.mxu0 %v1798
        %2635 = vmatpush.bf16.msra.mxu0 %v1786
        %2636 = vmatpush.bf16.msra.mxu0 %v1774
        %2637 = vmatpush.bf16.msra.mxu0 %v1762
        %2638 = vmatpush.bf16.msra.mxu0 %v1750
        %2639 = vmatpush.bf16.msra.mxu0 %v1738
        %2640 = vmatpush.bf16.msra.mxu0 %v1726
        %2641 = vmatpush.bf16.msra.mxu0 %v1714
        %2642 = vmatmul.bf16.gmra.mxu0 %v317
        %v2643 = vpop.f32.mrf.mxu0
        %v2644 = vadd.f32 %v2595, %v2643
        %v2645 = vpop.f32.mrf.mxu0
        %v2646 = vadd.f32 %v2597, %v2645
        %2647 = vmatmul.bf16.gmra.mxu0 %v320
        %v2648 = vpop.f32.mrf.mxu0
        %v2649 = vadd.f32 %v2600, %v2648
        %v2650 = vpop.f32.mrf.mxu0
        %v2651 = vadd.f32 %v2602, %v2650
        %2652 = vmatmul.bf16.gmra.mxu0 %v323
        %v2653 = vpop.f32.mrf.mxu0
        %v2654 = vadd.f32 %v2605, %v2653
        %v2655 = vpop.f32.mrf.mxu0
        %v2656 = vadd.f32 %v2607, %v2655
        %2657 = vmatmul.bf16.gmra.mxu0 %v326
        %v2658 = vpop.f32.mrf.mxu0
        %v2659 = vadd.f32 %v2610, %v2658
        %v2660 = vpop.f32.mrf.mxu0
        %v2661 = vadd.f32 %v2612, %v2660
        %2662 = vmatmul.bf16.gmra.mxu0 %v329
        %v2663 = vpop.f32.mrf.mxu0
        %v2664 = vadd.f32 %v2615, %v2663
        %v2665 = vpop.f32.mrf.mxu0
        %v2666 = vadd.f32 %v2617, %v2665
        %2667 = vmatmul.bf16.gmra.mxu0 %v332
        %v2668 = vpop.f32.mrf.mxu0
        %v2669 = vadd.f32 %v2620, %v2668
        %v2670 = vpop.f32.mrf.mxu0
        %v2671 = vadd.f32 %v2622, %v2670
        %2672 = vmatmul.bf16.gmra.mxu0 %v335
        %v2673 = vpop.f32.mrf.mxu0
        %v2674 = vadd.f32 %v2625, %v2673
        %v2675 = vpop.f32.mrf.mxu0
        %v2676 = vadd.f32 %v2627, %v2675
        %2677 = vmatmul.bf16.gmra.mxu0 %v338
        %v2678 = vpop.f32.mrf.mxu0
        %v2679 = vadd.f32 %v2630, %v2678
        %v2680 = vpop.f32.mrf.mxu0
        %v2681 = vadd.f32 %v2632, %v2680
        %2682 = vdwg.mxu0
        %2683 = vmatpush.bf16.msra.mxu0 %v1607
        %2684 = vmatpush.bf16.msra.mxu0 %v1595
        %2685 = vmatpush.bf16.msra.mxu0 %v1583
        %2686 = vmatpush.bf16.msra.mxu0 %v1571
        %2687 = vmatpush.bf16.msra.mxu0 %v1559
        %2688 = vmatpush.bf16.msra.mxu0 %v1547
        %2689 = vmatpush.bf16.msra.mxu0 %v1535
        %2690 = vmatpush.bf16.msra.mxu0 %v1523
        %2691 = vmatmul.bf16.gmra.mxu0 %v315
        %v2692 = vpop.f32.mrf.mxu0
        %v2693 = vadd.f32 %v635, %v2692
        %v2694 = vpop.f32.mrf.mxu0
        %v2695 = vadd.f32 %v635, %v2694
        %2696 = vmatmul.bf16.gmra.mxu0 %v318
        %v2697 = vpop.f32.mrf.mxu0
        %v2698 = vadd.f32 %v635, %v2697
        %v2699 = vpop.f32.mrf.mxu0
        %v2700 = vadd.f32 %v635, %v2699
        %2701 = vmatmul.bf16.gmra.mxu0 %v321
        %v2702 = vpop.f32.mrf.mxu0
        %v2703 = vadd.f32 %v635, %v2702
        %v2704 = vpop.f32.mrf.mxu0
        %v2705 = vadd.f32 %v635, %v2704
        %2706 = vmatmul.bf16.gmra.mxu0 %v324
        %v2707 = vpop.f32.mrf.mxu0
        %v2708 = vadd.f32 %v635, %v2707
        %v2709 = vpop.f32.mrf.mxu0
        %v2710 = vadd.f32 %v635, %v2709
        %2711 = vmatmul.bf16.gmra.mxu0 %v327
        %v2712 = vpop.f32.mrf.mxu0
        %v2713 = vadd.f32 %v635, %v2712
        %v2714 = vpop.f32.mrf.mxu0
        %v2715 = vadd.f32 %v635, %v2714
        %2716 = vmatmul.bf16.gmra.mxu0 %v330
        %v2717 = vpop.f32.mrf.mxu0
        %v2718 = vadd.f32 %v635, %v2717
        %v2719 = vpop.f32.mrf.mxu0
        %v2720 = vadd.f32 %v635, %v2719
        %2721 = vmatmul.bf16.gmra.mxu0 %v333
        %v2722 = vpop.f32.mrf.mxu0
        %v2723 = vadd.f32 %v635, %v2722
        %v2724 = vpop.f32.mrf.mxu0
        %v2725 = vadd.f32 %v635, %v2724
        %2726 = vmatmul.bf16.gmra.mxu0 %v336
        %v2727 = vpop.f32.mrf.mxu0
        %v2728 = vadd.f32 %v635, %v2727
        %v2729 = vpop.f32.mrf.mxu0
        %v2730 = vadd.f32 %v635, %v2729
        %2731 = vdwg.mxu0
        %2732 = vmatpush.bf16.msra.mxu0 %v1703
        %2733 = vmatpush.bf16.msra.mxu0 %v1691
        %2734 = vmatpush.bf16.msra.mxu0 %v1679
        %2735 = vmatpush.bf16.msra.mxu0 %v1667
        %2736 = vmatpush.bf16.msra.mxu0 %v1655
        %2737 = vmatpush.bf16.msra.mxu0 %v1643
        %2738 = vmatpush.bf16.msra.mxu0 %v1631
        %2739 = vmatpush.bf16.msra.mxu0 %v1619
        %2740 = vmatmul.bf16.gmra.mxu0 %v316
        %v2741 = vpop.f32.mrf.mxu0
        %v2742 = vadd.f32 %v2693, %v2741
        %v2743 = vpop.f32.mrf.mxu0
        %v2744 = vadd.f32 %v2695, %v2743
        %2745 = vmatmul.bf16.gmra.mxu0 %v319
        %v2746 = vpop.f32.mrf.mxu0
        %v2747 = vadd.f32 %v2698, %v2746
        %v2748 = vpop.f32.mrf.mxu0
        %v2749 = vadd.f32 %v2700, %v2748
        %2750 = vmatmul.bf16.gmra.mxu0 %v322
        %v2751 = vpop.f32.mrf.mxu0
        %v2752 = vadd.f32 %v2703, %v2751
        %v2753 = vpop.f32.mrf.mxu0
        %v2754 = vadd.f32 %v2705, %v2753
        %2755 = vmatmul.bf16.gmra.mxu0 %v325
        %v2756 = vpop.f32.mrf.mxu0
        %v2757 = vadd.f32 %v2708, %v2756
        %v2758 = vpop.f32.mrf.mxu0
        %v2759 = vadd.f32 %v2710, %v2758
        %2760 = vmatmul.bf16.gmra.mxu0 %v328
        %v2761 = vpop.f32.mrf.mxu0
        %v2762 = vadd.f32 %v2713, %v2761
        %v2763 = vpop.f32.mrf.mxu0
        %v2764 = vadd.f32 %v2715, %v2763
        %2765 = vmatmul.bf16.gmra.mxu0 %v331
        %v2766 = vpop.f32.mrf.mxu0
        %v2767 = vadd.f32 %v2718, %v2766
        %v2768 = vpop.f32.mrf.mxu0
        %v2769 = vadd.f32 %v2720, %v2768
        %2770 = vmatmul.bf16.gmra.mxu0 %v334
        %v2771 = vpop.f32.mrf.mxu0
        %v2772 = vadd.f32 %v2723, %v2771
        %v2773 = vpop.f32.mrf.mxu0
        %v2774 = vadd.f32 %v2725, %v2773
        %2775 = vmatmul.bf16.gmra.mxu0 %v337
        %v2776 = vpop.f32.mrf.mxu0
        %v2777 = vadd.f32 %v2728, %v2776
        %v2778 = vpop.f32.mrf.mxu0
        %v2779 = vadd.f32 %v2730, %v2778
        %2780 = vdwg.mxu0
        %2781 = vmatpush.bf16.msra.mxu0 %v1799
        %2782 = vmatpush.bf16.msra.mxu0 %v1787
        %2783 = vmatpush.bf16.msra.mxu0 %v1775
        %2784 = vmatpush.bf16.msra.mxu0 %v1763
        %2785 = vmatpush.bf16.msra.mxu0 %v1751
        %2786 = vmatpush.bf16.msra.mxu0 %v1739
        %2787 = vmatpush.bf16.msra.mxu0 %v1727
        %2788 = vmatpush.bf16.msra.mxu0 %v1715
        %2789 = vmatmul.bf16.gmra.mxu0 %v317
        %v2790 = vpop.f32.mrf.mxu0
        %v2791 = vadd.f32 %v2742, %v2790
        %v2792 = vpop.f32.mrf.mxu0
        %v2793 = vadd.f32 %v2744, %v2792
        %2794 = vmatmul.bf16.gmra.mxu0 %v320
        %v2795 = vpop.f32.mrf.mxu0
        %v2796 = vadd.f32 %v2747, %v2795
        %v2797 = vpop.f32.mrf.mxu0
        %v2798 = vadd.f32 %v2749, %v2797
        %2799 = vmatmul.bf16.gmra.mxu0 %v323
        %v2800 = vpop.f32.mrf.mxu0
        %v2801 = vadd.f32 %v2752, %v2800
        %v2802 = vpop.f32.mrf.mxu0
        %v2803 = vadd.f32 %v2754, %v2802
        %2804 = vmatmul.bf16.gmra.mxu0 %v326
        %v2805 = vpop.f32.mrf.mxu0
        %v2806 = vadd.f32 %v2757, %v2805
        %v2807 = vpop.f32.mrf.mxu0
        %v2808 = vadd.f32 %v2759, %v2807
        %2809 = vmatmul.bf16.gmra.mxu0 %v329
        %v2810 = vpop.f32.mrf.mxu0
        %v2811 = vadd.f32 %v2762, %v2810
        %v2812 = vpop.f32.mrf.mxu0
        %v2813 = vadd.f32 %v2764, %v2812
        %2814 = vmatmul.bf16.gmra.mxu0 %v332
        %v2815 = vpop.f32.mrf.mxu0
        %v2816 = vadd.f32 %v2767, %v2815
        %v2817 = vpop.f32.mrf.mxu0
        %v2818 = vadd.f32 %v2769, %v2817
        %2819 = vmatmul.bf16.gmra.mxu0 %v335
        %v2820 = vpop.f32.mrf.mxu0
        %v2821 = vadd.f32 %v2772, %v2820
        %v2822 = vpop.f32.mrf.mxu0
        %v2823 = vadd.f32 %v2774, %v2822
        %2824 = vmatmul.bf16.gmra.mxu0 %v338
        %v2825 = vpop.f32.mrf.mxu0
        %v2826 = vadd.f32 %v2777, %v2825
        %v2827 = vpop.f32.mrf.mxu0
        %v2828 = vadd.f32 %v2779, %v2827
        %2829 = vdwg.mxu0
        %2830 = vmatpush.bf16.msra.mxu0 %v1608
        %2831 = vmatpush.bf16.msra.mxu0 %v1596
        %2832 = vmatpush.bf16.msra.mxu0 %v1584
        %2833 = vmatpush.bf16.msra.mxu0 %v1572
        %2834 = vmatpush.bf16.msra.mxu0 %v1560
        %2835 = vmatpush.bf16.msra.mxu0 %v1548
        %2836 = vmatpush.bf16.msra.mxu0 %v1536
        %2837 = vmatpush.bf16.msra.mxu0 %v1524
        %2838 = vmatmul.bf16.gmra.mxu0 %v315
        %v2839 = vpop.f32.mrf.mxu0
        %v2840 = vadd.f32 %v636, %v2839
        %v2841 = vpop.f32.mrf.mxu0
        %v2842 = vadd.f32 %v636, %v2841
        %2843 = vmatmul.bf16.gmra.mxu0 %v318
        %v2844 = vpop.f32.mrf.mxu0
        %v2845 = vadd.f32 %v636, %v2844
        %v2846 = vpop.f32.mrf.mxu0
        %v2847 = vadd.f32 %v636, %v2846
        %2848 = vmatmul.bf16.gmra.mxu0 %v321
        %v2849 = vpop.f32.mrf.mxu0
        %v2850 = vadd.f32 %v636, %v2849
        %v2851 = vpop.f32.mrf.mxu0
        %v2852 = vadd.f32 %v636, %v2851
        %2853 = vmatmul.bf16.gmra.mxu0 %v324
        %v2854 = vpop.f32.mrf.mxu0
        %v2855 = vadd.f32 %v636, %v2854
        %v2856 = vpop.f32.mrf.mxu0
        %v2857 = vadd.f32 %v636, %v2856
        %2858 = vmatmul.bf16.gmra.mxu0 %v327
        %v2859 = vpop.f32.mrf.mxu0
        %v2860 = vadd.f32 %v636, %v2859
        %v2861 = vpop.f32.mrf.mxu0
        %v2862 = vadd.f32 %v636, %v2861
        %2863 = vmatmul.bf16.gmra.mxu0 %v330
        %v2864 = vpop.f32.mrf.mxu0
        %v2865 = vadd.f32 %v636, %v2864
        %v2866 = vpop.f32.mrf.mxu0
        %v2867 = vadd.f32 %v636, %v2866
        %2868 = vmatmul.bf16.gmra.mxu0 %v333
        %v2869 = vpop.f32.mrf.mxu0
        %v2870 = vadd.f32 %v636, %v2869
        %v2871 = vpop.f32.mrf.mxu0
        %v2872 = vadd.f32 %v636, %v2871
        %2873 = vmatmul.bf16.gmra.mxu0 %v336
        %v2874 = vpop.f32.mrf.mxu0
        %v2875 = vadd.f32 %v636, %v2874
        %v2876 = vpop.f32.mrf.mxu0
        %v2877 = vadd.f32 %v636, %v2876
        %2878 = vdwg.mxu0
        %2879 = vmatpush.bf16.msra.mxu0 %v1704
        %2880 = vmatpush.bf16.msra.mxu0 %v1692
        %2881 = vmatpush.bf16.msra.mxu0 %v1680
        %2882 = vmatpush.bf16.msra.mxu0 %v1668
        %2883 = vmatpush.bf16.msra.mxu0 %v1656
        %2884 = vmatpush.bf16.msra.mxu0 %v1644
        %2885 = vmatpush.bf16.msra.mxu0 %v1632
        %2886 = vmatpush.bf16.msra.mxu0 %v1620
        %2887 = vmatmul.bf16.gmra.mxu0 %v316
        %v2888 = vpop.f32.mrf.mxu0
        %v2889 = vadd.f32 %v2840, %v2888
        %v2890 = vpop.f32.mrf.mxu0
        %v2891 = vadd.f32 %v2842, %v2890
        %2892 = vmatmul.bf16.gmra.mxu0 %v319
        %v2893 = vpop.f32.mrf.mxu0
        %v2894 = vadd.f32 %v2845, %v2893
        %v2895 = vpop.f32.mrf.mxu0
        %v2896 = vadd.f32 %v2847, %v2895
        %2897 = vmatmul.bf16.gmra.mxu0 %v322
        %v2898 = vpop.f32.mrf.mxu0
        %v2899 = vadd.f32 %v2850, %v2898
        %v2900 = vpop.f32.mrf.mxu0
        %v2901 = vadd.f32 %v2852, %v2900
        %2902 = vmatmul.bf16.gmra.mxu0 %v325
        %v2903 = vpop.f32.mrf.mxu0
        %v2904 = vadd.f32 %v2855, %v2903
        %v2905 = vpop.f32.mrf.mxu0
        %v2906 = vadd.f32 %v2857, %v2905
        %2907 = vmatmul.bf16.gmra.mxu0 %v328
        %v2908 = vpop.f32.mrf.mxu0
        %v2909 = vadd.f32 %v2860, %v2908
        %v2910 = vpop.f32.mrf.mxu0
        %v2911 = vadd.f32 %v2862, %v2910
        %2912 = vmatmul.bf16.gmra.mxu0 %v331
        %v2913 = vpop.f32.mrf.mxu0
        %v2914 = vadd.f32 %v2865, %v2913
        %v2915 = vpop.f32.mrf.mxu0
        %v2916 = vadd.f32 %v2867, %v2915
        %2917 = vmatmul.bf16.gmra.mxu0 %v334
        %v2918 = vpop.f32.mrf.mxu0
        %v2919 = vadd.f32 %v2870, %v2918
        %v2920 = vpop.f32.mrf.mxu0
        %v2921 = vadd.f32 %v2872, %v2920
        %2922 = vmatmul.bf16.gmra.mxu0 %v337
        %v2923 = vpop.f32.mrf.mxu0
        %v2924 = vadd.f32 %v2875, %v2923
        %v2925 = vpop.f32.mrf.mxu0
        %v2926 = vadd.f32 %v2877, %v2925
        %2927 = vdwg.mxu0
        %2928 = vmatpush.bf16.msra.mxu0 %v1800
        %2929 = vmatpush.bf16.msra.mxu0 %v1788
        %2930 = vmatpush.bf16.msra.mxu0 %v1776
        %2931 = vmatpush.bf16.msra.mxu0 %v1764
        %2932 = vmatpush.bf16.msra.mxu0 %v1752
        %2933 = vmatpush.bf16.msra.mxu0 %v1740
        %2934 = vmatpush.bf16.msra.mxu0 %v1728
        %2935 = vmatpush.bf16.msra.mxu0 %v1716
        %2936 = vmatmul.bf16.gmra.mxu0 %v317
        %v2937 = vpop.f32.mrf.mxu0
        %v2938 = vadd.f32 %v2889, %v2937
        %v2939 = vpop.f32.mrf.mxu0
        %v2940 = vadd.f32 %v2891, %v2939
        %2941 = vmatmul.bf16.gmra.mxu0 %v320
        %v2942 = vpop.f32.mrf.mxu0
        %v2943 = vadd.f32 %v2894, %v2942
        %v2944 = vpop.f32.mrf.mxu0
        %v2945 = vadd.f32 %v2896, %v2944
        %2946 = vmatmul.bf16.gmra.mxu0 %v323
        %v2947 = vpop.f32.mrf.mxu0
        %v2948 = vadd.f32 %v2899, %v2947
        %v2949 = vpop.f32.mrf.mxu0
        %v2950 = vadd.f32 %v2901, %v2949
        %2951 = vmatmul.bf16.gmra.mxu0 %v326
        %v2952 = vpop.f32.mrf.mxu0
        %v2953 = vadd.f32 %v2904, %v2952
        %v2954 = vpop.f32.mrf.mxu0
        %v2955 = vadd.f32 %v2906, %v2954
        %2956 = vmatmul.bf16.gmra.mxu0 %v329
        %v2957 = vpop.f32.mrf.mxu0
        %v2958 = vadd.f32 %v2909, %v2957
        %v2959 = vpop.f32.mrf.mxu0
        %v2960 = vadd.f32 %v2911, %v2959
        %2961 = vmatmul.bf16.gmra.mxu0 %v332
        %v2962 = vpop.f32.mrf.mxu0
        %v2963 = vadd.f32 %v2914, %v2962
        %v2964 = vpop.f32.mrf.mxu0
        %v2965 = vadd.f32 %v2916, %v2964
        %2966 = vmatmul.bf16.gmra.mxu0 %v335
        %v2967 = vpop.f32.mrf.mxu0
        %v2968 = vadd.f32 %v2919, %v2967
        %v2969 = vpop.f32.mrf.mxu0
        %v2970 = vadd.f32 %v2921, %v2969
        %2971 = vmatmul.bf16.gmra.mxu0 %v338
        %v2972 = vpop.f32.mrf.mxu0
        %v2973 = vadd.f32 %v2924, %v2972
        %v2974 = vpop.f32.mrf.mxu0
        %v2975 = vadd.f32 %v2926, %v2974
        %2976 = vdwg.mxu0
        %2977 = vmatpush.bf16.msra.mxu0 %v1609
        %2978 = vmatpush.bf16.msra.mxu0 %v1597
        %2979 = vmatpush.bf16.msra.mxu0 %v1585
        %2980 = vmatpush.bf16.msra.mxu0 %v1573
        %2981 = vmatpush.bf16.msra.mxu0 %v1561
        %2982 = vmatpush.bf16.msra.mxu0 %v1549
        %2983 = vmatpush.bf16.msra.mxu0 %v1537
        %2984 = vmatpush.bf16.msra.mxu0 %v1525
        %2985 = vmatmul.bf16.gmra.mxu0 %v315
        %v2986 = vpop.f32.mrf.mxu0
        %v2987 = vadd.f32 %v637, %v2986
        %v2988 = vpop.f32.mrf.mxu0
        %v2989 = vadd.f32 %v637, %v2988
        %2990 = vmatmul.bf16.gmra.mxu0 %v318
        %v2991 = vpop.f32.mrf.mxu0
        %v2992 = vadd.f32 %v637, %v2991
        %v2993 = vpop.f32.mrf.mxu0
        %v2994 = vadd.f32 %v637, %v2993
        %2995 = vmatmul.bf16.gmra.mxu0 %v321
        %v2996 = vpop.f32.mrf.mxu0
        %v2997 = vadd.f32 %v637, %v2996
        %v2998 = vpop.f32.mrf.mxu0
        %v2999 = vadd.f32 %v637, %v2998
        %3000 = vmatmul.bf16.gmra.mxu0 %v324
        %v3001 = vpop.f32.mrf.mxu0
        %v3002 = vadd.f32 %v637, %v3001
        %v3003 = vpop.f32.mrf.mxu0
        %v3004 = vadd.f32 %v637, %v3003
        %3005 = vmatmul.bf16.gmra.mxu0 %v327
        %v3006 = vpop.f32.mrf.mxu0
        %v3007 = vadd.f32 %v637, %v3006
        %v3008 = vpop.f32.mrf.mxu0
        %v3009 = vadd.f32 %v637, %v3008
        %3010 = vmatmul.bf16.gmra.mxu0 %v330
        %v3011 = vpop.f32.mrf.mxu0
        %v3012 = vadd.f32 %v637, %v3011
        %v3013 = vpop.f32.mrf.mxu0
        %v3014 = vadd.f32 %v637, %v3013
        %3015 = vmatmul.bf16.gmra.mxu0 %v333
        %v3016 = vpop.f32.mrf.mxu0
        %v3017 = vadd.f32 %v637, %v3016
        %v3018 = vpop.f32.mrf.mxu0
        %v3019 = vadd.f32 %v637, %v3018
        %3020 = vmatmul.bf16.gmra.mxu0 %v336
        %v3021 = vpop.f32.mrf.mxu0
        %v3022 = vadd.f32 %v637, %v3021
        %v3023 = vpop.f32.mrf.mxu0
        %v3024 = vadd.f32 %v637, %v3023
        %3025 = vdwg.mxu0
        %3026 = vmatpush.bf16.msra.mxu0 %v1705
        %3027 = vmatpush.bf16.msra.mxu0 %v1693
        %3028 = vmatpush.bf16.msra.mxu0 %v1681
        %3029 = vmatpush.bf16.msra.mxu0 %v1669
        %3030 = vmatpush.bf16.msra.mxu0 %v1657
        %3031 = vmatpush.bf16.msra.mxu0 %v1645
        %3032 = vmatpush.bf16.msra.mxu0 %v1633
        %3033 = vmatpush.bf16.msra.mxu0 %v1621
        %3034 = vmatmul.bf16.gmra.mxu0 %v316
        %v3035 = vpop.f32.mrf.mxu0
        %v3036 = vadd.f32 %v2987, %v3035
        %v3037 = vpop.f32.mrf.mxu0
        %v3038 = vadd.f32 %v2989, %v3037
        %3039 = vmatmul.bf16.gmra.mxu0 %v319
        %v3040 = vpop.f32.mrf.mxu0
        %v3041 = vadd.f32 %v2992, %v3040
        %v3042 = vpop.f32.mrf.mxu0
        %v3043 = vadd.f32 %v2994, %v3042
        %3044 = vmatmul.bf16.gmra.mxu0 %v322
        %v3045 = vpop.f32.mrf.mxu0
        %v3046 = vadd.f32 %v2997, %v3045
        %v3047 = vpop.f32.mrf.mxu0
        %v3048 = vadd.f32 %v2999, %v3047
        %3049 = vmatmul.bf16.gmra.mxu0 %v325
        %v3050 = vpop.f32.mrf.mxu0
        %v3051 = vadd.f32 %v3002, %v3050
        %v3052 = vpop.f32.mrf.mxu0
        %v3053 = vadd.f32 %v3004, %v3052
        %3054 = vmatmul.bf16.gmra.mxu0 %v328
        %v3055 = vpop.f32.mrf.mxu0
        %v3056 = vadd.f32 %v3007, %v3055
        %v3057 = vpop.f32.mrf.mxu0
        %v3058 = vadd.f32 %v3009, %v3057
        %3059 = vmatmul.bf16.gmra.mxu0 %v331
        %v3060 = vpop.f32.mrf.mxu0
        %v3061 = vadd.f32 %v3012, %v3060
        %v3062 = vpop.f32.mrf.mxu0
        %v3063 = vadd.f32 %v3014, %v3062
        %3064 = vmatmul.bf16.gmra.mxu0 %v334
        %v3065 = vpop.f32.mrf.mxu0
        %v3066 = vadd.f32 %v3017, %v3065
        %v3067 = vpop.f32.mrf.mxu0
        %v3068 = vadd.f32 %v3019, %v3067
        %3069 = vmatmul.bf16.gmra.mxu0 %v337
        %v3070 = vpop.f32.mrf.mxu0
        %v3071 = vadd.f32 %v3022, %v3070
        %v3072 = vpop.f32.mrf.mxu0
        %v3073 = vadd.f32 %v3024, %v3072
        %3074 = vdwg.mxu0
        %3075 = vmatpush.bf16.msra.mxu0 %v1801
        %3076 = vmatpush.bf16.msra.mxu0 %v1789
        %3077 = vmatpush.bf16.msra.mxu0 %v1777
        %3078 = vmatpush.bf16.msra.mxu0 %v1765
        %3079 = vmatpush.bf16.msra.mxu0 %v1753
        %3080 = vmatpush.bf16.msra.mxu0 %v1741
        %3081 = vmatpush.bf16.msra.mxu0 %v1729
        %3082 = vmatpush.bf16.msra.mxu0 %v1717
        %3083 = vmatmul.bf16.gmra.mxu0 %v317
        %v3084 = vpop.f32.mrf.mxu0
        %v3085 = vadd.f32 %v3036, %v3084
        %v3086 = vpop.f32.mrf.mxu0
        %v3087 = vadd.f32 %v3038, %v3086
        %3088 = vmatmul.bf16.gmra.mxu0 %v320
        %v3089 = vpop.f32.mrf.mxu0
        %v3090 = vadd.f32 %v3041, %v3089
        %v3091 = vpop.f32.mrf.mxu0
        %v3092 = vadd.f32 %v3043, %v3091
        %3093 = vmatmul.bf16.gmra.mxu0 %v323
        %v3094 = vpop.f32.mrf.mxu0
        %v3095 = vadd.f32 %v3046, %v3094
        %v3096 = vpop.f32.mrf.mxu0
        %v3097 = vadd.f32 %v3048, %v3096
        %3098 = vmatmul.bf16.gmra.mxu0 %v326
        %v3099 = vpop.f32.mrf.mxu0
        %v3100 = vadd.f32 %v3051, %v3099
        %v3101 = vpop.f32.mrf.mxu0
        %v3102 = vadd.f32 %v3053, %v3101
        %3103 = vmatmul.bf16.gmra.mxu0 %v329
        %v3104 = vpop.f32.mrf.mxu0
        %v3105 = vadd.f32 %v3056, %v3104
        %v3106 = vpop.f32.mrf.mxu0
        %v3107 = vadd.f32 %v3058, %v3106
        %3108 = vmatmul.bf16.gmra.mxu0 %v332
        %v3109 = vpop.f32.mrf.mxu0
        %v3110 = vadd.f32 %v3061, %v3109
        %v3111 = vpop.f32.mrf.mxu0
        %v3112 = vadd.f32 %v3063, %v3111
        %3113 = vmatmul.bf16.gmra.mxu0 %v335
        %v3114 = vpop.f32.mrf.mxu0
        %v3115 = vadd.f32 %v3066, %v3114
        %v3116 = vpop.f32.mrf.mxu0
        %v3117 = vadd.f32 %v3068, %v3116
        %3118 = vmatmul.bf16.gmra.mxu0 %v338
        %v3119 = vpop.f32.mrf.mxu0
        %v3120 = vadd.f32 %v3071, %v3119
        %v3121 = vpop.f32.mrf.mxu0
        %v3122 = vadd.f32 %v3073, %v3121
        %3123 = vdwg.mxu0
        %3124 = vmatpush.bf16.msra.mxu0 %v1610
        %3125 = vmatpush.bf16.msra.mxu0 %v1598
        %3126 = vmatpush.bf16.msra.mxu0 %v1586
        %3127 = vmatpush.bf16.msra.mxu0 %v1574
        %3128 = vmatpush.bf16.msra.mxu0 %v1562
        %3129 = vmatpush.bf16.msra.mxu0 %v1550
        %3130 = vmatpush.bf16.msra.mxu0 %v1538
        %3131 = vmatpush.bf16.msra.mxu0 %v1526
        %3132 = vmatmul.bf16.gmra.mxu0 %v315
        %v3133 = vpop.f32.mrf.mxu0
        %v3134 = vadd.f32 %v638, %v3133
        %v3135 = vpop.f32.mrf.mxu0
        %v3136 = vadd.f32 %v638, %v3135
        %3137 = vmatmul.bf16.gmra.mxu0 %v318
        %v3138 = vpop.f32.mrf.mxu0
        %v3139 = vadd.f32 %v638, %v3138
        %v3140 = vpop.f32.mrf.mxu0
        %v3141 = vadd.f32 %v638, %v3140
        %3142 = vmatmul.bf16.gmra.mxu0 %v321
        %v3143 = vpop.f32.mrf.mxu0
        %v3144 = vadd.f32 %v638, %v3143
        %v3145 = vpop.f32.mrf.mxu0
        %v3146 = vadd.f32 %v638, %v3145
        %3147 = vmatmul.bf16.gmra.mxu0 %v324
        %v3148 = vpop.f32.mrf.mxu0
        %v3149 = vadd.f32 %v638, %v3148
        %v3150 = vpop.f32.mrf.mxu0
        %v3151 = vadd.f32 %v638, %v3150
        %3152 = vmatmul.bf16.gmra.mxu0 %v327
        %v3153 = vpop.f32.mrf.mxu0
        %v3154 = vadd.f32 %v638, %v3153
        %v3155 = vpop.f32.mrf.mxu0
        %v3156 = vadd.f32 %v638, %v3155
        %3157 = vmatmul.bf16.gmra.mxu0 %v330
        %v3158 = vpop.f32.mrf.mxu0
        %v3159 = vadd.f32 %v638, %v3158
        %v3160 = vpop.f32.mrf.mxu0
        %v3161 = vadd.f32 %v638, %v3160
        %3162 = vmatmul.bf16.gmra.mxu0 %v333
        %v3163 = vpop.f32.mrf.mxu0
        %v3164 = vadd.f32 %v638, %v3163
        %v3165 = vpop.f32.mrf.mxu0
        %v3166 = vadd.f32 %v638, %v3165
        %3167 = vmatmul.bf16.gmra.mxu0 %v336
        %v3168 = vpop.f32.mrf.mxu0
        %v3169 = vadd.f32 %v638, %v3168
        %v3170 = vpop.f32.mrf.mxu0
        %v3171 = vadd.f32 %v638, %v3170
        %3172 = vdwg.mxu0
        %3173 = vmatpush.bf16.msra.mxu0 %v1706
        %3174 = vmatpush.bf16.msra.mxu0 %v1694
        %3175 = vmatpush.bf16.msra.mxu0 %v1682
        %3176 = vmatpush.bf16.msra.mxu0 %v1670
        %3177 = vmatpush.bf16.msra.mxu0 %v1658
        %3178 = vmatpush.bf16.msra.mxu0 %v1646
        %3179 = vmatpush.bf16.msra.mxu0 %v1634
        %3180 = vmatpush.bf16.msra.mxu0 %v1622
        %3181 = vmatmul.bf16.gmra.mxu0 %v316
        %v3182 = vpop.f32.mrf.mxu0
        %v3183 = vadd.f32 %v3134, %v3182
        %v3184 = vpop.f32.mrf.mxu0
        %v3185 = vadd.f32 %v3136, %v3184
        %3186 = vmatmul.bf16.gmra.mxu0 %v319
        %v3187 = vpop.f32.mrf.mxu0
        %v3188 = vadd.f32 %v3139, %v3187
        %v3189 = vpop.f32.mrf.mxu0
        %v3190 = vadd.f32 %v3141, %v3189
        %3191 = vmatmul.bf16.gmra.mxu0 %v322
        %v3192 = vpop.f32.mrf.mxu0
        %v3193 = vadd.f32 %v3144, %v3192
        %v3194 = vpop.f32.mrf.mxu0
        %v3195 = vadd.f32 %v3146, %v3194
        %3196 = vmatmul.bf16.gmra.mxu0 %v325
        %v3197 = vpop.f32.mrf.mxu0
        %v3198 = vadd.f32 %v3149, %v3197
        %v3199 = vpop.f32.mrf.mxu0
        %v3200 = vadd.f32 %v3151, %v3199
        %3201 = vmatmul.bf16.gmra.mxu0 %v328
        %v3202 = vpop.f32.mrf.mxu0
        %v3203 = vadd.f32 %v3154, %v3202
        %v3204 = vpop.f32.mrf.mxu0
        %v3205 = vadd.f32 %v3156, %v3204
        %3206 = vmatmul.bf16.gmra.mxu0 %v331
        %v3207 = vpop.f32.mrf.mxu0
        %v3208 = vadd.f32 %v3159, %v3207
        %v3209 = vpop.f32.mrf.mxu0
        %v3210 = vadd.f32 %v3161, %v3209
        %3211 = vmatmul.bf16.gmra.mxu0 %v334
        %v3212 = vpop.f32.mrf.mxu0
        %v3213 = vadd.f32 %v3164, %v3212
        %v3214 = vpop.f32.mrf.mxu0
        %v3215 = vadd.f32 %v3166, %v3214
        %3216 = vmatmul.bf16.gmra.mxu0 %v337
        %v3217 = vpop.f32.mrf.mxu0
        %v3218 = vadd.f32 %v3169, %v3217
        %v3219 = vpop.f32.mrf.mxu0
        %v3220 = vadd.f32 %v3171, %v3219
        %3221 = vdwg.mxu0
        %3222 = vmatpush.bf16.msra.mxu0 %v1802
        %3223 = vmatpush.bf16.msra.mxu0 %v1790
        %3224 = vmatpush.bf16.msra.mxu0 %v1778
        %3225 = vmatpush.bf16.msra.mxu0 %v1766
        %3226 = vmatpush.bf16.msra.mxu0 %v1754
        %3227 = vmatpush.bf16.msra.mxu0 %v1742
        %3228 = vmatpush.bf16.msra.mxu0 %v1730
        %3229 = vmatpush.bf16.msra.mxu0 %v1718
        %3230 = vmatmul.bf16.gmra.mxu0 %v317
        %v3231 = vpop.f32.mrf.mxu0
        %v3232 = vadd.f32 %v3183, %v3231
        %v3233 = vpop.f32.mrf.mxu0
        %v3234 = vadd.f32 %v3185, %v3233
        %3235 = vmatmul.bf16.gmra.mxu0 %v320
        %v3236 = vpop.f32.mrf.mxu0
        %v3237 = vadd.f32 %v3188, %v3236
        %v3238 = vpop.f32.mrf.mxu0
        %v3239 = vadd.f32 %v3190, %v3238
        %3240 = vmatmul.bf16.gmra.mxu0 %v323
        %v3241 = vpop.f32.mrf.mxu0
        %v3242 = vadd.f32 %v3193, %v3241
        %v3243 = vpop.f32.mrf.mxu0
        %v3244 = vadd.f32 %v3195, %v3243
        %3245 = vmatmul.bf16.gmra.mxu0 %v326
        %v3246 = vpop.f32.mrf.mxu0
        %v3247 = vadd.f32 %v3198, %v3246
        %v3248 = vpop.f32.mrf.mxu0
        %v3249 = vadd.f32 %v3200, %v3248
        %3250 = vmatmul.bf16.gmra.mxu0 %v329
        %v3251 = vpop.f32.mrf.mxu0
        %v3252 = vadd.f32 %v3203, %v3251
        %v3253 = vpop.f32.mrf.mxu0
        %v3254 = vadd.f32 %v3205, %v3253
        %3255 = vmatmul.bf16.gmra.mxu0 %v332
        %v3256 = vpop.f32.mrf.mxu0
        %v3257 = vadd.f32 %v3208, %v3256
        %v3258 = vpop.f32.mrf.mxu0
        %v3259 = vadd.f32 %v3210, %v3258
        %3260 = vmatmul.bf16.gmra.mxu0 %v335
        %v3261 = vpop.f32.mrf.mxu0
        %v3262 = vadd.f32 %v3213, %v3261
        %v3263 = vpop.f32.mrf.mxu0
        %v3264 = vadd.f32 %v3215, %v3263
        %3265 = vmatmul.bf16.gmra.mxu0 %v338
        %v3266 = vpop.f32.mrf.mxu0
        %v3267 = vadd.f32 %v3218, %v3266
        %v3268 = vpop.f32.mrf.mxu0
        %v3269 = vadd.f32 %v3220, %v3268
        %3270 = vdwg.mxu0
        %3271 = vmatpush.bf16.msra.mxu0 %v1611
        %3272 = vmatpush.bf16.msra.mxu0 %v1599
        %3273 = vmatpush.bf16.msra.mxu0 %v1587
        %3274 = vmatpush.bf16.msra.mxu0 %v1575
        %3275 = vmatpush.bf16.msra.mxu0 %v1563
        %3276 = vmatpush.bf16.msra.mxu0 %v1551
        %3277 = vmatpush.bf16.msra.mxu0 %v1539
        %3278 = vmatpush.bf16.msra.mxu0 %v1527
        %3279 = vmatmul.bf16.gmra.mxu0 %v315
        %v3280 = vpop.f32.mrf.mxu0
        %v3281 = vadd.f32 %v639, %v3280
        %v3282 = vpop.f32.mrf.mxu0
        %v3283 = vadd.f32 %v639, %v3282
        %3284 = vmatmul.bf16.gmra.mxu0 %v318
        %v3285 = vpop.f32.mrf.mxu0
        %v3286 = vadd.f32 %v639, %v3285
        %v3287 = vpop.f32.mrf.mxu0
        %v3288 = vadd.f32 %v639, %v3287
        %3289 = vmatmul.bf16.gmra.mxu0 %v321
        %v3290 = vpop.f32.mrf.mxu0
        %v3291 = vadd.f32 %v639, %v3290
        %v3292 = vpop.f32.mrf.mxu0
        %v3293 = vadd.f32 %v639, %v3292
        %3294 = vmatmul.bf16.gmra.mxu0 %v324
        %v3295 = vpop.f32.mrf.mxu0
        %v3296 = vadd.f32 %v639, %v3295
        %v3297 = vpop.f32.mrf.mxu0
        %v3298 = vadd.f32 %v639, %v3297
        %3299 = vmatmul.bf16.gmra.mxu0 %v327
        %v3300 = vpop.f32.mrf.mxu0
        %v3301 = vadd.f32 %v639, %v3300
        %v3302 = vpop.f32.mrf.mxu0
        %v3303 = vadd.f32 %v639, %v3302
        %3304 = vmatmul.bf16.gmra.mxu0 %v330
        %v3305 = vpop.f32.mrf.mxu0
        %v3306 = vadd.f32 %v639, %v3305
        %v3307 = vpop.f32.mrf.mxu0
        %v3308 = vadd.f32 %v639, %v3307
        %3309 = vmatmul.bf16.gmra.mxu0 %v333
        %v3310 = vpop.f32.mrf.mxu0
        %v3311 = vadd.f32 %v639, %v3310
        %v3312 = vpop.f32.mrf.mxu0
        %v3313 = vadd.f32 %v639, %v3312
        %3314 = vmatmul.bf16.gmra.mxu0 %v336
        %v3315 = vpop.f32.mrf.mxu0
        %v3316 = vadd.f32 %v639, %v3315
        %v3317 = vpop.f32.mrf.mxu0
        %v3318 = vadd.f32 %v639, %v3317
        %3319 = vdwg.mxu0
        %3320 = vmatpush.bf16.msra.mxu0 %v1707
        %3321 = vmatpush.bf16.msra.mxu0 %v1695
        %3322 = vmatpush.bf16.msra.mxu0 %v1683
        %3323 = vmatpush.bf16.msra.mxu0 %v1671
        %3324 = vmatpush.bf16.msra.mxu0 %v1659
        %3325 = vmatpush.bf16.msra.mxu0 %v1647
        %3326 = vmatpush.bf16.msra.mxu0 %v1635
        %3327 = vmatpush.bf16.msra.mxu0 %v1623
        %3328 = vmatmul.bf16.gmra.mxu0 %v316
        %v3329 = vpop.f32.mrf.mxu0
        %v3330 = vadd.f32 %v3281, %v3329
        %v3331 = vpop.f32.mrf.mxu0
        %v3332 = vadd.f32 %v3283, %v3331
        %3333 = vmatmul.bf16.gmra.mxu0 %v319
        %v3334 = vpop.f32.mrf.mxu0
        %v3335 = vadd.f32 %v3286, %v3334
        %v3336 = vpop.f32.mrf.mxu0
        %v3337 = vadd.f32 %v3288, %v3336
        %3338 = vmatmul.bf16.gmra.mxu0 %v322
        %v3339 = vpop.f32.mrf.mxu0
        %v3340 = vadd.f32 %v3291, %v3339
        %v3341 = vpop.f32.mrf.mxu0
        %v3342 = vadd.f32 %v3293, %v3341
        %3343 = vmatmul.bf16.gmra.mxu0 %v325
        %v3344 = vpop.f32.mrf.mxu0
        %v3345 = vadd.f32 %v3296, %v3344
        %v3346 = vpop.f32.mrf.mxu0
        %v3347 = vadd.f32 %v3298, %v3346
        %3348 = vmatmul.bf16.gmra.mxu0 %v328
        %v3349 = vpop.f32.mrf.mxu0
        %v3350 = vadd.f32 %v3301, %v3349
        %v3351 = vpop.f32.mrf.mxu0
        %v3352 = vadd.f32 %v3303, %v3351
        %3353 = vmatmul.bf16.gmra.mxu0 %v331
        %v3354 = vpop.f32.mrf.mxu0
        %v3355 = vadd.f32 %v3306, %v3354
        %v3356 = vpop.f32.mrf.mxu0
        %v3357 = vadd.f32 %v3308, %v3356
        %3358 = vmatmul.bf16.gmra.mxu0 %v334
        %v3359 = vpop.f32.mrf.mxu0
        %v3360 = vadd.f32 %v3311, %v3359
        %v3361 = vpop.f32.mrf.mxu0
        %v3362 = vadd.f32 %v3313, %v3361
        %3363 = vmatmul.bf16.gmra.mxu0 %v337
        %v3364 = vpop.f32.mrf.mxu0
        %v3365 = vadd.f32 %v3316, %v3364
        %v3366 = vpop.f32.mrf.mxu0
        %v3367 = vadd.f32 %v3318, %v3366
        %3368 = vdwg.mxu0
        %3369 = vmatpush.bf16.msra.mxu0 %v1803
        %3370 = vmatpush.bf16.msra.mxu0 %v1791
        %3371 = vmatpush.bf16.msra.mxu0 %v1779
        %3372 = vmatpush.bf16.msra.mxu0 %v1767
        %3373 = vmatpush.bf16.msra.mxu0 %v1755
        %3374 = vmatpush.bf16.msra.mxu0 %v1743
        %3375 = vmatpush.bf16.msra.mxu0 %v1731
        %3376 = vmatpush.bf16.msra.mxu0 %v1719
        %3377 = vmatmul.bf16.gmra.mxu0 %v317
        %v3378 = vpop.f32.mrf.mxu0
        %v3379 = vadd.f32 %v3330, %v3378
        %v3380 = vpop.f32.mrf.mxu0
        %v3381 = vadd.f32 %v3332, %v3380
        %3382 = vmatmul.bf16.gmra.mxu0 %v320
        %v3383 = vpop.f32.mrf.mxu0
        %v3384 = vadd.f32 %v3335, %v3383
        %v3385 = vpop.f32.mrf.mxu0
        %v3386 = vadd.f32 %v3337, %v3385
        %3387 = vmatmul.bf16.gmra.mxu0 %v323
        %v3388 = vpop.f32.mrf.mxu0
        %v3389 = vadd.f32 %v3340, %v3388
        %v3390 = vpop.f32.mrf.mxu0
        %v3391 = vadd.f32 %v3342, %v3390
        %3392 = vmatmul.bf16.gmra.mxu0 %v326
        %v3393 = vpop.f32.mrf.mxu0
        %v3394 = vadd.f32 %v3345, %v3393
        %v3395 = vpop.f32.mrf.mxu0
        %v3396 = vadd.f32 %v3347, %v3395
        %3397 = vmatmul.bf16.gmra.mxu0 %v329
        %v3398 = vpop.f32.mrf.mxu0
        %v3399 = vadd.f32 %v3350, %v3398
        %v3400 = vpop.f32.mrf.mxu0
        %v3401 = vadd.f32 %v3352, %v3400
        %3402 = vmatmul.bf16.gmra.mxu0 %v332
        %v3403 = vpop.f32.mrf.mxu0
        %v3404 = vadd.f32 %v3355, %v3403
        %v3405 = vpop.f32.mrf.mxu0
        %v3406 = vadd.f32 %v3357, %v3405
        %3407 = vmatmul.bf16.gmra.mxu0 %v335
        %v3408 = vpop.f32.mrf.mxu0
        %v3409 = vadd.f32 %v3360, %v3408
        %v3410 = vpop.f32.mrf.mxu0
        %v3411 = vadd.f32 %v3362, %v3410
        %3412 = vmatmul.bf16.gmra.mxu0 %v338
        %v3413 = vpop.f32.mrf.mxu0
        %v3414 = vadd.f32 %v3365, %v3413
        %v3415 = vpop.f32.mrf.mxu0
        %v3416 = vadd.f32 %v3367, %v3415
        %3417 = vdwg.mxu0
        %3418 = vmatpush.bf16.msra.mxu0 %v1612
        %3419 = vmatpush.bf16.msra.mxu0 %v1600
        %3420 = vmatpush.bf16.msra.mxu0 %v1588
        %3421 = vmatpush.bf16.msra.mxu0 %v1576
        %3422 = vmatpush.bf16.msra.mxu0 %v1564
        %3423 = vmatpush.bf16.msra.mxu0 %v1552
        %3424 = vmatpush.bf16.msra.mxu0 %v1540
        %3425 = vmatpush.bf16.msra.mxu0 %v1528
        %3426 = vmatmul.bf16.gmra.mxu0 %v315
        %v3427 = vpop.f32.mrf.mxu0
        %v3428 = vadd.f32 %v640, %v3427
        %v3429 = vpop.f32.mrf.mxu0
        %v3430 = vadd.f32 %v640, %v3429
        %3431 = vmatmul.bf16.gmra.mxu0 %v318
        %v3432 = vpop.f32.mrf.mxu0
        %v3433 = vadd.f32 %v640, %v3432
        %v3434 = vpop.f32.mrf.mxu0
        %v3435 = vadd.f32 %v640, %v3434
        %3436 = vmatmul.bf16.gmra.mxu0 %v321
        %v3437 = vpop.f32.mrf.mxu0
        %v3438 = vadd.f32 %v640, %v3437
        %v3439 = vpop.f32.mrf.mxu0
        %v3440 = vadd.f32 %v640, %v3439
        %3441 = vmatmul.bf16.gmra.mxu0 %v324
        %v3442 = vpop.f32.mrf.mxu0
        %v3443 = vadd.f32 %v640, %v3442
        %v3444 = vpop.f32.mrf.mxu0
        %v3445 = vadd.f32 %v640, %v3444
        %3446 = vmatmul.bf16.gmra.mxu0 %v327
        %v3447 = vpop.f32.mrf.mxu0
        %v3448 = vadd.f32 %v640, %v3447
        %v3449 = vpop.f32.mrf.mxu0
        %v3450 = vadd.f32 %v640, %v3449
        %3451 = vmatmul.bf16.gmra.mxu0 %v330
        %v3452 = vpop.f32.mrf.mxu0
        %v3453 = vadd.f32 %v640, %v3452
        %v3454 = vpop.f32.mrf.mxu0
        %v3455 = vadd.f32 %v640, %v3454
        %3456 = vmatmul.bf16.gmra.mxu0 %v333
        %v3457 = vpop.f32.mrf.mxu0
        %v3458 = vadd.f32 %v640, %v3457
        %v3459 = vpop.f32.mrf.mxu0
        %v3460 = vadd.f32 %v640, %v3459
        %3461 = vmatmul.bf16.gmra.mxu0 %v336
        %v3462 = vpop.f32.mrf.mxu0
        %v3463 = vadd.f32 %v640, %v3462
        %v3464 = vpop.f32.mrf.mxu0
        %v3465 = vadd.f32 %v640, %v3464
        %3466 = vdwg.mxu0
        %3467 = vmatpush.bf16.msra.mxu0 %v1708
        %3468 = vmatpush.bf16.msra.mxu0 %v1696
        %3469 = vmatpush.bf16.msra.mxu0 %v1684
        %3470 = vmatpush.bf16.msra.mxu0 %v1672
        %3471 = vmatpush.bf16.msra.mxu0 %v1660
        %3472 = vmatpush.bf16.msra.mxu0 %v1648
        %3473 = vmatpush.bf16.msra.mxu0 %v1636
        %3474 = vmatpush.bf16.msra.mxu0 %v1624
        %3475 = vmatmul.bf16.gmra.mxu0 %v316
        %v3476 = vpop.f32.mrf.mxu0
        %v3477 = vadd.f32 %v3428, %v3476
        %v3478 = vpop.f32.mrf.mxu0
        %v3479 = vadd.f32 %v3430, %v3478
        %3480 = vmatmul.bf16.gmra.mxu0 %v319
        %v3481 = vpop.f32.mrf.mxu0
        %v3482 = vadd.f32 %v3433, %v3481
        %v3483 = vpop.f32.mrf.mxu0
        %v3484 = vadd.f32 %v3435, %v3483
        %3485 = vmatmul.bf16.gmra.mxu0 %v322
        %v3486 = vpop.f32.mrf.mxu0
        %v3487 = vadd.f32 %v3438, %v3486
        %v3488 = vpop.f32.mrf.mxu0
        %v3489 = vadd.f32 %v3440, %v3488
        %3490 = vmatmul.bf16.gmra.mxu0 %v325
        %v3491 = vpop.f32.mrf.mxu0
        %v3492 = vadd.f32 %v3443, %v3491
        %v3493 = vpop.f32.mrf.mxu0
        %v3494 = vadd.f32 %v3445, %v3493
        %3495 = vmatmul.bf16.gmra.mxu0 %v328
        %v3496 = vpop.f32.mrf.mxu0
        %v3497 = vadd.f32 %v3448, %v3496
        %v3498 = vpop.f32.mrf.mxu0
        %v3499 = vadd.f32 %v3450, %v3498
        %3500 = vmatmul.bf16.gmra.mxu0 %v331
        %v3501 = vpop.f32.mrf.mxu0
        %v3502 = vadd.f32 %v3453, %v3501
        %v3503 = vpop.f32.mrf.mxu0
        %v3504 = vadd.f32 %v3455, %v3503
        %3505 = vmatmul.bf16.gmra.mxu0 %v334
        %v3506 = vpop.f32.mrf.mxu0
        %v3507 = vadd.f32 %v3458, %v3506
        %v3508 = vpop.f32.mrf.mxu0
        %v3509 = vadd.f32 %v3460, %v3508
        %3510 = vmatmul.bf16.gmra.mxu0 %v337
        %v3511 = vpop.f32.mrf.mxu0
        %v3512 = vadd.f32 %v3463, %v3511
        %v3513 = vpop.f32.mrf.mxu0
        %v3514 = vadd.f32 %v3465, %v3513
        %3515 = vdwg.mxu0
        %3516 = vmatpush.bf16.msra.mxu0 %v1804
        %3517 = vmatpush.bf16.msra.mxu0 %v1792
        %3518 = vmatpush.bf16.msra.mxu0 %v1780
        %3519 = vmatpush.bf16.msra.mxu0 %v1768
        %3520 = vmatpush.bf16.msra.mxu0 %v1756
        %3521 = vmatpush.bf16.msra.mxu0 %v1744
        %3522 = vmatpush.bf16.msra.mxu0 %v1732
        %3523 = vmatpush.bf16.msra.mxu0 %v1720
        %3524 = vmatmul.bf16.gmra.mxu0 %v317
        %v3525 = vpop.f32.mrf.mxu0
        %v3526 = vadd.f32 %v3477, %v3525
        %v3527 = vpop.f32.mrf.mxu0
        %v3528 = vadd.f32 %v3479, %v3527
        %3529 = vmatmul.bf16.gmra.mxu0 %v320
        %v3530 = vpop.f32.mrf.mxu0
        %v3531 = vadd.f32 %v3482, %v3530
        %v3532 = vpop.f32.mrf.mxu0
        %v3533 = vadd.f32 %v3484, %v3532
        %3534 = vmatmul.bf16.gmra.mxu0 %v323
        %v3535 = vpop.f32.mrf.mxu0
        %v3536 = vadd.f32 %v3487, %v3535
        %v3537 = vpop.f32.mrf.mxu0
        %v3538 = vadd.f32 %v3489, %v3537
        %3539 = vmatmul.bf16.gmra.mxu0 %v326
        %v3540 = vpop.f32.mrf.mxu0
        %v3541 = vadd.f32 %v3492, %v3540
        %v3542 = vpop.f32.mrf.mxu0
        %v3543 = vadd.f32 %v3494, %v3542
        %3544 = vmatmul.bf16.gmra.mxu0 %v329
        %v3545 = vpop.f32.mrf.mxu0
        %v3546 = vadd.f32 %v3497, %v3545
        %v3547 = vpop.f32.mrf.mxu0
        %v3548 = vadd.f32 %v3499, %v3547
        %3549 = vmatmul.bf16.gmra.mxu0 %v332
        %v3550 = vpop.f32.mrf.mxu0
        %v3551 = vadd.f32 %v3502, %v3550
        %v3552 = vpop.f32.mrf.mxu0
        %v3553 = vadd.f32 %v3504, %v3552
        %3554 = vmatmul.bf16.gmra.mxu0 %v335
        %v3555 = vpop.f32.mrf.mxu0
        %v3556 = vadd.f32 %v3507, %v3555
        %v3557 = vpop.f32.mrf.mxu0
        %v3558 = vadd.f32 %v3509, %v3557
        %3559 = vmatmul.bf16.gmra.mxu0 %v338
        %v3560 = vpop.f32.mrf.mxu0
        %v3561 = vadd.f32 %v3512, %v3560
        %v3562 = vpop.f32.mrf.mxu0
        %v3563 = vadd.f32 %v3514, %v3562
        %3564 = vdwg.mxu0
        %3565 = vmatpush.bf16.msra.mxu0 %v1613
        %3566 = vmatpush.bf16.msra.mxu0 %v1601
        %3567 = vmatpush.bf16.msra.mxu0 %v1589
        %3568 = vmatpush.bf16.msra.mxu0 %v1577
        %3569 = vmatpush.bf16.msra.mxu0 %v1565
        %3570 = vmatpush.bf16.msra.mxu0 %v1553
        %3571 = vmatpush.bf16.msra.mxu0 %v1541
        %3572 = vmatpush.bf16.msra.mxu0 %v1529
        %3573 = vmatmul.bf16.gmra.mxu0 %v315
        %v3574 = vpop.f32.mrf.mxu0
        %v3575 = vadd.f32 %v641, %v3574
        %v3576 = vpop.f32.mrf.mxu0
        %v3577 = vadd.f32 %v641, %v3576
        %3578 = vmatmul.bf16.gmra.mxu0 %v318
        %v3579 = vpop.f32.mrf.mxu0
        %v3580 = vadd.f32 %v641, %v3579
        %v3581 = vpop.f32.mrf.mxu0
        %v3582 = vadd.f32 %v641, %v3581
        %3583 = vmatmul.bf16.gmra.mxu0 %v321
        %v3584 = vpop.f32.mrf.mxu0
        %v3585 = vadd.f32 %v641, %v3584
        %v3586 = vpop.f32.mrf.mxu0
        %v3587 = vadd.f32 %v641, %v3586
        %3588 = vmatmul.bf16.gmra.mxu0 %v324
        %v3589 = vpop.f32.mrf.mxu0
        %v3590 = vadd.f32 %v641, %v3589
        %v3591 = vpop.f32.mrf.mxu0
        %v3592 = vadd.f32 %v641, %v3591
        %3593 = vmatmul.bf16.gmra.mxu0 %v327
        %v3594 = vpop.f32.mrf.mxu0
        %v3595 = vadd.f32 %v641, %v3594
        %v3596 = vpop.f32.mrf.mxu0
        %v3597 = vadd.f32 %v641, %v3596
        %3598 = vmatmul.bf16.gmra.mxu0 %v330
        %v3599 = vpop.f32.mrf.mxu0
        %v3600 = vadd.f32 %v641, %v3599
        %v3601 = vpop.f32.mrf.mxu0
        %v3602 = vadd.f32 %v641, %v3601
        %3603 = vmatmul.bf16.gmra.mxu0 %v333
        %v3604 = vpop.f32.mrf.mxu0
        %v3605 = vadd.f32 %v641, %v3604
        %v3606 = vpop.f32.mrf.mxu0
        %v3607 = vadd.f32 %v641, %v3606
        %3608 = vmatmul.bf16.gmra.mxu0 %v336
        %v3609 = vpop.f32.mrf.mxu0
        %v3610 = vadd.f32 %v641, %v3609
        %v3611 = vpop.f32.mrf.mxu0
        %v3612 = vadd.f32 %v641, %v3611
        %3613 = vdwg.mxu0
        %3614 = vmatpush.bf16.msra.mxu0 %v1709
        %3615 = vmatpush.bf16.msra.mxu0 %v1697
        %3616 = vmatpush.bf16.msra.mxu0 %v1685
        %3617 = vmatpush.bf16.msra.mxu0 %v1673
        %3618 = vmatpush.bf16.msra.mxu0 %v1661
        %3619 = vmatpush.bf16.msra.mxu0 %v1649
        %3620 = vmatpush.bf16.msra.mxu0 %v1637
        %3621 = vmatpush.bf16.msra.mxu0 %v1625
        %3622 = vmatmul.bf16.gmra.mxu0 %v316
        %v3623 = vpop.f32.mrf.mxu0
        %v3624 = vadd.f32 %v3575, %v3623
        %v3625 = vpop.f32.mrf.mxu0
        %v3626 = vadd.f32 %v3577, %v3625
        %3627 = vmatmul.bf16.gmra.mxu0 %v319
        %v3628 = vpop.f32.mrf.mxu0
        %v3629 = vadd.f32 %v3580, %v3628
        %v3630 = vpop.f32.mrf.mxu0
        %v3631 = vadd.f32 %v3582, %v3630
        %3632 = vmatmul.bf16.gmra.mxu0 %v322
        %v3633 = vpop.f32.mrf.mxu0
        %v3634 = vadd.f32 %v3585, %v3633
        %v3635 = vpop.f32.mrf.mxu0
        %v3636 = vadd.f32 %v3587, %v3635
        %3637 = vmatmul.bf16.gmra.mxu0 %v325
        %v3638 = vpop.f32.mrf.mxu0
        %v3639 = vadd.f32 %v3590, %v3638
        %v3640 = vpop.f32.mrf.mxu0
        %v3641 = vadd.f32 %v3592, %v3640
        %3642 = vmatmul.bf16.gmra.mxu0 %v328
        %v3643 = vpop.f32.mrf.mxu0
        %v3644 = vadd.f32 %v3595, %v3643
        %v3645 = vpop.f32.mrf.mxu0
        %v3646 = vadd.f32 %v3597, %v3645
        %3647 = vmatmul.bf16.gmra.mxu0 %v331
        %v3648 = vpop.f32.mrf.mxu0
        %v3649 = vadd.f32 %v3600, %v3648
        %v3650 = vpop.f32.mrf.mxu0
        %v3651 = vadd.f32 %v3602, %v3650
        %3652 = vmatmul.bf16.gmra.mxu0 %v334
        %v3653 = vpop.f32.mrf.mxu0
        %v3654 = vadd.f32 %v3605, %v3653
        %v3655 = vpop.f32.mrf.mxu0
        %v3656 = vadd.f32 %v3607, %v3655
        %3657 = vmatmul.bf16.gmra.mxu0 %v337
        %v3658 = vpop.f32.mrf.mxu0
        %v3659 = vadd.f32 %v3610, %v3658
        %v3660 = vpop.f32.mrf.mxu0
        %v3661 = vadd.f32 %v3612, %v3660
        %3662 = vdwg.mxu0
        %3663 = vmatpush.bf16.msra.mxu0 %v1805
        %3664 = vmatpush.bf16.msra.mxu0 %v1793
        %3665 = vmatpush.bf16.msra.mxu0 %v1781
        %3666 = vmatpush.bf16.msra.mxu0 %v1769
        %3667 = vmatpush.bf16.msra.mxu0 %v1757
        %3668 = vmatpush.bf16.msra.mxu0 %v1745
        %3669 = vmatpush.bf16.msra.mxu0 %v1733
        %3670 = vmatpush.bf16.msra.mxu0 %v1721
        %3671 = vmatmul.bf16.gmra.mxu0 %v317
        %v3672 = vpop.f32.mrf.mxu0
        %v3673 = vadd.f32 %v3624, %v3672
        %v3674 = vpop.f32.mrf.mxu0
        %v3675 = vadd.f32 %v3626, %v3674
        %3676 = vmatmul.bf16.gmra.mxu0 %v320
        %v3677 = vpop.f32.mrf.mxu0
        %v3678 = vadd.f32 %v3629, %v3677
        %v3679 = vpop.f32.mrf.mxu0
        %v3680 = vadd.f32 %v3631, %v3679
        %3681 = vmatmul.bf16.gmra.mxu0 %v323
        %v3682 = vpop.f32.mrf.mxu0
        %v3683 = vadd.f32 %v3634, %v3682
        %v3684 = vpop.f32.mrf.mxu0
        %v3685 = vadd.f32 %v3636, %v3684
        %3686 = vmatmul.bf16.gmra.mxu0 %v326
        %v3687 = vpop.f32.mrf.mxu0
        %v3688 = vadd.f32 %v3639, %v3687
        %v3689 = vpop.f32.mrf.mxu0
        %v3690 = vadd.f32 %v3641, %v3689
        %3691 = vmatmul.bf16.gmra.mxu0 %v329
        %v3692 = vpop.f32.mrf.mxu0
        %v3693 = vadd.f32 %v3644, %v3692
        %v3694 = vpop.f32.mrf.mxu0
        %v3695 = vadd.f32 %v3646, %v3694
        %3696 = vmatmul.bf16.gmra.mxu0 %v332
        %v3697 = vpop.f32.mrf.mxu0
        %v3698 = vadd.f32 %v3649, %v3697
        %v3699 = vpop.f32.mrf.mxu0
        %v3700 = vadd.f32 %v3651, %v3699
        %3701 = vmatmul.bf16.gmra.mxu0 %v335
        %v3702 = vpop.f32.mrf.mxu0
        %v3703 = vadd.f32 %v3654, %v3702
        %v3704 = vpop.f32.mrf.mxu0
        %v3705 = vadd.f32 %v3656, %v3704
        %3706 = vmatmul.bf16.gmra.mxu0 %v338
        %v3707 = vpop.f32.mrf.mxu0
        %v3708 = vadd.f32 %v3659, %v3707
        %v3709 = vpop.f32.mrf.mxu0
        %v3710 = vadd.f32 %v3661, %v3709
        %3711 = vdwg.mxu0
        %3712 = vmatpush.bf16.msra.mxu0 %v1614
        %3713 = vmatpush.bf16.msra.mxu0 %v1602
        %3714 = vmatpush.bf16.msra.mxu0 %v1590
        %3715 = vmatpush.bf16.msra.mxu0 %v1578
        %3716 = vmatpush.bf16.msra.mxu0 %v1566
        %3717 = vmatpush.bf16.msra.mxu0 %v1554
        %3718 = vmatpush.bf16.msra.mxu0 %v1542
        %3719 = vmatpush.bf16.msra.mxu0 %v1530
        %3720 = vmatmul.bf16.gmra.mxu0 %v315
        %v3721 = vpop.f32.mrf.mxu0
        %v3722 = vadd.f32 %v642, %v3721
        %v3723 = vpop.f32.mrf.mxu0
        %v3724 = vadd.f32 %v642, %v3723
        %3725 = vmatmul.bf16.gmra.mxu0 %v318
        %v3726 = vpop.f32.mrf.mxu0
        %v3727 = vadd.f32 %v642, %v3726
        %v3728 = vpop.f32.mrf.mxu0
        %v3729 = vadd.f32 %v642, %v3728
        %3730 = vmatmul.bf16.gmra.mxu0 %v321
        %v3731 = vpop.f32.mrf.mxu0
        %v3732 = vadd.f32 %v642, %v3731
        %v3733 = vpop.f32.mrf.mxu0
        %v3734 = vadd.f32 %v642, %v3733
        %3735 = vmatmul.bf16.gmra.mxu0 %v324
        %v3736 = vpop.f32.mrf.mxu0
        %v3737 = vadd.f32 %v642, %v3736
        %v3738 = vpop.f32.mrf.mxu0
        %v3739 = vadd.f32 %v642, %v3738
        %3740 = vmatmul.bf16.gmra.mxu0 %v327
        %v3741 = vpop.f32.mrf.mxu0
        %v3742 = vadd.f32 %v642, %v3741
        %v3743 = vpop.f32.mrf.mxu0
        %v3744 = vadd.f32 %v642, %v3743
        %3745 = vmatmul.bf16.gmra.mxu0 %v330
        %v3746 = vpop.f32.mrf.mxu0
        %v3747 = vadd.f32 %v642, %v3746
        %v3748 = vpop.f32.mrf.mxu0
        %v3749 = vadd.f32 %v642, %v3748
        %3750 = vmatmul.bf16.gmra.mxu0 %v333
        %v3751 = vpop.f32.mrf.mxu0
        %v3752 = vadd.f32 %v642, %v3751
        %v3753 = vpop.f32.mrf.mxu0
        %v3754 = vadd.f32 %v642, %v3753
        %3755 = vmatmul.bf16.gmra.mxu0 %v336
        %v3756 = vpop.f32.mrf.mxu0
        %v3757 = vadd.f32 %v642, %v3756
        %v3758 = vpop.f32.mrf.mxu0
        %v3759 = vadd.f32 %v642, %v3758
        %3760 = vdwg.mxu0
        %3761 = vmatpush.bf16.msra.mxu0 %v1710
        %3762 = vmatpush.bf16.msra.mxu0 %v1698
        %3763 = vmatpush.bf16.msra.mxu0 %v1686
        %3764 = vmatpush.bf16.msra.mxu0 %v1674
        %3765 = vmatpush.bf16.msra.mxu0 %v1662
        %3766 = vmatpush.bf16.msra.mxu0 %v1650
        %3767 = vmatpush.bf16.msra.mxu0 %v1638
        %3768 = vmatpush.bf16.msra.mxu0 %v1626
        %3769 = vmatmul.bf16.gmra.mxu0 %v316
        %v3770 = vpop.f32.mrf.mxu0
        %v3771 = vadd.f32 %v3722, %v3770
        %v3772 = vpop.f32.mrf.mxu0
        %v3773 = vadd.f32 %v3724, %v3772
        %3774 = vmatmul.bf16.gmra.mxu0 %v319
        %v3775 = vpop.f32.mrf.mxu0
        %v3776 = vadd.f32 %v3727, %v3775
        %v3777 = vpop.f32.mrf.mxu0
        %v3778 = vadd.f32 %v3729, %v3777
        %3779 = vmatmul.bf16.gmra.mxu0 %v322
        %v3780 = vpop.f32.mrf.mxu0
        %v3781 = vadd.f32 %v3732, %v3780
        %v3782 = vpop.f32.mrf.mxu0
        %v3783 = vadd.f32 %v3734, %v3782
        %3784 = vmatmul.bf16.gmra.mxu0 %v325
        %v3785 = vpop.f32.mrf.mxu0
        %v3786 = vadd.f32 %v3737, %v3785
        %v3787 = vpop.f32.mrf.mxu0
        %v3788 = vadd.f32 %v3739, %v3787
        %3789 = vmatmul.bf16.gmra.mxu0 %v328
        %v3790 = vpop.f32.mrf.mxu0
        %v3791 = vadd.f32 %v3742, %v3790
        %v3792 = vpop.f32.mrf.mxu0
        %v3793 = vadd.f32 %v3744, %v3792
        %3794 = vmatmul.bf16.gmra.mxu0 %v331
        %v3795 = vpop.f32.mrf.mxu0
        %v3796 = vadd.f32 %v3747, %v3795
        %v3797 = vpop.f32.mrf.mxu0
        %v3798 = vadd.f32 %v3749, %v3797
        %3799 = vmatmul.bf16.gmra.mxu0 %v334
        %v3800 = vpop.f32.mrf.mxu0
        %v3801 = vadd.f32 %v3752, %v3800
        %v3802 = vpop.f32.mrf.mxu0
        %v3803 = vadd.f32 %v3754, %v3802
        %3804 = vmatmul.bf16.gmra.mxu0 %v337
        %v3805 = vpop.f32.mrf.mxu0
        %v3806 = vadd.f32 %v3757, %v3805
        %v3807 = vpop.f32.mrf.mxu0
        %v3808 = vadd.f32 %v3759, %v3807
        %3809 = vdwg.mxu0
        %3810 = vmatpush.bf16.msra.mxu0 %v1806
        %3811 = vmatpush.bf16.msra.mxu0 %v1794
        %3812 = vmatpush.bf16.msra.mxu0 %v1782
        %3813 = vmatpush.bf16.msra.mxu0 %v1770
        %3814 = vmatpush.bf16.msra.mxu0 %v1758
        %3815 = vmatpush.bf16.msra.mxu0 %v1746
        %3816 = vmatpush.bf16.msra.mxu0 %v1734
        %3817 = vmatpush.bf16.msra.mxu0 %v1722
        %3818 = vmatmul.bf16.gmra.mxu0 %v317
        %v3819 = vpop.f32.mrf.mxu0
        %v3820 = vadd.f32 %v3771, %v3819
        %v3821 = vpop.f32.mrf.mxu0
        %v3822 = vadd.f32 %v3773, %v3821
        %3823 = vmatmul.bf16.gmra.mxu0 %v320
        %v3824 = vpop.f32.mrf.mxu0
        %v3825 = vadd.f32 %v3776, %v3824
        %v3826 = vpop.f32.mrf.mxu0
        %v3827 = vadd.f32 %v3778, %v3826
        %3828 = vmatmul.bf16.gmra.mxu0 %v323
        %v3829 = vpop.f32.mrf.mxu0
        %v3830 = vadd.f32 %v3781, %v3829
        %v3831 = vpop.f32.mrf.mxu0
        %v3832 = vadd.f32 %v3783, %v3831
        %3833 = vmatmul.bf16.gmra.mxu0 %v326
        %v3834 = vpop.f32.mrf.mxu0
        %v3835 = vadd.f32 %v3786, %v3834
        %v3836 = vpop.f32.mrf.mxu0
        %v3837 = vadd.f32 %v3788, %v3836
        %3838 = vmatmul.bf16.gmra.mxu0 %v329
        %v3839 = vpop.f32.mrf.mxu0
        %v3840 = vadd.f32 %v3791, %v3839
        %v3841 = vpop.f32.mrf.mxu0
        %v3842 = vadd.f32 %v3793, %v3841
        %3843 = vmatmul.bf16.gmra.mxu0 %v332
        %v3844 = vpop.f32.mrf.mxu0
        %v3845 = vadd.f32 %v3796, %v3844
        %v3846 = vpop.f32.mrf.mxu0
        %v3847 = vadd.f32 %v3798, %v3846
        %3848 = vmatmul.bf16.gmra.mxu0 %v335
        %v3849 = vpop.f32.mrf.mxu0
        %v3850 = vadd.f32 %v3801, %v3849
        %v3851 = vpop.f32.mrf.mxu0
        %v3852 = vadd.f32 %v3803, %v3851
        %3853 = vmatmul.bf16.gmra.mxu0 %v338
        %v3854 = vpop.f32.mrf.mxu0
        %v3855 = vadd.f32 %v3806, %v3854
        %v3856 = vpop.f32.mrf.mxu0
        %v3857 = vadd.f32 %v3808, %v3856
        %3858 = vdwg.mxu0
        %v3859 = vmax.f32 %v2203, 0.0
        %v3860 = vmax.f32 %v2350, 0.0
        %v3861 = vmax.f32 %v2497, 0.0
        %v3862 = vmax.f32 %v2644, 0.0
        %v3863 = vmax.f32 %v2791, 0.0
        %v3864 = vmax.f32 %v2938, 0.0
        %v3865 = vmax.f32 %v3085, 0.0
        %v3866 = vmax.f32 %v3232, 0.0
        %v3867 = vmax.f32 %v3379, 0.0
        %v3868 = vmax.f32 %v3526, 0.0
        %v3869 = vmax.f32 %v3673, 0.0
        %v3870 = vmax.f32 %v3820, 0.0
        %v3871 = vmax.f32 %v2205, 0.0
        %v3872 = vmax.f32 %v2352, 0.0
        %v3873 = vmax.f32 %v2499, 0.0
        %v3874 = vmax.f32 %v2646, 0.0
        %v3875 = vmax.f32 %v2793, 0.0
        %v3876 = vmax.f32 %v2940, 0.0
        %v3877 = vmax.f32 %v3087, 0.0
        %v3878 = vmax.f32 %v3234, 0.0
        %v3879 = vmax.f32 %v3381, 0.0
        %v3880 = vmax.f32 %v3528, 0.0
        %v3881 = vmax.f32 %v3675, 0.0
        %v3882 = vmax.f32 %v3822, 0.0
        %v3883 = vmax.f32 %v2208, 0.0
        %v3884 = vmax.f32 %v2355, 0.0
        %v3885 = vmax.f32 %v2502, 0.0
        %v3886 = vmax.f32 %v2649, 0.0
        %v3887 = vmax.f32 %v2796, 0.0
        %v3888 = vmax.f32 %v2943, 0.0
        %v3889 = vmax.f32 %v3090, 0.0
        %v3890 = vmax.f32 %v3237, 0.0
        %v3891 = vmax.f32 %v3384, 0.0
        %v3892 = vmax.f32 %v3531, 0.0
        %v3893 = vmax.f32 %v3678, 0.0
        %v3894 = vmax.f32 %v3825, 0.0
        %v3895 = vmax.f32 %v2210, 0.0
        %v3896 = vmax.f32 %v2357, 0.0
        %v3897 = vmax.f32 %v2504, 0.0
        %v3898 = vmax.f32 %v2651, 0.0
        %v3899 = vmax.f32 %v2798, 0.0
        %v3900 = vmax.f32 %v2945, 0.0
        %v3901 = vmax.f32 %v3092, 0.0
        %v3902 = vmax.f32 %v3239, 0.0
        %v3903 = vmax.f32 %v3386, 0.0
        %v3904 = vmax.f32 %v3533, 0.0
        %v3905 = vmax.f32 %v3680, 0.0
        %v3906 = vmax.f32 %v3827, 0.0
        %v3907 = vmax.f32 %v2213, 0.0
        %v3908 = vmax.f32 %v2360, 0.0
        %v3909 = vmax.f32 %v2507, 0.0
        %v3910 = vmax.f32 %v2654, 0.0
        %v3911 = vmax.f32 %v2801, 0.0
        %v3912 = vmax.f32 %v2948, 0.0
        %v3913 = vmax.f32 %v3095, 0.0
        %v3914 = vmax.f32 %v3242, 0.0
        %v3915 = vmax.f32 %v3389, 0.0
        %v3916 = vmax.f32 %v3536, 0.0
        %v3917 = vmax.f32 %v3683, 0.0
        %v3918 = vmax.f32 %v3830, 0.0
        %v3919 = vmax.f32 %v2215, 0.0
        %v3920 = vmax.f32 %v2362, 0.0
        %v3921 = vmax.f32 %v2509, 0.0
        %v3922 = vmax.f32 %v2656, 0.0
        %v3923 = vmax.f32 %v2803, 0.0
        %v3924 = vmax.f32 %v2950, 0.0
        %v3925 = vmax.f32 %v3097, 0.0
        %v3926 = vmax.f32 %v3244, 0.0
        %v3927 = vmax.f32 %v3391, 0.0
        %v3928 = vmax.f32 %v3538, 0.0
        %v3929 = vmax.f32 %v3685, 0.0
        %v3930 = vmax.f32 %v3832, 0.0
        %v3931 = vmax.f32 %v2218, 0.0
        %v3932 = vmax.f32 %v2365, 0.0
        %v3933 = vmax.f32 %v2512, 0.0
        %v3934 = vmax.f32 %v2659, 0.0
        %v3935 = vmax.f32 %v2806, 0.0
        %v3936 = vmax.f32 %v2953, 0.0
        %v3937 = vmax.f32 %v3100, 0.0
        %v3938 = vmax.f32 %v3247, 0.0
        %v3939 = vmax.f32 %v3394, 0.0
        %v3940 = vmax.f32 %v3541, 0.0
        %v3941 = vmax.f32 %v3688, 0.0
        %v3942 = vmax.f32 %v3835, 0.0
        %v3943 = vmax.f32 %v2220, 0.0
        %v3944 = vmax.f32 %v2367, 0.0
        %v3945 = vmax.f32 %v2514, 0.0
        %v3946 = vmax.f32 %v2661, 0.0
        %v3947 = vmax.f32 %v2808, 0.0
        %v3948 = vmax.f32 %v2955, 0.0
        %v3949 = vmax.f32 %v3102, 0.0
        %v3950 = vmax.f32 %v3249, 0.0
        %v3951 = vmax.f32 %v3396, 0.0
        %v3952 = vmax.f32 %v3543, 0.0
        %v3953 = vmax.f32 %v3690, 0.0
        %v3954 = vmax.f32 %v3837, 0.0
        %v3955 = vmax.f32 %v2223, 0.0
        %v3956 = vmax.f32 %v2370, 0.0
        %v3957 = vmax.f32 %v2517, 0.0
        %v3958 = vmax.f32 %v2664, 0.0
        %v3959 = vmax.f32 %v2811, 0.0
        %v3960 = vmax.f32 %v2958, 0.0
        %v3961 = vmax.f32 %v3105, 0.0
        %v3962 = vmax.f32 %v3252, 0.0
        %v3963 = vmax.f32 %v3399, 0.0
        %v3964 = vmax.f32 %v3546, 0.0
        %v3965 = vmax.f32 %v3693, 0.0
        %v3966 = vmax.f32 %v3840, 0.0
        %v3967 = vmax.f32 %v2225, 0.0
        %v3968 = vmax.f32 %v2372, 0.0
        %v3969 = vmax.f32 %v2519, 0.0
        %v3970 = vmax.f32 %v2666, 0.0
        %v3971 = vmax.f32 %v2813, 0.0
        %v3972 = vmax.f32 %v2960, 0.0
        %v3973 = vmax.f32 %v3107, 0.0
        %v3974 = vmax.f32 %v3254, 0.0
        %v3975 = vmax.f32 %v3401, 0.0
        %v3976 = vmax.f32 %v3548, 0.0
        %v3977 = vmax.f32 %v3695, 0.0
        %v3978 = vmax.f32 %v3842, 0.0
        %v3979 = vmax.f32 %v2228, 0.0
        %v3980 = vmax.f32 %v2375, 0.0
        %v3981 = vmax.f32 %v2522, 0.0
        %v3982 = vmax.f32 %v2669, 0.0
        %v3983 = vmax.f32 %v2816, 0.0
        %v3984 = vmax.f32 %v2963, 0.0
        %v3985 = vmax.f32 %v3110, 0.0
        %v3986 = vmax.f32 %v3257, 0.0
        %v3987 = vmax.f32 %v3404, 0.0
        %v3988 = vmax.f32 %v3551, 0.0
        %v3989 = vmax.f32 %v3698, 0.0
        %v3990 = vmax.f32 %v3845, 0.0
        %v3991 = vmax.f32 %v2230, 0.0
        %v3992 = vmax.f32 %v2377, 0.0
        %v3993 = vmax.f32 %v2524, 0.0
        %v3994 = vmax.f32 %v2671, 0.0
        %v3995 = vmax.f32 %v2818, 0.0
        %v3996 = vmax.f32 %v2965, 0.0
        %v3997 = vmax.f32 %v3112, 0.0
        %v3998 = vmax.f32 %v3259, 0.0
        %v3999 = vmax.f32 %v3406, 0.0
        %v4000 = vmax.f32 %v3553, 0.0
        %v4001 = vmax.f32 %v3700, 0.0
        %v4002 = vmax.f32 %v3847, 0.0
        %v4003 = vmax.f32 %v2233, 0.0
        %v4004 = vmax.f32 %v2380, 0.0
        %v4005 = vmax.f32 %v2527, 0.0
        %v4006 = vmax.f32 %v2674, 0.0
        %v4007 = vmax.f32 %v2821, 0.0
        %v4008 = vmax.f32 %v2968, 0.0
        %v4009 = vmax.f32 %v3115, 0.0
        %v4010 = vmax.f32 %v3262, 0.0
        %v4011 = vmax.f32 %v3409, 0.0
        %v4012 = vmax.f32 %v3556, 0.0
        %v4013 = vmax.f32 %v3703, 0.0
        %v4014 = vmax.f32 %v3850, 0.0
        %v4015 = vmax.f32 %v2235, 0.0
        %v4016 = vmax.f32 %v2382, 0.0
        %v4017 = vmax.f32 %v2529, 0.0
        %v4018 = vmax.f32 %v2676, 0.0
        %v4019 = vmax.f32 %v2823, 0.0
        %v4020 = vmax.f32 %v2970, 0.0
        %v4021 = vmax.f32 %v3117, 0.0
        %v4022 = vmax.f32 %v3264, 0.0
        %v4023 = vmax.f32 %v3411, 0.0
        %v4024 = vmax.f32 %v3558, 0.0
        %v4025 = vmax.f32 %v3705, 0.0
        %v4026 = vmax.f32 %v3852, 0.0
        %v4027 = vmax.f32 %v2238, 0.0
        %v4028 = vmax.f32 %v2385, 0.0
        %v4029 = vmax.f32 %v2532, 0.0
        %v4030 = vmax.f32 %v2679, 0.0
        %v4031 = vmax.f32 %v2826, 0.0
        %v4032 = vmax.f32 %v2973, 0.0
        %v4033 = vmax.f32 %v3120, 0.0
        %v4034 = vmax.f32 %v3267, 0.0
        %v4035 = vmax.f32 %v3414, 0.0
        %v4036 = vmax.f32 %v3561, 0.0
        %v4037 = vmax.f32 %v3708, 0.0
        %v4038 = vmax.f32 %v3855, 0.0
        %v4039 = vmax.f32 %v2240, 0.0
        %v4040 = vmax.f32 %v2387, 0.0
        %v4041 = vmax.f32 %v2534, 0.0
        %v4042 = vmax.f32 %v2681, 0.0
        %v4043 = vmax.f32 %v2828, 0.0
        %v4044 = vmax.f32 %v2975, 0.0
        %v4045 = vmax.f32 %v3122, 0.0
        %v4046 = vmax.f32 %v3269, 0.0
        %v4047 = vmax.f32 %v3416, 0.0
        %v4048 = vmax.f32 %v3563, 0.0
        %v4049 = vmax.f32 %v3710, 0.0
        %v4050 = vmax.f32 %v3857, 0.0
        %v4051 = vpack.c.bf16 %v3871, %v3859
        %v4052 = vpack.c.bf16 %v3872, %v3860
        %v4053 = vpack.c.bf16 %v3873, %v3861
        %v4054 = vpack.c.bf16 %v3874, %v3862
        %v4055 = vpack.c.bf16 %v3875, %v3863
        %v4056 = vpack.c.bf16 %v3876, %v3864
        %v4057 = vpack.c.bf16 %v3877, %v3865
        %v4058 = vpack.c.bf16 %v3878, %v3866
        %v4059 = vpack.c.bf16 %v3879, %v3867
        %v4060 = vpack.c.bf16 %v3880, %v3868
        %v4061 = vpack.c.bf16 %v3881, %v3869
        %v4062 = vpack.c.bf16 %v3882, %v3870
        %v4063 = vpack.c.bf16 %v3895, %v3883
        %v4064 = vpack.c.bf16 %v3896, %v3884
        %v4065 = vpack.c.bf16 %v3897, %v3885
        %v4066 = vpack.c.bf16 %v3898, %v3886
        %v4067 = vpack.c.bf16 %v3899, %v3887
        %v4068 = vpack.c.bf16 %v3900, %v3888
        %v4069 = vpack.c.bf16 %v3901, %v3889
        %v4070 = vpack.c.bf16 %v3902, %v3890
        %v4071 = vpack.c.bf16 %v3903, %v3891
        %v4072 = vpack.c.bf16 %v3904, %v3892
        %v4073 = vpack.c.bf16 %v3905, %v3893
        %v4074 = vpack.c.bf16 %v3906, %v3894
        %v4075 = vpack.c.bf16 %v3919, %v3907
        %v4076 = vpack.c.bf16 %v3920, %v3908
        %v4077 = vpack.c.bf16 %v3921, %v3909
        %v4078 = vpack.c.bf16 %v3922, %v3910
        %v4079 = vpack.c.bf16 %v3923, %v3911
        %v4080 = vpack.c.bf16 %v3924, %v3912
        %v4081 = vpack.c.bf16 %v3925, %v3913
        %v4082 = vpack.c.bf16 %v3926, %v3914
        %v4083 = vpack.c.bf16 %v3927, %v3915
        %v4084 = vpack.c.bf16 %v3928, %v3916
        %v4085 = vpack.c.bf16 %v3929, %v3917
        %v4086 = vpack.c.bf16 %v3930, %v3918
        %v4087 = vpack.c.bf16 %v3943, %v3931
        %v4088 = vpack.c.bf16 %v3944, %v3932
        %v4089 = vpack.c.bf16 %v3945, %v3933
        %v4090 = vpack.c.bf16 %v3946, %v3934
        %v4091 = vpack.c.bf16 %v3947, %v3935
        %v4092 = vpack.c.bf16 %v3948, %v3936
        %v4093 = vpack.c.bf16 %v3949, %v3937
        %v4094 = vpack.c.bf16 %v3950, %v3938
        %v4095 = vpack.c.bf16 %v3951, %v3939
        %v4096 = vpack.c.bf16 %v3952, %v3940
        %v4097 = vpack.c.bf16 %v3953, %v3941
        %v4098 = vpack.c.bf16 %v3954, %v3942
        %v4099 = vpack.c.bf16 %v3967, %v3955
        %v4100 = vpack.c.bf16 %v3968, %v3956
        %v4101 = vpack.c.bf16 %v3969, %v3957
        %v4102 = vpack.c.bf16 %v3970, %v3958
        %v4103 = vpack.c.bf16 %v3971, %v3959
        %v4104 = vpack.c.bf16 %v3972, %v3960
        %v4105 = vpack.c.bf16 %v3973, %v3961
        %v4106 = vpack.c.bf16 %v3974, %v3962
        %v4107 = vpack.c.bf16 %v3975, %v3963
        %v4108 = vpack.c.bf16 %v3976, %v3964
        %v4109 = vpack.c.bf16 %v3977, %v3965
        %v4110 = vpack.c.bf16 %v3978, %v3966
        %v4111 = vpack.c.bf16 %v3991, %v3979
        %v4112 = vpack.c.bf16 %v3992, %v3980
        %v4113 = vpack.c.bf16 %v3993, %v3981
        %v4114 = vpack.c.bf16 %v3994, %v3982
        %v4115 = vpack.c.bf16 %v3995, %v3983
        %v4116 = vpack.c.bf16 %v3996, %v3984
        %v4117 = vpack.c.bf16 %v3997, %v3985
        %v4118 = vpack.c.bf16 %v3998, %v3986
        %v4119 = vpack.c.bf16 %v3999, %v3987
        %v4120 = vpack.c.bf16 %v4000, %v3988
        %v4121 = vpack.c.bf16 %v4001, %v3989
        %v4122 = vpack.c.bf16 %v4002, %v3990
        %v4123 = vpack.c.bf16 %v4015, %v4003
        %v4124 = vpack.c.bf16 %v4016, %v4004
        %v4125 = vpack.c.bf16 %v4017, %v4005
        %v4126 = vpack.c.bf16 %v4018, %v4006
        %v4127 = vpack.c.bf16 %v4019, %v4007
        %v4128 = vpack.c.bf16 %v4020, %v4008
        %v4129 = vpack.c.bf16 %v4021, %v4009
        %v4130 = vpack.c.bf16 %v4022, %v4010
        %v4131 = vpack.c.bf16 %v4023, %v4011
        %v4132 = vpack.c.bf16 %v4024, %v4012
        %v4133 = vpack.c.bf16 %v4025, %v4013
        %v4134 = vpack.c.bf16 %v4026, %v4014
        %v4135 = vpack.c.bf16 %v4039, %v4027
        %v4136 = vpack.c.bf16 %v4040, %v4028
        %v4137 = vpack.c.bf16 %v4041, %v4029
        %v4138 = vpack.c.bf16 %v4042, %v4030
        %v4139 = vpack.c.bf16 %v4043, %v4031
        %v4140 = vpack.c.bf16 %v4044, %v4032
        %v4141 = vpack.c.bf16 %v4045, %v4033
        %v4142 = vpack.c.bf16 %v4046, %v4034
        %v4143 = vpack.c.bf16 %v4047, %v4035
        %v4144 = vpack.c.bf16 %v4048, %v4036
        %v4145 = vpack.c.bf16 %v4049, %v4037
        %v4146 = vpack.c.bf16 %v4050, %v4038
        %v4147 = vld [vmem:[#allocation4] sm:$0xff]
        %v4148 = vld [vmem:[#allocation4 + $0x8] sm:$0xf]
        %v4149 = vld [vmem:[#allocation4 + $0xc] sm:$0xff]
        %v4150 = vld [vmem:[#allocation4 + $0x14] sm:$0xf]
        %v4151 = vld [vmem:[#allocation4 + $0x18] sm:$0xff]
        %v4152 = vld [vmem:[#allocation4 + $0x20] sm:$0xf]
        %v4153 = vld [vmem:[#allocation4 + $0x24] sm:$0xff]
        %v4154 = vld [vmem:[#allocation4 + $0x2c] sm:$0xf]
        %v4155 = vld [vmem:[#allocation4 + $0x30] sm:$0xff]
        %v4156 = vld [vmem:[#allocation4 + $0x38] sm:$0xf]
        %v4157 = vld [vmem:[#allocation4 + $0x3c] sm:$0xff]
        %v4158 = vld [vmem:[#allocation4 + $0x44] sm:$0xf]
        %v4159 = vld [vmem:[#allocation4 + $0x48] sm:$0xff]
        %v4160 = vld [vmem:[#allocation4 + $0x50] sm:$0xf]
        %v4161 = vld [vmem:[#allocation4 + $0x54] sm:$0xff]
        %v4162 = vld [vmem:[#allocation4 + $0x5c] sm:$0xf]
        %v4163 = vld [vmem:[#allocation4 + $0x60] sm:$0xff]
        %v4164 = vld [vmem:[#allocation4 + $0x68] sm:$0xf]
        %v4165 = vld [vmem:[#allocation4 + $0x6c] sm:$0xff]
        %v4166 = vld [vmem:[#allocation4 + $0x74] sm:$0xf]
        %v4167 = vld [vmem:[#allocation4 + $0x78] sm:$0xff]
        %v4168 = vld [vmem:[#allocation4 + $0x80] sm:$0xf]
        %v4169 = vld [vmem:[#allocation4 + $0x84] sm:$0xff]
        %v4170 = vld [vmem:[#allocation4 + $0x8c] sm:$0xf]
        %v4171 = vld [vmem:[#allocation4 + $0x90] sm:$0xff]
        %v4172 = vld [vmem:[#allocation4 + $0x98] sm:$0xf]
        %v4173 = vld [vmem:[#allocation4 + $0x9c] sm:$0xff]
        %v4174 = vld [vmem:[#allocation4 + $0xa4] sm:$0xf]
        %v4175 = vld [vmem:[#allocation4 + $0xa8] sm:$0xff]
        %v4176 = vld [vmem:[#allocation4 + $0xb0] sm:$0xf]
        %v4177 = vld [vmem:[#allocation4 + $0xb4] sm:$0xff]
        %v4178 = vld [vmem:[#allocation4 + $0xbc] sm:$0xf]
        %v4179 = vld [vmem:[#allocation4 + $0xc0] sm:$0xff]
        %v4180 = vld [vmem:[#allocation4 + $0xc8] sm:$0xf]
        %v4181 = vld [vmem:[#allocation4 + $0xcc] sm:$0xff]
        %v4182 = vld [vmem:[#allocation4 + $0xd4] sm:$0xf]
        %v4183 = vld [vmem:[#allocation4 + $0xd8] sm:$0xff]
        %v4184 = vld [vmem:[#allocation4 + $0xe0] sm:$0xf]
        %v4185 = vld [vmem:[#allocation4 + $0xe4] sm:$0xff]
        %v4186 = vld [vmem:[#allocation4 + $0xec] sm:$0xf]
        %v4187 = vld [vmem:[#allocation4 + $0xf0] sm:$0xff]
        %v4188 = vld [vmem:[#allocation4 + $0xf8] sm:$0xf]
        %v4189 = vld [vmem:[#allocation4 + $0xfc] sm:$0xff]
        %v4190 = vld [vmem:[#allocation4 + $0x104] sm:$0xf]
        %v4191 = vld [vmem:[#allocation4 + $0x108] sm:$0xff]
        %v4192 = vld [vmem:[#allocation4 + $0x110] sm:$0xf]
        %v4193 = vld [vmem:[#allocation4 + $0x114] sm:$0xff]
        %v4194 = vld [vmem:[#allocation4 + $0x11c] sm:$0xf]
        %v4195 = vld [vmem:[#allocation4 + $0x120] sm:$0xff]
        %v4196 = vld [vmem:[#allocation4 + $0x128] sm:$0xf]
        %v4197 = vld [vmem:[#allocation4 + $0x12c] sm:$0xff]
        %v4198 = vld [vmem:[#allocation4 + $0x134] sm:$0xf]
        %v4199 = vld [vmem:[#allocation4 + $0x138] sm:$0xff]
        %v4200 = vld [vmem:[#allocation4 + $0x140] sm:$0xf]
        %v4201 = vld [vmem:[#allocation4 + $0x144] sm:$0xff]
        %v4202 = vld [vmem:[#allocation4 + $0x14c] sm:$0xf]
        %v4203 = vld [vmem:[#allocation4 + $0x150] sm:$0xff]
        %v4204 = vld [vmem:[#allocation4 + $0x158] sm:$0xf]
        %v4205 = vld [vmem:[#allocation4 + $0x15c] sm:$0xff]
        %v4206 = vld [vmem:[#allocation4 + $0x164] sm:$0xf]
        %v4207 = vld [vmem:[#allocation4 + $0x168] sm:$0xff]
        %v4208 = vld [vmem:[#allocation4 + $0x170] sm:$0xf]
        %v4209 = vld [vmem:[#allocation4 + $0x174] sm:$0xff]
        %v4210 = vld [vmem:[#allocation4 + $0x17c] sm:$0xf]
        %v4211 = vld [vmem:[#allocation4 + $0x180] sm:$0xff]
        %v4212 = vld [vmem:[#allocation4 + $0x188] sm:$0xf]
        %v4213 = vld [vmem:[#allocation4 + $0x18c] sm:$0xff]
        %v4214 = vld [vmem:[#allocation4 + $0x194] sm:$0xf]
        %v4215 = vld [vmem:[#allocation4 + $0x198] sm:$0xff]
        %v4216 = vld [vmem:[#allocation4 + $0x1a0] sm:$0xf]
        %v4217 = vld [vmem:[#allocation4 + $0x1a4] sm:$0xff]
        %v4218 = vld [vmem:[#allocation4 + $0x1ac] sm:$0xf]
        %v4219 = vld [vmem:[#allocation4 + $0x1b0] sm:$0xff]
        %v4220 = vld [vmem:[#allocation4 + $0x1b8] sm:$0xf]
        %v4221 = vld [vmem:[#allocation4 + $0x1bc] sm:$0xff]
        %v4222 = vld [vmem:[#allocation4 + $0x1c4] sm:$0xf]
        %v4223 = vld [vmem:[#allocation4 + $0x1c8] sm:$0xff]
        %v4224 = vld [vmem:[#allocation4 + $0x1d0] sm:$0xf]
        %v4225 = vld [vmem:[#allocation4 + $0x1d4] sm:$0xff]
        %v4226 = vld [vmem:[#allocation4 + $0x1dc] sm:$0xf]
        %v4227 = vld [vmem:[#allocation4 + $0x1e0] sm:$0xff]
        %v4228 = vld [vmem:[#allocation4 + $0x1e8] sm:$0xf]
        %v4229 = vld [vmem:[#allocation4 + $0x1ec] sm:$0xff]
        %v4230 = vld [vmem:[#allocation4 + $0x1f4] sm:$0xf]
        %v4231 = vld [vmem:[#allocation4 + $0x1f8] sm:$0xff]
        %v4232 = vld [vmem:[#allocation4 + $0x200] sm:$0xf]
        %v4233 = vld [vmem:[#allocation4 + $0x204] sm:$0xff]
        %v4234 = vld [vmem:[#allocation4 + $0x20c] sm:$0xf]
        %v4235 = vld [vmem:[#allocation4 + $0x210] sm:$0xff]
        %v4236 = vld [vmem:[#allocation4 + $0x218] sm:$0xf]
        %v4237 = vld [vmem:[#allocation4 + $0x21c] sm:$0xff]
        %v4238 = vld [vmem:[#allocation4 + $0x224] sm:$0xf]
        %v4239 = vld [vmem:[#allocation4 + $0x228] sm:$0xff]
        %v4240 = vld [vmem:[#allocation4 + $0x230] sm:$0xf]
        %v4241 = vld [vmem:[#allocation4 + $0x234] sm:$0xff]
        %v4242 = vld [vmem:[#allocation4 + $0x23c] sm:$0xf]
        %v4243 = vld [vmem:[#allocation4 + $0x240] sm:$0xff]
        %v4244 = vld [vmem:[#allocation4 + $0x248] sm:$0xf]
        %v4245 = vld [vmem:[#allocation4 + $0x24c] sm:$0xff]
        %v4246 = vld [vmem:[#allocation4 + $0x254] sm:$0xf]
        %v4247 = vld [vmem:[#allocation4 + $0x258] sm:$0xff]
        %v4248 = vld [vmem:[#allocation4 + $0x260] sm:$0xf]
        %v4249 = vld [vmem:[#allocation4 + $0x264] sm:$0xff]
        %v4250 = vld [vmem:[#allocation4 + $0x26c] sm:$0xf]
        %v4251 = vld [vmem:[#allocation4 + $0x270] sm:$0xff]
        %v4252 = vld [vmem:[#allocation4 + $0x278] sm:$0xf]
        %v4253 = vld [vmem:[#allocation4 + $0x27c] sm:$0xff]
        %v4254 = vld [vmem:[#allocation4 + $0x284] sm:$0xf]
        %v4255 = vld [vmem:[#allocation4 + $0x288] sm:$0xff]
        %v4256 = vld [vmem:[#allocation4 + $0x290] sm:$0xf]
        %v4257 = vld [vmem:[#allocation4 + $0x294] sm:$0xff]
        %v4258 = vld [vmem:[#allocation4 + $0x29c] sm:$0xf]
        %v4259 = vld [vmem:[#allocation4 + $0x2a0] sm:$0xff]
        %v4260 = vld [vmem:[#allocation4 + $0x2a8] sm:$0xf]
        %v4261 = vld [vmem:[#allocation4 + $0x2ac] sm:$0xff]
        %v4262 = vld [vmem:[#allocation4 + $0x2b4] sm:$0xf]
        %v4263 = vld [vmem:[#allocation4 + $0x2b8] sm:$0xff]
        %v4264 = vld [vmem:[#allocation4 + $0x2c0] sm:$0xf]
        %v4265 = vld [vmem:[#allocation4 + $0x2c4] sm:$0xff]
        %v4266 = vld [vmem:[#allocation4 + $0x2cc] sm:$0xf]
        %v4267 = vld [vmem:[#allocation4 + $0x2d0] sm:$0xff]
        %v4268 = vld [vmem:[#allocation4 + $0x2d8] sm:$0xf]
        %v4269 = vld [vmem:[#allocation4 + $0x2dc] sm:$0xff]
        %v4270 = vld [vmem:[#allocation4 + $0x2e4] sm:$0xf]
        %v4271 = vld [vmem:[#allocation4 + $0x2e8] sm:$0xff]
        %v4272 = vld [vmem:[#allocation4 + $0x2f0] sm:$0xf]
        %v4273 = vld [vmem:[#allocation4 + $0x2f4] sm:$0xff]
        %v4274 = vld [vmem:[#allocation4 + $0x2fc] sm:$0xf]
        %v4275 = vld [vmem:[#allocation4 + $0x300] sm:$0xff]
        %v4276 = vld [vmem:[#allocation4 + $0x308] sm:$0xf]
        %v4277 = vld [vmem:[#allocation4 + $0x30c] sm:$0xff]
        %v4278 = vld [vmem:[#allocation4 + $0x314] sm:$0xf]
        %v4279 = vld [vmem:[#allocation4 + $0x318] sm:$0xff]
        %v4280 = vld [vmem:[#allocation4 + $0x320] sm:$0xf]
        %v4281 = vld [vmem:[#allocation4 + $0x324] sm:$0xff]
        %v4282 = vld [vmem:[#allocation4 + $0x32c] sm:$0xf]
        %v4283 = vld [vmem:[#allocation4 + $0x330] sm:$0xff]
        %v4284 = vld [vmem:[#allocation4 + $0x338] sm:$0xf]
        %v4285 = vld [vmem:[#allocation4 + $0x33c] sm:$0xff]
        %v4286 = vld [vmem:[#allocation4 + $0x344] sm:$0xf]
        %v4287 = vld [vmem:[#allocation4 + $0x348] sm:$0xff]
        %v4288 = vld [vmem:[#allocation4 + $0x350] sm:$0xf]
        %v4289 = vld [vmem:[#allocation4 + $0x354] sm:$0xff]
        %v4290 = vld [vmem:[#allocation4 + $0x35c] sm:$0xf]
        %v4291 = vld [vmem:[#allocation4 + $0x360] sm:$0xff]
        %v4292 = vld [vmem:[#allocation4 + $0x368] sm:$0xf]
        %v4293 = vld [vmem:[#allocation4 + $0x36c] sm:$0xff]
        %v4294 = vld [vmem:[#allocation4 + $0x374] sm:$0xf]
        %v4295 = vld [vmem:[#allocation4 + $0x378] sm:$0xff]
        %v4296 = vld [vmem:[#allocation4 + $0x380] sm:$0xf]
        %v4297 = vld [vmem:[#allocation4 + $0x384] sm:$0xff]
        %v4298 = vld [vmem:[#allocation4 + $0x38c] sm:$0xf]
        %v4299 = vld [vmem:[#allocation4 + $0x390] sm:$0xff]
        %v4300 = vld [vmem:[#allocation4 + $0x398] sm:$0xf]
        %v4301 = vld [vmem:[#allocation4 + $0x39c] sm:$0xff]
        %v4302 = vld [vmem:[#allocation4 + $0x3a4] sm:$0xf]
        %v4303 = vld [vmem:[#allocation4 + $0x3a8] sm:$0xff]
        %v4304 = vld [vmem:[#allocation4 + $0x3b0] sm:$0xf]
        %v4305 = vld [vmem:[#allocation4 + $0x3b4] sm:$0xff]
        %v4306 = vld [vmem:[#allocation4 + $0x3bc] sm:$0xf]
        %v4307 = vld [vmem:[#allocation4 + $0x3c0] sm:$0xff]
        %v4308 = vld [vmem:[#allocation4 + $0x3c8] sm:$0xf]
        %v4309 = vld [vmem:[#allocation4 + $0x3cc] sm:$0xff]
        %v4310 = vld [vmem:[#allocation4 + $0x3d4] sm:$0xf]
        %v4311 = vld [vmem:[#allocation4 + $0x3d8] sm:$0xff]
        %v4312 = vld [vmem:[#allocation4 + $0x3e0] sm:$0xf]
        %v4313 = vld [vmem:[#allocation4 + $0x3e4] sm:$0xff]
        %v4314 = vld [vmem:[#allocation4 + $0x3ec] sm:$0xf]
        %v4315 = vld [vmem:[#allocation4 + $0x3f0] sm:$0xff]
        %v4316 = vld [vmem:[#allocation4 + $0x3f8] sm:$0xf]
        %v4317 = vld [vmem:[#allocation4 + $0x3fc] sm:$0xff]
        %v4318 = vld [vmem:[#allocation4 + $0x404] sm:$0xf]
        %v4319 = vld [vmem:[#allocation4 + $0x408] sm:$0xff]
        %v4320 = vld [vmem:[#allocation4 + $0x410] sm:$0xf]
        %v4321 = vld [vmem:[#allocation4 + $0x414] sm:$0xff]
        %v4322 = vld [vmem:[#allocation4 + $0x41c] sm:$0xf]
        %v4323 = vld [vmem:[#allocation4 + $0x420] sm:$0xff]
        %v4324 = vld [vmem:[#allocation4 + $0x428] sm:$0xf]
        %v4325 = vld [vmem:[#allocation4 + $0x42c] sm:$0xff]
        %v4326 = vld [vmem:[#allocation4 + $0x434] sm:$0xf]
        %v4327 = vld [vmem:[#allocation4 + $0x438] sm:$0xff]
        %v4328 = vld [vmem:[#allocation4 + $0x440] sm:$0xf]
        %v4329 = vld [vmem:[#allocation4 + $0x444] sm:$0xff]
        %v4330 = vld [vmem:[#allocation4 + $0x44c] sm:$0xf]
        %v4331 = vld [vmem:[#allocation4 + $0x450] sm:$0xff]
        %v4332 = vld [vmem:[#allocation4 + $0x458] sm:$0xf]
        %v4333 = vld [vmem:[#allocation4 + $0x45c] sm:$0xff]
        %v4334 = vld [vmem:[#allocation4 + $0x464] sm:$0xf]
        %v4335 = vld [vmem:[#allocation4 + $0x468] sm:$0xff]
        %v4336 = vld [vmem:[#allocation4 + $0x470] sm:$0xf]
        %v4337 = vld [vmem:[#allocation4 + $0x474] sm:$0xff]
        %v4338 = vld [vmem:[#allocation4 + $0x47c] sm:$0xf]
        %v4339 = vld [vmem:[#allocation4 + $0x480] sm:$0xff]
        %v4340 = vld [vmem:[#allocation4 + $0x488] sm:$0xf]
        %v4341 = vld [vmem:[#allocation4 + $0x48c] sm:$0xff]
        %v4342 = vld [vmem:[#allocation4 + $0x494] sm:$0xf]
        %v4343 = vld [vmem:[#allocation4 + $0x498] sm:$0xff]
        %v4344 = vld [vmem:[#allocation4 + $0x4a0] sm:$0xf]
        %v4345 = vld [vmem:[#allocation4 + $0x4a4] sm:$0xff]
        %v4346 = vld [vmem:[#allocation4 + $0x4ac] sm:$0xf]
        %v4347 = vld [vmem:[#allocation4 + $0x4b0] sm:$0xff]
        %v4348 = vld [vmem:[#allocation4 + $0x4b8] sm:$0xf]
        %v4349 = vld [vmem:[#allocation4 + $0x4bc] sm:$0xff]
        %v4350 = vld [vmem:[#allocation4 + $0x4c4] sm:$0xf]
        %v4351 = vld [vmem:[#allocation4 + $0x4c8] sm:$0xff]
        %v4352 = vld [vmem:[#allocation4 + $0x4d0] sm:$0xf]
        %v4353 = vld [vmem:[#allocation4 + $0x4d4] sm:$0xff]
        %v4354 = vld [vmem:[#allocation4 + $0x4dc] sm:$0xf]
        %v4355 = vld [vmem:[#allocation4 + $0x4e0] sm:$0xff]
        %v4356 = vld [vmem:[#allocation4 + $0x4e8] sm:$0xf]
        %v4357 = vld [vmem:[#allocation4 + $0x4ec] sm:$0xff]
        %v4358 = vld [vmem:[#allocation4 + $0x4f4] sm:$0xf]
        %v4359 = vld [vmem:[#allocation4 + $0x4f8] sm:$0xff]
        %v4360 = vld [vmem:[#allocation4 + $0x500] sm:$0xf]
        %v4361 = vld [vmem:[#allocation4 + $0x504] sm:$0xff]
        %v4362 = vld [vmem:[#allocation4 + $0x50c] sm:$0xf]
        %v4363 = vld [vmem:[#allocation4 + $0x510] sm:$0xff]
        %v4364 = vld [vmem:[#allocation4 + $0x518] sm:$0xf]
        %v4365 = vld [vmem:[#allocation4 + $0x51c] sm:$0xff]
        %v4366 = vld [vmem:[#allocation4 + $0x524] sm:$0xf]
        %v4367 = vld [vmem:[#allocation4 + $0x528] sm:$0xff]
        %v4368 = vld [vmem:[#allocation4 + $0x530] sm:$0xf]
        %v4369 = vld [vmem:[#allocation4 + $0x534] sm:$0xff]
        %v4370 = vld [vmem:[#allocation4 + $0x53c] sm:$0xf]
        %v4371 = vld [vmem:[#allocation4 + $0x540] sm:$0xff]
        %v4372 = vld [vmem:[#allocation4 + $0x548] sm:$0xf]
        %v4373 = vld [vmem:[#allocation4 + $0x54c] sm:$0xff]
        %v4374 = vld [vmem:[#allocation4 + $0x554] sm:$0xf]
        %v4375 = vld [vmem:[#allocation4 + $0x558] sm:$0xff]
        %v4376 = vld [vmem:[#allocation4 + $0x560] sm:$0xf]
        %v4377 = vld [vmem:[#allocation4 + $0x564] sm:$0xff]
        %v4378 = vld [vmem:[#allocation4 + $0x56c] sm:$0xf]
        %v4379 = vld [vmem:[#allocation4 + $0x570] sm:$0xff]
        %v4380 = vld [vmem:[#allocation4 + $0x578] sm:$0xf]
        %v4381 = vld [vmem:[#allocation4 + $0x57c] sm:$0xff]
        %v4382 = vld [vmem:[#allocation4 + $0x584] sm:$0xf]
        %v4383 = vld [vmem:[#allocation4 + $0x588] sm:$0xff]
        %v4384 = vld [vmem:[#allocation4 + $0x590] sm:$0xf]
        %v4385 = vld [vmem:[#allocation4 + $0x594] sm:$0xff]
        %v4386 = vld [vmem:[#allocation4 + $0x59c] sm:$0xf]
        %v4387 = vld [vmem:[#allocation4 + $0x5a0] sm:$0xff]
        %v4388 = vld [vmem:[#allocation4 + $0x5a8] sm:$0xf]
        %v4389 = vld [vmem:[#allocation4 + $0x5ac] sm:$0xff]
        %v4390 = vld [vmem:[#allocation4 + $0x5b4] sm:$0xf]
        %v4391 = vld [vmem:[#allocation4 + $0x5b8] sm:$0xff]
        %v4392 = vld [vmem:[#allocation4 + $0x5c0] sm:$0xf]
        %v4393 = vld [vmem:[#allocation4 + $0x5c4] sm:$0xff]
        %v4394 = vld [vmem:[#allocation4 + $0x5cc] sm:$0xf]
        %v4395 = vld [vmem:[#allocation4 + $0x5d0] sm:$0xff]
        %v4396 = vld [vmem:[#allocation4 + $0x5d8] sm:$0xf]
        %v4397 = vld [vmem:[#allocation4 + $0x5dc] sm:$0xff]
        %v4398 = vld [vmem:[#allocation4 + $0x5e4] sm:$0xf]
        %v4399 = vld [vmem:[#allocation4 + $0x5e8] sm:$0xff]
        %v4400 = vld [vmem:[#allocation4 + $0x5f0] sm:$0xf]
        %v4401 = vld [vmem:[#allocation4 + $0x5f4] sm:$0xff]
        %v4402 = vld [vmem:[#allocation4 + $0x5fc] sm:$0xf]
        %v4403 = vld [vmem:[#allocation4 + $0x600] sm:$0xff]
        %v4404 = vld [vmem:[#allocation4 + $0x608] sm:$0xf]
        %v4405 = vld [vmem:[#allocation4 + $0x60c] sm:$0xff]
        %v4406 = vld [vmem:[#allocation4 + $0x614] sm:$0xf]
        %v4407 = vld [vmem:[#allocation4 + $0x618] sm:$0xff]
        %v4408 = vld [vmem:[#allocation4 + $0x620] sm:$0xf]
        %v4409 = vld [vmem:[#allocation4 + $0x624] sm:$0xff]
        %v4410 = vld [vmem:[#allocation4 + $0x62c] sm:$0xf]
        %v4411 = vld [vmem:[#allocation4 + $0x630] sm:$0xff]
        %v4412 = vld [vmem:[#allocation4 + $0x638] sm:$0xf]
        %v4413 = vld [vmem:[#allocation4 + $0x63c] sm:$0xff]
        %v4414 = vld [vmem:[#allocation4 + $0x644] sm:$0xf]
        %v4415 = vld [vmem:[#allocation4 + $0x648] sm:$0xff]
        %v4416 = vld [vmem:[#allocation4 + $0x650] sm:$0xf]
        %v4417 = vld [vmem:[#allocation4 + $0x654] sm:$0xff]
        %v4418 = vld [vmem:[#allocation4 + $0x65c] sm:$0xf]
        %v4419 = vld [vmem:[#allocation4 + $0x660] sm:$0xff]
        %v4420 = vld [vmem:[#allocation4 + $0x668] sm:$0xf]
        %v4421 = vld [vmem:[#allocation4 + $0x66c] sm:$0xff]
        %v4422 = vld [vmem:[#allocation4 + $0x674] sm:$0xf]
        %v4423 = vld [vmem:[#allocation4 + $0x678] sm:$0xff]
        %v4424 = vld [vmem:[#allocation4 + $0x680] sm:$0xf]
        %v4425 = vld [vmem:[#allocation4 + $0x684] sm:$0xff]
        %v4426 = vld [vmem:[#allocation4 + $0x68c] sm:$0xf]
        %v4427 = vld [vmem:[#allocation4 + $0x690] sm:$0xff]
        %v4428 = vld [vmem:[#allocation4 + $0x698] sm:$0xf]
        %v4429 = vld [vmem:[#allocation4 + $0x69c] sm:$0xff]
        %v4430 = vld [vmem:[#allocation4 + $0x6a4] sm:$0xf]
        %v4431 = vld [vmem:[#allocation4 + $0x6a8] sm:$0xff]
        %v4432 = vld [vmem:[#allocation4 + $0x6b0] sm:$0xf]
        %v4433 = vld [vmem:[#allocation4 + $0x6b4] sm:$0xff]
        %v4434 = vld [vmem:[#allocation4 + $0x6bc] sm:$0xf]
        %v4435 = vld [vmem:[#allocation4 + $0x6c0] sm:$0xff]
        %v4436 = vld [vmem:[#allocation4 + $0x6c8] sm:$0xf]
        %v4437 = vld [vmem:[#allocation4 + $0x6cc] sm:$0xff]
        %v4438 = vld [vmem:[#allocation4 + $0x6d4] sm:$0xf]
        %v4439 = vld [vmem:[#allocation4 + $0x6d8] sm:$0xff]
        %v4440 = vld [vmem:[#allocation4 + $0x6e0] sm:$0xf]
        %v4441 = vld [vmem:[#allocation4 + $0x6e4] sm:$0xff]
        %v4442 = vld [vmem:[#allocation4 + $0x6ec] sm:$0xf]
        %v4443 = vld [vmem:[#allocation4 + $0x6f0] sm:$0xff]
        %v4444 = vld [vmem:[#allocation4 + $0x6f8] sm:$0xf]
        %v4445 = vld [vmem:[#allocation4 + $0x6fc] sm:$0xff]
        %v4446 = vld [vmem:[#allocation4 + $0x704] sm:$0xf]
        %v4447 = vld [vmem:[#allocation4 + $0x708] sm:$0xff]
        %v4448 = vld [vmem:[#allocation4 + $0x710] sm:$0xf]
        %v4449 = vld [vmem:[#allocation4 + $0x714] sm:$0xff]
        %v4450 = vld [vmem:[#allocation4 + $0x71c] sm:$0xf]
        %v4451 = vld [vmem:[#allocation4 + $0x720] sm:$0xff]
        %v4452 = vld [vmem:[#allocation4 + $0x728] sm:$0xf]
        %v4453 = vld [vmem:[#allocation4 + $0x72c] sm:$0xff]
        %v4454 = vld [vmem:[#allocation4 + $0x734] sm:$0xf]
        %v4455 = vld [vmem:[#allocation4 + $0x738] sm:$0xff]
        %v4456 = vld [vmem:[#allocation4 + $0x740] sm:$0xf]
        %v4457 = vld [vmem:[#allocation4 + $0x744] sm:$0xff]
        %v4458 = vld [vmem:[#allocation4 + $0x74c] sm:$0xf]
        %v4459 = vld [vmem:[#allocation4 + $0x750] sm:$0xff]
        %v4460 = vld [vmem:[#allocation4 + $0x758] sm:$0xf]
        %v4461 = vld [vmem:[#allocation4 + $0x75c] sm:$0xff]
        %v4462 = vld [vmem:[#allocation4 + $0x764] sm:$0xf]
        %v4463 = vld [vmem:[#allocation4 + $0x768] sm:$0xff]
        %v4464 = vld [vmem:[#allocation4 + $0x770] sm:$0xf]
        %v4465 = vld [vmem:[#allocation4 + $0x774] sm:$0xff]
        %v4466 = vld [vmem:[#allocation4 + $0x77c] sm:$0xf]
        %v4467 = vld [vmem:[#allocation4 + $0x780] sm:$0xff]
        %v4468 = vld [vmem:[#allocation4 + $0x788] sm:$0xf]
        %v4469 = vld [vmem:[#allocation4 + $0x78c] sm:$0xff]
        %v4470 = vld [vmem:[#allocation4 + $0x794] sm:$0xf]
        %v4471 = vld [vmem:[#allocation4 + $0x798] sm:$0xff]
        %v4472 = vld [vmem:[#allocation4 + $0x7a0] sm:$0xf]
        %v4473 = vld [vmem:[#allocation4 + $0x7a4] sm:$0xff]
        %v4474 = vld [vmem:[#allocation4 + $0x7ac] sm:$0xf]
        %v4475 = vld [vmem:[#allocation4 + $0x7b0] sm:$0xff]
        %v4476 = vld [vmem:[#allocation4 + $0x7b8] sm:$0xf]
        %v4477 = vld [vmem:[#allocation4 + $0x7bc] sm:$0xff]
        %v4478 = vld [vmem:[#allocation4 + $0x7c4] sm:$0xf]
        %v4479 = vld [vmem:[#allocation4 + $0x7c8] sm:$0xff]
        %v4480 = vld [vmem:[#allocation4 + $0x7d0] sm:$0xf]
        %v4481 = vld [vmem:[#allocation4 + $0x7d4] sm:$0xff]
        %v4482 = vld [vmem:[#allocation4 + $0x7dc] sm:$0xf]
        %v4483 = vld [vmem:[#allocation4 + $0x7e0] sm:$0xff]
        %v4484 = vld [vmem:[#allocation4 + $0x7e8] sm:$0xf]
        %v4485 = vld [vmem:[#allocation4 + $0x7ec] sm:$0xff]
        %v4486 = vld [vmem:[#allocation4 + $0x7f4] sm:$0xf]
        %v4487 = vld [vmem:[#allocation4 + $0x7f8] sm:$0xff]
        %v4488 = vld [vmem:[#allocation4 + $0x800] sm:$0xf]
        %v4489 = vld [vmem:[#allocation4 + $0x804] sm:$0xff]
        %v4490 = vld [vmem:[#allocation4 + $0x80c] sm:$0xf]
        %v4491 = vld [vmem:[#allocation4 + $0x810] sm:$0xff]
        %v4492 = vld [vmem:[#allocation4 + $0x818] sm:$0xf]
        %v4493 = vld [vmem:[#allocation4 + $0x81c] sm:$0xff]
        %v4494 = vld [vmem:[#allocation4 + $0x824] sm:$0xf]
        %v4495 = vld [vmem:[#allocation4 + $0x828] sm:$0xff]
        %v4496 = vld [vmem:[#allocation4 + $0x830] sm:$0xf]
        %v4497 = vld [vmem:[#allocation4 + $0x834] sm:$0xff]
        %v4498 = vld [vmem:[#allocation4 + $0x83c] sm:$0xf]
        %v4499 = vld [vmem:[#allocation4 + $0x840] sm:$0xff]
        %v4500 = vld [vmem:[#allocation4 + $0x848] sm:$0xf]
        %v4501 = vld [vmem:[#allocation4 + $0x84c] sm:$0xff]
        %v4502 = vld [vmem:[#allocation4 + $0x854] sm:$0xf]
        %v4503 = vld [vmem:[#allocation4 + $0x858] sm:$0xff]
        %v4504 = vld [vmem:[#allocation4 + $0x860] sm:$0xf]
        %v4505 = vld [vmem:[#allocation4 + $0x864] sm:$0xff]
        %v4506 = vld [vmem:[#allocation4 + $0x86c] sm:$0xf]
        %v4507 = vld [vmem:[#allocation4 + $0x870] sm:$0xff]
        %v4508 = vld [vmem:[#allocation4 + $0x878] sm:$0xf]
        %v4509 = vld [vmem:[#allocation4 + $0x87c] sm:$0xff]
        %v4510 = vld [vmem:[#allocation4 + $0x884] sm:$0xf]
        %v4511 = vld [vmem:[#allocation4 + $0x888] sm:$0xff]
        %v4512 = vld [vmem:[#allocation4 + $0x890] sm:$0xf]
        %v4513 = vld [vmem:[#allocation4 + $0x894] sm:$0xff]
        %v4514 = vld [vmem:[#allocation4 + $0x89c] sm:$0xf]
        %v4515 = vld [vmem:[#allocation4 + $0x8a0] sm:$0xff]
        %v4516 = vld [vmem:[#allocation4 + $0x8a8] sm:$0xf]
        %v4517 = vld [vmem:[#allocation4 + $0x8ac] sm:$0xff]
        %v4518 = vld [vmem:[#allocation4 + $0x8b4] sm:$0xf]
        %v4519 = vld [vmem:[#allocation4 + $0x8b8] sm:$0xff]
        %v4520 = vld [vmem:[#allocation4 + $0x8c0] sm:$0xf]
        %v4521 = vld [vmem:[#allocation4 + $0x8c4] sm:$0xff]
        %v4522 = vld [vmem:[#allocation4 + $0x8cc] sm:$0xf]
        %v4523 = vld [vmem:[#allocation4 + $0x8d0] sm:$0xff]
        %v4524 = vld [vmem:[#allocation4 + $0x8d8] sm:$0xf]
        %v4525 = vld [vmem:[#allocation4 + $0x8dc] sm:$0xff]
        %v4526 = vld [vmem:[#allocation4 + $0x8e4] sm:$0xf]
        %v4527 = vld [vmem:[#allocation4 + $0x8e8] sm:$0xff]
        %v4528 = vld [vmem:[#allocation4 + $0x8f0] sm:$0xf]
        %v4529 = vld [vmem:[#allocation4 + $0x8f4] sm:$0xff]
        %v4530 = vld [vmem:[#allocation4 + $0x8fc] sm:$0xf]
        %v4531 = vld [vmem:[%s4] sm:$0x7]
        %v4533 = vperm.slane %v4531, 0
        %v4534 = vperm.slane %v4531, 1
        %v4535 = vperm.slane %v4531, 2
        %v4923 = vunpack.c.l.b16 %v4147
        %v4924 = vunpack.c.h.b16 %v4147
        %v4925 = vunpack.c.l.b16 %v4148
        %v4926 = vunpack.c.l.b16 %v4149
        %v4927 = vunpack.c.h.b16 %v4149
        %v4928 = vunpack.c.l.b16 %v4150
        %v4929 = vunpack.c.l.b16 %v4151
        %v4930 = vunpack.c.h.b16 %v4151
        %v4931 = vunpack.c.l.b16 %v4152
        %v4932 = vunpack.c.l.b16 %v4153
        %v4933 = vunpack.c.h.b16 %v4153
        %v4934 = vunpack.c.l.b16 %v4154
        %v4935 = vunpack.c.l.b16 %v4155
        %v4936 = vunpack.c.h.b16 %v4155
        %v4937 = vunpack.c.l.b16 %v4156
        %v4938 = vunpack.c.l.b16 %v4157
        %v4939 = vunpack.c.h.b16 %v4157
        %v4940 = vunpack.c.l.b16 %v4158
        %v4941 = vunpack.c.l.b16 %v4159
        %v4942 = vunpack.c.h.b16 %v4159
        %v4943 = vunpack.c.l.b16 %v4160
        %v4944 = vunpack.c.l.b16 %v4161
        %v4945 = vunpack.c.h.b16 %v4161
        %v4946 = vunpack.c.l.b16 %v4162
        %v4947 = vunpack.c.l.b16 %v4163
        %v4948 = vunpack.c.h.b16 %v4163
        %v4949 = vunpack.c.l.b16 %v4164
        %v4950 = vunpack.c.l.b16 %v4165
        %v4951 = vunpack.c.h.b16 %v4165
        %v4952 = vunpack.c.l.b16 %v4166
        %v4953 = vunpack.c.l.b16 %v4167
        %v4954 = vunpack.c.h.b16 %v4167
        %v4955 = vunpack.c.l.b16 %v4168
        %v4956 = vunpack.c.l.b16 %v4169
        %v4957 = vunpack.c.h.b16 %v4169
        %v4958 = vunpack.c.l.b16 %v4170
        %v4959 = vunpack.c.l.b16 %v4171
        %v4960 = vunpack.c.h.b16 %v4171
        %v4961 = vunpack.c.l.b16 %v4172
        %v4962 = vunpack.c.l.b16 %v4173
        %v4963 = vunpack.c.h.b16 %v4173
        %v4964 = vunpack.c.l.b16 %v4174
        %v4965 = vunpack.c.l.b16 %v4175
        %v4966 = vunpack.c.h.b16 %v4175
        %v4967 = vunpack.c.l.b16 %v4176
        %v4968 = vunpack.c.l.b16 %v4177
        %v4969 = vunpack.c.h.b16 %v4177
        %v4970 = vunpack.c.l.b16 %v4178
        %v4971 = vunpack.c.l.b16 %v4179
        %v4972 = vunpack.c.h.b16 %v4179
        %v4973 = vunpack.c.l.b16 %v4180
        %v4974 = vunpack.c.l.b16 %v4181
        %v4975 = vunpack.c.h.b16 %v4181
        %v4976 = vunpack.c.l.b16 %v4182
        %v4977 = vunpack.c.l.b16 %v4183
        %v4978 = vunpack.c.h.b16 %v4183
        %v4979 = vunpack.c.l.b16 %v4184
        %v4980 = vunpack.c.l.b16 %v4185
        %v4981 = vunpack.c.h.b16 %v4185
        %v4982 = vunpack.c.l.b16 %v4186
        %v4983 = vunpack.c.l.b16 %v4187
        %v4984 = vunpack.c.h.b16 %v4187
        %v4985 = vunpack.c.l.b16 %v4188
        %v4986 = vunpack.c.l.b16 %v4189
        %v4987 = vunpack.c.h.b16 %v4189
        %v4988 = vunpack.c.l.b16 %v4190
        %v4989 = vunpack.c.l.b16 %v4191
        %v4990 = vunpack.c.h.b16 %v4191
        %v4991 = vunpack.c.l.b16 %v4192
        %v4992 = vunpack.c.l.b16 %v4193
        %v4993 = vunpack.c.h.b16 %v4193
        %v4994 = vunpack.c.l.b16 %v4194
        %v4995 = vunpack.c.l.b16 %v4195
        %v4996 = vunpack.c.h.b16 %v4195
        %v4997 = vunpack.c.l.b16 %v4196
        %v4998 = vunpack.c.l.b16 %v4197
        %v4999 = vunpack.c.h.b16 %v4197
        %v5000 = vunpack.c.l.b16 %v4198
        %v5001 = vunpack.c.l.b16 %v4199
        %v5002 = vunpack.c.h.b16 %v4199
        %v5003 = vunpack.c.l.b16 %v4200
        %v5004 = vunpack.c.l.b16 %v4201
        %v5005 = vunpack.c.h.b16 %v4201
        %v5006 = vunpack.c.l.b16 %v4202
        %v5007 = vunpack.c.l.b16 %v4203
        %v5008 = vunpack.c.h.b16 %v4203
        %v5009 = vunpack.c.l.b16 %v4204
        %v5010 = vunpack.c.l.b16 %v4205
        %v5011 = vunpack.c.h.b16 %v4205
        %v5012 = vunpack.c.l.b16 %v4206
        %v5013 = vunpack.c.l.b16 %v4207
        %v5014 = vunpack.c.h.b16 %v4207
        %v5015 = vunpack.c.l.b16 %v4208
        %v5016 = vunpack.c.l.b16 %v4209
        %v5017 = vunpack.c.h.b16 %v4209
        %v5018 = vunpack.c.l.b16 %v4210
        %v5019 = vunpack.c.l.b16 %v4211
        %v5020 = vunpack.c.h.b16 %v4211
        %v5021 = vunpack.c.l.b16 %v4212
        %v5022 = vunpack.c.l.b16 %v4213
        %v5023 = vunpack.c.h.b16 %v4213
        %v5024 = vunpack.c.l.b16 %v4214
        %v5025 = vunpack.c.l.b16 %v4215
        %v5026 = vunpack.c.h.b16 %v4215
        %v5027 = vunpack.c.l.b16 %v4216
        %v5028 = vunpack.c.l.b16 %v4217
        %v5029 = vunpack.c.h.b16 %v4217
        %v5030 = vunpack.c.l.b16 %v4218
        %v5031 = vunpack.c.l.b16 %v4219
        %v5032 = vunpack.c.h.b16 %v4219
        %v5033 = vunpack.c.l.b16 %v4220
        %v5034 = vunpack.c.l.b16 %v4221
        %v5035 = vunpack.c.h.b16 %v4221
        %v5036 = vunpack.c.l.b16 %v4222
        %v5037 = vunpack.c.l.b16 %v4223
        %v5038 = vunpack.c.h.b16 %v4223
        %v5039 = vunpack.c.l.b16 %v4224
        %v5040 = vunpack.c.l.b16 %v4225
        %v5041 = vunpack.c.h.b16 %v4225
        %v5042 = vunpack.c.l.b16 %v4226
        %v5043 = vunpack.c.l.b16 %v4227
        %v5044 = vunpack.c.h.b16 %v4227
        %v5045 = vunpack.c.l.b16 %v4228
        %v5046 = vunpack.c.l.b16 %v4229
        %v5047 = vunpack.c.h.b16 %v4229
        %v5048 = vunpack.c.l.b16 %v4230
        %v5049 = vunpack.c.l.b16 %v4231
        %v5050 = vunpack.c.h.b16 %v4231
        %v5051 = vunpack.c.l.b16 %v4232
        %v5052 = vunpack.c.l.b16 %v4233
        %v5053 = vunpack.c.h.b16 %v4233
        %v5054 = vunpack.c.l.b16 %v4234
        %v5055 = vunpack.c.l.b16 %v4235
        %v5056 = vunpack.c.h.b16 %v4235
        %v5057 = vunpack.c.l.b16 %v4236
        %v5058 = vunpack.c.l.b16 %v4237
        %v5059 = vunpack.c.h.b16 %v4237
        %v5060 = vunpack.c.l.b16 %v4238
        %v5061 = vunpack.c.l.b16 %v4239
        %v5062 = vunpack.c.h.b16 %v4239
        %v5063 = vunpack.c.l.b16 %v4240
        %v5064 = vunpack.c.l.b16 %v4241
        %v5065 = vunpack.c.h.b16 %v4241
        %v5066 = vunpack.c.l.b16 %v4242
        %v5067 = vunpack.c.l.b16 %v4243
        %v5068 = vunpack.c.h.b16 %v4243
        %v5069 = vunpack.c.l.b16 %v4244
        %v5070 = vunpack.c.l.b16 %v4245
        %v5071 = vunpack.c.h.b16 %v4245
        %v5072 = vunpack.c.l.b16 %v4246
        %v5073 = vunpack.c.l.b16 %v4247
        %v5074 = vunpack.c.h.b16 %v4247
        %v5075 = vunpack.c.l.b16 %v4248
        %v5076 = vunpack.c.l.b16 %v4249
        %v5077 = vunpack.c.h.b16 %v4249
        %v5078 = vunpack.c.l.b16 %v4250
        %v5079 = vunpack.c.l.b16 %v4251
        %v5080 = vunpack.c.h.b16 %v4251
        %v5081 = vunpack.c.l.b16 %v4252
        %v5082 = vunpack.c.l.b16 %v4253
        %v5083 = vunpack.c.h.b16 %v4253
        %v5084 = vunpack.c.l.b16 %v4254
        %v5085 = vunpack.c.l.b16 %v4255
        %v5086 = vunpack.c.h.b16 %v4255
        %v5087 = vunpack.c.l.b16 %v4256
        %v5088 = vunpack.c.l.b16 %v4257
        %v5089 = vunpack.c.h.b16 %v4257
        %v5090 = vunpack.c.l.b16 %v4258
        %v5091 = vunpack.c.l.b16 %v4259
        %v5092 = vunpack.c.h.b16 %v4259
        %v5093 = vunpack.c.l.b16 %v4260
        %v5094 = vunpack.c.l.b16 %v4261
        %v5095 = vunpack.c.h.b16 %v4261
        %v5096 = vunpack.c.l.b16 %v4262
        %v5097 = vunpack.c.l.b16 %v4263
        %v5098 = vunpack.c.h.b16 %v4263
        %v5099 = vunpack.c.l.b16 %v4264
        %v5100 = vunpack.c.l.b16 %v4265
        %v5101 = vunpack.c.h.b16 %v4265
        %v5102 = vunpack.c.l.b16 %v4266
        %v5103 = vunpack.c.l.b16 %v4267
        %v5104 = vunpack.c.h.b16 %v4267
        %v5105 = vunpack.c.l.b16 %v4268
        %v5106 = vunpack.c.l.b16 %v4269
        %v5107 = vunpack.c.h.b16 %v4269
        %v5108 = vunpack.c.l.b16 %v4270
        %v5109 = vunpack.c.l.b16 %v4271
        %v5110 = vunpack.c.h.b16 %v4271
        %v5111 = vunpack.c.l.b16 %v4272
        %v5112 = vunpack.c.l.b16 %v4273
        %v5113 = vunpack.c.h.b16 %v4273
        %v5114 = vunpack.c.l.b16 %v4274
        %v5115 = vunpack.c.l.b16 %v4275
        %v5116 = vunpack.c.h.b16 %v4275
        %v5117 = vunpack.c.l.b16 %v4276
        %v5118 = vunpack.c.l.b16 %v4277
        %v5119 = vunpack.c.h.b16 %v4277
        %v5120 = vunpack.c.l.b16 %v4278
        %v5121 = vunpack.c.l.b16 %v4279
        %v5122 = vunpack.c.h.b16 %v4279
        %v5123 = vunpack.c.l.b16 %v4280
        %v5124 = vunpack.c.l.b16 %v4281
        %v5125 = vunpack.c.h.b16 %v4281
        %v5126 = vunpack.c.l.b16 %v4282
        %v5127 = vunpack.c.l.b16 %v4283
        %v5128 = vunpack.c.h.b16 %v4283
        %v5129 = vunpack.c.l.b16 %v4284
        %v5130 = vunpack.c.l.b16 %v4285
        %v5131 = vunpack.c.h.b16 %v4285
        %v5132 = vunpack.c.l.b16 %v4286
        %v5133 = vunpack.c.l.b16 %v4287
        %v5134 = vunpack.c.h.b16 %v4287
        %v5135 = vunpack.c.l.b16 %v4288
        %v5136 = vunpack.c.l.b16 %v4289
        %v5137 = vunpack.c.h.b16 %v4289
        %v5138 = vunpack.c.l.b16 %v4290
        %v5139 = vunpack.c.l.b16 %v4291
        %v5140 = vunpack.c.h.b16 %v4291
        %v5141 = vunpack.c.l.b16 %v4292
        %v5142 = vunpack.c.l.b16 %v4293
        %v5143 = vunpack.c.h.b16 %v4293
        %v5144 = vunpack.c.l.b16 %v4294
        %v5145 = vunpack.c.l.b16 %v4295
        %v5146 = vunpack.c.h.b16 %v4295
        %v5147 = vunpack.c.l.b16 %v4296
        %v5148 = vunpack.c.l.b16 %v4297
        %v5149 = vunpack.c.h.b16 %v4297
        %v5150 = vunpack.c.l.b16 %v4298
        %v5151 = vunpack.c.l.b16 %v4299
        %v5152 = vunpack.c.h.b16 %v4299
        %v5153 = vunpack.c.l.b16 %v4300
        %v5154 = vunpack.c.l.b16 %v4301
        %v5155 = vunpack.c.h.b16 %v4301
        %v5156 = vunpack.c.l.b16 %v4302
        %v5157 = vunpack.c.l.b16 %v4303
        %v5158 = vunpack.c.h.b16 %v4303
        %v5159 = vunpack.c.l.b16 %v4304
        %v5160 = vunpack.c.l.b16 %v4305
        %v5161 = vunpack.c.h.b16 %v4305
        %v5162 = vunpack.c.l.b16 %v4306
        %v5163 = vunpack.c.l.b16 %v4307
        %v5164 = vunpack.c.h.b16 %v4307
        %v5165 = vunpack.c.l.b16 %v4308
        %v5166 = vunpack.c.l.b16 %v4309
        %v5167 = vunpack.c.h.b16 %v4309
        %v5168 = vunpack.c.l.b16 %v4310
        %v5169 = vunpack.c.l.b16 %v4311
        %v5170 = vunpack.c.h.b16 %v4311
        %v5171 = vunpack.c.l.b16 %v4312
        %v5172 = vunpack.c.l.b16 %v4313
        %v5173 = vunpack.c.h.b16 %v4313
        %v5174 = vunpack.c.l.b16 %v4314
        %v5175 = vunpack.c.l.b16 %v4315
        %v5176 = vunpack.c.h.b16 %v4315
        %v5177 = vunpack.c.l.b16 %v4316
        %v5178 = vunpack.c.l.b16 %v4317
        %v5179 = vunpack.c.h.b16 %v4317
        %v5180 = vunpack.c.l.b16 %v4318
        %v5181 = vunpack.c.l.b16 %v4319
        %v5182 = vunpack.c.h.b16 %v4319
        %v5183 = vunpack.c.l.b16 %v4320
        %v5184 = vunpack.c.l.b16 %v4321
        %v5185 = vunpack.c.h.b16 %v4321
        %v5186 = vunpack.c.l.b16 %v4322
        %v5187 = vunpack.c.l.b16 %v4323
        %v5188 = vunpack.c.h.b16 %v4323
        %v5189 = vunpack.c.l.b16 %v4324
        %v5190 = vunpack.c.l.b16 %v4325
        %v5191 = vunpack.c.h.b16 %v4325
        %v5192 = vunpack.c.l.b16 %v4326
        %v5193 = vunpack.c.l.b16 %v4327
        %v5194 = vunpack.c.h.b16 %v4327
        %v5195 = vunpack.c.l.b16 %v4328
        %v5196 = vunpack.c.l.b16 %v4329
        %v5197 = vunpack.c.h.b16 %v4329
        %v5198 = vunpack.c.l.b16 %v4330
        %v5199 = vunpack.c.l.b16 %v4331
        %v5200 = vunpack.c.h.b16 %v4331
        %v5201 = vunpack.c.l.b16 %v4332
        %v5202 = vunpack.c.l.b16 %v4333
        %v5203 = vunpack.c.h.b16 %v4333
        %v5204 = vunpack.c.l.b16 %v4334
        %v5205 = vunpack.c.l.b16 %v4335
        %v5206 = vunpack.c.h.b16 %v4335
        %v5207 = vunpack.c.l.b16 %v4336
        %v5208 = vunpack.c.l.b16 %v4337
        %v5209 = vunpack.c.h.b16 %v4337
        %v5210 = vunpack.c.l.b16 %v4338
        %v5211 = vunpack.c.l.b16 %v4339
        %v5212 = vunpack.c.h.b16 %v4339
        %v5213 = vunpack.c.l.b16 %v4340
        %v5214 = vunpack.c.l.b16 %v4341
        %v5215 = vunpack.c.h.b16 %v4341
        %v5216 = vunpack.c.l.b16 %v4342
        %v5217 = vunpack.c.l.b16 %v4343
        %v5218 = vunpack.c.h.b16 %v4343
        %v5219 = vunpack.c.l.b16 %v4344
        %v5220 = vunpack.c.l.b16 %v4345
        %v5221 = vunpack.c.h.b16 %v4345
        %v5222 = vunpack.c.l.b16 %v4346
        %v5223 = vunpack.c.l.b16 %v4347
        %v5224 = vunpack.c.h.b16 %v4347
        %v5225 = vunpack.c.l.b16 %v4348
        %v5226 = vunpack.c.l.b16 %v4349
        %v5227 = vunpack.c.h.b16 %v4349
        %v5228 = vunpack.c.l.b16 %v4350
        %v5229 = vunpack.c.l.b16 %v4351
        %v5230 = vunpack.c.h.b16 %v4351
        %v5231 = vunpack.c.l.b16 %v4352
        %v5232 = vunpack.c.l.b16 %v4353
        %v5233 = vunpack.c.h.b16 %v4353
        %v5234 = vunpack.c.l.b16 %v4354
        %v5235 = vunpack.c.l.b16 %v4355
        %v5236 = vunpack.c.h.b16 %v4355
        %v5237 = vunpack.c.l.b16 %v4356
        %v5238 = vunpack.c.l.b16 %v4357
        %v5239 = vunpack.c.h.b16 %v4357
        %v5240 = vunpack.c.l.b16 %v4358
        %v5241 = vunpack.c.l.b16 %v4359
        %v5242 = vunpack.c.h.b16 %v4359
        %v5243 = vunpack.c.l.b16 %v4360
        %v5244 = vunpack.c.l.b16 %v4361
        %v5245 = vunpack.c.h.b16 %v4361
        %v5246 = vunpack.c.l.b16 %v4362
        %v5247 = vunpack.c.l.b16 %v4363
        %v5248 = vunpack.c.h.b16 %v4363
        %v5249 = vunpack.c.l.b16 %v4364
        %v5250 = vunpack.c.l.b16 %v4365
        %v5251 = vunpack.c.h.b16 %v4365
        %v5252 = vunpack.c.l.b16 %v4366
        %v5253 = vunpack.c.l.b16 %v4367
        %v5254 = vunpack.c.h.b16 %v4367
        %v5255 = vunpack.c.l.b16 %v4368
        %v5256 = vunpack.c.l.b16 %v4369
        %v5257 = vunpack.c.h.b16 %v4369
        %v5258 = vunpack.c.l.b16 %v4370
        %v5259 = vunpack.c.l.b16 %v4371
        %v5260 = vunpack.c.h.b16 %v4371
        %v5261 = vunpack.c.l.b16 %v4372
        %v5262 = vunpack.c.l.b16 %v4373
        %v5263 = vunpack.c.h.b16 %v4373
        %v5264 = vunpack.c.l.b16 %v4374
        %v5265 = vunpack.c.l.b16 %v4375
        %v5266 = vunpack.c.h.b16 %v4375
        %v5267 = vunpack.c.l.b16 %v4376
        %v5268 = vunpack.c.l.b16 %v4377
        %v5269 = vunpack.c.h.b16 %v4377
        %v5270 = vunpack.c.l.b16 %v4378
        %v5271 = vunpack.c.l.b16 %v4379
        %v5272 = vunpack.c.h.b16 %v4379
        %v5273 = vunpack.c.l.b16 %v4380
        %v5274 = vunpack.c.l.b16 %v4381
        %v5275 = vunpack.c.h.b16 %v4381
        %v5276 = vunpack.c.l.b16 %v4382
        %v5277 = vunpack.c.l.b16 %v4383
        %v5278 = vunpack.c.h.b16 %v4383
        %v5279 = vunpack.c.l.b16 %v4384
        %v5280 = vunpack.c.l.b16 %v4385
        %v5281 = vunpack.c.h.b16 %v4385
        %v5282 = vunpack.c.l.b16 %v4386
        %v5283 = vunpack.c.l.b16 %v4387
        %v5284 = vunpack.c.h.b16 %v4387
        %v5285 = vunpack.c.l.b16 %v4388
        %v5286 = vunpack.c.l.b16 %v4389
        %v5287 = vunpack.c.h.b16 %v4389
        %v5288 = vunpack.c.l.b16 %v4390
        %v5289 = vunpack.c.l.b16 %v4391
        %v5290 = vunpack.c.h.b16 %v4391
        %v5291 = vunpack.c.l.b16 %v4392
        %v5292 = vunpack.c.l.b16 %v4393
        %v5293 = vunpack.c.h.b16 %v4393
        %v5294 = vunpack.c.l.b16 %v4394
        %v5295 = vunpack.c.l.b16 %v4395
        %v5296 = vunpack.c.h.b16 %v4395
        %v5297 = vunpack.c.l.b16 %v4396
        %v5298 = vunpack.c.l.b16 %v4397
        %v5299 = vunpack.c.h.b16 %v4397
        %v5300 = vunpack.c.l.b16 %v4398
        %v5301 = vunpack.c.l.b16 %v4399
        %v5302 = vunpack.c.h.b16 %v4399
        %v5303 = vunpack.c.l.b16 %v4400
        %v5304 = vunpack.c.l.b16 %v4401
        %v5305 = vunpack.c.h.b16 %v4401
        %v5306 = vunpack.c.l.b16 %v4402
        %v5307 = vunpack.c.l.b16 %v4403
        %v5308 = vunpack.c.h.b16 %v4403
        %v5309 = vunpack.c.l.b16 %v4404
        %v5310 = vunpack.c.l.b16 %v4405
        %v5311 = vunpack.c.h.b16 %v4405
        %v5312 = vunpack.c.l.b16 %v4406
        %v5313 = vunpack.c.l.b16 %v4407
        %v5314 = vunpack.c.h.b16 %v4407
        %v5315 = vunpack.c.l.b16 %v4408
        %v5316 = vunpack.c.l.b16 %v4409
        %v5317 = vunpack.c.h.b16 %v4409
        %v5318 = vunpack.c.l.b16 %v4410
        %v5319 = vunpack.c.l.b16 %v4411
        %v5320 = vunpack.c.h.b16 %v4411
        %v5321 = vunpack.c.l.b16 %v4412
        %v5322 = vunpack.c.l.b16 %v4413
        %v5323 = vunpack.c.h.b16 %v4413
        %v5324 = vunpack.c.l.b16 %v4414
        %v5325 = vunpack.c.l.b16 %v4415
        %v5326 = vunpack.c.h.b16 %v4415
        %v5327 = vunpack.c.l.b16 %v4416
        %v5328 = vunpack.c.l.b16 %v4417
        %v5329 = vunpack.c.h.b16 %v4417
        %v5330 = vunpack.c.l.b16 %v4418
        %v5331 = vunpack.c.l.b16 %v4419
        %v5332 = vunpack.c.h.b16 %v4419
        %v5333 = vunpack.c.l.b16 %v4420
        %v5334 = vunpack.c.l.b16 %v4421
        %v5335 = vunpack.c.h.b16 %v4421
        %v5336 = vunpack.c.l.b16 %v4422
        %v5337 = vunpack.c.l.b16 %v4423
        %v5338 = vunpack.c.h.b16 %v4423
        %v5339 = vunpack.c.l.b16 %v4424
        %v5340 = vunpack.c.l.b16 %v4425
        %v5341 = vunpack.c.h.b16 %v4425
        %v5342 = vunpack.c.l.b16 %v4426
        %v5343 = vunpack.c.l.b16 %v4427
        %v5344 = vunpack.c.h.b16 %v4427
        %v5345 = vunpack.c.l.b16 %v4428
        %v5346 = vunpack.c.l.b16 %v4429
        %v5347 = vunpack.c.h.b16 %v4429
        %v5348 = vunpack.c.l.b16 %v4430
        %v5349 = vunpack.c.l.b16 %v4431
        %v5350 = vunpack.c.h.b16 %v4431
        %v5351 = vunpack.c.l.b16 %v4432
        %v5352 = vunpack.c.l.b16 %v4433
        %v5353 = vunpack.c.h.b16 %v4433
        %v5354 = vunpack.c.l.b16 %v4434
        %v5355 = vunpack.c.l.b16 %v4435
        %v5356 = vunpack.c.h.b16 %v4435
        %v5357 = vunpack.c.l.b16 %v4436
        %v5358 = vunpack.c.l.b16 %v4437
        %v5359 = vunpack.c.h.b16 %v4437
        %v5360 = vunpack.c.l.b16 %v4438
        %v5361 = vunpack.c.l.b16 %v4439
        %v5362 = vunpack.c.h.b16 %v4439
        %v5363 = vunpack.c.l.b16 %v4440
        %v5364 = vunpack.c.l.b16 %v4441
        %v5365 = vunpack.c.h.b16 %v4441
        %v5366 = vunpack.c.l.b16 %v4442
        %v5367 = vunpack.c.l.b16 %v4443
        %v5368 = vunpack.c.h.b16 %v4443
        %v5369 = vunpack.c.l.b16 %v4444
        %v5370 = vunpack.c.l.b16 %v4445
        %v5371 = vunpack.c.h.b16 %v4445
        %v5372 = vunpack.c.l.b16 %v4446
        %v5373 = vunpack.c.l.b16 %v4447
        %v5374 = vunpack.c.h.b16 %v4447
        %v5375 = vunpack.c.l.b16 %v4448
        %v5376 = vunpack.c.l.b16 %v4449
        %v5377 = vunpack.c.h.b16 %v4449
        %v5378 = vunpack.c.l.b16 %v4450
        %v5379 = vunpack.c.l.b16 %v4451
        %v5380 = vunpack.c.h.b16 %v4451
        %v5381 = vunpack.c.l.b16 %v4452
        %v5382 = vunpack.c.l.b16 %v4453
        %v5383 = vunpack.c.h.b16 %v4453
        %v5384 = vunpack.c.l.b16 %v4454
        %v5385 = vunpack.c.l.b16 %v4455
        %v5386 = vunpack.c.h.b16 %v4455
        %v5387 = vunpack.c.l.b16 %v4456
        %v5388 = vunpack.c.l.b16 %v4457
        %v5389 = vunpack.c.h.b16 %v4457
        %v5390 = vunpack.c.l.b16 %v4458
        %v5391 = vunpack.c.l.b16 %v4459
        %v5392 = vunpack.c.h.b16 %v4459
        %v5393 = vunpack.c.l.b16 %v4460
        %v5394 = vunpack.c.l.b16 %v4461
        %v5395 = vunpack.c.h.b16 %v4461
        %v5396 = vunpack.c.l.b16 %v4462
        %v5397 = vunpack.c.l.b16 %v4463
        %v5398 = vunpack.c.h.b16 %v4463
        %v5399 = vunpack.c.l.b16 %v4464
        %v5400 = vunpack.c.l.b16 %v4465
        %v5401 = vunpack.c.h.b16 %v4465
        %v5402 = vunpack.c.l.b16 %v4466
        %v5403 = vunpack.c.l.b16 %v4467
        %v5404 = vunpack.c.h.b16 %v4467
        %v5405 = vunpack.c.l.b16 %v4468
        %v5406 = vunpack.c.l.b16 %v4469
        %v5407 = vunpack.c.h.b16 %v4469
        %v5408 = vunpack.c.l.b16 %v4470
        %v5409 = vunpack.c.l.b16 %v4471
        %v5410 = vunpack.c.h.b16 %v4471
        %v5411 = vunpack.c.l.b16 %v4472
        %v5412 = vunpack.c.l.b16 %v4473
        %v5413 = vunpack.c.h.b16 %v4473
        %v5414 = vunpack.c.l.b16 %v4474
        %v5415 = vunpack.c.l.b16 %v4475
        %v5416 = vunpack.c.h.b16 %v4475
        %v5417 = vunpack.c.l.b16 %v4476
        %v5418 = vunpack.c.l.b16 %v4477
        %v5419 = vunpack.c.h.b16 %v4477
        %v5420 = vunpack.c.l.b16 %v4478
        %v5421 = vunpack.c.l.b16 %v4479
        %v5422 = vunpack.c.h.b16 %v4479
        %v5423 = vunpack.c.l.b16 %v4480
        %v5424 = vunpack.c.l.b16 %v4481
        %v5425 = vunpack.c.h.b16 %v4481
        %v5426 = vunpack.c.l.b16 %v4482
        %v5427 = vunpack.c.l.b16 %v4483
        %v5428 = vunpack.c.h.b16 %v4483
        %v5429 = vunpack.c.l.b16 %v4484
        %v5430 = vunpack.c.l.b16 %v4485
        %v5431 = vunpack.c.h.b16 %v4485
        %v5432 = vunpack.c.l.b16 %v4486
        %v5433 = vunpack.c.l.b16 %v4487
        %v5434 = vunpack.c.h.b16 %v4487
        %v5435 = vunpack.c.l.b16 %v4488
        %v5436 = vunpack.c.l.b16 %v4489
        %v5437 = vunpack.c.h.b16 %v4489
        %v5438 = vunpack.c.l.b16 %v4490
        %v5439 = vunpack.c.l.b16 %v4491
        %v5440 = vunpack.c.h.b16 %v4491
        %v5441 = vunpack.c.l.b16 %v4492
        %v5442 = vunpack.c.l.b16 %v4493
        %v5443 = vunpack.c.h.b16 %v4493
        %v5444 = vunpack.c.l.b16 %v4494
        %v5445 = vunpack.c.l.b16 %v4495
        %v5446 = vunpack.c.h.b16 %v4495
        %v5447 = vunpack.c.l.b16 %v4496
        %v5448 = vunpack.c.l.b16 %v4497
        %v5449 = vunpack.c.h.b16 %v4497
        %v5450 = vunpack.c.l.b16 %v4498
        %v5451 = vunpack.c.l.b16 %v4499
        %v5452 = vunpack.c.h.b16 %v4499
        %v5453 = vunpack.c.l.b16 %v4500
        %v5454 = vunpack.c.l.b16 %v4501
        %v5455 = vunpack.c.h.b16 %v4501
        %v5456 = vunpack.c.l.b16 %v4502
        %v5457 = vunpack.c.l.b16 %v4503
        %v5458 = vunpack.c.h.b16 %v4503
        %v5459 = vunpack.c.l.b16 %v4504
        %v5460 = vunpack.c.l.b16 %v4505
        %v5461 = vunpack.c.h.b16 %v4505
        %v5462 = vunpack.c.l.b16 %v4506
        %v5463 = vunpack.c.l.b16 %v4507
        %v5464 = vunpack.c.h.b16 %v4507
        %v5465 = vunpack.c.l.b16 %v4508
        %v5466 = vunpack.c.l.b16 %v4509
        %v5467 = vunpack.c.h.b16 %v4509
        %v5468 = vunpack.c.l.b16 %v4510
        %v5469 = vunpack.c.l.b16 %v4511
        %v5470 = vunpack.c.h.b16 %v4511
        %v5471 = vunpack.c.l.b16 %v4512
        %v5472 = vunpack.c.l.b16 %v4513
        %v5473 = vunpack.c.h.b16 %v4513
        %v5474 = vunpack.c.l.b16 %v4514
        %v5475 = vunpack.c.l.b16 %v4515
        %v5476 = vunpack.c.h.b16 %v4515
        %v5477 = vunpack.c.l.b16 %v4516
        %v5478 = vunpack.c.l.b16 %v4517
        %v5479 = vunpack.c.h.b16 %v4517
        %v5480 = vunpack.c.l.b16 %v4518
        %v5481 = vunpack.c.l.b16 %v4519
        %v5482 = vunpack.c.h.b16 %v4519
        %v5483 = vunpack.c.l.b16 %v4520
        %v5484 = vunpack.c.l.b16 %v4521
        %v5485 = vunpack.c.h.b16 %v4521
        %v5486 = vunpack.c.l.b16 %v4522
        %v5487 = vunpack.c.l.b16 %v4523
        %v5488 = vunpack.c.h.b16 %v4523
        %v5489 = vunpack.c.l.b16 %v4524
        %v5490 = vunpack.c.l.b16 %v4525
        %v5491 = vunpack.c.h.b16 %v4525
        %v5492 = vunpack.c.l.b16 %v4526
        %v5493 = vunpack.c.l.b16 %v4527
        %v5494 = vunpack.c.h.b16 %v4527
        %v5495 = vunpack.c.l.b16 %v4528
        %v5496 = vunpack.c.l.b16 %v4529
        %v5497 = vunpack.c.h.b16 %v4529
        %v5498 = vunpack.c.l.b16 %v4530
        %v5499 = vpack.c.b16 %v4926, %v4923
        %v5500 = vpack.c.b16 %v4927, %v4924
        %v5501 = vpack.c.b16 %v4928, %v4925
        %v5502 = vpack.c.b16 %v4932, %v4929
        %v5503 = vpack.c.b16 %v4933, %v4930
        %v5504 = vpack.c.b16 %v4934, %v4931
        %v5505 = vpack.c.b16 %v4938, %v4935
        %v5506 = vpack.c.b16 %v4939, %v4936
        %v5507 = vpack.c.b16 %v4940, %v4937
        %v5508 = vpack.c.b16 %v4944, %v4941
        %v5509 = vpack.c.b16 %v4945, %v4942
        %v5510 = vpack.c.b16 %v4946, %v4943
        %v5511 = vpack.c.b16 %v4950, %v4947
        %v5512 = vpack.c.b16 %v4951, %v4948
        %v5513 = vpack.c.b16 %v4952, %v4949
        %v5514 = vpack.c.b16 %v4956, %v4953
        %v5515 = vpack.c.b16 %v4957, %v4954
        %v5516 = vpack.c.b16 %v4958, %v4955
        %v5517 = vpack.c.b16 %v4962, %v4959
        %v5518 = vpack.c.b16 %v4963, %v4960
        %v5519 = vpack.c.b16 %v4964, %v4961
        %v5520 = vpack.c.b16 %v4968, %v4965
        %v5521 = vpack.c.b16 %v4969, %v4966
        %v5522 = vpack.c.b16 %v4970, %v4967
        %v5523 = vpack.c.b16 %v4974, %v4971
        %v5524 = vpack.c.b16 %v4975, %v4972
        %v5525 = vpack.c.b16 %v4976, %v4973
        %v5526 = vpack.c.b16 %v4980, %v4977
        %v5527 = vpack.c.b16 %v4981, %v4978
        %v5528 = vpack.c.b16 %v4982, %v4979
        %v5529 = vpack.c.b16 %v4986, %v4983
        %v5530 = vpack.c.b16 %v4987, %v4984
        %v5531 = vpack.c.b16 %v4988, %v4985
        %v5532 = vpack.c.b16 %v4992, %v4989
        %v5533 = vpack.c.b16 %v4993, %v4990
        %v5534 = vpack.c.b16 %v4994, %v4991
        %v5535 = vpack.c.b16 %v4998, %v4995
        %v5536 = vpack.c.b16 %v4999, %v4996
        %v5537 = vpack.c.b16 %v5000, %v4997
        %v5538 = vpack.c.b16 %v5004, %v5001
        %v5539 = vpack.c.b16 %v5005, %v5002
        %v5540 = vpack.c.b16 %v5006, %v5003
        %v5541 = vpack.c.b16 %v5010, %v5007
        %v5542 = vpack.c.b16 %v5011, %v5008
        %v5543 = vpack.c.b16 %v5012, %v5009
        %v5544 = vpack.c.b16 %v5016, %v5013
        %v5545 = vpack.c.b16 %v5017, %v5014
        %v5546 = vpack.c.b16 %v5018, %v5015
        %v5547 = vpack.c.b16 %v5022, %v5019
        %v5548 = vpack.c.b16 %v5023, %v5020
        %v5549 = vpack.c.b16 %v5024, %v5021
        %v5550 = vpack.c.b16 %v5028, %v5025
        %v5551 = vpack.c.b16 %v5029, %v5026
        %v5552 = vpack.c.b16 %v5030, %v5027
        %v5553 = vpack.c.b16 %v5034, %v5031
        %v5554 = vpack.c.b16 %v5035, %v5032
        %v5555 = vpack.c.b16 %v5036, %v5033
        %v5556 = vpack.c.b16 %v5040, %v5037
        %v5557 = vpack.c.b16 %v5041, %v5038
        %v5558 = vpack.c.b16 %v5042, %v5039
        %v5559 = vpack.c.b16 %v5046, %v5043
        %v5560 = vpack.c.b16 %v5047, %v5044
        %v5561 = vpack.c.b16 %v5048, %v5045
        %v5562 = vpack.c.b16 %v5052, %v5049
        %v5563 = vpack.c.b16 %v5053, %v5050
        %v5564 = vpack.c.b16 %v5054, %v5051
        %v5565 = vpack.c.b16 %v5058, %v5055
        %v5566 = vpack.c.b16 %v5059, %v5056
        %v5567 = vpack.c.b16 %v5060, %v5057
        %v5568 = vpack.c.b16 %v5064, %v5061
        %v5569 = vpack.c.b16 %v5065, %v5062
        %v5570 = vpack.c.b16 %v5066, %v5063
        %v5571 = vpack.c.b16 %v5070, %v5067
        %v5572 = vpack.c.b16 %v5071, %v5068
        %v5573 = vpack.c.b16 %v5072, %v5069
        %v5574 = vpack.c.b16 %v5076, %v5073
        %v5575 = vpack.c.b16 %v5077, %v5074
        %v5576 = vpack.c.b16 %v5078, %v5075
        %v5577 = vpack.c.b16 %v5082, %v5079
        %v5578 = vpack.c.b16 %v5083, %v5080
        %v5579 = vpack.c.b16 %v5084, %v5081
        %v5580 = vpack.c.b16 %v5088, %v5085
        %v5581 = vpack.c.b16 %v5089, %v5086
        %v5582 = vpack.c.b16 %v5090, %v5087
        %v5583 = vpack.c.b16 %v5094, %v5091
        %v5584 = vpack.c.b16 %v5095, %v5092
        %v5585 = vpack.c.b16 %v5096, %v5093
        %v5586 = vpack.c.b16 %v5100, %v5097
        %v5587 = vpack.c.b16 %v5101, %v5098
        %v5588 = vpack.c.b16 %v5102, %v5099
        %v5589 = vpack.c.b16 %v5106, %v5103
        %v5590 = vpack.c.b16 %v5107, %v5104
        %v5591 = vpack.c.b16 %v5108, %v5105
        %v5592 = vpack.c.b16 %v5112, %v5109
        %v5593 = vpack.c.b16 %v5113, %v5110
        %v5594 = vpack.c.b16 %v5114, %v5111
        %v5595 = vpack.c.b16 %v5118, %v5115
        %v5596 = vpack.c.b16 %v5119, %v5116
        %v5597 = vpack.c.b16 %v5120, %v5117
        %v5598 = vpack.c.b16 %v5124, %v5121
        %v5599 = vpack.c.b16 %v5125, %v5122
        %v5600 = vpack.c.b16 %v5126, %v5123
        %v5601 = vpack.c.b16 %v5130, %v5127
        %v5602 = vpack.c.b16 %v5131, %v5128
        %v5603 = vpack.c.b16 %v5132, %v5129
        %v5604 = vpack.c.b16 %v5136, %v5133
        %v5605 = vpack.c.b16 %v5137, %v5134
        %v5606 = vpack.c.b16 %v5138, %v5135
        %v5607 = vpack.c.b16 %v5142, %v5139
        %v5608 = vpack.c.b16 %v5143, %v5140
        %v5609 = vpack.c.b16 %v5144, %v5141
        %v5610 = vpack.c.b16 %v5148, %v5145
        %v5611 = vpack.c.b16 %v5149, %v5146
        %v5612 = vpack.c.b16 %v5150, %v5147
        %v5613 = vpack.c.b16 %v5154, %v5151
        %v5614 = vpack.c.b16 %v5155, %v5152
        %v5615 = vpack.c.b16 %v5156, %v5153
        %v5616 = vpack.c.b16 %v5160, %v5157
        %v5617 = vpack.c.b16 %v5161, %v5158
        %v5618 = vpack.c.b16 %v5162, %v5159
        %v5619 = vpack.c.b16 %v5166, %v5163
        %v5620 = vpack.c.b16 %v5167, %v5164
        %v5621 = vpack.c.b16 %v5168, %v5165
        %v5622 = vpack.c.b16 %v5172, %v5169
        %v5623 = vpack.c.b16 %v5173, %v5170
        %v5624 = vpack.c.b16 %v5174, %v5171
        %v5625 = vpack.c.b16 %v5178, %v5175
        %v5626 = vpack.c.b16 %v5179, %v5176
        %v5627 = vpack.c.b16 %v5180, %v5177
        %v5628 = vpack.c.b16 %v5184, %v5181
        %v5629 = vpack.c.b16 %v5185, %v5182
        %v5630 = vpack.c.b16 %v5186, %v5183
        %v5631 = vpack.c.b16 %v5190, %v5187
        %v5632 = vpack.c.b16 %v5191, %v5188
        %v5633 = vpack.c.b16 %v5192, %v5189
        %v5634 = vpack.c.b16 %v5196, %v5193
        %v5635 = vpack.c.b16 %v5197, %v5194
        %v5636 = vpack.c.b16 %v5198, %v5195
        %v5637 = vpack.c.b16 %v5202, %v5199
        %v5638 = vpack.c.b16 %v5203, %v5200
        %v5639 = vpack.c.b16 %v5204, %v5201
        %v5640 = vpack.c.b16 %v5208, %v5205
        %v5641 = vpack.c.b16 %v5209, %v5206
        %v5642 = vpack.c.b16 %v5210, %v5207
        %v5643 = vpack.c.b16 %v5214, %v5211
        %v5644 = vpack.c.b16 %v5215, %v5212
        %v5645 = vpack.c.b16 %v5216, %v5213
        %v5646 = vpack.c.b16 %v5220, %v5217
        %v5647 = vpack.c.b16 %v5221, %v5218
        %v5648 = vpack.c.b16 %v5222, %v5219
        %v5649 = vpack.c.b16 %v5226, %v5223
        %v5650 = vpack.c.b16 %v5227, %v5224
        %v5651 = vpack.c.b16 %v5228, %v5225
        %v5652 = vpack.c.b16 %v5232, %v5229
        %v5653 = vpack.c.b16 %v5233, %v5230
        %v5654 = vpack.c.b16 %v5234, %v5231
        %v5655 = vpack.c.b16 %v5238, %v5235
        %v5656 = vpack.c.b16 %v5239, %v5236
        %v5657 = vpack.c.b16 %v5240, %v5237
        %v5658 = vpack.c.b16 %v5244, %v5241
        %v5659 = vpack.c.b16 %v5245, %v5242
        %v5660 = vpack.c.b16 %v5246, %v5243
        %v5661 = vpack.c.b16 %v5250, %v5247
        %v5662 = vpack.c.b16 %v5251, %v5248
        %v5663 = vpack.c.b16 %v5252, %v5249
        %v5664 = vpack.c.b16 %v5256, %v5253
        %v5665 = vpack.c.b16 %v5257, %v5254
        %v5666 = vpack.c.b16 %v5258, %v5255
        %v5667 = vpack.c.b16 %v5262, %v5259
        %v5668 = vpack.c.b16 %v5263, %v5260
        %v5669 = vpack.c.b16 %v5264, %v5261
        %v5670 = vpack.c.b16 %v5268, %v5265
        %v5671 = vpack.c.b16 %v5269, %v5266
        %v5672 = vpack.c.b16 %v5270, %v5267
        %v5673 = vpack.c.b16 %v5274, %v5271
        %v5674 = vpack.c.b16 %v5275, %v5272
        %v5675 = vpack.c.b16 %v5276, %v5273
        %v5676 = vpack.c.b16 %v5280, %v5277
        %v5677 = vpack.c.b16 %v5281, %v5278
        %v5678 = vpack.c.b16 %v5282, %v5279
        %v5679 = vpack.c.b16 %v5286, %v5283
        %v5680 = vpack.c.b16 %v5287, %v5284
        %v5681 = vpack.c.b16 %v5288, %v5285
        %v5682 = vpack.c.b16 %v5292, %v5289
        %v5683 = vpack.c.b16 %v5293, %v5290
        %v5684 = vpack.c.b16 %v5294, %v5291
        %v5685 = vpack.c.b16 %v5298, %v5295
        %v5686 = vpack.c.b16 %v5299, %v5296
        %v5687 = vpack.c.b16 %v5300, %v5297
        %v5688 = vpack.c.b16 %v5304, %v5301
        %v5689 = vpack.c.b16 %v5305, %v5302
        %v5690 = vpack.c.b16 %v5306, %v5303
        %v5691 = vpack.c.b16 %v5310, %v5307
        %v5692 = vpack.c.b16 %v5311, %v5308
        %v5693 = vpack.c.b16 %v5312, %v5309
        %v5694 = vpack.c.b16 %v5316, %v5313
        %v5695 = vpack.c.b16 %v5317, %v5314
        %v5696 = vpack.c.b16 %v5318, %v5315
        %v5697 = vpack.c.b16 %v5322, %v5319
        %v5698 = vpack.c.b16 %v5323, %v5320
        %v5699 = vpack.c.b16 %v5324, %v5321
        %v5700 = vpack.c.b16 %v5328, %v5325
        %v5701 = vpack.c.b16 %v5329, %v5326
        %v5702 = vpack.c.b16 %v5330, %v5327
        %v5703 = vpack.c.b16 %v5334, %v5331
        %v5704 = vpack.c.b16 %v5335, %v5332
        %v5705 = vpack.c.b16 %v5336, %v5333
        %v5706 = vpack.c.b16 %v5340, %v5337
        %v5707 = vpack.c.b16 %v5341, %v5338
        %v5708 = vpack.c.b16 %v5342, %v5339
        %v5709 = vpack.c.b16 %v5346, %v5343
        %v5710 = vpack.c.b16 %v5347, %v5344
        %v5711 = vpack.c.b16 %v5348, %v5345
        %v5712 = vpack.c.b16 %v5352, %v5349
        %v5713 = vpack.c.b16 %v5353, %v5350
        %v5714 = vpack.c.b16 %v5354, %v5351
        %v5715 = vpack.c.b16 %v5358, %v5355
        %v5716 = vpack.c.b16 %v5359, %v5356
        %v5717 = vpack.c.b16 %v5360, %v5357
        %v5718 = vpack.c.b16 %v5364, %v5361
        %v5719 = vpack.c.b16 %v5365, %v5362
        %v5720 = vpack.c.b16 %v5366, %v5363
        %v5721 = vpack.c.b16 %v5370, %v5367
        %v5722 = vpack.c.b16 %v5371, %v5368
        %v5723 = vpack.c.b16 %v5372, %v5369
        %v5724 = vpack.c.b16 %v5376, %v5373
        %v5725 = vpack.c.b16 %v5377, %v5374
        %v5726 = vpack.c.b16 %v5378, %v5375
        %v5727 = vpack.c.b16 %v5382, %v5379
        %v5728 = vpack.c.b16 %v5383, %v5380
        %v5729 = vpack.c.b16 %v5384, %v5381
        %v5730 = vpack.c.b16 %v5388, %v5385
        %v5731 = vpack.c.b16 %v5389, %v5386
        %v5732 = vpack.c.b16 %v5390, %v5387
        %v5733 = vpack.c.b16 %v5394, %v5391
        %v5734 = vpack.c.b16 %v5395, %v5392
        %v5735 = vpack.c.b16 %v5396, %v5393
        %v5736 = vpack.c.b16 %v5400, %v5397
        %v5737 = vpack.c.b16 %v5401, %v5398
        %v5738 = vpack.c.b16 %v5402, %v5399
        %v5739 = vpack.c.b16 %v5406, %v5403
        %v5740 = vpack.c.b16 %v5407, %v5404
        %v5741 = vpack.c.b16 %v5408, %v5405
        %v5742 = vpack.c.b16 %v5412, %v5409
        %v5743 = vpack.c.b16 %v5413, %v5410
        %v5744 = vpack.c.b16 %v5414, %v5411
        %v5745 = vpack.c.b16 %v5418, %v5415
        %v5746 = vpack.c.b16 %v5419, %v5416
        %v5747 = vpack.c.b16 %v5420, %v5417
        %v5748 = vpack.c.b16 %v5424, %v5421
        %v5749 = vpack.c.b16 %v5425, %v5422
        %v5750 = vpack.c.b16 %v5426, %v5423
        %v5751 = vpack.c.b16 %v5430, %v5427
        %v5752 = vpack.c.b16 %v5431, %v5428
        %v5753 = vpack.c.b16 %v5432, %v5429
        %v5754 = vpack.c.b16 %v5436, %v5433
        %v5755 = vpack.c.b16 %v5437, %v5434
        %v5756 = vpack.c.b16 %v5438, %v5435
        %v5757 = vpack.c.b16 %v5442, %v5439
        %v5758 = vpack.c.b16 %v5443, %v5440
        %v5759 = vpack.c.b16 %v5444, %v5441
        %v5760 = vpack.c.b16 %v5448, %v5445
        %v5761 = vpack.c.b16 %v5449, %v5446
        %v5762 = vpack.c.b16 %v5450, %v5447
        %v5763 = vpack.c.b16 %v5454, %v5451
        %v5764 = vpack.c.b16 %v5455, %v5452
        %v5765 = vpack.c.b16 %v5456, %v5453
        %v5766 = vpack.c.b16 %v5460, %v5457
        %v5767 = vpack.c.b16 %v5461, %v5458
        %v5768 = vpack.c.b16 %v5462, %v5459
        %v5769 = vpack.c.b16 %v5466, %v5463
        %v5770 = vpack.c.b16 %v5467, %v5464
        %v5771 = vpack.c.b16 %v5468, %v5465
        %v5772 = vpack.c.b16 %v5472, %v5469
        %v5773 = vpack.c.b16 %v5473, %v5470
        %v5774 = vpack.c.b16 %v5474, %v5471
        %v5775 = vpack.c.b16 %v5478, %v5475
        %v5776 = vpack.c.b16 %v5479, %v5476
        %v5777 = vpack.c.b16 %v5480, %v5477
        %v5778 = vpack.c.b16 %v5484, %v5481
        %v5779 = vpack.c.b16 %v5485, %v5482
        %v5780 = vpack.c.b16 %v5486, %v5483
        %v5781 = vpack.c.b16 %v5490, %v5487
        %v5782 = vpack.c.b16 %v5491, %v5488
        %v5783 = vpack.c.b16 %v5492, %v5489
        %v5784 = vpack.c.b16 %v5496, %v5493
        %v5785 = vpack.c.b16 %v5497, %v5494
        %v5786 = vpack.c.b16 %v5498, %v5495
        %6075 = vmatpush.bf16.msra.mxu0 %v5520
        %6076 = vmatpush.bf16.msra.mxu0 %v5517
        %6077 = vmatpush.bf16.msra.mxu0 %v5514
        %6078 = vmatpush.bf16.msra.mxu0 %v5511
        %6079 = vmatpush.bf16.msra.mxu0 %v5508
        %6080 = vmatpush.bf16.msra.mxu0 %v5505
        %6081 = vmatpush.bf16.msra.mxu0 %v5502
        %6082 = vmatpush.bf16.msra.mxu0 %v5499
        %6083 = vmatmul.bf16.gmra.mxu0 %v4051
        %v6084 = vpop.f32.mrf.mxu0
        %v6085 = vadd.f32 %v4533, %v6084
        %v6086 = vpop.f32.mrf.mxu0
        %v6087 = vadd.f32 %v4533, %v6086
        %6088 = vmatmul.bf16.gmra.mxu0 %v4063
        %v6089 = vpop.f32.mrf.mxu0
        %v6090 = vadd.f32 %v4533, %v6089
        %v6091 = vpop.f32.mrf.mxu0
        %v6092 = vadd.f32 %v4533, %v6091
        %6093 = vmatmul.bf16.gmra.mxu0 %v4075
        %v6094 = vpop.f32.mrf.mxu0
        %v6095 = vadd.f32 %v4533, %v6094
        %v6096 = vpop.f32.mrf.mxu0
        %v6097 = vadd.f32 %v4533, %v6096
        %6098 = vmatmul.bf16.gmra.mxu0 %v4087
        %v6099 = vpop.f32.mrf.mxu0
        %v6100 = vadd.f32 %v4533, %v6099
        %v6101 = vpop.f32.mrf.mxu0
        %v6102 = vadd.f32 %v4533, %v6101
        %6103 = vmatmul.bf16.gmra.mxu0 %v4099
        %v6104 = vpop.f32.mrf.mxu0
        %v6105 = vadd.f32 %v4533, %v6104
        %v6106 = vpop.f32.mrf.mxu0
        %v6107 = vadd.f32 %v4533, %v6106
        %6108 = vmatmul.bf16.gmra.mxu0 %v4111
        %v6109 = vpop.f32.mrf.mxu0
        %v6110 = vadd.f32 %v4533, %v6109
        %v6111 = vpop.f32.mrf.mxu0
        %v6112 = vadd.f32 %v4533, %v6111
        %6113 = vmatmul.bf16.gmra.mxu0 %v4123
        %v6114 = vpop.f32.mrf.mxu0
        %v6115 = vadd.f32 %v4533, %v6114
        %v6116 = vpop.f32.mrf.mxu0
        %v6117 = vadd.f32 %v4533, %v6116
        %6118 = vmatmul.bf16.gmra.mxu0 %v4135
        %v6119 = vpop.f32.mrf.mxu0
        %v6120 = vadd.f32 %v4533, %v6119
        %v6121 = vpop.f32.mrf.mxu0
        %v6122 = vadd.f32 %v4533, %v6121
        %6123 = vdwg.mxu0
        %6124 = vmatpush.bf16.msra.mxu0 %v5544
        %6125 = vmatpush.bf16.msra.mxu0 %v5541
        %6126 = vmatpush.bf16.msra.mxu0 %v5538
        %6127 = vmatpush.bf16.msra.mxu0 %v5535
        %6128 = vmatpush.bf16.msra.mxu0 %v5532
        %6129 = vmatpush.bf16.msra.mxu0 %v5529
        %6130 = vmatpush.bf16.msra.mxu0 %v5526
        %6131 = vmatpush.bf16.msra.mxu0 %v5523
        %6132 = vmatmul.bf16.gmra.mxu0 %v4052
        %v6133 = vpop.f32.mrf.mxu0
        %v6134 = vadd.f32 %v6085, %v6133
        %v6135 = vpop.f32.mrf.mxu0
        %v6136 = vadd.f32 %v6087, %v6135
        %6137 = vmatmul.bf16.gmra.mxu0 %v4064
        %v6138 = vpop.f32.mrf.mxu0
        %v6139 = vadd.f32 %v6090, %v6138
        %v6140 = vpop.f32.mrf.mxu0
        %v6141 = vadd.f32 %v6092, %v6140
        %6142 = vmatmul.bf16.gmra.mxu0 %v4076
        %v6143 = vpop.f32.mrf.mxu0
        %v6144 = vadd.f32 %v6095, %v6143
        %v6145 = vpop.f32.mrf.mxu0
        %v6146 = vadd.f32 %v6097, %v6145
        %6147 = vmatmul.bf16.gmra.mxu0 %v4088
        %v6148 = vpop.f32.mrf.mxu0
        %v6149 = vadd.f32 %v6100, %v6148
        %v6150 = vpop.f32.mrf.mxu0
        %v6151 = vadd.f32 %v6102, %v6150
        %6152 = vmatmul.bf16.gmra.mxu0 %v4100
        %v6153 = vpop.f32.mrf.mxu0
        %v6154 = vadd.f32 %v6105, %v6153
        %v6155 = vpop.f32.mrf.mxu0
        %v6156 = vadd.f32 %v6107, %v6155
        %6157 = vmatmul.bf16.gmra.mxu0 %v4112
        %v6158 = vpop.f32.mrf.mxu0
        %v6159 = vadd.f32 %v6110, %v6158
        %v6160 = vpop.f32.mrf.mxu0
        %v6161 = vadd.f32 %v6112, %v6160
        %6162 = vmatmul.bf16.gmra.mxu0 %v4124
        %v6163 = vpop.f32.mrf.mxu0
        %v6164 = vadd.f32 %v6115, %v6163
        %v6165 = vpop.f32.mrf.mxu0
        %v6166 = vadd.f32 %v6117, %v6165
        %6167 = vmatmul.bf16.gmra.mxu0 %v4136
        %v6168 = vpop.f32.mrf.mxu0
        %v6169 = vadd.f32 %v6120, %v6168
        %v6170 = vpop.f32.mrf.mxu0
        %v6171 = vadd.f32 %v6122, %v6170
        %6172 = vdwg.mxu0
        %6173 = vmatpush.bf16.msra.mxu0 %v5568
        %6174 = vmatpush.bf16.msra.mxu0 %v5565
        %6175 = vmatpush.bf16.msra.mxu0 %v5562
        %6176 = vmatpush.bf16.msra.mxu0 %v5559
        %6177 = vmatpush.bf16.msra.mxu0 %v5556
        %6178 = vmatpush.bf16.msra.mxu0 %v5553
        %6179 = vmatpush.bf16.msra.mxu0 %v5550
        %6180 = vmatpush.bf16.msra.mxu0 %v5547
        %6181 = vmatmul.bf16.gmra.mxu0 %v4053
        %v6182 = vpop.f32.mrf.mxu0
        %v6183 = vadd.f32 %v6134, %v6182
        %v6184 = vpop.f32.mrf.mxu0
        %v6185 = vadd.f32 %v6136, %v6184
        %6186 = vmatmul.bf16.gmra.mxu0 %v4065
        %v6187 = vpop.f32.mrf.mxu0
        %v6188 = vadd.f32 %v6139, %v6187
        %v6189 = vpop.f32.mrf.mxu0
        %v6190 = vadd.f32 %v6141, %v6189
        %6191 = vmatmul.bf16.gmra.mxu0 %v4077
        %v6192 = vpop.f32.mrf.mxu0
        %v6193 = vadd.f32 %v6144, %v6192
        %v6194 = vpop.f32.mrf.mxu0
        %v6195 = vadd.f32 %v6146, %v6194
        %6196 = vmatmul.bf16.gmra.mxu0 %v4089
        %v6197 = vpop.f32.mrf.mxu0
        %v6198 = vadd.f32 %v6149, %v6197
        %v6199 = vpop.f32.mrf.mxu0
        %v6200 = vadd.f32 %v6151, %v6199
        %6201 = vmatmul.bf16.gmra.mxu0 %v4101
        %v6202 = vpop.f32.mrf.mxu0
        %v6203 = vadd.f32 %v6154, %v6202
        %v6204 = vpop.f32.mrf.mxu0
        %v6205 = vadd.f32 %v6156, %v6204
        %6206 = vmatmul.bf16.gmra.mxu0 %v4113
        %v6207 = vpop.f32.mrf.mxu0
        %v6208 = vadd.f32 %v6159, %v6207
        %v6209 = vpop.f32.mrf.mxu0
        %v6210 = vadd.f32 %v6161, %v6209
        %6211 = vmatmul.bf16.gmra.mxu0 %v4125
        %v6212 = vpop.f32.mrf.mxu0
        %v6213 = vadd.f32 %v6164, %v6212
        %v6214 = vpop.f32.mrf.mxu0
        %v6215 = vadd.f32 %v6166, %v6214
        %6216 = vmatmul.bf16.gmra.mxu0 %v4137
        %v6217 = vpop.f32.mrf.mxu0
        %v6218 = vadd.f32 %v6169, %v6217
        %v6219 = vpop.f32.mrf.mxu0
        %v6220 = vadd.f32 %v6171, %v6219
        %6221 = vdwg.mxu0
        %6222 = vmatpush.bf16.msra.mxu0 %v5592
        %6223 = vmatpush.bf16.msra.mxu0 %v5589
        %6224 = vmatpush.bf16.msra.mxu0 %v5586
        %6225 = vmatpush.bf16.msra.mxu0 %v5583
        %6226 = vmatpush.bf16.msra.mxu0 %v5580
        %6227 = vmatpush.bf16.msra.mxu0 %v5577
        %6228 = vmatpush.bf16.msra.mxu0 %v5574
        %6229 = vmatpush.bf16.msra.mxu0 %v5571
        %6230 = vmatmul.bf16.gmra.mxu0 %v4054
        %v6231 = vpop.f32.mrf.mxu0
        %v6232 = vadd.f32 %v6183, %v6231
        %v6233 = vpop.f32.mrf.mxu0
        %v6234 = vadd.f32 %v6185, %v6233
        %6235 = vmatmul.bf16.gmra.mxu0 %v4066
        %v6236 = vpop.f32.mrf.mxu0
        %v6237 = vadd.f32 %v6188, %v6236
        %v6238 = vpop.f32.mrf.mxu0
        %v6239 = vadd.f32 %v6190, %v6238
        %6240 = vmatmul.bf16.gmra.mxu0 %v4078
        %v6241 = vpop.f32.mrf.mxu0
        %v6242 = vadd.f32 %v6193, %v6241
        %v6243 = vpop.f32.mrf.mxu0
        %v6244 = vadd.f32 %v6195, %v6243
        %6245 = vmatmul.bf16.gmra.mxu0 %v4090
        %v6246 = vpop.f32.mrf.mxu0
        %v6247 = vadd.f32 %v6198, %v6246
        %v6248 = vpop.f32.mrf.mxu0
        %v6249 = vadd.f32 %v6200, %v6248
        %6250 = vmatmul.bf16.gmra.mxu0 %v4102
        %v6251 = vpop.f32.mrf.mxu0
        %v6252 = vadd.f32 %v6203, %v6251
        %v6253 = vpop.f32.mrf.mxu0
        %v6254 = vadd.f32 %v6205, %v6253
        %6255 = vmatmul.bf16.gmra.mxu0 %v4114
        %v6256 = vpop.f32.mrf.mxu0
        %v6257 = vadd.f32 %v6208, %v6256
        %v6258 = vpop.f32.mrf.mxu0
        %v6259 = vadd.f32 %v6210, %v6258
        %6260 = vmatmul.bf16.gmra.mxu0 %v4126
        %v6261 = vpop.f32.mrf.mxu0
        %v6262 = vadd.f32 %v6213, %v6261
        %v6263 = vpop.f32.mrf.mxu0
        %v6264 = vadd.f32 %v6215, %v6263
        %6265 = vmatmul.bf16.gmra.mxu0 %v4138
        %v6266 = vpop.f32.mrf.mxu0
        %v6267 = vadd.f32 %v6218, %v6266
        %v6268 = vpop.f32.mrf.mxu0
        %v6269 = vadd.f32 %v6220, %v6268
        %6270 = vdwg.mxu0
        %6271 = vmatpush.bf16.msra.mxu0 %v5616
        %6272 = vmatpush.bf16.msra.mxu0 %v5613
        %6273 = vmatpush.bf16.msra.mxu0 %v5610
        %6274 = vmatpush.bf16.msra.mxu0 %v5607
        %6275 = vmatpush.bf16.msra.mxu0 %v5604
        %6276 = vmatpush.bf16.msra.mxu0 %v5601
        %6277 = vmatpush.bf16.msra.mxu0 %v5598
        %6278 = vmatpush.bf16.msra.mxu0 %v5595
        %6279 = vmatmul.bf16.gmra.mxu0 %v4055
        %v6280 = vpop.f32.mrf.mxu0
        %v6281 = vadd.f32 %v6232, %v6280
        %v6282 = vpop.f32.mrf.mxu0
        %v6283 = vadd.f32 %v6234, %v6282
        %6284 = vmatmul.bf16.gmra.mxu0 %v4067
        %v6285 = vpop.f32.mrf.mxu0
        %v6286 = vadd.f32 %v6237, %v6285
        %v6287 = vpop.f32.mrf.mxu0
        %v6288 = vadd.f32 %v6239, %v6287
        %6289 = vmatmul.bf16.gmra.mxu0 %v4079
        %v6290 = vpop.f32.mrf.mxu0
        %v6291 = vadd.f32 %v6242, %v6290
        %v6292 = vpop.f32.mrf.mxu0
        %v6293 = vadd.f32 %v6244, %v6292
        %6294 = vmatmul.bf16.gmra.mxu0 %v4091
        %v6295 = vpop.f32.mrf.mxu0
        %v6296 = vadd.f32 %v6247, %v6295
        %v6297 = vpop.f32.mrf.mxu0
        %v6298 = vadd.f32 %v6249, %v6297
        %6299 = vmatmul.bf16.gmra.mxu0 %v4103
        %v6300 = vpop.f32.mrf.mxu0
        %v6301 = vadd.f32 %v6252, %v6300
        %v6302 = vpop.f32.mrf.mxu0
        %v6303 = vadd.f32 %v6254, %v6302
        %6304 = vmatmul.bf16.gmra.mxu0 %v4115
        %v6305 = vpop.f32.mrf.mxu0
        %v6306 = vadd.f32 %v6257, %v6305
        %v6307 = vpop.f32.mrf.mxu0
        %v6308 = vadd.f32 %v6259, %v6307
        %6309 = vmatmul.bf16.gmra.mxu0 %v4127
        %v6310 = vpop.f32.mrf.mxu0
        %v6311 = vadd.f32 %v6262, %v6310
        %v6312 = vpop.f32.mrf.mxu0
        %v6313 = vadd.f32 %v6264, %v6312
        %6314 = vmatmul.bf16.gmra.mxu0 %v4139
        %v6315 = vpop.f32.mrf.mxu0
        %v6316 = vadd.f32 %v6267, %v6315
        %v6317 = vpop.f32.mrf.mxu0
        %v6318 = vadd.f32 %v6269, %v6317
        %6319 = vdwg.mxu0
        %6320 = vmatpush.bf16.msra.mxu0 %v5640
        %6321 = vmatpush.bf16.msra.mxu0 %v5637
        %6322 = vmatpush.bf16.msra.mxu0 %v5634
        %6323 = vmatpush.bf16.msra.mxu0 %v5631
        %6324 = vmatpush.bf16.msra.mxu0 %v5628
        %6325 = vmatpush.bf16.msra.mxu0 %v5625
        %6326 = vmatpush.bf16.msra.mxu0 %v5622
        %6327 = vmatpush.bf16.msra.mxu0 %v5619
        %6328 = vmatmul.bf16.gmra.mxu0 %v4056
        %v6329 = vpop.f32.mrf.mxu0
        %v6330 = vadd.f32 %v6281, %v6329
        %v6331 = vpop.f32.mrf.mxu0
        %v6332 = vadd.f32 %v6283, %v6331
        %6333 = vmatmul.bf16.gmra.mxu0 %v4068
        %v6334 = vpop.f32.mrf.mxu0
        %v6335 = vadd.f32 %v6286, %v6334
        %v6336 = vpop.f32.mrf.mxu0
        %v6337 = vadd.f32 %v6288, %v6336
        %6338 = vmatmul.bf16.gmra.mxu0 %v4080
        %v6339 = vpop.f32.mrf.mxu0
        %v6340 = vadd.f32 %v6291, %v6339
        %v6341 = vpop.f32.mrf.mxu0
        %v6342 = vadd.f32 %v6293, %v6341
        %6343 = vmatmul.bf16.gmra.mxu0 %v4092
        %v6344 = vpop.f32.mrf.mxu0
        %v6345 = vadd.f32 %v6296, %v6344
        %v6346 = vpop.f32.mrf.mxu0
        %v6347 = vadd.f32 %v6298, %v6346
        %6348 = vmatmul.bf16.gmra.mxu0 %v4104
        %v6349 = vpop.f32.mrf.mxu0
        %v6350 = vadd.f32 %v6301, %v6349
        %v6351 = vpop.f32.mrf.mxu0
        %v6352 = vadd.f32 %v6303, %v6351
        %6353 = vmatmul.bf16.gmra.mxu0 %v4116
        %v6354 = vpop.f32.mrf.mxu0
        %v6355 = vadd.f32 %v6306, %v6354
        %v6356 = vpop.f32.mrf.mxu0
        %v6357 = vadd.f32 %v6308, %v6356
        %6358 = vmatmul.bf16.gmra.mxu0 %v4128
        %v6359 = vpop.f32.mrf.mxu0
        %v6360 = vadd.f32 %v6311, %v6359
        %v6361 = vpop.f32.mrf.mxu0
        %v6362 = vadd.f32 %v6313, %v6361
        %6363 = vmatmul.bf16.gmra.mxu0 %v4140
        %v6364 = vpop.f32.mrf.mxu0
        %v6365 = vadd.f32 %v6316, %v6364
        %v6366 = vpop.f32.mrf.mxu0
        %v6367 = vadd.f32 %v6318, %v6366
        %6368 = vdwg.mxu0
        %6369 = vmatpush.bf16.msra.mxu0 %v5664
        %6370 = vmatpush.bf16.msra.mxu0 %v5661
        %6371 = vmatpush.bf16.msra.mxu0 %v5658
        %6372 = vmatpush.bf16.msra.mxu0 %v5655
        %6373 = vmatpush.bf16.msra.mxu0 %v5652
        %6374 = vmatpush.bf16.msra.mxu0 %v5649
        %6375 = vmatpush.bf16.msra.mxu0 %v5646
        %6376 = vmatpush.bf16.msra.mxu0 %v5643
        %6377 = vmatmul.bf16.gmra.mxu0 %v4057
        %v6378 = vpop.f32.mrf.mxu0
        %v6379 = vadd.f32 %v6330, %v6378
        %v6380 = vpop.f32.mrf.mxu0
        %v6381 = vadd.f32 %v6332, %v6380
        %6382 = vmatmul.bf16.gmra.mxu0 %v4069
        %v6383 = vpop.f32.mrf.mxu0
        %v6384 = vadd.f32 %v6335, %v6383
        %v6385 = vpop.f32.mrf.mxu0
        %v6386 = vadd.f32 %v6337, %v6385
        %6387 = vmatmul.bf16.gmra.mxu0 %v4081
        %v6388 = vpop.f32.mrf.mxu0
        %v6389 = vadd.f32 %v6340, %v6388
        %v6390 = vpop.f32.mrf.mxu0
        %v6391 = vadd.f32 %v6342, %v6390
        %6392 = vmatmul.bf16.gmra.mxu0 %v4093
        %v6393 = vpop.f32.mrf.mxu0
        %v6394 = vadd.f32 %v6345, %v6393
        %v6395 = vpop.f32.mrf.mxu0
        %v6396 = vadd.f32 %v6347, %v6395
        %6397 = vmatmul.bf16.gmra.mxu0 %v4105
        %v6398 = vpop.f32.mrf.mxu0
        %v6399 = vadd.f32 %v6350, %v6398
        %v6400 = vpop.f32.mrf.mxu0
        %v6401 = vadd.f32 %v6352, %v6400
        %6402 = vmatmul.bf16.gmra.mxu0 %v4117
        %v6403 = vpop.f32.mrf.mxu0
        %v6404 = vadd.f32 %v6355, %v6403
        %v6405 = vpop.f32.mrf.mxu0
        %v6406 = vadd.f32 %v6357, %v6405
        %6407 = vmatmul.bf16.gmra.mxu0 %v4129
        %v6408 = vpop.f32.mrf.mxu0
        %v6409 = vadd.f32 %v6360, %v6408
        %v6410 = vpop.f32.mrf.mxu0
        %v6411 = vadd.f32 %v6362, %v6410
        %6412 = vmatmul.bf16.gmra.mxu0 %v4141
        %v6413 = vpop.f32.mrf.mxu0
        %v6414 = vadd.f32 %v6365, %v6413
        %v6415 = vpop.f32.mrf.mxu0
        %v6416 = vadd.f32 %v6367, %v6415
        %6417 = vdwg.mxu0
        %6418 = vmatpush.bf16.msra.mxu0 %v5688
        %6419 = vmatpush.bf16.msra.mxu0 %v5685
        %6420 = vmatpush.bf16.msra.mxu0 %v5682
        %6421 = vmatpush.bf16.msra.mxu0 %v5679
        %6422 = vmatpush.bf16.msra.mxu0 %v5676
        %6423 = vmatpush.bf16.msra.mxu0 %v5673
        %6424 = vmatpush.bf16.msra.mxu0 %v5670
        %6425 = vmatpush.bf16.msra.mxu0 %v5667
        %6426 = vmatmul.bf16.gmra.mxu0 %v4058
        %v6427 = vpop.f32.mrf.mxu0
        %v6428 = vadd.f32 %v6379, %v6427
        %v6429 = vpop.f32.mrf.mxu0
        %v6430 = vadd.f32 %v6381, %v6429
        %6431 = vmatmul.bf16.gmra.mxu0 %v4070
        %v6432 = vpop.f32.mrf.mxu0
        %v6433 = vadd.f32 %v6384, %v6432
        %v6434 = vpop.f32.mrf.mxu0
        %v6435 = vadd.f32 %v6386, %v6434
        %6436 = vmatmul.bf16.gmra.mxu0 %v4082
        %v6437 = vpop.f32.mrf.mxu0
        %v6438 = vadd.f32 %v6389, %v6437
        %v6439 = vpop.f32.mrf.mxu0
        %v6440 = vadd.f32 %v6391, %v6439
        %6441 = vmatmul.bf16.gmra.mxu0 %v4094
        %v6442 = vpop.f32.mrf.mxu0
        %v6443 = vadd.f32 %v6394, %v6442
        %v6444 = vpop.f32.mrf.mxu0
        %v6445 = vadd.f32 %v6396, %v6444
        %6446 = vmatmul.bf16.gmra.mxu0 %v4106
        %v6447 = vpop.f32.mrf.mxu0
        %v6448 = vadd.f32 %v6399, %v6447
        %v6449 = vpop.f32.mrf.mxu0
        %v6450 = vadd.f32 %v6401, %v6449
        %6451 = vmatmul.bf16.gmra.mxu0 %v4118
        %v6452 = vpop.f32.mrf.mxu0
        %v6453 = vadd.f32 %v6404, %v6452
        %v6454 = vpop.f32.mrf.mxu0
        %v6455 = vadd.f32 %v6406, %v6454
        %6456 = vmatmul.bf16.gmra.mxu0 %v4130
        %v6457 = vpop.f32.mrf.mxu0
        %v6458 = vadd.f32 %v6409, %v6457
        %v6459 = vpop.f32.mrf.mxu0
        %v6460 = vadd.f32 %v6411, %v6459
        %6461 = vmatmul.bf16.gmra.mxu0 %v4142
        %v6462 = vpop.f32.mrf.mxu0
        %v6463 = vadd.f32 %v6414, %v6462
        %v6464 = vpop.f32.mrf.mxu0
        %v6465 = vadd.f32 %v6416, %v6464
        %6466 = vdwg.mxu0
        %6467 = vmatpush.bf16.msra.mxu0 %v5712
        %6468 = vmatpush.bf16.msra.mxu0 %v5709
        %6469 = vmatpush.bf16.msra.mxu0 %v5706
        %6470 = vmatpush.bf16.msra.mxu0 %v5703
        %6471 = vmatpush.bf16.msra.mxu0 %v5700
        %6472 = vmatpush.bf16.msra.mxu0 %v5697
        %6473 = vmatpush.bf16.msra.mxu0 %v5694
        %6474 = vmatpush.bf16.msra.mxu0 %v5691
        %6475 = vmatmul.bf16.gmra.mxu0 %v4059
        %v6476 = vpop.f32.mrf.mxu0
        %v6477 = vadd.f32 %v6428, %v6476
        %v6478 = vpop.f32.mrf.mxu0
        %v6479 = vadd.f32 %v6430, %v6478
        %6480 = vmatmul.bf16.gmra.mxu0 %v4071
        %v6481 = vpop.f32.mrf.mxu0
        %v6482 = vadd.f32 %v6433, %v6481
        %v6483 = vpop.f32.mrf.mxu0
        %v6484 = vadd.f32 %v6435, %v6483
        %6485 = vmatmul.bf16.gmra.mxu0 %v4083
        %v6486 = vpop.f32.mrf.mxu0
        %v6487 = vadd.f32 %v6438, %v6486
        %v6488 = vpop.f32.mrf.mxu0
        %v6489 = vadd.f32 %v6440, %v6488
        %6490 = vmatmul.bf16.gmra.mxu0 %v4095
        %v6491 = vpop.f32.mrf.mxu0
        %v6492 = vadd.f32 %v6443, %v6491
        %v6493 = vpop.f32.mrf.mxu0
        %v6494 = vadd.f32 %v6445, %v6493
        %6495 = vmatmul.bf16.gmra.mxu0 %v4107
        %v6496 = vpop.f32.mrf.mxu0
        %v6497 = vadd.f32 %v6448, %v6496
        %v6498 = vpop.f32.mrf.mxu0
        %v6499 = vadd.f32 %v6450, %v6498
        %6500 = vmatmul.bf16.gmra.mxu0 %v4119
        %v6501 = vpop.f32.mrf.mxu0
        %v6502 = vadd.f32 %v6453, %v6501
        %v6503 = vpop.f32.mrf.mxu0
        %v6504 = vadd.f32 %v6455, %v6503
        %6505 = vmatmul.bf16.gmra.mxu0 %v4131
        %v6506 = vpop.f32.mrf.mxu0
        %v6507 = vadd.f32 %v6458, %v6506
        %v6508 = vpop.f32.mrf.mxu0
        %v6509 = vadd.f32 %v6460, %v6508
        %6510 = vmatmul.bf16.gmra.mxu0 %v4143
        %v6511 = vpop.f32.mrf.mxu0
        %v6512 = vadd.f32 %v6463, %v6511
        %v6513 = vpop.f32.mrf.mxu0
        %v6514 = vadd.f32 %v6465, %v6513
        %6515 = vdwg.mxu0
        %6516 = vmatpush.bf16.msra.mxu0 %v5736
        %6517 = vmatpush.bf16.msra.mxu0 %v5733
        %6518 = vmatpush.bf16.msra.mxu0 %v5730
        %6519 = vmatpush.bf16.msra.mxu0 %v5727
        %6520 = vmatpush.bf16.msra.mxu0 %v5724
        %6521 = vmatpush.bf16.msra.mxu0 %v5721
        %6522 = vmatpush.bf16.msra.mxu0 %v5718
        %6523 = vmatpush.bf16.msra.mxu0 %v5715
        %6524 = vmatmul.bf16.gmra.mxu0 %v4060
        %v6525 = vpop.f32.mrf.mxu0
        %v6526 = vadd.f32 %v6477, %v6525
        %v6527 = vpop.f32.mrf.mxu0
        %v6528 = vadd.f32 %v6479, %v6527
        %6529 = vmatmul.bf16.gmra.mxu0 %v4072
        %v6530 = vpop.f32.mrf.mxu0
        %v6531 = vadd.f32 %v6482, %v6530
        %v6532 = vpop.f32.mrf.mxu0
        %v6533 = vadd.f32 %v6484, %v6532
        %6534 = vmatmul.bf16.gmra.mxu0 %v4084
        %v6535 = vpop.f32.mrf.mxu0
        %v6536 = vadd.f32 %v6487, %v6535
        %v6537 = vpop.f32.mrf.mxu0
        %v6538 = vadd.f32 %v6489, %v6537
        %6539 = vmatmul.bf16.gmra.mxu0 %v4096
        %v6540 = vpop.f32.mrf.mxu0
        %v6541 = vadd.f32 %v6492, %v6540
        %v6542 = vpop.f32.mrf.mxu0
        %v6543 = vadd.f32 %v6494, %v6542
        %6544 = vmatmul.bf16.gmra.mxu0 %v4108
        %v6545 = vpop.f32.mrf.mxu0
        %v6546 = vadd.f32 %v6497, %v6545
        %v6547 = vpop.f32.mrf.mxu0
        %v6548 = vadd.f32 %v6499, %v6547
        %6549 = vmatmul.bf16.gmra.mxu0 %v4120
        %v6550 = vpop.f32.mrf.mxu0
        %v6551 = vadd.f32 %v6502, %v6550
        %v6552 = vpop.f32.mrf.mxu0
        %v6553 = vadd.f32 %v6504, %v6552
        %6554 = vmatmul.bf16.gmra.mxu0 %v4132
        %v6555 = vpop.f32.mrf.mxu0
        %v6556 = vadd.f32 %v6507, %v6555
        %v6557 = vpop.f32.mrf.mxu0
        %v6558 = vadd.f32 %v6509, %v6557
        %6559 = vmatmul.bf16.gmra.mxu0 %v4144
        %v6560 = vpop.f32.mrf.mxu0
        %v6561 = vadd.f32 %v6512, %v6560
        %v6562 = vpop.f32.mrf.mxu0
        %v6563 = vadd.f32 %v6514, %v6562
        %6564 = vdwg.mxu0
        %6565 = vmatpush.bf16.msra.mxu0 %v5760
        %6566 = vmatpush.bf16.msra.mxu0 %v5757
        %6567 = vmatpush.bf16.msra.mxu0 %v5754
        %6568 = vmatpush.bf16.msra.mxu0 %v5751
        %6569 = vmatpush.bf16.msra.mxu0 %v5748
        %6570 = vmatpush.bf16.msra.mxu0 %v5745
        %6571 = vmatpush.bf16.msra.mxu0 %v5742
        %6572 = vmatpush.bf16.msra.mxu0 %v5739
        %6573 = vmatmul.bf16.gmra.mxu0 %v4061
        %v6574 = vpop.f32.mrf.mxu0
        %v6575 = vadd.f32 %v6526, %v6574
        %v6576 = vpop.f32.mrf.mxu0
        %v6577 = vadd.f32 %v6528, %v6576
        %6578 = vmatmul.bf16.gmra.mxu0 %v4073
        %v6579 = vpop.f32.mrf.mxu0
        %v6580 = vadd.f32 %v6531, %v6579
        %v6581 = vpop.f32.mrf.mxu0
        %v6582 = vadd.f32 %v6533, %v6581
        %6583 = vmatmul.bf16.gmra.mxu0 %v4085
        %v6584 = vpop.f32.mrf.mxu0
        %v6585 = vadd.f32 %v6536, %v6584
        %v6586 = vpop.f32.mrf.mxu0
        %v6587 = vadd.f32 %v6538, %v6586
        %6588 = vmatmul.bf16.gmra.mxu0 %v4097
        %v6589 = vpop.f32.mrf.mxu0
        %v6590 = vadd.f32 %v6541, %v6589
        %v6591 = vpop.f32.mrf.mxu0
        %v6592 = vadd.f32 %v6543, %v6591
        %6593 = vmatmul.bf16.gmra.mxu0 %v4109
        %v6594 = vpop.f32.mrf.mxu0
        %v6595 = vadd.f32 %v6546, %v6594
        %v6596 = vpop.f32.mrf.mxu0
        %v6597 = vadd.f32 %v6548, %v6596
        %6598 = vmatmul.bf16.gmra.mxu0 %v4121
        %v6599 = vpop.f32.mrf.mxu0
        %v6600 = vadd.f32 %v6551, %v6599
        %v6601 = vpop.f32.mrf.mxu0
        %v6602 = vadd.f32 %v6553, %v6601
        %6603 = vmatmul.bf16.gmra.mxu0 %v4133
        %v6604 = vpop.f32.mrf.mxu0
        %v6605 = vadd.f32 %v6556, %v6604
        %v6606 = vpop.f32.mrf.mxu0
        %v6607 = vadd.f32 %v6558, %v6606
        %6608 = vmatmul.bf16.gmra.mxu0 %v4145
        %v6609 = vpop.f32.mrf.mxu0
        %v6610 = vadd.f32 %v6561, %v6609
        %v6611 = vpop.f32.mrf.mxu0
        %v6612 = vadd.f32 %v6563, %v6611
        %6613 = vdwg.mxu0
        %6614 = vmatpush.bf16.msra.mxu0 %v5784
        %6615 = vmatpush.bf16.msra.mxu0 %v5781
        %6616 = vmatpush.bf16.msra.mxu0 %v5778
        %6617 = vmatpush.bf16.msra.mxu0 %v5775
        %6618 = vmatpush.bf16.msra.mxu0 %v5772
        %6619 = vmatpush.bf16.msra.mxu0 %v5769
        %6620 = vmatpush.bf16.msra.mxu0 %v5766
        %6621 = vmatpush.bf16.msra.mxu0 %v5763
        %6622 = vmatmul.bf16.gmra.mxu0 %v4062
        %v6623 = vpop.f32.mrf.mxu0
        %v6624 = vadd.f32 %v6575, %v6623
        %v6625 = vpop.f32.mrf.mxu0
        %v6626 = vadd.f32 %v6577, %v6625
        %6627 = vmatmul.bf16.gmra.mxu0 %v4074
        %v6628 = vpop.f32.mrf.mxu0
        %v6629 = vadd.f32 %v6580, %v6628
        %v6630 = vpop.f32.mrf.mxu0
        %v6631 = vadd.f32 %v6582, %v6630
        %6632 = vmatmul.bf16.gmra.mxu0 %v4086
        %v6633 = vpop.f32.mrf.mxu0
        %v6634 = vadd.f32 %v6585, %v6633
        %v6635 = vpop.f32.mrf.mxu0
        %v6636 = vadd.f32 %v6587, %v6635
        %6637 = vmatmul.bf16.gmra.mxu0 %v4098
        %v6638 = vpop.f32.mrf.mxu0
        %v6639 = vadd.f32 %v6590, %v6638
        %v6640 = vpop.f32.mrf.mxu0
        %v6641 = vadd.f32 %v6592, %v6640
        %6642 = vmatmul.bf16.gmra.mxu0 %v4110
        %v6643 = vpop.f32.mrf.mxu0
        %v6644 = vadd.f32 %v6595, %v6643
        %v6645 = vpop.f32.mrf.mxu0
        %v6646 = vadd.f32 %v6597, %v6645
        %6647 = vmatmul.bf16.gmra.mxu0 %v4122
        %v6648 = vpop.f32.mrf.mxu0
        %v6649 = vadd.f32 %v6600, %v6648
        %v6650 = vpop.f32.mrf.mxu0
        %v6651 = vadd.f32 %v6602, %v6650
        %6652 = vmatmul.bf16.gmra.mxu0 %v4134
        %v6653 = vpop.f32.mrf.mxu0
        %v6654 = vadd.f32 %v6605, %v6653
        %v6655 = vpop.f32.mrf.mxu0
        %v6656 = vadd.f32 %v6607, %v6655
        %6657 = vmatmul.bf16.gmra.mxu0 %v4146
        %v6658 = vpop.f32.mrf.mxu0
        %v6659 = vadd.f32 %v6610, %v6658
        %v6660 = vpop.f32.mrf.mxu0
        %v6661 = vadd.f32 %v6612, %v6660
        %6662 = vdwg.mxu0
        %6663 = vmatpush.bf16.msra.mxu0 %v5521
        %6664 = vmatpush.bf16.msra.mxu0 %v5518
        %6665 = vmatpush.bf16.msra.mxu0 %v5515
        %6666 = vmatpush.bf16.msra.mxu0 %v5512
        %6667 = vmatpush.bf16.msra.mxu0 %v5509
        %6668 = vmatpush.bf16.msra.mxu0 %v5506
        %6669 = vmatpush.bf16.msra.mxu0 %v5503
        %6670 = vmatpush.bf16.msra.mxu0 %v5500
        %6671 = vmatmul.bf16.gmra.mxu0 %v4051
        %v6672 = vpop.f32.mrf.mxu0
        %v6673 = vadd.f32 %v4534, %v6672
        %v6674 = vpop.f32.mrf.mxu0
        %v6675 = vadd.f32 %v4534, %v6674
        %6676 = vmatmul.bf16.gmra.mxu0 %v4063
        %v6677 = vpop.f32.mrf.mxu0
        %v6678 = vadd.f32 %v4534, %v6677
        %v6679 = vpop.f32.mrf.mxu0
        %v6680 = vadd.f32 %v4534, %v6679
        %6681 = vmatmul.bf16.gmra.mxu0 %v4075
        %v6682 = vpop.f32.mrf.mxu0
        %v6683 = vadd.f32 %v4534, %v6682
        %v6684 = vpop.f32.mrf.mxu0
        %v6685 = vadd.f32 %v4534, %v6684
        %6686 = vmatmul.bf16.gmra.mxu0 %v4087
        %v6687 = vpop.f32.mrf.mxu0
        %v6688 = vadd.f32 %v4534, %v6687
        %v6689 = vpop.f32.mrf.mxu0
        %v6690 = vadd.f32 %v4534, %v6689
        %6691 = vmatmul.bf16.gmra.mxu0 %v4099
        %v6692 = vpop.f32.mrf.mxu0
        %v6693 = vadd.f32 %v4534, %v6692
        %v6694 = vpop.f32.mrf.mxu0
        %v6695 = vadd.f32 %v4534, %v6694
        %6696 = vmatmul.bf16.gmra.mxu0 %v4111
        %v6697 = vpop.f32.mrf.mxu0
        %v6698 = vadd.f32 %v4534, %v6697
        %v6699 = vpop.f32.mrf.mxu0
        %v6700 = vadd.f32 %v4534, %v6699
        %6701 = vmatmul.bf16.gmra.mxu0 %v4123
        %v6702 = vpop.f32.mrf.mxu0
        %v6703 = vadd.f32 %v4534, %v6702
        %v6704 = vpop.f32.mrf.mxu0
        %v6705 = vadd.f32 %v4534, %v6704
        %6706 = vmatmul.bf16.gmra.mxu0 %v4135
        %v6707 = vpop.f32.mrf.mxu0
        %v6708 = vadd.f32 %v4534, %v6707
        %v6709 = vpop.f32.mrf.mxu0
        %v6710 = vadd.f32 %v4534, %v6709
        %6711 = vdwg.mxu0
        %6712 = vmatpush.bf16.msra.mxu0 %v5545
        %6713 = vmatpush.bf16.msra.mxu0 %v5542
        %6714 = vmatpush.bf16.msra.mxu0 %v5539
        %6715 = vmatpush.bf16.msra.mxu0 %v5536
        %6716 = vmatpush.bf16.msra.mxu0 %v5533
        %6717 = vmatpush.bf16.msra.mxu0 %v5530
        %6718 = vmatpush.bf16.msra.mxu0 %v5527
        %6719 = vmatpush.bf16.msra.mxu0 %v5524
        %6720 = vmatmul.bf16.gmra.mxu0 %v4052
        %v6721 = vpop.f32.mrf.mxu0
        %v6722 = vadd.f32 %v6673, %v6721
        %v6723 = vpop.f32.mrf.mxu0
        %v6724 = vadd.f32 %v6675, %v6723
        %6725 = vmatmul.bf16.gmra.mxu0 %v4064
        %v6726 = vpop.f32.mrf.mxu0
        %v6727 = vadd.f32 %v6678, %v6726
        %v6728 = vpop.f32.mrf.mxu0
        %v6729 = vadd.f32 %v6680, %v6728
        %6730 = vmatmul.bf16.gmra.mxu0 %v4076
        %v6731 = vpop.f32.mrf.mxu0
        %v6732 = vadd.f32 %v6683, %v6731
        %v6733 = vpop.f32.mrf.mxu0
        %v6734 = vadd.f32 %v6685, %v6733
        %6735 = vmatmul.bf16.gmra.mxu0 %v4088
        %v6736 = vpop.f32.mrf.mxu0
        %v6737 = vadd.f32 %v6688, %v6736
        %v6738 = vpop.f32.mrf.mxu0
        %v6739 = vadd.f32 %v6690, %v6738
        %6740 = vmatmul.bf16.gmra.mxu0 %v4100
        %v6741 = vpop.f32.mrf.mxu0
        %v6742 = vadd.f32 %v6693, %v6741
        %v6743 = vpop.f32.mrf.mxu0
        %v6744 = vadd.f32 %v6695, %v6743
        %6745 = vmatmul.bf16.gmra.mxu0 %v4112
        %v6746 = vpop.f32.mrf.mxu0
        %v6747 = vadd.f32 %v6698, %v6746
        %v6748 = vpop.f32.mrf.mxu0
        %v6749 = vadd.f32 %v6700, %v6748
        %6750 = vmatmul.bf16.gmra.mxu0 %v4124
        %v6751 = vpop.f32.mrf.mxu0
        %v6752 = vadd.f32 %v6703, %v6751
        %v6753 = vpop.f32.mrf.mxu0
        %v6754 = vadd.f32 %v6705, %v6753
        %6755 = vmatmul.bf16.gmra.mxu0 %v4136
        %v6756 = vpop.f32.mrf.mxu0
        %v6757 = vadd.f32 %v6708, %v6756
        %v6758 = vpop.f32.mrf.mxu0
        %v6759 = vadd.f32 %v6710, %v6758
        %6760 = vdwg.mxu0
        %6761 = vmatpush.bf16.msra.mxu0 %v5569
        %6762 = vmatpush.bf16.msra.mxu0 %v5566
        %6763 = vmatpush.bf16.msra.mxu0 %v5563
        %6764 = vmatpush.bf16.msra.mxu0 %v5560
        %6765 = vmatpush.bf16.msra.mxu0 %v5557
        %6766 = vmatpush.bf16.msra.mxu0 %v5554
        %6767 = vmatpush.bf16.msra.mxu0 %v5551
        %6768 = vmatpush.bf16.msra.mxu0 %v5548
        %6769 = vmatmul.bf16.gmra.mxu0 %v4053
        %v6770 = vpop.f32.mrf.mxu0
        %v6771 = vadd.f32 %v6722, %v6770
        %v6772 = vpop.f32.mrf.mxu0
        %v6773 = vadd.f32 %v6724, %v6772
        %6774 = vmatmul.bf16.gmra.mxu0 %v4065
        %v6775 = vpop.f32.mrf.mxu0
        %v6776 = vadd.f32 %v6727, %v6775
        %v6777 = vpop.f32.mrf.mxu0
        %v6778 = vadd.f32 %v6729, %v6777
        %6779 = vmatmul.bf16.gmra.mxu0 %v4077
        %v6780 = vpop.f32.mrf.mxu0
        %v6781 = vadd.f32 %v6732, %v6780
        %v6782 = vpop.f32.mrf.mxu0
        %v6783 = vadd.f32 %v6734, %v6782
        %6784 = vmatmul.bf16.gmra.mxu0 %v4089
        %v6785 = vpop.f32.mrf.mxu0
        %v6786 = vadd.f32 %v6737, %v6785
        %v6787 = vpop.f32.mrf.mxu0
        %v6788 = vadd.f32 %v6739, %v6787
        %6789 = vmatmul.bf16.gmra.mxu0 %v4101
        %v6790 = vpop.f32.mrf.mxu0
        %v6791 = vadd.f32 %v6742, %v6790
        %v6792 = vpop.f32.mrf.mxu0
        %v6793 = vadd.f32 %v6744, %v6792
        %6794 = vmatmul.bf16.gmra.mxu0 %v4113
        %v6795 = vpop.f32.mrf.mxu0
        %v6796 = vadd.f32 %v6747, %v6795
        %v6797 = vpop.f32.mrf.mxu0
        %v6798 = vadd.f32 %v6749, %v6797
        %6799 = vmatmul.bf16.gmra.mxu0 %v4125
        %v6800 = vpop.f32.mrf.mxu0
        %v6801 = vadd.f32 %v6752, %v6800
        %v6802 = vpop.f32.mrf.mxu0
        %v6803 = vadd.f32 %v6754, %v6802
        %6804 = vmatmul.bf16.gmra.mxu0 %v4137
        %v6805 = vpop.f32.mrf.mxu0
        %v6806 = vadd.f32 %v6757, %v6805
        %v6807 = vpop.f32.mrf.mxu0
        %v6808 = vadd.f32 %v6759, %v6807
        %6809 = vdwg.mxu0
        %6810 = vmatpush.bf16.msra.mxu0 %v5593
        %6811 = vmatpush.bf16.msra.mxu0 %v5590
        %6812 = vmatpush.bf16.msra.mxu0 %v5587
        %6813 = vmatpush.bf16.msra.mxu0 %v5584
        %6814 = vmatpush.bf16.msra.mxu0 %v5581
        %6815 = vmatpush.bf16.msra.mxu0 %v5578
        %6816 = vmatpush.bf16.msra.mxu0 %v5575
        %6817 = vmatpush.bf16.msra.mxu0 %v5572
        %6818 = vmatmul.bf16.gmra.mxu0 %v4054
        %v6819 = vpop.f32.mrf.mxu0
        %v6820 = vadd.f32 %v6771, %v6819
        %v6821 = vpop.f32.mrf.mxu0
        %v6822 = vadd.f32 %v6773, %v6821
        %6823 = vmatmul.bf16.gmra.mxu0 %v4066
        %v6824 = vpop.f32.mrf.mxu0
        %v6825 = vadd.f32 %v6776, %v6824
        %v6826 = vpop.f32.mrf.mxu0
        %v6827 = vadd.f32 %v6778, %v6826
        %6828 = vmatmul.bf16.gmra.mxu0 %v4078
        %v6829 = vpop.f32.mrf.mxu0
        %v6830 = vadd.f32 %v6781, %v6829
        %v6831 = vpop.f32.mrf.mxu0
        %v6832 = vadd.f32 %v6783, %v6831
        %6833 = vmatmul.bf16.gmra.mxu0 %v4090
        %v6834 = vpop.f32.mrf.mxu0
        %v6835 = vadd.f32 %v6786, %v6834
        %v6836 = vpop.f32.mrf.mxu0
        %v6837 = vadd.f32 %v6788, %v6836
        %6838 = vmatmul.bf16.gmra.mxu0 %v4102
        %v6839 = vpop.f32.mrf.mxu0
        %v6840 = vadd.f32 %v6791, %v6839
        %v6841 = vpop.f32.mrf.mxu0
        %v6842 = vadd.f32 %v6793, %v6841
        %6843 = vmatmul.bf16.gmra.mxu0 %v4114
        %v6844 = vpop.f32.mrf.mxu0
        %v6845 = vadd.f32 %v6796, %v6844
        %v6846 = vpop.f32.mrf.mxu0
        %v6847 = vadd.f32 %v6798, %v6846
        %6848 = vmatmul.bf16.gmra.mxu0 %v4126
        %v6849 = vpop.f32.mrf.mxu0
        %v6850 = vadd.f32 %v6801, %v6849
        %v6851 = vpop.f32.mrf.mxu0
        %v6852 = vadd.f32 %v6803, %v6851
        %6853 = vmatmul.bf16.gmra.mxu0 %v4138
        %v6854 = vpop.f32.mrf.mxu0
        %v6855 = vadd.f32 %v6806, %v6854
        %v6856 = vpop.f32.mrf.mxu0
        %v6857 = vadd.f32 %v6808, %v6856
        %6858 = vdwg.mxu0
        %6859 = vmatpush.bf16.msra.mxu0 %v5617
        %6860 = vmatpush.bf16.msra.mxu0 %v5614
        %6861 = vmatpush.bf16.msra.mxu0 %v5611
        %6862 = vmatpush.bf16.msra.mxu0 %v5608
        %6863 = vmatpush.bf16.msra.mxu0 %v5605
        %6864 = vmatpush.bf16.msra.mxu0 %v5602
        %6865 = vmatpush.bf16.msra.mxu0 %v5599
        %6866 = vmatpush.bf16.msra.mxu0 %v5596
        %6867 = vmatmul.bf16.gmra.mxu0 %v4055
        %v6868 = vpop.f32.mrf.mxu0
        %v6869 = vadd.f32 %v6820, %v6868
        %v6870 = vpop.f32.mrf.mxu0
        %v6871 = vadd.f32 %v6822, %v6870
        %6872 = vmatmul.bf16.gmra.mxu0 %v4067
        %v6873 = vpop.f32.mrf.mxu0
        %v6874 = vadd.f32 %v6825, %v6873
        %v6875 = vpop.f32.mrf.mxu0
        %v6876 = vadd.f32 %v6827, %v6875
        %6877 = vmatmul.bf16.gmra.mxu0 %v4079
        %v6878 = vpop.f32.mrf.mxu0
        %v6879 = vadd.f32 %v6830, %v6878
        %v6880 = vpop.f32.mrf.mxu0
        %v6881 = vadd.f32 %v6832, %v6880
        %6882 = vmatmul.bf16.gmra.mxu0 %v4091
        %v6883 = vpop.f32.mrf.mxu0
        %v6884 = vadd.f32 %v6835, %v6883
        %v6885 = vpop.f32.mrf.mxu0
        %v6886 = vadd.f32 %v6837, %v6885
        %6887 = vmatmul.bf16.gmra.mxu0 %v4103
        %v6888 = vpop.f32.mrf.mxu0
        %v6889 = vadd.f32 %v6840, %v6888
        %v6890 = vpop.f32.mrf.mxu0
        %v6891 = vadd.f32 %v6842, %v6890
        %6892 = vmatmul.bf16.gmra.mxu0 %v4115
        %v6893 = vpop.f32.mrf.mxu0
        %v6894 = vadd.f32 %v6845, %v6893
        %v6895 = vpop.f32.mrf.mxu0
        %v6896 = vadd.f32 %v6847, %v6895
        %6897 = vmatmul.bf16.gmra.mxu0 %v4127
        %v6898 = vpop.f32.mrf.mxu0
        %v6899 = vadd.f32 %v6850, %v6898
        %v6900 = vpop.f32.mrf.mxu0
        %v6901 = vadd.f32 %v6852, %v6900
        %6902 = vmatmul.bf16.gmra.mxu0 %v4139
        %v6903 = vpop.f32.mrf.mxu0
        %v6904 = vadd.f32 %v6855, %v6903
        %v6905 = vpop.f32.mrf.mxu0
        %v6906 = vadd.f32 %v6857, %v6905
        %6907 = vdwg.mxu0
        %6908 = vmatpush.bf16.msra.mxu0 %v5641
        %6909 = vmatpush.bf16.msra.mxu0 %v5638
        %6910 = vmatpush.bf16.msra.mxu0 %v5635
        %6911 = vmatpush.bf16.msra.mxu0 %v5632
        %6912 = vmatpush.bf16.msra.mxu0 %v5629
        %6913 = vmatpush.bf16.msra.mxu0 %v5626
        %6914 = vmatpush.bf16.msra.mxu0 %v5623
        %6915 = vmatpush.bf16.msra.mxu0 %v5620
        %6916 = vmatmul.bf16.gmra.mxu0 %v4056
        %v6917 = vpop.f32.mrf.mxu0
        %v6918 = vadd.f32 %v6869, %v6917
        %v6919 = vpop.f32.mrf.mxu0
        %v6920 = vadd.f32 %v6871, %v6919
        %6921 = vmatmul.bf16.gmra.mxu0 %v4068
        %v6922 = vpop.f32.mrf.mxu0
        %v6923 = vadd.f32 %v6874, %v6922
        %v6924 = vpop.f32.mrf.mxu0
        %v6925 = vadd.f32 %v6876, %v6924
        %6926 = vmatmul.bf16.gmra.mxu0 %v4080
        %v6927 = vpop.f32.mrf.mxu0
        %v6928 = vadd.f32 %v6879, %v6927
        %v6929 = vpop.f32.mrf.mxu0
        %v6930 = vadd.f32 %v6881, %v6929
        %6931 = vmatmul.bf16.gmra.mxu0 %v4092
        %v6932 = vpop.f32.mrf.mxu0
        %v6933 = vadd.f32 %v6884, %v6932
        %v6934 = vpop.f32.mrf.mxu0
        %v6935 = vadd.f32 %v6886, %v6934
        %6936 = vmatmul.bf16.gmra.mxu0 %v4104
        %v6937 = vpop.f32.mrf.mxu0
        %v6938 = vadd.f32 %v6889, %v6937
        %v6939 = vpop.f32.mrf.mxu0
        %v6940 = vadd.f32 %v6891, %v6939
        %6941 = vmatmul.bf16.gmra.mxu0 %v4116
        %v6942 = vpop.f32.mrf.mxu0
        %v6943 = vadd.f32 %v6894, %v6942
        %v6944 = vpop.f32.mrf.mxu0
        %v6945 = vadd.f32 %v6896, %v6944
        %6946 = vmatmul.bf16.gmra.mxu0 %v4128
        %v6947 = vpop.f32.mrf.mxu0
        %v6948 = vadd.f32 %v6899, %v6947
        %v6949 = vpop.f32.mrf.mxu0
        %v6950 = vadd.f32 %v6901, %v6949
        %6951 = vmatmul.bf16.gmra.mxu0 %v4140
        %v6952 = vpop.f32.mrf.mxu0
        %v6953 = vadd.f32 %v6904, %v6952
        %v6954 = vpop.f32.mrf.mxu0
        %v6955 = vadd.f32 %v6906, %v6954
        %6956 = vdwg.mxu0
        %6957 = vmatpush.bf16.msra.mxu0 %v5665
        %6958 = vmatpush.bf16.msra.mxu0 %v5662
        %6959 = vmatpush.bf16.msra.mxu0 %v5659
        %6960 = vmatpush.bf16.msra.mxu0 %v5656
        %6961 = vmatpush.bf16.msra.mxu0 %v5653
        %6962 = vmatpush.bf16.msra.mxu0 %v5650
        %6963 = vmatpush.bf16.msra.mxu0 %v5647
        %6964 = vmatpush.bf16.msra.mxu0 %v5644
        %6965 = vmatmul.bf16.gmra.mxu0 %v4057
        %v6966 = vpop.f32.mrf.mxu0
        %v6967 = vadd.f32 %v6918, %v6966
        %v6968 = vpop.f32.mrf.mxu0
        %v6969 = vadd.f32 %v6920, %v6968
        %6970 = vmatmul.bf16.gmra.mxu0 %v4069
        %v6971 = vpop.f32.mrf.mxu0
        %v6972 = vadd.f32 %v6923, %v6971
        %v6973 = vpop.f32.mrf.mxu0
        %v6974 = vadd.f32 %v6925, %v6973
        %6975 = vmatmul.bf16.gmra.mxu0 %v4081
        %v6976 = vpop.f32.mrf.mxu0
        %v6977 = vadd.f32 %v6928, %v6976
        %v6978 = vpop.f32.mrf.mxu0
        %v6979 = vadd.f32 %v6930, %v6978
        %6980 = vmatmul.bf16.gmra.mxu0 %v4093
        %v6981 = vpop.f32.mrf.mxu0
        %v6982 = vadd.f32 %v6933, %v6981
        %v6983 = vpop.f32.mrf.mxu0
        %v6984 = vadd.f32 %v6935, %v6983
        %6985 = vmatmul.bf16.gmra.mxu0 %v4105
        %v6986 = vpop.f32.mrf.mxu0
        %v6987 = vadd.f32 %v6938, %v6986
        %v6988 = vpop.f32.mrf.mxu0
        %v6989 = vadd.f32 %v6940, %v6988
        %6990 = vmatmul.bf16.gmra.mxu0 %v4117
        %v6991 = vpop.f32.mrf.mxu0
        %v6992 = vadd.f32 %v6943, %v6991
        %v6993 = vpop.f32.mrf.mxu0
        %v6994 = vadd.f32 %v6945, %v6993
        %6995 = vmatmul.bf16.gmra.mxu0 %v4129
        %v6996 = vpop.f32.mrf.mxu0
        %v6997 = vadd.f32 %v6948, %v6996
        %v6998 = vpop.f32.mrf.mxu0
        %v6999 = vadd.f32 %v6950, %v6998
        %7000 = vmatmul.bf16.gmra.mxu0 %v4141
        %v7001 = vpop.f32.mrf.mxu0
        %v7002 = vadd.f32 %v6953, %v7001
        %v7003 = vpop.f32.mrf.mxu0
        %v7004 = vadd.f32 %v6955, %v7003
        %7005 = vdwg.mxu0
        %7006 = vmatpush.bf16.msra.mxu0 %v5689
        %7007 = vmatpush.bf16.msra.mxu0 %v5686
        %7008 = vmatpush.bf16.msra.mxu0 %v5683
        %7009 = vmatpush.bf16.msra.mxu0 %v5680
        %7010 = vmatpush.bf16.msra.mxu0 %v5677
        %7011 = vmatpush.bf16.msra.mxu0 %v5674
        %7012 = vmatpush.bf16.msra.mxu0 %v5671
        %7013 = vmatpush.bf16.msra.mxu0 %v5668
        %7014 = vmatmul.bf16.gmra.mxu0 %v4058
        %v7015 = vpop.f32.mrf.mxu0
        %v7016 = vadd.f32 %v6967, %v7015
        %v7017 = vpop.f32.mrf.mxu0
        %v7018 = vadd.f32 %v6969, %v7017
        %7019 = vmatmul.bf16.gmra.mxu0 %v4070
        %v7020 = vpop.f32.mrf.mxu0
        %v7021 = vadd.f32 %v6972, %v7020
        %v7022 = vpop.f32.mrf.mxu0
        %v7023 = vadd.f32 %v6974, %v7022
        %7024 = vmatmul.bf16.gmra.mxu0 %v4082
        %v7025 = vpop.f32.mrf.mxu0
        %v7026 = vadd.f32 %v6977, %v7025
        %v7027 = vpop.f32.mrf.mxu0
        %v7028 = vadd.f32 %v6979, %v7027
        %7029 = vmatmul.bf16.gmra.mxu0 %v4094
        %v7030 = vpop.f32.mrf.mxu0
        %v7031 = vadd.f32 %v6982, %v7030
        %v7032 = vpop.f32.mrf.mxu0
        %v7033 = vadd.f32 %v6984, %v7032
        %7034 = vmatmul.bf16.gmra.mxu0 %v4106
        %v7035 = vpop.f32.mrf.mxu0
        %v7036 = vadd.f32 %v6987, %v7035
        %v7037 = vpop.f32.mrf.mxu0
        %v7038 = vadd.f32 %v6989, %v7037
        %7039 = vmatmul.bf16.gmra.mxu0 %v4118
        %v7040 = vpop.f32.mrf.mxu0
        %v7041 = vadd.f32 %v6992, %v7040
        %v7042 = vpop.f32.mrf.mxu0
        %v7043 = vadd.f32 %v6994, %v7042
        %7044 = vmatmul.bf16.gmra.mxu0 %v4130
        %v7045 = vpop.f32.mrf.mxu0
        %v7046 = vadd.f32 %v6997, %v7045
        %v7047 = vpop.f32.mrf.mxu0
        %v7048 = vadd.f32 %v6999, %v7047
        %7049 = vmatmul.bf16.gmra.mxu0 %v4142
        %v7050 = vpop.f32.mrf.mxu0
        %v7051 = vadd.f32 %v7002, %v7050
        %v7052 = vpop.f32.mrf.mxu0
        %v7053 = vadd.f32 %v7004, %v7052
        %7054 = vdwg.mxu0
        %7055 = vmatpush.bf16.msra.mxu0 %v5713
        %7056 = vmatpush.bf16.msra.mxu0 %v5710
        %7057 = vmatpush.bf16.msra.mxu0 %v5707
        %7058 = vmatpush.bf16.msra.mxu0 %v5704
        %7059 = vmatpush.bf16.msra.mxu0 %v5701
        %7060 = vmatpush.bf16.msra.mxu0 %v5698
        %7061 = vmatpush.bf16.msra.mxu0 %v5695
        %7062 = vmatpush.bf16.msra.mxu0 %v5692
        %7063 = vmatmul.bf16.gmra.mxu0 %v4059
        %v7064 = vpop.f32.mrf.mxu0
        %v7065 = vadd.f32 %v7016, %v7064
        %v7066 = vpop.f32.mrf.mxu0
        %v7067 = vadd.f32 %v7018, %v7066
        %7068 = vmatmul.bf16.gmra.mxu0 %v4071
        %v7069 = vpop.f32.mrf.mxu0
        %v7070 = vadd.f32 %v7021, %v7069
        %v7071 = vpop.f32.mrf.mxu0
        %v7072 = vadd.f32 %v7023, %v7071
        %7073 = vmatmul.bf16.gmra.mxu0 %v4083
        %v7074 = vpop.f32.mrf.mxu0
        %v7075 = vadd.f32 %v7026, %v7074
        %v7076 = vpop.f32.mrf.mxu0
        %v7077 = vadd.f32 %v7028, %v7076
        %7078 = vmatmul.bf16.gmra.mxu0 %v4095
        %v7079 = vpop.f32.mrf.mxu0
        %v7080 = vadd.f32 %v7031, %v7079
        %v7081 = vpop.f32.mrf.mxu0
        %v7082 = vadd.f32 %v7033, %v7081
        %7083 = vmatmul.bf16.gmra.mxu0 %v4107
        %v7084 = vpop.f32.mrf.mxu0
        %v7085 = vadd.f32 %v7036, %v7084
        %v7086 = vpop.f32.mrf.mxu0
        %v7087 = vadd.f32 %v7038, %v7086
        %7088 = vmatmul.bf16.gmra.mxu0 %v4119
        %v7089 = vpop.f32.mrf.mxu0
        %v7090 = vadd.f32 %v7041, %v7089
        %v7091 = vpop.f32.mrf.mxu0
        %v7092 = vadd.f32 %v7043, %v7091
        %7093 = vmatmul.bf16.gmra.mxu0 %v4131
        %v7094 = vpop.f32.mrf.mxu0
        %v7095 = vadd.f32 %v7046, %v7094
        %v7096 = vpop.f32.mrf.mxu0
        %v7097 = vadd.f32 %v7048, %v7096
        %7098 = vmatmul.bf16.gmra.mxu0 %v4143
        %v7099 = vpop.f32.mrf.mxu0
        %v7100 = vadd.f32 %v7051, %v7099
        %v7101 = vpop.f32.mrf.mxu0
        %v7102 = vadd.f32 %v7053, %v7101
        %7103 = vdwg.mxu0
        %7104 = vmatpush.bf16.msra.mxu0 %v5737
        %7105 = vmatpush.bf16.msra.mxu0 %v5734
        %7106 = vmatpush.bf16.msra.mxu0 %v5731
        %7107 = vmatpush.bf16.msra.mxu0 %v5728
        %7108 = vmatpush.bf16.msra.mxu0 %v5725
        %7109 = vmatpush.bf16.msra.mxu0 %v5722
        %7110 = vmatpush.bf16.msra.mxu0 %v5719
        %7111 = vmatpush.bf16.msra.mxu0 %v5716
        %7112 = vmatmul.bf16.gmra.mxu0 %v4060
        %v7113 = vpop.f32.mrf.mxu0
        %v7114 = vadd.f32 %v7065, %v7113
        %v7115 = vpop.f32.mrf.mxu0
        %v7116 = vadd.f32 %v7067, %v7115
        %7117 = vmatmul.bf16.gmra.mxu0 %v4072
        %v7118 = vpop.f32.mrf.mxu0
        %v7119 = vadd.f32 %v7070, %v7118
        %v7120 = vpop.f32.mrf.mxu0
        %v7121 = vadd.f32 %v7072, %v7120
        %7122 = vmatmul.bf16.gmra.mxu0 %v4084
        %v7123 = vpop.f32.mrf.mxu0
        %v7124 = vadd.f32 %v7075, %v7123
        %v7125 = vpop.f32.mrf.mxu0
        %v7126 = vadd.f32 %v7077, %v7125
        %7127 = vmatmul.bf16.gmra.mxu0 %v4096
        %v7128 = vpop.f32.mrf.mxu0
        %v7129 = vadd.f32 %v7080, %v7128
        %v7130 = vpop.f32.mrf.mxu0
        %v7131 = vadd.f32 %v7082, %v7130
        %7132 = vmatmul.bf16.gmra.mxu0 %v4108
        %v7133 = vpop.f32.mrf.mxu0
        %v7134 = vadd.f32 %v7085, %v7133
        %v7135 = vpop.f32.mrf.mxu0
        %v7136 = vadd.f32 %v7087, %v7135
        %7137 = vmatmul.bf16.gmra.mxu0 %v4120
        %v7138 = vpop.f32.mrf.mxu0
        %v7139 = vadd.f32 %v7090, %v7138
        %v7140 = vpop.f32.mrf.mxu0
        %v7141 = vadd.f32 %v7092, %v7140
        %7142 = vmatmul.bf16.gmra.mxu0 %v4132
        %v7143 = vpop.f32.mrf.mxu0
        %v7144 = vadd.f32 %v7095, %v7143
        %v7145 = vpop.f32.mrf.mxu0
        %v7146 = vadd.f32 %v7097, %v7145
        %7147 = vmatmul.bf16.gmra.mxu0 %v4144
        %v7148 = vpop.f32.mrf.mxu0
        %v7149 = vadd.f32 %v7100, %v7148
        %v7150 = vpop.f32.mrf.mxu0
        %v7151 = vadd.f32 %v7102, %v7150
        %7152 = vdwg.mxu0
        %7153 = vmatpush.bf16.msra.mxu0 %v5761
        %7154 = vmatpush.bf16.msra.mxu0 %v5758
        %7155 = vmatpush.bf16.msra.mxu0 %v5755
        %7156 = vmatpush.bf16.msra.mxu0 %v5752
        %7157 = vmatpush.bf16.msra.mxu0 %v5749
        %7158 = vmatpush.bf16.msra.mxu0 %v5746
        %7159 = vmatpush.bf16.msra.mxu0 %v5743
        %7160 = vmatpush.bf16.msra.mxu0 %v5740
        %7161 = vmatmul.bf16.gmra.mxu0 %v4061
        %v7162 = vpop.f32.mrf.mxu0
        %v7163 = vadd.f32 %v7114, %v7162
        %v7164 = vpop.f32.mrf.mxu0
        %v7165 = vadd.f32 %v7116, %v7164
        %7166 = vmatmul.bf16.gmra.mxu0 %v4073
        %v7167 = vpop.f32.mrf.mxu0
        %v7168 = vadd.f32 %v7119, %v7167
        %v7169 = vpop.f32.mrf.mxu0
        %v7170 = vadd.f32 %v7121, %v7169
        %7171 = vmatmul.bf16.gmra.mxu0 %v4085
        %v7172 = vpop.f32.mrf.mxu0
        %v7173 = vadd.f32 %v7124, %v7172
        %v7174 = vpop.f32.mrf.mxu0
        %v7175 = vadd.f32 %v7126, %v7174
        %7176 = vmatmul.bf16.gmra.mxu0 %v4097
        %v7177 = vpop.f32.mrf.mxu0
        %v7178 = vadd.f32 %v7129, %v7177
        %v7179 = vpop.f32.mrf.mxu0
        %v7180 = vadd.f32 %v7131, %v7179
        %7181 = vmatmul.bf16.gmra.mxu0 %v4109
        %v7182 = vpop.f32.mrf.mxu0
        %v7183 = vadd.f32 %v7134, %v7182
        %v7184 = vpop.f32.mrf.mxu0
        %v7185 = vadd.f32 %v7136, %v7184
        %7186 = vmatmul.bf16.gmra.mxu0 %v4121
        %v7187 = vpop.f32.mrf.mxu0
        %v7188 = vadd.f32 %v7139, %v7187
        %v7189 = vpop.f32.mrf.mxu0
        %v7190 = vadd.f32 %v7141, %v7189
        %7191 = vmatmul.bf16.gmra.mxu0 %v4133
        %v7192 = vpop.f32.mrf.mxu0
        %v7193 = vadd.f32 %v7144, %v7192
        %v7194 = vpop.f32.mrf.mxu0
        %v7195 = vadd.f32 %v7146, %v7194
        %7196 = vmatmul.bf16.gmra.mxu0 %v4145
        %v7197 = vpop.f32.mrf.mxu0
        %v7198 = vadd.f32 %v7149, %v7197
        %v7199 = vpop.f32.mrf.mxu0
        %v7200 = vadd.f32 %v7151, %v7199
        %7201 = vdwg.mxu0
        %7202 = vmatpush.bf16.msra.mxu0 %v5785
        %7203 = vmatpush.bf16.msra.mxu0 %v5782
        %7204 = vmatpush.bf16.msra.mxu0 %v5779
        %7205 = vmatpush.bf16.msra.mxu0 %v5776
        %7206 = vmatpush.bf16.msra.mxu0 %v5773
        %7207 = vmatpush.bf16.msra.mxu0 %v5770
        %7208 = vmatpush.bf16.msra.mxu0 %v5767
        %7209 = vmatpush.bf16.msra.mxu0 %v5764
        %7210 = vmatmul.bf16.gmra.mxu0 %v4062
        %v7211 = vpop.f32.mrf.mxu0
        %v7212 = vadd.f32 %v7163, %v7211
        %v7213 = vpop.f32.mrf.mxu0
        %v7214 = vadd.f32 %v7165, %v7213
        %7215 = vmatmul.bf16.gmra.mxu0 %v4074
        %v7216 = vpop.f32.mrf.mxu0
        %v7217 = vadd.f32 %v7168, %v7216
        %v7218 = vpop.f32.mrf.mxu0
        %v7219 = vadd.f32 %v7170, %v7218
        %7220 = vmatmul.bf16.gmra.mxu0 %v4086
        %v7221 = vpop.f32.mrf.mxu0
        %v7222 = vadd.f32 %v7173, %v7221
        %v7223 = vpop.f32.mrf.mxu0
        %v7224 = vadd.f32 %v7175, %v7223
        %7225 = vmatmul.bf16.gmra.mxu0 %v4098
        %v7226 = vpop.f32.mrf.mxu0
        %v7227 = vadd.f32 %v7178, %v7226
        %v7228 = vpop.f32.mrf.mxu0
        %v7229 = vadd.f32 %v7180, %v7228
        %7230 = vmatmul.bf16.gmra.mxu0 %v4110
        %v7231 = vpop.f32.mrf.mxu0
        %v7232 = vadd.f32 %v7183, %v7231
        %v7233 = vpop.f32.mrf.mxu0
        %v7234 = vadd.f32 %v7185, %v7233
        %7235 = vmatmul.bf16.gmra.mxu0 %v4122
        %v7236 = vpop.f32.mrf.mxu0
        %v7237 = vadd.f32 %v7188, %v7236
        %v7238 = vpop.f32.mrf.mxu0
        %v7239 = vadd.f32 %v7190, %v7238
        %7240 = vmatmul.bf16.gmra.mxu0 %v4134
        %v7241 = vpop.f32.mrf.mxu0
        %v7242 = vadd.f32 %v7193, %v7241
        %v7243 = vpop.f32.mrf.mxu0
        %v7244 = vadd.f32 %v7195, %v7243
        %7245 = vmatmul.bf16.gmra.mxu0 %v4146
        %v7246 = vpop.f32.mrf.mxu0
        %v7247 = vadd.f32 %v7198, %v7246
        %v7248 = vpop.f32.mrf.mxu0
        %v7249 = vadd.f32 %v7200, %v7248
        %7250 = vdwg.mxu0
        %7251 = vmatpush.bf16.msra.mxu0 %v5522
        %7252 = vmatpush.bf16.msra.mxu0 %v5519
        %7253 = vmatpush.bf16.msra.mxu0 %v5516
        %7254 = vmatpush.bf16.msra.mxu0 %v5513
        %7255 = vmatpush.bf16.msra.mxu0 %v5510
        %7256 = vmatpush.bf16.msra.mxu0 %v5507
        %7257 = vmatpush.bf16.msra.mxu0 %v5504
        %7258 = vmatpush.bf16.msra.mxu0 %v5501
        %7259 = vmatmul.bf16.gmra.mxu0 %v4051
        %v7260 = vpop.f32.mrf.mxu0
        %v7261 = vadd.f32 %v4535, %v7260
        %v7262 = vpop.f32.mrf.mxu0
        %v7263 = vadd.f32 %v4535, %v7262
        %7264 = vmatmul.bf16.gmra.mxu0 %v4063
        %v7265 = vpop.f32.mrf.mxu0
        %v7266 = vadd.f32 %v4535, %v7265
        %v7267 = vpop.f32.mrf.mxu0
        %v7268 = vadd.f32 %v4535, %v7267
        %7269 = vmatmul.bf16.gmra.mxu0 %v4075
        %v7270 = vpop.f32.mrf.mxu0
        %v7271 = vadd.f32 %v4535, %v7270
        %v7272 = vpop.f32.mrf.mxu0
        %v7273 = vadd.f32 %v4535, %v7272
        %7274 = vmatmul.bf16.gmra.mxu0 %v4087
        %v7275 = vpop.f32.mrf.mxu0
        %v7276 = vadd.f32 %v4535, %v7275
        %v7277 = vpop.f32.mrf.mxu0
        %v7278 = vadd.f32 %v4535, %v7277
        %7279 = vmatmul.bf16.gmra.mxu0 %v4099
        %v7280 = vpop.f32.mrf.mxu0
        %v7281 = vadd.f32 %v4535, %v7280
        %v7282 = vpop.f32.mrf.mxu0
        %v7283 = vadd.f32 %v4535, %v7282
        %7284 = vmatmul.bf16.gmra.mxu0 %v4111
        %v7285 = vpop.f32.mrf.mxu0
        %v7286 = vadd.f32 %v4535, %v7285
        %v7287 = vpop.f32.mrf.mxu0
        %v7288 = vadd.f32 %v4535, %v7287
        %7289 = vmatmul.bf16.gmra.mxu0 %v4123
        %v7290 = vpop.f32.mrf.mxu0
        %v7291 = vadd.f32 %v4535, %v7290
        %v7292 = vpop.f32.mrf.mxu0
        %v7293 = vadd.f32 %v4535, %v7292
        %7294 = vmatmul.bf16.gmra.mxu0 %v4135
        %v7295 = vpop.f32.mrf.mxu0
        %v7296 = vadd.f32 %v4535, %v7295
        %v7297 = vpop.f32.mrf.mxu0
        %v7298 = vadd.f32 %v4535, %v7297
        %7299 = vdwg.mxu0
        %7300 = vmatpush.bf16.msra.mxu0 %v5546
        %7301 = vmatpush.bf16.msra.mxu0 %v5543
        %7302 = vmatpush.bf16.msra.mxu0 %v5540
        %7303 = vmatpush.bf16.msra.mxu0 %v5537
        %7304 = vmatpush.bf16.msra.mxu0 %v5534
        %7305 = vmatpush.bf16.msra.mxu0 %v5531
        %7306 = vmatpush.bf16.msra.mxu0 %v5528
        %7307 = vmatpush.bf16.msra.mxu0 %v5525
        %7308 = vmatmul.bf16.gmra.mxu0 %v4052
        %v7309 = vpop.f32.mrf.mxu0
        %v7310 = vadd.f32 %v7261, %v7309
        %v7311 = vpop.f32.mrf.mxu0
        %v7312 = vadd.f32 %v7263, %v7311
        %7313 = vmatmul.bf16.gmra.mxu0 %v4064
        %v7314 = vpop.f32.mrf.mxu0
        %v7315 = vadd.f32 %v7266, %v7314
        %v7316 = vpop.f32.mrf.mxu0
        %v7317 = vadd.f32 %v7268, %v7316
        %7318 = vmatmul.bf16.gmra.mxu0 %v4076
        %v7319 = vpop.f32.mrf.mxu0
        %v7320 = vadd.f32 %v7271, %v7319
        %v7321 = vpop.f32.mrf.mxu0
        %v7322 = vadd.f32 %v7273, %v7321
        %7323 = vmatmul.bf16.gmra.mxu0 %v4088
        %v7324 = vpop.f32.mrf.mxu0
        %v7325 = vadd.f32 %v7276, %v7324
        %v7326 = vpop.f32.mrf.mxu0
        %v7327 = vadd.f32 %v7278, %v7326
        %7328 = vmatmul.bf16.gmra.mxu0 %v4100
        %v7329 = vpop.f32.mrf.mxu0
        %v7330 = vadd.f32 %v7281, %v7329
        %v7331 = vpop.f32.mrf.mxu0
        %v7332 = vadd.f32 %v7283, %v7331
        %7333 = vmatmul.bf16.gmra.mxu0 %v4112
        %v7334 = vpop.f32.mrf.mxu0
        %v7335 = vadd.f32 %v7286, %v7334
        %v7336 = vpop.f32.mrf.mxu0
        %v7337 = vadd.f32 %v7288, %v7336
        %7338 = vmatmul.bf16.gmra.mxu0 %v4124
        %v7339 = vpop.f32.mrf.mxu0
        %v7340 = vadd.f32 %v7291, %v7339
        %v7341 = vpop.f32.mrf.mxu0
        %v7342 = vadd.f32 %v7293, %v7341
        %7343 = vmatmul.bf16.gmra.mxu0 %v4136
        %v7344 = vpop.f32.mrf.mxu0
        %v7345 = vadd.f32 %v7296, %v7344
        %v7346 = vpop.f32.mrf.mxu0
        %v7347 = vadd.f32 %v7298, %v7346
        %7348 = vdwg.mxu0
        %7349 = vmatpush.bf16.msra.mxu0 %v5570
        %7350 = vmatpush.bf16.msra.mxu0 %v5567
        %7351 = vmatpush.bf16.msra.mxu0 %v5564
        %7352 = vmatpush.bf16.msra.mxu0 %v5561
        %7353 = vmatpush.bf16.msra.mxu0 %v5558
        %7354 = vmatpush.bf16.msra.mxu0 %v5555
        %7355 = vmatpush.bf16.msra.mxu0 %v5552
        %7356 = vmatpush.bf16.msra.mxu0 %v5549
        %7357 = vmatmul.bf16.gmra.mxu0 %v4053
        %v7358 = vpop.f32.mrf.mxu0
        %v7359 = vadd.f32 %v7310, %v7358
        %v7360 = vpop.f32.mrf.mxu0
        %v7361 = vadd.f32 %v7312, %v7360
        %7362 = vmatmul.bf16.gmra.mxu0 %v4065
        %v7363 = vpop.f32.mrf.mxu0
        %v7364 = vadd.f32 %v7315, %v7363
        %v7365 = vpop.f32.mrf.mxu0
        %v7366 = vadd.f32 %v7317, %v7365
        %7367 = vmatmul.bf16.gmra.mxu0 %v4077
        %v7368 = vpop.f32.mrf.mxu0
        %v7369 = vadd.f32 %v7320, %v7368
        %v7370 = vpop.f32.mrf.mxu0
        %v7371 = vadd.f32 %v7322, %v7370
        %7372 = vmatmul.bf16.gmra.mxu0 %v4089
        %v7373 = vpop.f32.mrf.mxu0
        %v7374 = vadd.f32 %v7325, %v7373
        %v7375 = vpop.f32.mrf.mxu0
        %v7376 = vadd.f32 %v7327, %v7375
        %7377 = vmatmul.bf16.gmra.mxu0 %v4101
        %v7378 = vpop.f32.mrf.mxu0
        %v7379 = vadd.f32 %v7330, %v7378
        %v7380 = vpop.f32.mrf.mxu0
        %v7381 = vadd.f32 %v7332, %v7380
        %7382 = vmatmul.bf16.gmra.mxu0 %v4113
        %v7383 = vpop.f32.mrf.mxu0
        %v7384 = vadd.f32 %v7335, %v7383
        %v7385 = vpop.f32.mrf.mxu0
        %v7386 = vadd.f32 %v7337, %v7385
        %7387 = vmatmul.bf16.gmra.mxu0 %v4125
        %v7388 = vpop.f32.mrf.mxu0
        %v7389 = vadd.f32 %v7340, %v7388
        %v7390 = vpop.f32.mrf.mxu0
        %v7391 = vadd.f32 %v7342, %v7390
        %7392 = vmatmul.bf16.gmra.mxu0 %v4137
        %v7393 = vpop.f32.mrf.mxu0
        %v7394 = vadd.f32 %v7345, %v7393
        %v7395 = vpop.f32.mrf.mxu0
        %v7396 = vadd.f32 %v7347, %v7395
        %7397 = vdwg.mxu0
        %7398 = vmatpush.bf16.msra.mxu0 %v5594
        %7399 = vmatpush.bf16.msra.mxu0 %v5591
        %7400 = vmatpush.bf16.msra.mxu0 %v5588
        %7401 = vmatpush.bf16.msra.mxu0 %v5585
        %7402 = vmatpush.bf16.msra.mxu0 %v5582
        %7403 = vmatpush.bf16.msra.mxu0 %v5579
        %7404 = vmatpush.bf16.msra.mxu0 %v5576
        %7405 = vmatpush.bf16.msra.mxu0 %v5573
        %7406 = vmatmul.bf16.gmra.mxu0 %v4054
        %v7407 = vpop.f32.mrf.mxu0
        %v7408 = vadd.f32 %v7359, %v7407
        %v7409 = vpop.f32.mrf.mxu0
        %v7410 = vadd.f32 %v7361, %v7409
        %7411 = vmatmul.bf16.gmra.mxu0 %v4066
        %v7412 = vpop.f32.mrf.mxu0
        %v7413 = vadd.f32 %v7364, %v7412
        %v7414 = vpop.f32.mrf.mxu0
        %v7415 = vadd.f32 %v7366, %v7414
        %7416 = vmatmul.bf16.gmra.mxu0 %v4078
        %v7417 = vpop.f32.mrf.mxu0
        %v7418 = vadd.f32 %v7369, %v7417
        %v7419 = vpop.f32.mrf.mxu0
        %v7420 = vadd.f32 %v7371, %v7419
        %7421 = vmatmul.bf16.gmra.mxu0 %v4090
        %v7422 = vpop.f32.mrf.mxu0
        %v7423 = vadd.f32 %v7374, %v7422
        %v7424 = vpop.f32.mrf.mxu0
        %v7425 = vadd.f32 %v7376, %v7424
        %7426 = vmatmul.bf16.gmra.mxu0 %v4102
        %v7427 = vpop.f32.mrf.mxu0
        %v7428 = vadd.f32 %v7379, %v7427
        %v7429 = vpop.f32.mrf.mxu0
        %v7430 = vadd.f32 %v7381, %v7429
        %7431 = vmatmul.bf16.gmra.mxu0 %v4114
        %v7432 = vpop.f32.mrf.mxu0
        %v7433 = vadd.f32 %v7384, %v7432
        %v7434 = vpop.f32.mrf.mxu0
        %v7435 = vadd.f32 %v7386, %v7434
        %7436 = vmatmul.bf16.gmra.mxu0 %v4126
        %v7437 = vpop.f32.mrf.mxu0
        %v7438 = vadd.f32 %v7389, %v7437
        %v7439 = vpop.f32.mrf.mxu0
        %v7440 = vadd.f32 %v7391, %v7439
        %7441 = vmatmul.bf16.gmra.mxu0 %v4138
        %v7442 = vpop.f32.mrf.mxu0
        %v7443 = vadd.f32 %v7394, %v7442
        %v7444 = vpop.f32.mrf.mxu0
        %v7445 = vadd.f32 %v7396, %v7444
        %7446 = vdwg.mxu0
        %7447 = vmatpush.bf16.msra.mxu0 %v5618
        %7448 = vmatpush.bf16.msra.mxu0 %v5615
        %7449 = vmatpush.bf16.msra.mxu0 %v5612
        %7450 = vmatpush.bf16.msra.mxu0 %v5609
        %7451 = vmatpush.bf16.msra.mxu0 %v5606
        %7452 = vmatpush.bf16.msra.mxu0 %v5603
        %7453 = vmatpush.bf16.msra.mxu0 %v5600
        %7454 = vmatpush.bf16.msra.mxu0 %v5597
        %7455 = vmatmul.bf16.gmra.mxu0 %v4055
        %v7456 = vpop.f32.mrf.mxu0
        %v7457 = vadd.f32 %v7408, %v7456
        %v7458 = vpop.f32.mrf.mxu0
        %v7459 = vadd.f32 %v7410, %v7458
        %7460 = vmatmul.bf16.gmra.mxu0 %v4067
        %v7461 = vpop.f32.mrf.mxu0
        %v7462 = vadd.f32 %v7413, %v7461
        %v7463 = vpop.f32.mrf.mxu0
        %v7464 = vadd.f32 %v7415, %v7463
        %7465 = vmatmul.bf16.gmra.mxu0 %v4079
        %v7466 = vpop.f32.mrf.mxu0
        %v7467 = vadd.f32 %v7418, %v7466
        %v7468 = vpop.f32.mrf.mxu0
        %v7469 = vadd.f32 %v7420, %v7468
        %7470 = vmatmul.bf16.gmra.mxu0 %v4091
        %v7471 = vpop.f32.mrf.mxu0
        %v7472 = vadd.f32 %v7423, %v7471
        %v7473 = vpop.f32.mrf.mxu0
        %v7474 = vadd.f32 %v7425, %v7473
        %7475 = vmatmul.bf16.gmra.mxu0 %v4103
        %v7476 = vpop.f32.mrf.mxu0
        %v7477 = vadd.f32 %v7428, %v7476
        %v7478 = vpop.f32.mrf.mxu0
        %v7479 = vadd.f32 %v7430, %v7478
        %7480 = vmatmul.bf16.gmra.mxu0 %v4115
        %v7481 = vpop.f32.mrf.mxu0
        %v7482 = vadd.f32 %v7433, %v7481
        %v7483 = vpop.f32.mrf.mxu0
        %v7484 = vadd.f32 %v7435, %v7483
        %7485 = vmatmul.bf16.gmra.mxu0 %v4127
        %v7486 = vpop.f32.mrf.mxu0
        %v7487 = vadd.f32 %v7438, %v7486
        %v7488 = vpop.f32.mrf.mxu0
        %v7489 = vadd.f32 %v7440, %v7488
        %7490 = vmatmul.bf16.gmra.mxu0 %v4139
        %v7491 = vpop.f32.mrf.mxu0
        %v7492 = vadd.f32 %v7443, %v7491
        %v7493 = vpop.f32.mrf.mxu0
        %v7494 = vadd.f32 %v7445, %v7493
        %7495 = vdwg.mxu0
        %7496 = vmatpush.bf16.msra.mxu0 %v5642
        %7497 = vmatpush.bf16.msra.mxu0 %v5639
        %7498 = vmatpush.bf16.msra.mxu0 %v5636
        %7499 = vmatpush.bf16.msra.mxu0 %v5633
        %7500 = vmatpush.bf16.msra.mxu0 %v5630
        %7501 = vmatpush.bf16.msra.mxu0 %v5627
        %7502 = vmatpush.bf16.msra.mxu0 %v5624
        %7503 = vmatpush.bf16.msra.mxu0 %v5621
        %7504 = vmatmul.bf16.gmra.mxu0 %v4056
        %v7505 = vpop.f32.mrf.mxu0
        %v7506 = vadd.f32 %v7457, %v7505
        %v7507 = vpop.f32.mrf.mxu0
        %v7508 = vadd.f32 %v7459, %v7507
        %7509 = vmatmul.bf16.gmra.mxu0 %v4068
        %v7510 = vpop.f32.mrf.mxu0
        %v7511 = vadd.f32 %v7462, %v7510
        %v7512 = vpop.f32.mrf.mxu0
        %v7513 = vadd.f32 %v7464, %v7512
        %7514 = vmatmul.bf16.gmra.mxu0 %v4080
        %v7515 = vpop.f32.mrf.mxu0
        %v7516 = vadd.f32 %v7467, %v7515
        %v7517 = vpop.f32.mrf.mxu0
        %v7518 = vadd.f32 %v7469, %v7517
        %7519 = vmatmul.bf16.gmra.mxu0 %v4092
        %v7520 = vpop.f32.mrf.mxu0
        %v7521 = vadd.f32 %v7472, %v7520
        %v7522 = vpop.f32.mrf.mxu0
        %v7523 = vadd.f32 %v7474, %v7522
        %7524 = vmatmul.bf16.gmra.mxu0 %v4104
        %v7525 = vpop.f32.mrf.mxu0
        %v7526 = vadd.f32 %v7477, %v7525
        %v7527 = vpop.f32.mrf.mxu0
        %v7528 = vadd.f32 %v7479, %v7527
        %7529 = vmatmul.bf16.gmra.mxu0 %v4116
        %v7530 = vpop.f32.mrf.mxu0
        %v7531 = vadd.f32 %v7482, %v7530
        %v7532 = vpop.f32.mrf.mxu0
        %v7533 = vadd.f32 %v7484, %v7532
        %7534 = vmatmul.bf16.gmra.mxu0 %v4128
        %v7535 = vpop.f32.mrf.mxu0
        %v7536 = vadd.f32 %v7487, %v7535
        %v7537 = vpop.f32.mrf.mxu0
        %v7538 = vadd.f32 %v7489, %v7537
        %7539 = vmatmul.bf16.gmra.mxu0 %v4140
        %v7540 = vpop.f32.mrf.mxu0
        %v7541 = vadd.f32 %v7492, %v7540
        %v7542 = vpop.f32.mrf.mxu0
        %v7543 = vadd.f32 %v7494, %v7542
        %7544 = vdwg.mxu0
        %7545 = vmatpush.bf16.msra.mxu0 %v5666
        %7546 = vmatpush.bf16.msra.mxu0 %v5663
        %7547 = vmatpush.bf16.msra.mxu0 %v5660
        %7548 = vmatpush.bf16.msra.mxu0 %v5657
        %7549 = vmatpush.bf16.msra.mxu0 %v5654
        %7550 = vmatpush.bf16.msra.mxu0 %v5651
        %7551 = vmatpush.bf16.msra.mxu0 %v5648
        %7552 = vmatpush.bf16.msra.mxu0 %v5645
        %7553 = vmatmul.bf16.gmra.mxu0 %v4057
        %v7554 = vpop.f32.mrf.mxu0
        %v7555 = vadd.f32 %v7506, %v7554
        %v7556 = vpop.f32.mrf.mxu0
        %v7557 = vadd.f32 %v7508, %v7556
        %7558 = vmatmul.bf16.gmra.mxu0 %v4069
        %v7559 = vpop.f32.mrf.mxu0
        %v7560 = vadd.f32 %v7511, %v7559
        %v7561 = vpop.f32.mrf.mxu0
        %v7562 = vadd.f32 %v7513, %v7561
        %7563 = vmatmul.bf16.gmra.mxu0 %v4081
        %v7564 = vpop.f32.mrf.mxu0
        %v7565 = vadd.f32 %v7516, %v7564
        %v7566 = vpop.f32.mrf.mxu0
        %v7567 = vadd.f32 %v7518, %v7566
        %7568 = vmatmul.bf16.gmra.mxu0 %v4093
        %v7569 = vpop.f32.mrf.mxu0
        %v7570 = vadd.f32 %v7521, %v7569
        %v7571 = vpop.f32.mrf.mxu0
        %v7572 = vadd.f32 %v7523, %v7571
        %7573 = vmatmul.bf16.gmra.mxu0 %v4105
        %v7574 = vpop.f32.mrf.mxu0
        %v7575 = vadd.f32 %v7526, %v7574
        %v7576 = vpop.f32.mrf.mxu0
        %v7577 = vadd.f32 %v7528, %v7576
        %7578 = vmatmul.bf16.gmra.mxu0 %v4117
        %v7579 = vpop.f32.mrf.mxu0
        %v7580 = vadd.f32 %v7531, %v7579
        %v7581 = vpop.f32.mrf.mxu0
        %v7582 = vadd.f32 %v7533, %v7581
        %7583 = vmatmul.bf16.gmra.mxu0 %v4129
        %v7584 = vpop.f32.mrf.mxu0
        %v7585 = vadd.f32 %v7536, %v7584
        %v7586 = vpop.f32.mrf.mxu0
        %v7587 = vadd.f32 %v7538, %v7586
        %7588 = vmatmul.bf16.gmra.mxu0 %v4141
        %v7589 = vpop.f32.mrf.mxu0
        %v7590 = vadd.f32 %v7541, %v7589
        %v7591 = vpop.f32.mrf.mxu0
        %v7592 = vadd.f32 %v7543, %v7591
        %7593 = vdwg.mxu0
        %7594 = vmatpush.bf16.msra.mxu0 %v5690
        %7595 = vmatpush.bf16.msra.mxu0 %v5687
        %7596 = vmatpush.bf16.msra.mxu0 %v5684
        %7597 = vmatpush.bf16.msra.mxu0 %v5681
        %7598 = vmatpush.bf16.msra.mxu0 %v5678
        %7599 = vmatpush.bf16.msra.mxu0 %v5675
        %7600 = vmatpush.bf16.msra.mxu0 %v5672
        %7601 = vmatpush.bf16.msra.mxu0 %v5669
        %7602 = vmatmul.bf16.gmra.mxu0 %v4058
        %v7603 = vpop.f32.mrf.mxu0
        %v7604 = vadd.f32 %v7555, %v7603
        %v7605 = vpop.f32.mrf.mxu0
        %v7606 = vadd.f32 %v7557, %v7605
        %7607 = vmatmul.bf16.gmra.mxu0 %v4070
        %v7608 = vpop.f32.mrf.mxu0
        %v7609 = vadd.f32 %v7560, %v7608
        %v7610 = vpop.f32.mrf.mxu0
        %v7611 = vadd.f32 %v7562, %v7610
        %7612 = vmatmul.bf16.gmra.mxu0 %v4082
        %v7613 = vpop.f32.mrf.mxu0
        %v7614 = vadd.f32 %v7565, %v7613
        %v7615 = vpop.f32.mrf.mxu0
        %v7616 = vadd.f32 %v7567, %v7615
        %7617 = vmatmul.bf16.gmra.mxu0 %v4094
        %v7618 = vpop.f32.mrf.mxu0
        %v7619 = vadd.f32 %v7570, %v7618
        %v7620 = vpop.f32.mrf.mxu0
        %v7621 = vadd.f32 %v7572, %v7620
        %7622 = vmatmul.bf16.gmra.mxu0 %v4106
        %v7623 = vpop.f32.mrf.mxu0
        %v7624 = vadd.f32 %v7575, %v7623
        %v7625 = vpop.f32.mrf.mxu0
        %v7626 = vadd.f32 %v7577, %v7625
        %7627 = vmatmul.bf16.gmra.mxu0 %v4118
        %v7628 = vpop.f32.mrf.mxu0
        %v7629 = vadd.f32 %v7580, %v7628
        %v7630 = vpop.f32.mrf.mxu0
        %v7631 = vadd.f32 %v7582, %v7630
        %7632 = vmatmul.bf16.gmra.mxu0 %v4130
        %v7633 = vpop.f32.mrf.mxu0
        %v7634 = vadd.f32 %v7585, %v7633
        %v7635 = vpop.f32.mrf.mxu0
        %v7636 = vadd.f32 %v7587, %v7635
        %7637 = vmatmul.bf16.gmra.mxu0 %v4142
        %v7638 = vpop.f32.mrf.mxu0
        %v7639 = vadd.f32 %v7590, %v7638
        %v7640 = vpop.f32.mrf.mxu0
        %v7641 = vadd.f32 %v7592, %v7640
        %7642 = vdwg.mxu0
        %7643 = vmatpush.bf16.msra.mxu0 %v5714
        %7644 = vmatpush.bf16.msra.mxu0 %v5711
        %7645 = vmatpush.bf16.msra.mxu0 %v5708
        %7646 = vmatpush.bf16.msra.mxu0 %v5705
        %7647 = vmatpush.bf16.msra.mxu0 %v5702
        %7648 = vmatpush.bf16.msra.mxu0 %v5699
        %7649 = vmatpush.bf16.msra.mxu0 %v5696
        %7650 = vmatpush.bf16.msra.mxu0 %v5693
        %7651 = vmatmul.bf16.gmra.mxu0 %v4059
        %v7652 = vpop.f32.mrf.mxu0
        %v7653 = vadd.f32 %v7604, %v7652
        %v7654 = vpop.f32.mrf.mxu0
        %v7655 = vadd.f32 %v7606, %v7654
        %7656 = vmatmul.bf16.gmra.mxu0 %v4071
        %v7657 = vpop.f32.mrf.mxu0
        %v7658 = vadd.f32 %v7609, %v7657
        %v7659 = vpop.f32.mrf.mxu0
        %v7660 = vadd.f32 %v7611, %v7659
        %7661 = vmatmul.bf16.gmra.mxu0 %v4083
        %v7662 = vpop.f32.mrf.mxu0
        %v7663 = vadd.f32 %v7614, %v7662
        %v7664 = vpop.f32.mrf.mxu0
        %v7665 = vadd.f32 %v7616, %v7664
        %7666 = vmatmul.bf16.gmra.mxu0 %v4095
        %v7667 = vpop.f32.mrf.mxu0
        %v7668 = vadd.f32 %v7619, %v7667
        %v7669 = vpop.f32.mrf.mxu0
        %v7670 = vadd.f32 %v7621, %v7669
        %7671 = vmatmul.bf16.gmra.mxu0 %v4107
        %v7672 = vpop.f32.mrf.mxu0
        %v7673 = vadd.f32 %v7624, %v7672
        %v7674 = vpop.f32.mrf.mxu0
        %v7675 = vadd.f32 %v7626, %v7674
        %7676 = vmatmul.bf16.gmra.mxu0 %v4119
        %v7677 = vpop.f32.mrf.mxu0
        %v7678 = vadd.f32 %v7629, %v7677
        %v7679 = vpop.f32.mrf.mxu0
        %v7680 = vadd.f32 %v7631, %v7679
        %7681 = vmatmul.bf16.gmra.mxu0 %v4131
        %v7682 = vpop.f32.mrf.mxu0
        %v7683 = vadd.f32 %v7634, %v7682
        %v7684 = vpop.f32.mrf.mxu0
        %v7685 = vadd.f32 %v7636, %v7684
        %7686 = vmatmul.bf16.gmra.mxu0 %v4143
        %v7687 = vpop.f32.mrf.mxu0
        %v7688 = vadd.f32 %v7639, %v7687
        %v7689 = vpop.f32.mrf.mxu0
        %v7690 = vadd.f32 %v7641, %v7689
        %7691 = vdwg.mxu0
        %7692 = vmatpush.bf16.msra.mxu0 %v5738
        %7693 = vmatpush.bf16.msra.mxu0 %v5735
        %7694 = vmatpush.bf16.msra.mxu0 %v5732
        %7695 = vmatpush.bf16.msra.mxu0 %v5729
        %7696 = vmatpush.bf16.msra.mxu0 %v5726
        %7697 = vmatpush.bf16.msra.mxu0 %v5723
        %7698 = vmatpush.bf16.msra.mxu0 %v5720
        %7699 = vmatpush.bf16.msra.mxu0 %v5717
        %7700 = vmatmul.bf16.gmra.mxu0 %v4060
        %v7701 = vpop.f32.mrf.mxu0
        %v7702 = vadd.f32 %v7653, %v7701
        %v7703 = vpop.f32.mrf.mxu0
        %v7704 = vadd.f32 %v7655, %v7703
        %7705 = vmatmul.bf16.gmra.mxu0 %v4072
        %v7706 = vpop.f32.mrf.mxu0
        %v7707 = vadd.f32 %v7658, %v7706
        %v7708 = vpop.f32.mrf.mxu0
        %v7709 = vadd.f32 %v7660, %v7708
        %7710 = vmatmul.bf16.gmra.mxu0 %v4084
        %v7711 = vpop.f32.mrf.mxu0
        %v7712 = vadd.f32 %v7663, %v7711
        %v7713 = vpop.f32.mrf.mxu0
        %v7714 = vadd.f32 %v7665, %v7713
        %7715 = vmatmul.bf16.gmra.mxu0 %v4096
        %v7716 = vpop.f32.mrf.mxu0
        %v7717 = vadd.f32 %v7668, %v7716
        %v7718 = vpop.f32.mrf.mxu0
        %v7719 = vadd.f32 %v7670, %v7718
        %7720 = vmatmul.bf16.gmra.mxu0 %v4108
        %v7721 = vpop.f32.mrf.mxu0
        %v7722 = vadd.f32 %v7673, %v7721
        %v7723 = vpop.f32.mrf.mxu0
        %v7724 = vadd.f32 %v7675, %v7723
        %7725 = vmatmul.bf16.gmra.mxu0 %v4120
        %v7726 = vpop.f32.mrf.mxu0
        %v7727 = vadd.f32 %v7678, %v7726
        %v7728 = vpop.f32.mrf.mxu0
        %v7729 = vadd.f32 %v7680, %v7728
        %7730 = vmatmul.bf16.gmra.mxu0 %v4132
        %v7731 = vpop.f32.mrf.mxu0
        %v7732 = vadd.f32 %v7683, %v7731
        %v7733 = vpop.f32.mrf.mxu0
        %v7734 = vadd.f32 %v7685, %v7733
        %7735 = vmatmul.bf16.gmra.mxu0 %v4144
        %v7736 = vpop.f32.mrf.mxu0
        %v7737 = vadd.f32 %v7688, %v7736
        %v7738 = vpop.f32.mrf.mxu0
        %v7739 = vadd.f32 %v7690, %v7738
        %7740 = vdwg.mxu0
        %7741 = vmatpush.bf16.msra.mxu0 %v5762
        %7742 = vmatpush.bf16.msra.mxu0 %v5759
        %7743 = vmatpush.bf16.msra.mxu0 %v5756
        %7744 = vmatpush.bf16.msra.mxu0 %v5753
        %7745 = vmatpush.bf16.msra.mxu0 %v5750
        %7746 = vmatpush.bf16.msra.mxu0 %v5747
        %7747 = vmatpush.bf16.msra.mxu0 %v5744
        %7748 = vmatpush.bf16.msra.mxu0 %v5741
        %7749 = vmatmul.bf16.gmra.mxu0 %v4061
        %v7750 = vpop.f32.mrf.mxu0
        %v7751 = vadd.f32 %v7702, %v7750
        %v7752 = vpop.f32.mrf.mxu0
        %v7753 = vadd.f32 %v7704, %v7752
        %7754 = vmatmul.bf16.gmra.mxu0 %v4073
        %v7755 = vpop.f32.mrf.mxu0
        %v7756 = vadd.f32 %v7707, %v7755
        %v7757 = vpop.f32.mrf.mxu0
        %v7758 = vadd.f32 %v7709, %v7757
        %7759 = vmatmul.bf16.gmra.mxu0 %v4085
        %v7760 = vpop.f32.mrf.mxu0
        %v7761 = vadd.f32 %v7712, %v7760
        %v7762 = vpop.f32.mrf.mxu0
        %v7763 = vadd.f32 %v7714, %v7762
        %7764 = vmatmul.bf16.gmra.mxu0 %v4097
        %v7765 = vpop.f32.mrf.mxu0
        %v7766 = vadd.f32 %v7717, %v7765
        %v7767 = vpop.f32.mrf.mxu0
        %v7768 = vadd.f32 %v7719, %v7767
        %7769 = vmatmul.bf16.gmra.mxu0 %v4109
        %v7770 = vpop.f32.mrf.mxu0
        %v7771 = vadd.f32 %v7722, %v7770
        %v7772 = vpop.f32.mrf.mxu0
        %v7773 = vadd.f32 %v7724, %v7772
        %7774 = vmatmul.bf16.gmra.mxu0 %v4121
        %v7775 = vpop.f32.mrf.mxu0
        %v7776 = vadd.f32 %v7727, %v7775
        %v7777 = vpop.f32.mrf.mxu0
        %v7778 = vadd.f32 %v7729, %v7777
        %7779 = vmatmul.bf16.gmra.mxu0 %v4133
        %v7780 = vpop.f32.mrf.mxu0
        %v7781 = vadd.f32 %v7732, %v7780
        %v7782 = vpop.f32.mrf.mxu0
        %v7783 = vadd.f32 %v7734, %v7782
        %7784 = vmatmul.bf16.gmra.mxu0 %v4145
        %v7785 = vpop.f32.mrf.mxu0
        %v7786 = vadd.f32 %v7737, %v7785
        %v7787 = vpop.f32.mrf.mxu0
        %v7788 = vadd.f32 %v7739, %v7787
        %7789 = vdwg.mxu0
        %7790 = vmatpush.bf16.msra.mxu0 %v5786
        %7791 = vmatpush.bf16.msra.mxu0 %v5783
        %7792 = vmatpush.bf16.msra.mxu0 %v5780
        %7793 = vmatpush.bf16.msra.mxu0 %v5777
        %7794 = vmatpush.bf16.msra.mxu0 %v5774
        %7795 = vmatpush.bf16.msra.mxu0 %v5771
        %7796 = vmatpush.bf16.msra.mxu0 %v5768
        %7797 = vmatpush.bf16.msra.mxu0 %v5765
        %7798 = vmatmul.bf16.gmra.mxu0 %v4062
        %v7799 = vpop.f32.mrf.mxu0
        %v7800 = vadd.f32 %v7751, %v7799
        %v7801 = vpop.f32.mrf.mxu0
        %v7802 = vadd.f32 %v7753, %v7801
        %7803 = vmatmul.bf16.gmra.mxu0 %v4074
        %v7804 = vpop.f32.mrf.mxu0
        %v7805 = vadd.f32 %v7756, %v7804
        %v7806 = vpop.f32.mrf.mxu0
        %v7807 = vadd.f32 %v7758, %v7806
        %7808 = vmatmul.bf16.gmra.mxu0 %v4086
        %v7809 = vpop.f32.mrf.mxu0
        %v7810 = vadd.f32 %v7761, %v7809
        %v7811 = vpop.f32.mrf.mxu0
        %v7812 = vadd.f32 %v7763, %v7811
        %7813 = vmatmul.bf16.gmra.mxu0 %v4098
        %v7814 = vpop.f32.mrf.mxu0
        %v7815 = vadd.f32 %v7766, %v7814
        %v7816 = vpop.f32.mrf.mxu0
        %v7817 = vadd.f32 %v7768, %v7816
        %7818 = vmatmul.bf16.gmra.mxu0 %v4110
        %v7819 = vpop.f32.mrf.mxu0
        %v7820 = vadd.f32 %v7771, %v7819
        %v7821 = vpop.f32.mrf.mxu0
        %v7822 = vadd.f32 %v7773, %v7821
        %7823 = vmatmul.bf16.gmra.mxu0 %v4122
        %v7824 = vpop.f32.mrf.mxu0
        %v7825 = vadd.f32 %v7776, %v7824
        %v7826 = vpop.f32.mrf.mxu0
        %v7827 = vadd.f32 %v7778, %v7826
        %7828 = vmatmul.bf16.gmra.mxu0 %v4134
        %v7829 = vpop.f32.mrf.mxu0
        %v7830 = vadd.f32 %v7781, %v7829
        %v7831 = vpop.f32.mrf.mxu0
        %v7832 = vadd.f32 %v7783, %v7831
        %7833 = vmatmul.bf16.gmra.mxu0 %v4146
        %v7834 = vpop.f32.mrf.mxu0
        %v7835 = vadd.f32 %v7786, %v7834
        %v7836 = vpop.f32.mrf.mxu0
        %v7837 = vadd.f32 %v7788, %v7836
        %7838 = vdwg.mxu0
        %7839 = vst [vmem:[%s265] sm:$0xff] %v6624
        %7840 = vst [vmem:[%s265 + $0x8] sm:$0xff] %v7212
        %7841 = vst [vmem:[%s265 + $0x10] sm:$0xff] %v7800
        %7842 = vst [vmem:[%s265 + $0x18] sm:$0xff] %v6626
        %7843 = vst [vmem:[%s265 + $0x20] sm:$0xff] %v7214
        %7844 = vst [vmem:[%s265 + $0x28] sm:$0xff] %v7802
        %7845 = vst [vmem:[%s265 + $0x30] sm:$0xff] %v6629
        %7846 = vst [vmem:[%s265 + $0x38] sm:$0xff] %v7217
        %7847 = vst [vmem:[%s265 + $0x40] sm:$0xff] %v7805
        %7848 = vst [vmem:[%s265 + $0x48] sm:$0xff] %v6631
        %7849 = vst [vmem:[%s265 + $0x50] sm:$0xff] %v7219
        %7850 = vst [vmem:[%s265 + $0x58] sm:$0xff] %v7807
        %7851 = vst [vmem:[%s265 + $0x60] sm:$0xff] %v6634
        %7852 = vst [vmem:[%s265 + $0x68] sm:$0xff] %v7222
        %7853 = vst [vmem:[%s265 + $0x70] sm:$0xff] %v7810
        %7854 = vst [vmem:[%s265 + $0x78] sm:$0xff] %v6636
        %7855 = vst [vmem:[%s265 + $0x80] sm:$0xff] %v7224
        %7856 = vst [vmem:[%s265 + $0x88] sm:$0xff] %v7812
        %7857 = vst [vmem:[%s265 + $0x90] sm:$0xff] %v6639
        %7858 = vst [vmem:[%s265 + $0x98] sm:$0xff] %v7227
        %7859 = vst [vmem:[%s265 + $0xa0] sm:$0xff] %v7815
        %7860 = vst [vmem:[%s265 + $0xa8] sm:$0xff] %v6641
        %7861 = vst [vmem:[%s265 + $0xb0] sm:$0xff] %v7229
        %7862 = vst [vmem:[%s265 + $0xb8] sm:$0xff] %v7817
        %7863 = vst [vmem:[%s265 + $0xc0] sm:$0xff] %v6644
        %7864 = vst [vmem:[%s265 + $0xc8] sm:$0xff] %v7232
        %7865 = vst [vmem:[%s265 + $0xd0] sm:$0xff] %v7820
        %7866 = vst [vmem:[%s265 + $0xd8] sm:$0xff] %v6646
        %7867 = vst [vmem:[%s265 + $0xe0] sm:$0xff] %v7234
        %7868 = vst [vmem:[%s265 + $0xe8] sm:$0xff] %v7822
        %7869 = vst [vmem:[%s265 + $0xf0] sm:$0xff] %v6649
        %7870 = vst [vmem:[%s265 + $0xf8] sm:$0xff] %v7237
        %7871 = vst [vmem:[%s265 + $0x100] sm:$0xff] %v7825
        %7872 = vst [vmem:[%s265 + $0x108] sm:$0xff] %v6651
        %7873 = vst [vmem:[%s265 + $0x110] sm:$0xff] %v7239
        %7874 = vst [vmem:[%s265 + $0x118] sm:$0xff] %v7827
        %7875 = vst [vmem:[%s265 + $0x120] sm:$0xff] %v6654
        %7876 = vst [vmem:[%s265 + $0x128] sm:$0xff] %v7242
        %7877 = vst [vmem:[%s265 + $0x130] sm:$0xff] %v7830
        %7878 = vst [vmem:[%s265 + $0x138] sm:$0xff] %v6656
        %7879 = vst [vmem:[%s265 + $0x140] sm:$0xff] %v7244
        %7880 = vst [vmem:[%s265 + $0x148] sm:$0xff] %v7832
        %7881 = vst [vmem:[%s265 + $0x150] sm:$0xff] %v6659
        %7882 = vst [vmem:[%s265 + $0x158] sm:$0xff] %v7247
        %7883 = vst [vmem:[%s265 + $0x160] sm:$0xff] %v7835
        %7884 = vst [vmem:[%s265 + $0x168] sm:$0xff] %v6661
        %7885 = vst [vmem:[%s265 + $0x170] sm:$0xff] %v7249
        %7886 = vst [vmem:[%s265 + $0x178] sm:$0xff] %v7837
        %s7887 = smul.u32 16, %s18
        %p7888 = scmp.lt.s32.totalorder %s7887, 31
        %s7889 = scalar_select %p7888, %s7887, 31
        %s7890 = smul.addr %s7889, 3
        %s7891 = smul.addr %s7890, 8
        %s7892 = scalar_lea.vmem %s5, %s7891
        // Predicated region
        $region49: #{feed_forward.1} parent=39 // pred_check
          %p7893 = pneg %p146
        $region50: #{feed_forward.1} parent=39 // pred_check_branch
          %7895 = sbr.rel (%p7893) target = $region52
        $region51: #{feed_forward.1} parent=39 // pred_region
          %s7896 = smul.u32 16, %s18
        $region52: #{feed_forward.1} parent=39 // pred_fallthru
          _
      $region40: #{feed_forward.1} parent=5 // pred_fallthru
        _
      %p7897 = scmp.le.s32.totalorder 2, %s13
      // Predicated region
      $region53: #{feed_forward.1} parent=5 // pred_check
        %p7898 = pneg %p7897
      $region54: #{feed_forward.1} parent=5 // pred_check_branch
        %7900 = sbr.rel (%p7898) target = $region56
      $region55: #{feed_forward.1} parent=5 // pred_region
        %s7901 = ssub.s32 %s13, 2
        // Predicated region
        $region57: #{feed_forward.1} parent=55 // pred_check
          %p7902 = pneg %p152
        $region58: #{feed_forward.1} parent=55 // pred_check_branch
          %7904 = sbr.rel (%p7902) target = $region60
        $region59: #{feed_forward.1} parent=55 // pred_region
          %s7905 = smul.u32 16, %s19
          %p7906 = scmp.lt.s32.totalorder %s7905, 31
          %s7907 = scalar_select %p7906, %s7905, 31
          %s7908 = smul.addr %s7907, 3
          %s7909 = smul.addr %s7908, 8
          %s7910 = scalar_lea.vmem %s5, %s7909
        $region60: #{feed_forward.1} parent=55 // pred_fallthru
          _
      $region56: #{feed_forward.1} parent=5 // pred_fallthru
        _
    $region6: #{feed_forward.1} parent=1 // loop_footer
      %s17 = sadd.s32 1, %s13
    $region7: #{feed_forward.1} parent=1 // loop_footer_branch
      %12 = sbr.rel target = $region3
    $region8: #{feed_forward.1} parent=1 // loop_exit
      _
    %7911 = vsyncpa [#allocation3], 1
    %s7912 = scalar_lea.sflag [#allocation3], 1
    %7913 = vsyncpa %s7912, 1
    %7914 = vsyncpa [#allocation5], 1

</llo_original>
